<compile_context>
chip_gen: v7x
topology: tpu7x:2x2x1
jax: 0.10.0
libtpu: 0.0.40
codegen_flags: <defaults>
</compile_context>

<pallas_src>
import functools

import jax
import jax.numpy as jnp
import numpy as np
from jax.experimental import pallas as pl
from jax.experimental.pallas import tpu as pltpu

# Safe on v5e/v6e (128 MiB physical) and v7x (64 MiB physical); well above the
# small double-buffered tiles used below.
_VMEM_LIMIT_BYTES = 48 * 1024 * 1024


def _pick_tile(m, tile):
    # Either the whole M dimension (block == full dim -> no (8,128) constraint)
    # or a multiple-of-8 tile; `tile` defaults below are multiples of 8.
    return m if m <= tile else tile


# ---------------------------------------------------------------------------
# im2col glue (plain JAX): pad + 9 (or 4) shifted slices concatenated on C.
# ---------------------------------------------------------------------------
def _im2col(x, kh, kw, pad):
    B, H, W, C = x.shape
    xp = jnp.pad(x, ((0, 0), (pad, pad), (pad, pad), (0, 0)))
    Ho = H + 2 * pad - kh + 1
    Wo = W + 2 * pad - kw + 1
    cols = [xp[:, i:i + Ho, j:j + Wo, :] for i in range(kh) for j in range(kw)]
    return jnp.concatenate(cols, axis=-1)          # (B, Ho, Wo, kh*kw*C)


# ---------------------------------------------------------------------------
# Kernel 1: conv-as-matmul + bias + ReLU + fused 2x2 average pool.
# Patches arrive position-major: x_ref[p] holds the patches of pool-window
# position p for every pooled output row of this tile.
# ---------------------------------------------------------------------------
def _conv_pool_kernel(x_ref, w_ref, b_ref, o_ref):
    w = w_ref[...]                                  # (K, Cout) bf16
    b = b_ref[...]                                  # (1, Cout) f32
    acc = jnp.zeros(o_ref.shape, jnp.float32)       # (tm, Cout)
    for p in range(4):                              # 4 positions of the 2x2 window
        y = jnp.dot(x_ref[p], w, preferred_element_type=jnp.float32)
        acc = acc + jnp.maximum(y + b, 0.0)         # ReLU before the pool
    o_ref[...] = (acc * 0.25).astype(o_ref.dtype)   # average pool epilogue


def conv_relu_pool(x, wm, b, *, kh, kw, pad, tile_m=256):
    """Conv2d(stride 1, pad) + ReLU + AvgPool2d(2,2) on an NHWC tensor."""
    B = x.shape[0]
    K, Cout = wm.shape
    patches = _im2col(x, kh, kw, pad)               # (B, Hc, Wc, K)
    Hc, Wc = patches.shape[1], patches.shape[2]
    Hp, Wp = Hc // 2, Wc // 2
    M = B * Hp * Wp
    # Group the four pool-window positions position-major: (4, M, K), bf16.
    pg = (patches.reshape(B, Hp, 2, Wp, 2, K)
                 .transpose(2, 4, 0, 1, 3, 5)
                 .reshape(4, M, K)
                 .astype(jnp.bfloat16))
    tm = _pick_tile(M, tile_m)
    grid = (pl.cdiv(M, tm),)
    cost = pl.CostEstimate(
        flops=2 * 4 * M * K * Cout, transcendentals=0,
        bytes_accessed=4 * M * K * 2 + K * Cout * 2 + Cout * 4 + M * Cout * 2)
    y = pl.pallas_call(
        _conv_pool_kernel,
        out_shape=jax.ShapeDtypeStruct((M, Cout), jnp.bfloat16),
        grid=grid,
        in_specs=[pl.BlockSpec((4, tm, K), lambda i: (0, i, 0)),
                  pl.BlockSpec((K, Cout), lambda i: (0, 0)),
                  pl.BlockSpec((1, Cout), lambda i: (0, 0))],
        out_specs=pl.BlockSpec((tm, Cout), lambda i: (i, 0)),
        compiler_params=pltpu.CompilerParams(
            dimension_semantics=("parallel",),
            vmem_limit_bytes=_VMEM_LIMIT_BYTES),
        cost_estimate=cost,
    )(pg, wm, b)
    return y.reshape(B, Hp, Wp, Cout)


# ---------------------------------------------------------------------------
# Kernel 2: tiled matmul + bias (+ optional ReLU), grid over rows.
# ---------------------------------------------------------------------------
def _mm_bias_kernel(x_ref, w_ref, b_ref, o_ref, *, relu):
    acc = jnp.dot(x_ref[...], w_ref[...], preferred_element_type=jnp.float32)
    acc = acc + b_ref[...]
    if relu:
        acc = jnp.maximum(acc, 0.0)
    o_ref[...] = acc.astype(o_ref.dtype)


def matmul_bias(x, w, b, *, relu, out_dtype, tile_m=512):
    M, K = x.shape
    N = w.shape[1]
    tm = _pick_tile(M, tile_m)
    grid = (pl.cdiv(M, tm),)
    cost = pl.CostEstimate(
        flops=2 * M * K * N, transcendentals=0,
        bytes_accessed=M * K * x.dtype.itemsize + K * N * 2 + N * 4
        + M * N * jnp.dtype(out_dtype).itemsize)
    return pl.pallas_call(
        functools.partial(_mm_bias_kernel, relu=relu),
        out_shape=jax.ShapeDtypeStruct((M, N), out_dtype),
        grid=grid,
        in_specs=[pl.BlockSpec((tm, K), lambda i: (i, 0)),
                  pl.BlockSpec((K, N), lambda i: (0, 0)),
                  pl.BlockSpec((1, N), lambda i: (0, 0))],
        out_specs=pl.BlockSpec((tm, N), lambda i: (i, 0)),
        compiler_params=pltpu.CompilerParams(
            dimension_semantics=("parallel",),
            vmem_limit_bytes=_VMEM_LIMIT_BYTES),
        cost_estimate=cost,
    )(x, w, b)


def conv_relu(x, wm, b, *, kh, kw, pad, tile_m=512):
    """Conv2d(stride 1, pad) + ReLU (no pool) on an NHWC tensor."""
    B = x.shape[0]
    K, Cout = wm.shape
    patches = _im2col(x, kh, kw, pad)               # (B, Ho, Wo, K)
    Ho, Wo = patches.shape[1], patches.shape[2]
    M = B * Ho * Wo
    y = matmul_bias(patches.reshape(M, K).astype(jnp.bfloat16), wm, b,
                    relu=True, out_dtype=jnp.bfloat16, tile_m=tile_m)
    return y.reshape(B, Ho, Wo, Cout)


# ---------------------------------------------------------------------------
# Kernel 3: fused FC head  (x @ W1 + b1 -> ReLU -> @ W2 + b2), grid over batch.
# ---------------------------------------------------------------------------
def _fc_head_kernel(x_ref, w1_ref, b1_ref, w2_ref, b2_ref, o_ref):
    h = jnp.dot(x_ref[...], w1_ref[...], preferred_element_type=jnp.float32)
    h = jnp.maximum(h + b1_ref[...], 0.0)
    y = jnp.dot(h.astype(jnp.bfloat16), w2_ref[...],
                preferred_element_type=jnp.float32)
    o_ref[...] = (y + b2_ref[...]).astype(o_ref.dtype)


def fc_head(x, w1, b1, w2, b2, *, tile_m=256):
    M, K = x.shape
    Hd = w1.shape[1]
    N = w2.shape[1]
    tm = _pick_tile(M, tile_m)
    grid = (pl.cdiv(M, tm),)
    cost = pl.CostEstimate(
        flops=2 * M * K * Hd + 2 * M * Hd * N, transcendentals=0,
        bytes_accessed=M * K * 2 + K * Hd * 2 + Hd * N * 2 + M * N * 4)
    return pl.pallas_call(
        _fc_head_kernel,
        out_shape=jax.ShapeDtypeStruct((M, N), jnp.float32),
        grid=grid,
        in_specs=[pl.BlockSpec((tm, K), lambda i: (i, 0)),
                  pl.BlockSpec((K, Hd), lambda i: (0, 0)),
                  pl.BlockSpec((1, Hd), lambda i: (0, 0)),
                  pl.BlockSpec((Hd, N), lambda i: (0, 0)),
                  pl.BlockSpec((1, N), lambda i: (0, 0))],
        out_specs=pl.BlockSpec((tm, N), lambda i: (i, 0)),
        compiler_params=pltpu.CompilerParams(
            dimension_semantics=("parallel",),
            vmem_limit_bytes=_VMEM_LIMIT_BYTES),
        cost_estimate=cost,
    )(x, w1, b1, w2, b2)


# ---------------------------------------------------------------------------
# Parameters (PyTorch layout) and one-time weight preparation.
# ---------------------------------------------------------------------------
def init_params(key):
    def uniform(k, shape, fan_in):
        bound = 1.0 / np.sqrt(fan_in)
        return jax.random.uniform(k, shape, jnp.float32, -bound, bound)

    ks = jax.random.split(key, 10)
    return {
        "w1": uniform(ks[0], (16, 1, 3, 3), 1 * 3 * 3),
        "b1": uniform(ks[1], (16,), 1 * 3 * 3),
        "w2": uniform(ks[2], (32, 16, 3, 3), 16 * 3 * 3),
        "b2": uniform(ks[3], (32,), 16 * 3 * 3),
        "w3": uniform(ks[4], (64, 32, 2, 2), 32 * 2 * 2),
        "b3": uniform(ks[5], (64,), 32 * 2 * 2),
        "wf1": uniform(ks[6], (128, 64 * 8 * 8), 64 * 8 * 8),
        "bf1": uniform(ks[7], (128,), 64 * 8 * 8),
        "wf2": uniform(ks[8], (10, 128), 128),
        "bf2": uniform(ks[9], (10,), 128),
    }


def prepare_params(p):
    """One-time layout/dtype prep (done OUTSIDE the jitted forward):
    conv OIHW -> (kh*kw*Cin, Cout) bf16; fc1 columns permuted from NCHW to
    NHWC flatten order and pre-transposed; biases reshaped to (1, N) f32."""
    bf16 = jnp.bfloat16

    def conv_w(w):
        cout, cin, kh, kw = w.shape
        return jnp.transpose(w, (2, 3, 1, 0)).reshape(kh * kw * cin, cout).astype(bf16)

    # wf1[n, c*64 + h*8 + w]  ->  wf1p[h*512 + w*64 + c, n]
    wf1 = p["wf1"].reshape(128, 64, 8, 8).transpose(0, 2, 3, 1).reshape(128, 64 * 8 * 8)
    return {
        "w1": conv_w(p["w1"]), "b1": p["b1"].reshape(1, -1),
        "w2": conv_w(p["w2"]), "b2": p["b2"].reshape(1, -1),
        "w3": conv_w(p["w3"]), "b3": p["b3"].reshape(1, -1),
        "wf1": jnp.transpose(wf1).astype(bf16),          # (4096, 128)
        "bf1": p["bf1"].reshape(1, -1),
        "wf2": jnp.transpose(p["wf2"]).astype(bf16),     # (128, 10)
        "bf2": p["bf2"].reshape(1, -1),
    }


# ---------------------------------------------------------------------------
# Forward pass (Pallas) and a pure-JAX reference that mirrors the same
# bf16-input / f32-accumulate mixed precision.
# ---------------------------------------------------------------------------
def cnn_forward(prep, x):
    x = x.reshape(-1, 1, 28, 28).astype(jnp.float32)            # like PyTorch reshape
    x = jnp.transpose(x, (0, 2, 3, 1))                           # NCHW -> NHWC
    x = conv_relu_pool(x, prep["w1"], prep["b1"], kh=3, kw=3, pad=1)   # (B,14,14,16)
    x = conv_relu_pool(x, prep["w2"], prep["b2"], kh=3, kw=3, pad=1)   # (B,7,7,32)
    x = conv_relu(x, prep["w3"], prep["b3"], kh=2, kw=2, pad=1)        # (B,8,8,64)
    B = x.shape[0]
    flat = x.reshape(B, 8 * 8 * 64)          # NHWC flatten; wf1 pre-permuted to match
    return fc_head(flat, prep["wf1"], prep["bf1"], prep["wf2"], prep["bf2"])


def cnn_reference(params, x):
    """XLA reference with the same numerics as the kernels (bf16 matmul/conv
    inputs, f32 accumulation, bf16 intermediate activations)."""
    bf16, f32 = jnp.bfloat16, jnp.float32
    x = x.reshape(-1, 1, 28, 28).astype(f32)
    x = jnp.transpose(x, (0, 2, 3, 1))                           # NHWC

    def conv(x, w, b, pad):
        wm = jnp.transpose(w, (2, 3, 1, 0)).astype(bf16)         # HWIO
        y = jax.lax.conv_general_dilated(
            x.astype(bf16), wm, (1, 1), ((pad, pad), (pad, pad)),
            dimension_numbers=("NHWC", "HWIO", "NHWC"),
            preferred_element_type=f32)
        return jax.nn.relu(y + b[None, None, None, :])

    def pool(x):
        B, H, W, C = x.shape
        return x.reshape(B, H // 2, 2, W // 2, 2, C).mean(axis=(2, 4))

    x = pool(conv(x, params["w1"], params["b1"], 1)).astype(bf16)
    x = pool(conv(x, params["w2"], params["b2"], 1)).astype(bf16)
    x = conv(x, params["w3"], params["b3"], 1).astype(bf16)
    B = x.shape[0]
    flat = jnp.transpose(x, (0, 3, 1, 2)).reshape(B, -1)         # PyTorch NCHW flatten
    h = jax.nn.relu(jnp.dot(flat, params["wf1"].T.astype(bf16),
                            preferred_element_type=f32) + params["bf1"])
    return jnp.dot(h.astype(bf16), params["wf2"].T.astype(bf16),
                   preferred_element_type=f32) + params["bf2"]


if __name__ == "__main__":
    key = jax.random.PRNGKey(0)
    kx, kp = jax.random.split(key)
    x = jax.random.normal(kx, (2, 1, 28, 28), jnp.float32)
    params = init_params(kp)
    prep = prepare_params(params)                 # one-time, outside the jit

    out = jax.block_until_ready(jax.jit(cnn_forward)(prep, x))
    ref = jax.block_until_ready(cnn_reference(params, x))

    assert out.shape == (2, 10), out.shape
    # Tolerance covers reduction-order differences between im2col-matmul and
    # lax.conv plus bf16 intermediate rounding (both paths use bf16 inputs
    # with f32 accumulation).
    np.testing.assert_allclose(np.asarray(out, dtype=np.float32),
                               np.asarray(ref, dtype=np.float32),
                               rtol=2e-2, atol=2e-2)
    print("KERNEL_OK")
</pallas_src>

<mosaic_0001>
module attributes {stable_mosaic.version = 11 : i64} {
  func.func @_conv_pool_kernel(%arg0: i32, %arg1: memref<4x256x9xbf16, #tpu.memory_space<vmem>>, %arg2: memref<9x16xbf16, #tpu.memory_space<vmem>>, %arg3: memref<1x16xf32, #tpu.memory_space<vmem>>, %arg4: memref<256x16xbf16, #tpu.memory_space<vmem>>) attributes {dimension_semantics = [#tpu.dimension_semantics<parallel>], iteration_bounds = array<i64: 2>, scalar_prefetch = 0 : i64, scratch_operands = 0 : i64, tpu.core_type = #tpu.core_type<tc>, window_params = [{transform_indices = @transform_0, window_bounds = array<i64: 4, 256, 9>}, {pipeline_mode = #tpu.pipeline_mode<synchronous>, transform_indices = @transform_1, window_bounds = array<i64: 9, 16>}, {pipeline_mode = #tpu.pipeline_mode<synchronous>, transform_indices = @transform_2, window_bounds = array<i64: 1, 16>}, {transform_indices = @transform_3, window_bounds = array<i64: 256, 16>}]} {
    %c0 = arith.constant 0 : index
    %c0_0 = arith.constant 0 : index
    %0 = vector.load %arg2[%c0, %c0_0] : memref<9x16xbf16, #tpu.memory_space<vmem>>, vector<9x16xbf16>
    %c0_1 = arith.constant 0 : index
    %c0_2 = arith.constant 0 : index
    %1 = vector.load %arg3[%c0_1, %c0_2] : memref<1x16xf32, #tpu.memory_space<vmem>>, vector<1x16xf32>
    %cst = arith.constant 0.000000e+00 : f32
    %2 = vector.broadcast %cst : f32 to vector<256x16xf32>
    %c0_3 = arith.constant 0 : index
    %c0_4 = arith.constant 0 : index
    %c0_5 = arith.constant 0 : index
    %3 = vector.load %arg1[%c0_3, %c0_4, %c0_5] : memref<4x256x9xbf16, #tpu.memory_space<vmem>>, vector<1x256x9xbf16>
    %4 = vector.shape_cast %3 : vector<1x256x9xbf16> to vector<256x9xbf16>
    %cst_6 = arith.constant dense<0.000000e+00> : vector<256x16xf32>
    %5 = tpu.matmul %4, %0, %cst_6 {dimension_numbers = #tpu.dot_dimension_numbers<[1], [0], [0], [1], [0, 0, 1, 1], [], []>} : vector<256x9xbf16>, vector<9x16xbf16>, vector<256x16xf32> -> vector<256x16xf32>
    %6 = vector.broadcast %1 : vector<1x16xf32> to vector<256x16xf32>
    %7 = arith.addf %5, %6 : vector<256x16xf32>
    %cst_7 = arith.constant 0.000000e+00 : f32
    %8 = vector.broadcast %cst_7 : f32 to vector<256x16xf32>
    %9 = arith.maximumf %7, %8 : vector<256x16xf32>
    %10 = arith.addf %2, %9 : vector<256x16xf32>
    %c1 = arith.constant 1 : index
    %c0_8 = arith.constant 0 : index
    %c0_9 = arith.constant 0 : index
    %11 = vector.load %arg1[%c1, %c0_8, %c0_9] : memref<4x256x9xbf16, #tpu.memory_space<vmem>>, vector<1x256x9xbf16>
    %12 = vector.shape_cast %11 : vector<1x256x9xbf16> to vector<256x9xbf16>
    %cst_10 = arith.constant dense<0.000000e+00> : vector<256x16xf32>
    %13 = tpu.matmul %12, %0, %cst_10 {dimension_numbers = #tpu.dot_dimension_numbers<[1], [0], [0], [1], [0, 0, 1, 1], [], []>} : vector<256x9xbf16>, vector<9x16xbf16>, vector<256x16xf32> -> vector<256x16xf32>
    %14 = vector.broadcast %1 : vector<1x16xf32> to vector<256x16xf32>
    %15 = arith.addf %13, %14 : vector<256x16xf32>
    %cst_11 = arith.constant 0.000000e+00 : f32
    %16 = vector.broadcast %cst_11 : f32 to vector<256x16xf32>
    %17 = arith.maximumf %15, %16 : vector<256x16xf32>
    %18 = arith.addf %10, %17 : vector<256x16xf32>
    %c2 = arith.constant 2 : index
    %c0_12 = arith.constant 0 : index
    %c0_13 = arith.constant 0 : index
    %19 = vector.load %arg1[%c2, %c0_12, %c0_13] : memref<4x256x9xbf16, #tpu.memory_space<vmem>>, vector<1x256x9xbf16>
    %20 = vector.shape_cast %19 : vector<1x256x9xbf16> to vector<256x9xbf16>
    %cst_14 = arith.constant dense<0.000000e+00> : vector<256x16xf32>
    %21 = tpu.matmul %20, %0, %cst_14 {dimension_numbers = #tpu.dot_dimension_numbers<[1], [0], [0], [1], [0, 0, 1, 1], [], []>} : vector<256x9xbf16>, vector<9x16xbf16>, vector<256x16xf32> -> vector<256x16xf32>
    %22 = vector.broadcast %1 : vector<1x16xf32> to vector<256x16xf32>
    %23 = arith.addf %21, %22 : vector<256x16xf32>
    %cst_15 = arith.constant 0.000000e+00 : f32
    %24 = vector.broadcast %cst_15 : f32 to vector<256x16xf32>
    %25 = arith.maximumf %23, %24 : vector<256x16xf32>
    %26 = arith.addf %18, %25 : vector<256x16xf32>
    %c3 = arith.constant 3 : index
    %c0_16 = arith.constant 0 : index
    %c0_17 = arith.constant 0 : index
    %27 = vector.load %arg1[%c3, %c0_16, %c0_17] : memref<4x256x9xbf16, #tpu.memory_space<vmem>>, vector<1x256x9xbf16>
    %28 = vector.shape_cast %27 : vector<1x256x9xbf16> to vector<256x9xbf16>
    %cst_18 = arith.constant dense<0.000000e+00> : vector<256x16xf32>
    %29 = tpu.matmul %28, %0, %cst_18 {dimension_numbers = #tpu.dot_dimension_numbers<[1], [0], [0], [1], [0, 0, 1, 1], [], []>} : vector<256x9xbf16>, vector<9x16xbf16>, vector<256x16xf32> -> vector<256x16xf32>
    %30 = vector.broadcast %1 : vector<1x16xf32> to vector<256x16xf32>
    %31 = arith.addf %29, %30 : vector<256x16xf32>
    %cst_19 = arith.constant 0.000000e+00 : f32
    %32 = vector.broadcast %cst_19 : f32 to vector<256x16xf32>
    %33 = arith.maximumf %31, %32 : vector<256x16xf32>
    %34 = arith.addf %26, %33 : vector<256x16xf32>
    %cst_20 = arith.constant 2.500000e-01 : f32
    %35 = vector.broadcast %cst_20 : f32 to vector<256x16xf32>
    %36 = arith.mulf %34, %35 : vector<256x16xf32>
    %37 = arith.truncf %36 : vector<256x16xf32> to vector<256x16xbf16>
    %c0_21 = arith.constant 0 : index
    %c0_22 = arith.constant 0 : index
    %38 = vector.load %arg4[%c0_21, %c0_22] : memref<256x16xbf16, #tpu.memory_space<vmem>>, vector<256x16xbf16>
    tpu.vector_store %arg4[%c0_21, %c0_22], %37 {strides = array<i32>} : memref<256x16xbf16, #tpu.memory_space<vmem>>, vector<256x16xbf16>,
    return
  }
  func.func @transform_0(%arg0: i32) -> (i32, i32, i32) {
    %c0_i32 = arith.constant 0 : i32
    %c0_i32_0 = arith.constant 0 : i32
    %c0_i32_1 = arith.constant 0 : i32
    return %c0_i32, %arg0, %c0_i32_0 : i32, i32, i32
  }
  func.func @transform_1(%arg0: i32) -> (i32, i32) {
    %c0_i32 = arith.constant 0 : i32
    %c0_i32_0 = arith.constant 0 : i32
    %c0_i32_1 = arith.constant 0 : i32
    return %c0_i32, %c0_i32_0 : i32, i32
  }
  func.func @transform_2(%arg0: i32) -> (i32, i32) {
    %c0_i32 = arith.constant 0 : i32
    %c0_i32_0 = arith.constant 0 : i32
    %c0_i32_1 = arith.constant 0 : i32
    return %c0_i32, %c0_i32_0 : i32, i32
  }
  func.func @transform_3(%arg0: i32) -> (i32, i32) {
    %c0_i32 = arith.constant 0 : i32
    %c0_i32_0 = arith.constant 0 : i32
    return %arg0, %c0_i32 : i32, i32
  }
}

module attributes {stable_mosaic.version = 11 : i64} {
  func.func @_conv_pool_kernel(%arg0: i32, %arg1: memref<4x98x144xbf16, #tpu.memory_space<vmem>>, %arg2: memref<144x32xbf16, #tpu.memory_space<vmem>>, %arg3: memref<1x32xf32, #tpu.memory_space<vmem>>, %arg4: memref<98x32xbf16, #tpu.memory_space<vmem>>) attributes {dimension_semantics = [#tpu.dimension_semantics<parallel>], iteration_bounds = array<i64: 1>, scalar_prefetch = 0 : i64, scratch_operands = 0 : i64, tpu.core_type = #tpu.core_type<tc>, window_params = [{transform_indices = @transform_0, window_bounds = array<i64: 4, 98, 144>}, {pipeline_mode = #tpu.pipeline_mode<synchronous>, transform_indices = @transform_1, window_bounds = array<i64: 144, 32>}, {pipeline_mode = #tpu.pipeline_mode<synchronous>, transform_indices = @transform_2, window_bounds = array<i64: 1, 32>}, {transform_indices = @transform_3, window_bounds = array<i64: 98, 32>}]} {
    %c0 = arith.constant 0 : index
    %c0_0 = arith.constant 0 : index
    %0 = vector.load %arg2[%c0, %c0_0] : memref<144x32xbf16, #tpu.memory_space<vmem>>, vector<144x32xbf16>
    %c0_1 = arith.constant 0 : index
    %c0_2 = arith.constant 0 : index
    %1 = vector.load %arg3[%c0_1, %c0_2] : memref<1x32xf32, #tpu.memory_space<vmem>>, vector<1x32xf32>
    %cst = arith.constant 0.000000e+00 : f32
    %2 = vector.broadcast %cst : f32 to vector<98x32xf32>
    %c0_3 = arith.constant 0 : index
    %c0_4 = arith.constant 0 : index
    %c0_5 = arith.constant 0 : index
    %3 = vector.load %arg1[%c0_3, %c0_4, %c0_5] : memref<4x98x144xbf16, #tpu.memory_space<vmem>>, vector<1x98x144xbf16>
    %4 = vector.shape_cast %3 : vector<1x98x144xbf16> to vector<98x144xbf16>
    %cst_6 = arith.constant dense<0.000000e+00> : vector<98x32xf32>
    %5 = tpu.matmul %4, %0, %cst_6 {dimension_numbers = #tpu.dot_dimension_numbers<[1], [0], [0], [1], [0, 0, 1, 1], [], []>} : vector<98x144xbf16>, vector<144x32xbf16>, vector<98x32xf32> -> vector<98x32xf32>
    %6 = vector.broadcast %1 : vector<1x32xf32> to vector<98x32xf32>
    %7 = arith.addf %5, %6 : vector<98x32xf32>
    %cst_7 = arith.constant 0.000000e+00 : f32
    %8 = vector.broadcast %cst_7 : f32 to vector<98x32xf32>
    %9 = arith.maximumf %7, %8 : vector<98x32xf32>
    %10 = arith.addf %2, %9 : vector<98x32xf32>
    %c1 = arith.constant 1 : index
    %c0_8 = arith.constant 0 : index
    %c0_9 = arith.constant 0 : index
    %11 = vector.load %arg1[%c1, %c0_8, %c0_9] : memref<4x98x144xbf16, #tpu.memory_space<vmem>>, vector<1x98x144xbf16>
    %12 = vector.shape_cast %11 : vector<1x98x144xbf16> to vector<98x144xbf16>
    %cst_10 = arith.constant dense<0.000000e+00> : vector<98x32xf32>
    %13 = tpu.matmul %12, %0, %cst_10 {dimension_numbers = #tpu.dot_dimension_numbers<[1], [0], [0], [1], [0, 0, 1, 1], [], []>} : vector<98x144xbf16>, vector<144x32xbf16>, vector<98x32xf32> -> vector<98x32xf32>
    %14 = vector.broadcast %1 : vector<1x32xf32> to vector<98x32xf32>
    %15 = arith.addf %13, %14 : vector<98x32xf32>
    %cst_11 = arith.constant 0.000000e+00 : f32
    %16 = vector.broadcast %cst_11 : f32 to vector<98x32xf32>
    %17 = arith.maximumf %15, %16 : vector<98x32xf32>
    %18 = arith.addf %10, %17 : vector<98x32xf32>
    %c2 = arith.constant 2 : index
    %c0_12 = arith.constant 0 : index
    %c0_13 = arith.constant 0 : index
    %19 = vector.load %arg1[%c2, %c0_12, %c0_13] : memref<4x98x144xbf16, #tpu.memory_space<vmem>>, vector<1x98x144xbf16>
    %20 = vector.shape_cast %19 : vector<1x98x144xbf16> to vector<98x144xbf16>
    %cst_14 = arith.constant dense<0.000000e+00> : vector<98x32xf32>
    %21 = tpu.matmul %20, %0, %cst_14 {dimension_numbers = #tpu.dot_dimension_numbers<[1], [0], [0], [1], [0, 0, 1, 1], [], []>} : vector<98x144xbf16>, vector<144x32xbf16>, vector<98x32xf32> -> vector<98x32xf32>
    %22 = vector.broadcast %1 : vector<1x32xf32> to vector<98x32xf32>
    %23 = arith.addf %21, %22 : vector<98x32xf32>
    %cst_15 = arith.constant 0.000000e+00 : f32
    %24 = vector.broadcast %cst_15 : f32 to vector<98x32xf32>
    %25 = arith.maximumf %23, %24 : vector<98x32xf32>
    %26 = arith.addf %18, %25 : vector<98x32xf32>
    %c3 = arith.constant 3 : index
    %c0_16 = arith.constant 0 : index
    %c0_17 = arith.constant 0 : index
    %27 = vector.load %arg1[%c3, %c0_16, %c0_17] : memref<4x98x144xbf16, #tpu.memory_space<vmem>>, vector<1x98x144xbf16>
    %28 = vector.shape_cast %27 : vector<1x98x144xbf16> to vector<98x144xbf16>
    %cst_18 = arith.constant dense<0.000000e+00> : vector<98x32xf32>
    %29 = tpu.matmul %28, %0, %cst_18 {dimension_numbers = #tpu.dot_dimension_numbers<[1], [0], [0], [1], [0, 0, 1, 1], [], []>} : vector<98x144xbf16>, vector<144x32xbf16>, vector<98x32xf32> -> vector<98x32xf32>
    %30 = vector.broadcast %1 : vector<1x32xf32> to vector<98x32xf32>
    %31 = arith.addf %29, %30 : vector<98x32xf32>
    %cst_19 = arith.constant 0.000000e+00 : f32
    %32 = vector.broadcast %cst_19 : f32 to vector<98x32xf32>
    %33 = arith.maximumf %31, %32 : vector<98x32xf32>
    %34 = arith.addf %26, %33 : vector<98x32xf32>
    %cst_20 = arith.constant 2.500000e-01 : f32
    %35 = vector.broadcast %cst_20 : f32 to vector<98x32xf32>
    %36 = arith.mulf %34, %35 : vector<98x32xf32>
    %37 = arith.truncf %36 : vector<98x32xf32> to vector<98x32xbf16>
    %c0_21 = arith.constant 0 : index
    %c0_22 = arith.constant 0 : index
    %38 = vector.load %arg4[%c0_21, %c0_22] : memref<98x32xbf16, #tpu.memory_space<vmem>>, vector<98x32xbf16>
    tpu.vector_store %arg4[%c0_21, %c0_22], %37 {strides = array<i32>} : memref<98x32xbf16, #tpu.memory_space<vmem>>, vector<98x32xbf16>,
    return
  }
  func.func @transform_0(%arg0: i32) -> (i32, i32, i32) {
    %c0_i32 = arith.constant 0 : i32
    %c0_i32_0 = arith.constant 0 : i32
    %c0_i32_1 = arith.constant 0 : i32
    return %c0_i32, %arg0, %c0_i32_0 : i32, i32, i32
  }
  func.func @transform_1(%arg0: i32) -> (i32, i32) {
    %c0_i32 = arith.constant 0 : i32
    %c0_i32_0 = arith.constant 0 : i32
    %c0_i32_1 = arith.constant 0 : i32
    return %c0_i32, %c0_i32_0 : i32, i32
  }
  func.func @transform_2(%arg0: i32) -> (i32, i32) {
    %c0_i32 = arith.constant 0 : i32
    %c0_i32_0 = arith.constant 0 : i32
    %c0_i32_1 = arith.constant 0 : i32
    return %c0_i32, %c0_i32_0 : i32, i32
  }
  func.func @transform_3(%arg0: i32) -> (i32, i32) {
    %c0_i32 = arith.constant 0 : i32
    %c0_i32_0 = arith.constant 0 : i32
    return %arg0, %c0_i32 : i32, i32
  }
}

module attributes {stable_mosaic.version = 11 : i64} {
  func.func @_mm_bias_kernel(%arg0: i32, %arg1: memref<128x128xbf16, #tpu.memory_space<vmem>>, %arg2: memref<128x64xbf16, #tpu.memory_space<vmem>>, %arg3: memref<1x64xf32, #tpu.memory_space<vmem>>, %arg4: memref<128x64xbf16, #tpu.memory_space<vmem>>) attributes {dimension_semantics = [#tpu.dimension_semantics<parallel>], iteration_bounds = array<i64: 1>, scalar_prefetch = 0 : i64, scratch_operands = 0 : i64, tpu.core_type = #tpu.core_type<tc>, window_params = [{transform_indices = @transform_0, window_bounds = array<i64: 128, 128>}, {pipeline_mode = #tpu.pipeline_mode<synchronous>, transform_indices = @transform_1, window_bounds = array<i64: 128, 64>}, {pipeline_mode = #tpu.pipeline_mode<synchronous>, transform_indices = @transform_2, window_bounds = array<i64: 1, 64>}, {transform_indices = @transform_3, window_bounds = array<i64: 128, 64>}]} {
    %c0 = arith.constant 0 : index
    %c0_0 = arith.constant 0 : index
    %0 = vector.load %arg1[%c0, %c0_0] : memref<128x128xbf16, #tpu.memory_space<vmem>>, vector<128x128xbf16>
    %c0_1 = arith.constant 0 : index
    %c0_2 = arith.constant 0 : index
    %1 = vector.load %arg2[%c0_1, %c0_2] : memref<128x64xbf16, #tpu.memory_space<vmem>>, vector<128x64xbf16>
    %cst = arith.constant dense<0.000000e+00> : vector<128x64xf32>
    %2 = tpu.matmul %0, %1, %cst {dimension_numbers = #tpu.dot_dimension_numbers<[1], [0], [0], [1], [0, 0, 1, 1], [], []>} : vector<128x128xbf16>, vector<128x64xbf16>, vector<128x64xf32> -> vector<128x64xf32>
    %c0_3 = arith.constant 0 : index
    %c0_4 = arith.constant 0 : index
    %3 = vector.load %arg3[%c0_3, %c0_4] : memref<1x64xf32, #tpu.memory_space<vmem>>, vector<1x64xf32>
    %4 = vector.broadcast %3 : vector<1x64xf32> to vector<128x64xf32>
    %5 = arith.addf %2, %4 : vector<128x64xf32>
    %cst_5 = arith.constant 0.000000e+00 : f32
    %6 = vector.broadcast %cst_5 : f32 to vector<128x64xf32>
    %7 = arith.maximumf %5, %6 : vector<128x64xf32>
    %8 = arith.truncf %7 : vector<128x64xf32> to vector<128x64xbf16>
    %c0_6 = arith.constant 0 : index
    %c0_7 = arith.constant 0 : index
    %9 = vector.load %arg4[%c0_6, %c0_7] : memref<128x64xbf16, #tpu.memory_space<vmem>>, vector<128x64xbf16>
    tpu.vector_store %arg4[%c0_6, %c0_7], %8 {strides = array<i32>} : memref<128x64xbf16, #tpu.memory_space<vmem>>, vector<128x64xbf16>,
    return
  }
  func.func @transform_0(%arg0: i32) -> (i32, i32) {
    %c0_i32 = arith.constant 0 : i32
    %c0_i32_0 = arith.constant 0 : i32
    return %arg0, %c0_i32 : i32, i32
  }
  func.func @transform_1(%arg0: i32) -> (i32, i32) {
    %c0_i32 = arith.constant 0 : i32
    %c0_i32_0 = arith.constant 0 : i32
    %c0_i32_1 = arith.constant 0 : i32
    return %c0_i32, %c0_i32_0 : i32, i32
  }
  func.func @transform_2(%arg0: i32) -> (i32, i32) {
    %c0_i32 = arith.constant 0 : i32
    %c0_i32_0 = arith.constant 0 : i32
    %c0_i32_1 = arith.constant 0 : i32
    return %c0_i32, %c0_i32_0 : i32, i32
  }
  func.func @transform_3(%arg0: i32) -> (i32, i32) {
    %c0_i32 = arith.constant 0 : i32
    %c0_i32_0 = arith.constant 0 : i32
    return %arg0, %c0_i32 : i32, i32
  }
}

module attributes {stable_mosaic.version = 11 : i64} {
  func.func @_fc_head_kernel(%arg0: i32, %arg1: memref<2x4096xbf16, #tpu.memory_space<vmem>>, %arg2: memref<4096x128xbf16, #tpu.memory_space<vmem>>, %arg3: memref<1x128xf32, #tpu.memory_space<vmem>>, %arg4: memref<128x10xbf16, #tpu.memory_space<vmem>>, %arg5: memref<1x10xf32, #tpu.memory_space<vmem>>, %arg6: memref<2x10xf32, #tpu.memory_space<vmem>>) attributes {dimension_semantics = [#tpu.dimension_semantics<parallel>], iteration_bounds = array<i64: 1>, scalar_prefetch = 0 : i64, scratch_operands = 0 : i64, tpu.core_type = #tpu.core_type<tc>, window_params = [{transform_indices = @transform_0, window_bounds = array<i64: 2, 4096>}, {pipeline_mode = #tpu.pipeline_mode<synchronous>, transform_indices = @transform_1, window_bounds = array<i64: 4096, 128>}, {pipeline_mode = #tpu.pipeline_mode<synchronous>, transform_indices = @transform_2, window_bounds = array<i64: 1, 128>}, {pipeline_mode = #tpu.pipeline_mode<synchronous>, transform_indices = @transform_3, window_bounds = array<i64: 128, 10>}, {pipeline_mode = #tpu.pipeline_mode<synchronous>, transform_indices = @transform_4, window_bounds = array<i64: 1, 10>}, {transform_indices = @transform_5, window_bounds = array<i64: 2, 10>}]} {
    %c0 = arith.constant 0 : index
    %c0_0 = arith.constant 0 : index
    %0 = vector.load %arg1[%c0, %c0_0] : memref<2x4096xbf16, #tpu.memory_space<vmem>>, vector<2x4096xbf16>
    %c0_1 = arith.constant 0 : index
    %c0_2 = arith.constant 0 : index
    %1 = vector.load %arg2[%c0_1, %c0_2] : memref<4096x128xbf16, #tpu.memory_space<vmem>>, vector<4096x128xbf16>
    %cst = arith.constant dense<0.000000e+00> : vector<2x128xf32>
    %2 = tpu.matmul %0, %1, %cst {dimension_numbers = #tpu.dot_dimension_numbers<[1], [0], [0], [1], [0, 0, 1, 1], [], []>} : vector<2x4096xbf16>, vector<4096x128xbf16>, vector<2x128xf32> -> vector<2x128xf32>
    %c0_3 = arith.constant 0 : index
    %c0_4 = arith.constant 0 : index
    %3 = vector.load %arg3[%c0_3, %c0_4] : memref<1x128xf32, #tpu.memory_space<vmem>>, vector<1x128xf32>
    %4 = vector.broadcast %3 : vector<1x128xf32> to vector<2x128xf32>
    %5 = arith.addf %2, %4 : vector<2x128xf32>
    %cst_5 = arith.constant 0.000000e+00 : f32
    %6 = vector.broadcast %cst_5 : f32 to vector<2x128xf32>
    %7 = arith.maximumf %5, %6 : vector<2x128xf32>
    %8 = arith.truncf %7 : vector<2x128xf32> to vector<2x128xbf16>
    %c0_6 = arith.constant 0 : index
    %c0_7 = arith.constant 0 : index
    %9 = vector.load %arg4[%c0_6, %c0_7] : memref<128x10xbf16, #tpu.memory_space<vmem>>, vector<128x10xbf16>
    %cst_8 = arith.constant dense<0.000000e+00> : vector<2x10xf32>
    %10 = tpu.matmul %8, %9, %cst_8 {dimension_numbers = #tpu.dot_dimension_numbers<[1], [0], [0], [1], [0, 0, 1, 1], [], []>} : vector<2x128xbf16>, vector<128x10xbf16>, vector<2x10xf32> -> vector<2x10xf32>
    %c0_9 = arith.constant 0 : index
    %c0_10 = arith.constant 0 : index
    %11 = vector.load %arg5[%c0_9, %c0_10] : memref<1x10xf32, #tpu.memory_space<vmem>>, vector<1x10xf32>
    %12 = vector.broadcast %11 : vector<1x10xf32> to vector<2x10xf32>
    %13 = arith.addf %10, %12 : vector<2x10xf32>
    %c0_11 = arith.constant 0 : index
    %c0_12 = arith.constant 0 : index
    %14 = vector.load %arg6[%c0_11, %c0_12] : memref<2x10xf32, #tpu.memory_space<vmem>>, vector<2x10xf32>
    tpu.vector_store %arg6[%c0_11, %c0_12], %13 {strides = array<i32>} : memref<2x10xf32, #tpu.memory_space<vmem>>, vector<2x10xf32>,
    return
  }
  func.func @transform_0(%arg0: i32) -> (i32, i32) {
    %c0_i32 = arith.constant 0 : i32
    %c0_i32_0 = arith.constant 0 : i32
    return %arg0, %c0_i32 : i32, i32
  }
  func.func @transform_1(%arg0: i32) -> (i32, i32) {
    %c0_i32 = arith.constant 0 : i32
    %c0_i32_0 = arith.constant 0 : i32
    %c0_i32_1 = arith.constant 0 : i32
    return %c0_i32, %c0_i32_0 : i32, i32
  }
  func.func @transform_2(%arg0: i32) -> (i32, i32) {
    %c0_i32 = arith.constant 0 : i32
    %c0_i32_0 = arith.constant 0 : i32
    %c0_i32_1 = arith.constant 0 : i32
    return %c0_i32, %c0_i32_0 : i32, i32
  }
  func.func @transform_3(%arg0: i32) -> (i32, i32) {
    %c0_i32 = arith.constant 0 : i32
    %c0_i32_0 = arith.constant 0 : i32
    %c0_i32_1 = arith.constant 0 : i32
    return %c0_i32, %c0_i32_0 : i32, i32
  }
  func.func @transform_4(%arg0: i32) -> (i32, i32) {
    %c0_i32 = arith.constant 0 : i32
    %c0_i32_0 = arith.constant 0 : i32
    %c0_i32_1 = arith.constant 0 : i32
    return %c0_i32, %c0_i32_0 : i32, i32
  }
  func.func @transform_5(%arg0: i32) -> (i32, i32) {
    %c0_i32 = arith.constant 0 : i32
    %c0_i32_0 = arith.constant 0 : i32
    return %arg0, %c0_i32 : i32, i32
  }
}

</mosaic_0001>

<llo_original>
// kernel: cnn_forward.4
$region0: #{cnn_forward.4}
  #allocation0 [shape = 'u32[]', space=smem, size = 0x4, offset = 0x4, fixed_abs, tag = 'smem constant byte address 0x4 - core index']
  #allocation1 [shape = 'u32[144,128]{1,0:T(1,128)}', space=vmem, size = 0x12000, scoped, tag = 'internal scratch']
  %s0 = inlined_call_operand.vmem [shape: bf16[4,392,9], index: 0, kind: input, shape index: {}]
  %s1 = inlined_call_operand.vmem [shape: bf16[9,16], index: 1, kind: input, shape index: {}]
  %s2 = inlined_call_operand.vmem [shape: f32[1,16], index: 2, kind: input, shape index: {}]
  %s3 = inlined_call_operand.vmem [shape: bf16[392,16], index: 3, kind: output, shape index: {}]
  %s4 = sld [smem:[#allocation0]]
  $region151: #{cnn_forward.4} parent=0
    _
  %s6 = ssub.s32 1, %s4
  %s7 = scalar_select 0, %s6, %s4
  $region1: #{cnn_forward.4} parent=0
    #allocation2 [shape = 'u8[524288]{0}', space=vmem, size = 0x80000, scoped, tag = 'input window, operand 0']
    #allocation3 [shape = 'u8[131072]{0}', space=vmem, size = 0x20000, scoped, tag = 'output window, operand 0']
    loop: start=0, step=1, limit=4
    $region2: #{cnn_forward.4} parent=1 // loop_pre_header
      _
    $region3: #{cnn_forward.4} parent=1 // loop_header
      %s9 = sphi 0, %s13
      %p10 = scmp.ge.s32.totalorder %s9, 4
      %s19 = sphi 0, %s21
      %s22 = sphi 0, %s19
      %s23 = sphi 0, %s22
      %s39 = sphi 0, %s23
      %s43 = sphi 0, %s43
      %s45 = sphi 0, %s43
      %s46 = sphi 0, %s45
      %s60 = sphi 0, %s46
      %s64 = sphi 0, %s64
      %s66 = sphi 0, %s64
      %s67 = sphi 0, %s66
      %s81 = sphi 0, %s67
      %s87 = sphi 0, %s89
      %s90 = sphi 0, %s87
      %s91 = sphi 0, %s90
      %s107 = sphi 0, %s91
    $region4: #{cnn_forward.4} parent=1 // loop_header_branch
      %12 = sbr.rel (%p10) target = $region8
    $region5: #{cnn_forward.4} parent=1 // loop_body
      %s14 = ssub.s32 %s9, 1
      %s15 = ssub.s32 %s9, 2
      %s16 = sadd.s32 %s9, 1
      %s17 = ssub.s32 %s9, %s16
      %p18 = scmp.eq.s32.totalorder %s17, 0
      %s20 = sadd.s32 %s19, 1
      %s21 = scalar_select %p18, %s19, %s20
      %p24 = pneg %p18
      %p25 = scmp.eq.s32.totalorder %s9, 1
      %p26 = por %p24, %p25
      %p27 = scmp.ne.s32.totalorder %s19, %s22
      %p28 = scmp.eq.s32.totalorder %s9, 0
      %p29 = por %p27, %p28
      %p30 = scmp.ne.s32.totalorder %s19, %s22
      %p31 = scmp.eq.s32.totalorder %s14, 1
      %p32 = por %p30, %p31
      %p33 = scmp.ne.s32.totalorder %s22, %s23
      %p34 = scmp.eq.s32.totalorder %s14, 0
      %p35 = por %p33, %p34
      %p36 = scmp.ne.s32.totalorder %s22, %s23
      %p37 = scmp.eq.s32.totalorder %s15, 1
      %p38 = por %p36, %p37
      %p40 = scmp.ne.s32.totalorder %s23, %s39
      %p41 = scmp.eq.s32.totalorder %s15, 0
      %p42 = por %p40, %p41
      %s44 = sadd.s32 %s43, 1
      %p47 = scmp.eq.s32.totalorder %s9, 1
      %p48 = scmp.ne.s32.totalorder %s43, %s45
      %p49 = scmp.eq.s32.totalorder %s9, 0
      %p50 = por %p48, %p49
      %p51 = scmp.ne.s32.totalorder %s43, %s45
      %p52 = scmp.eq.s32.totalorder %s14, 1
      %p53 = por %p51, %p52
      %p54 = scmp.ne.s32.totalorder %s45, %s46
      %p55 = scmp.eq.s32.totalorder %s14, 0
      %p56 = por %p54, %p55
      %p57 = scmp.ne.s32.totalorder %s45, %s46
      %p58 = scmp.eq.s32.totalorder %s15, 1
      %p59 = por %p57, %p58
      %p61 = scmp.ne.s32.totalorder %s46, %s60
      %p62 = scmp.eq.s32.totalorder %s15, 0
      %p63 = por %p61, %p62
      %s65 = sadd.s32 %s64, 1
      %p68 = scmp.eq.s32.totalorder %s9, 1
      %p69 = scmp.ne.s32.totalorder %s64, %s66
      %p70 = scmp.eq.s32.totalorder %s9, 0
      %p71 = por %p69, %p70
      %p72 = scmp.ne.s32.totalorder %s64, %s66
      %p73 = scmp.eq.s32.totalorder %s14, 1
      %p74 = por %p72, %p73
      %p75 = scmp.ne.s32.totalorder %s66, %s67
      %p76 = scmp.eq.s32.totalorder %s14, 0
      %p77 = por %p75, %p76
      %p78 = scmp.ne.s32.totalorder %s66, %s67
      %p79 = scmp.eq.s32.totalorder %s15, 1
      %p80 = por %p78, %p79
      %p82 = scmp.ne.s32.totalorder %s67, %s81
      %p83 = scmp.eq.s32.totalorder %s15, 0
      %p84 = por %p82, %p83
      %s85 = ssub.s32 %s9, %s16
      %p86 = scmp.eq.s32.totalorder %s85, 0
      %s88 = sadd.s32 %s87, 1
      %s89 = scalar_select %p86, %s87, %s88
      %p92 = pneg %p86
      %p93 = scmp.eq.s32.totalorder %s9, 1
      %p94 = por %p92, %p93
      %p95 = scmp.ne.s32.totalorder %s87, %s90
      %p96 = scmp.eq.s32.totalorder %s9, 0
      %p97 = por %p95, %p96
      %p98 = scmp.ne.s32.totalorder %s87, %s90
      %p99 = scmp.eq.s32.totalorder %s14, 1
      %p100 = por %p98, %p99
      %p101 = scmp.ne.s32.totalorder %s90, %s91
      %p102 = scmp.eq.s32.totalorder %s14, 0
      %p103 = por %p101, %p102
      %p104 = scmp.ne.s32.totalorder %s90, %s91
      %p105 = scmp.eq.s32.totalorder %s15, 1
      %p106 = por %p104, %p105
      %p108 = scmp.ne.s32.totalorder %s91, %s107
      %p109 = scmp.eq.s32.totalorder %s15, 0
      %p110 = por %p108, %p109
      %p111 = scmp.le.s32.totalorder 1, %s9
      %p112 = scmp.lt.s32.totalorder %s9, 3
      %p113 = pnand %p111, %p112
      %p114 = pneg %p113
      // Predicated region
      $region9: #{cnn_forward.4} parent=5 // pred_check
        _
      $region10: #{cnn_forward.4} parent=5 // pred_check_branch
        %116 = sbr.rel (%p113) target = $region12
      $region11: #{cnn_forward.4} parent=5 // pred_region
        %s117 = ssub.s32 %s9, 1
        // Predicated region
        $region13: #{cnn_forward.4} parent=11 // pred_check
          %p118 = pneg %p56
        $region14: #{cnn_forward.4} parent=11 // pred_check_branch
          %120 = sbr.rel (%p118) target = $region16
        $region15: #{cnn_forward.4} parent=11 // pred_region
          _
        $region16: #{cnn_forward.4} parent=11 // pred_fallthru
          _
        // Predicated region
        $region17: #{cnn_forward.4} parent=11 // pred_check
          %p121 = pneg %p77
        $region18: #{cnn_forward.4} parent=11 // pred_check_branch
          %123 = sbr.rel (%p121) target = $region20
        $region19: #{cnn_forward.4} parent=11 // pred_region
          _
        $region20: #{cnn_forward.4} parent=11 // pred_fallthru
          _
      $region12: #{cnn_forward.4} parent=5 // pred_fallthru
        _
      %p124 = scmp.lt.s32.totalorder %s9, 2
      // Predicated region
      $region21: #{cnn_forward.4} parent=5 // pred_check
        %p125 = pneg %p124
      $region22: #{cnn_forward.4} parent=5 // pred_check_branch
        %127 = sbr.rel (%p125) target = $region24
      $region23: #{cnn_forward.4} parent=5 // pred_region
        // Predicated region
        $region25: #{cnn_forward.4} parent=23 // pred_check
          %p128 = pneg %p29
        $region26: #{cnn_forward.4} parent=23 // pred_check_branch
          %130 = sbr.rel (%p128) target = $region28
        $region27: #{cnn_forward.4} parent=23 // pred_region
          %s131 = sand.u32 %s19, 1
          %s132 = sand.u32 %s19, 1
          %s133 = smul.addr %s132, 512
          %s134 = scalar_lea.vmem [#allocation2], %s133
          %s135 = smul.u32 32, %s9
          %s136 = ssub.s32 49, %s135
          %p137 = scmp.lt.s32.totalorder %s136, 32
          %s138 = scalar_select %p137, %s136, 32
          %s139 = smul.u32 256, %s138
          %p140 = scmp.ne.s32.totalorder 0, %s139
          %s141 = smul.addr %s135, 4
          %s142 = scalar_lea.vmem %s0, %s141
          // Predicated region
          $region29: #{cnn_forward.4} parent=27 // pred_check
            %p143 = pneg %p140
          $region30: #{cnn_forward.4} parent=27 // pred_check_branch
            %145 = sbr.rel (%p143) target = $region32
          $region31: #{cnn_forward.4} parent=27 // pred_region
            // Predicated region
            $region33: #{cnn_forward.4} parent=31 // pred_check
              _
            $region34: #{cnn_forward.4} parent=31 // pred_check_branch
              %147 = sbr.rel target = $region36
            $region35: #{cnn_forward.4} parent=31 // pred_region
              // Predicated region
              $region55: #{cnn_forward.4} parent=35 // pred_check
                _
              $region56: #{cnn_forward.4} parent=35 // pred_check_branch
                %328 = sbr.rel (0) target = $region58
              $region57: #{cnn_forward.4} parent=35 // pred_region
                %s329 = sshrl.u32 %s138, 5
                // While loop
                $region59: #{cnn_forward.4} parent=57 // loop_pre_header
                  _
                $region60: #{cnn_forward.4} parent=57 // loop_header
                  %s331 = sphi 0, %s333
                  %p332 = scmp.ge.s32.totalorder %s331, %s329
                  %s336 = sphi 0, %s341
                  %s337 = sphi %s142, %s344
                  %s338 = sphi %s134, %s345
                $region61: #{cnn_forward.4} parent=57 // loop_header_branch
                  %335 = sbr.rel (%p332) target = $region65
                $region62: #{cnn_forward.4} parent=57 // loop_body
                  %s339 = sadd.s32 1, %s336
                  %p340 = scmp.ge.s32.totalorder %s339, %s329
                  %s341 = scalar_select %p340, 0, %s339
                  %s342 = smul.u32 %s341, 128
                  %s343 = smul.u32 %s341, 128
                  %s344 = scalar_lea.vmem %s142, %s342
                  %s345 = scalar_lea.vmem %s134, %s343 [#allocation2]
                $region63: #{cnn_forward.4} parent=57 // loop_footer
                  %s333 = sadd.s32 %s331, 1
                $region64: #{cnn_forward.4} parent=57 // loop_footer_branch
                  %330 = sbr.rel target = $region60
                $region65: #{cnn_forward.4} parent=57 // loop_exit
                  _
                %s346 = sshrl.u32 %s138, 5
                %s347 = sand.u32 %s138, 31
                %s348 = smul.u32 %s346, 32
                %s349 = smul.u32 4, %s348
                %s350 = scalar_lea.vmem %s142, %s349
                %s351 = smul.u32 4, %s348
                %s352 = scalar_lea.vmem %s134, %s351 [#allocation2]
                // While loop
                $region66: #{cnn_forward.4} parent=57 // loop_pre_header
                  _
                $region67: #{cnn_forward.4} parent=57 // loop_header
                  %s354 = sphi 0, %s356
                  %p355 = scmp.ge.s32.totalorder %s354, %s347
                  %s359 = sphi 0, %s364
                  %s360 = sphi %s350, %s367
                  %s361 = sphi %s352, %s368
                $region68: #{cnn_forward.4} parent=57 // loop_header_branch
                  %358 = sbr.rel (%p355) target = $region72
                $region69: #{cnn_forward.4} parent=57 // loop_body
                  %s362 = sadd.s32 1, %s359
                  %p363 = scmp.ge.s32.totalorder %s362, %s347
                  %s364 = scalar_select %p363, 0, %s362
                  %s365 = smul.u32 %s364, 4
                  %s366 = smul.u32 %s364, 4
                  %s367 = scalar_lea.vmem %s350, %s365
                  %s368 = scalar_lea.vmem %s352, %s366 [#allocation2]
                $region70: #{cnn_forward.4} parent=57 // loop_footer
                  %s356 = sadd.s32 %s354, 1
                $region71: #{cnn_forward.4} parent=57 // loop_footer_branch
                  %353 = sbr.rel target = $region67
                $region72: #{cnn_forward.4} parent=57 // loop_exit
                  _
                %s370 = sshrl.u32 %s138, 4
                // While loop
                $region73: #{cnn_forward.4} parent=57 // loop_pre_header
                  _
                $region74: #{cnn_forward.4} parent=57 // loop_header
                  %s372 = sphi 0, %s374
                  %p373 = scmp.ge.s32.totalorder %s372, %s370
                  %s377 = sphi 0, %s510
                  %s378 = sphi %s142, %s513
                  %s379 = sphi %s134, %s514
                $region75: #{cnn_forward.4} parent=57 // loop_header_branch
                  %376 = sbr.rel (%p373) target = $region79
                $region76: #{cnn_forward.4} parent=57 // loop_body
                  %v380 = vld [vmem:[%s378] sm:$0xf]
                  %381 = vst [vmem:[%s379] sm:$0xf] %v380
                  %v382 = vld [vmem:[%s378 + $0x4] sm:$0xf]
                  %383 = vst [vmem:[%s379 + $0x4] sm:$0xf] %v382
                  %v384 = vld [vmem:[%s378 + $0x8] sm:$0xf]
                  %385 = vst [vmem:[%s379 + $0x8] sm:$0xf] %v384
                  %v386 = vld [vmem:[%s378 + $0xc] sm:$0xf]
                  %387 = vst [vmem:[%s379 + $0xc] sm:$0xf] %v386
                  %v388 = vld [vmem:[%s378 + $0x10] sm:$0xf]
                  %389 = vst [vmem:[%s379 + $0x10] sm:$0xf] %v388
                  %v390 = vld [vmem:[%s378 + $0x14] sm:$0xf]
                  %391 = vst [vmem:[%s379 + $0x14] sm:$0xf] %v390
                  %v392 = vld [vmem:[%s378 + $0x18] sm:$0xf]
                  %393 = vst [vmem:[%s379 + $0x18] sm:$0xf] %v392
                  %v394 = vld [vmem:[%s378 + $0x1c] sm:$0xf]
                  %395 = vst [vmem:[%s379 + $0x1c] sm:$0xf] %v394
                  %v396 = vld [vmem:[%s378 + $0x20] sm:$0xf]
                  %397 = vst [vmem:[%s379 + $0x20] sm:$0xf] %v396
                  %v398 = vld [vmem:[%s378 + $0x24] sm:$0xf]
                  %399 = vst [vmem:[%s379 + $0x24] sm:$0xf] %v398
                  %v400 = vld [vmem:[%s378 + $0x28] sm:$0xf]
                  %401 = vst [vmem:[%s379 + $0x28] sm:$0xf] %v400
                  %v402 = vld [vmem:[%s378 + $0x2c] sm:$0xf]
                  %403 = vst [vmem:[%s379 + $0x2c] sm:$0xf] %v402
                  %v404 = vld [vmem:[%s378 + $0x30] sm:$0xf]
                  %405 = vst [vmem:[%s379 + $0x30] sm:$0xf] %v404
                  %v406 = vld [vmem:[%s378 + $0x34] sm:$0xf]
                  %407 = vst [vmem:[%s379 + $0x34] sm:$0xf] %v406
                  %v408 = vld [vmem:[%s378 + $0x38] sm:$0xf]
                  %409 = vst [vmem:[%s379 + $0x38] sm:$0xf] %v408
                  %v410 = vld [vmem:[%s378 + $0x3c] sm:$0xf]
                  %411 = vst [vmem:[%s379 + $0x3c] sm:$0xf] %v410
                  %v412 = vld [vmem:[%s378 + $0xc4] sm:$0xf]
                  %413 = vst [vmem:[%s379 + $0x80] sm:$0xf] %v412
                  %v414 = vld [vmem:[%s378 + $0xc8] sm:$0xf]
                  %415 = vst [vmem:[%s379 + $0x84] sm:$0xf] %v414
                  %v416 = vld [vmem:[%s378 + $0xcc] sm:$0xf]
                  %417 = vst [vmem:[%s379 + $0x88] sm:$0xf] %v416
                  %v418 = vld [vmem:[%s378 + $0xd0] sm:$0xf]
                  %419 = vst [vmem:[%s379 + $0x8c] sm:$0xf] %v418
                  %v420 = vld [vmem:[%s378 + $0xd4] sm:$0xf]
                  %421 = vst [vmem:[%s379 + $0x90] sm:$0xf] %v420
                  %v422 = vld [vmem:[%s378 + $0xd8] sm:$0xf]
                  %423 = vst [vmem:[%s379 + $0x94] sm:$0xf] %v422
                  %v424 = vld [vmem:[%s378 + $0xdc] sm:$0xf]
                  %425 = vst [vmem:[%s379 + $0x98] sm:$0xf] %v424
                  %v426 = vld [vmem:[%s378 + $0xe0] sm:$0xf]
                  %427 = vst [vmem:[%s379 + $0x9c] sm:$0xf] %v426
                  %v428 = vld [vmem:[%s378 + $0xe4] sm:$0xf]
                  %429 = vst [vmem:[%s379 + $0xa0] sm:$0xf] %v428
                  %v430 = vld [vmem:[%s378 + $0xe8] sm:$0xf]
                  %431 = vst [vmem:[%s379 + $0xa4] sm:$0xf] %v430
                  %v432 = vld [vmem:[%s378 + $0xec] sm:$0xf]
                  %433 = vst [vmem:[%s379 + $0xa8] sm:$0xf] %v432
                  %v434 = vld [vmem:[%s378 + $0xf0] sm:$0xf]
                  %435 = vst [vmem:[%s379 + $0xac] sm:$0xf] %v434
                  %v436 = vld [vmem:[%s378 + $0xf4] sm:$0xf]
                  %437 = vst [vmem:[%s379 + $0xb0] sm:$0xf] %v436
                  %v438 = vld [vmem:[%s378 + $0xf8] sm:$0xf]
                  %439 = vst [vmem:[%s379 + $0xb4] sm:$0xf] %v438
                  %v440 = vld [vmem:[%s378 + $0xfc] sm:$0xf]
                  %441 = vst [vmem:[%s379 + $0xb8] sm:$0xf] %v440
                  %v442 = vld [vmem:[%s378 + $0x100] sm:$0xf]
                  %443 = vst [vmem:[%s379 + $0xbc] sm:$0xf] %v442
                  %v444 = vld [vmem:[%s378 + $0x188] sm:$0xf]
                  %445 = vst [vmem:[%s379 + $0x100] sm:$0xf] %v444
                  %v446 = vld [vmem:[%s378 + $0x18c] sm:$0xf]
                  %447 = vst [vmem:[%s379 + $0x104] sm:$0xf] %v446
                  %v448 = vld [vmem:[%s378 + $0x190] sm:$0xf]
                  %449 = vst [vmem:[%s379 + $0x108] sm:$0xf] %v448
                  %v450 = vld [vmem:[%s378 + $0x194] sm:$0xf]
                  %451 = vst [vmem:[%s379 + $0x10c] sm:$0xf] %v450
                  %v452 = vld [vmem:[%s378 + $0x198] sm:$0xf]
                  %453 = vst [vmem:[%s379 + $0x110] sm:$0xf] %v452
                  %v454 = vld [vmem:[%s378 + $0x19c] sm:$0xf]
                  %455 = vst [vmem:[%s379 + $0x114] sm:$0xf] %v454
                  %v456 = vld [vmem:[%s378 + $0x1a0] sm:$0xf]
                  %457 = vst [vmem:[%s379 + $0x118] sm:$0xf] %v456
                  %v458 = vld [vmem:[%s378 + $0x1a4] sm:$0xf]
                  %459 = vst [vmem:[%s379 + $0x11c] sm:$0xf] %v458
                  %v460 = vld [vmem:[%s378 + $0x1a8] sm:$0xf]
                  %461 = vst [vmem:[%s379 + $0x120] sm:$0xf] %v460
                  %v462 = vld [vmem:[%s378 + $0x1ac] sm:$0xf]
                  %463 = vst [vmem:[%s379 + $0x124] sm:$0xf] %v462
                  %v464 = vld [vmem:[%s378 + $0x1b0] sm:$0xf]
                  %465 = vst [vmem:[%s379 + $0x128] sm:$0xf] %v464
                  %v466 = vld [vmem:[%s378 + $0x1b4] sm:$0xf]
                  %467 = vst [vmem:[%s379 + $0x12c] sm:$0xf] %v466
                  %v468 = vld [vmem:[%s378 + $0x1b8] sm:$0xf]
                  %469 = vst [vmem:[%s379 + $0x130] sm:$0xf] %v468
                  %v470 = vld [vmem:[%s378 + $0x1bc] sm:$0xf]
                  %471 = vst [vmem:[%s379 + $0x134] sm:$0xf] %v470
                  %v472 = vld [vmem:[%s378 + $0x1c0] sm:$0xf]
                  %473 = vst [vmem:[%s379 + $0x138] sm:$0xf] %v472
                  %v474 = vld [vmem:[%s378 + $0x1c4] sm:$0xf]
                  %475 = vst [vmem:[%s379 + $0x13c] sm:$0xf] %v474
                  %v476 = vld [vmem:[%s378 + $0x24c] sm:$0xf]
                  %477 = vst [vmem:[%s379 + $0x180] sm:$0xf] %v476
                  %v478 = vld [vmem:[%s378 + $0x250] sm:$0xf]
                  %479 = vst [vmem:[%s379 + $0x184] sm:$0xf] %v478
                  %v480 = vld [vmem:[%s378 + $0x254] sm:$0xf]
                  %481 = vst [vmem:[%s379 + $0x188] sm:$0xf] %v480
                  %v482 = vld [vmem:[%s378 + $0x258] sm:$0xf]
                  %483 = vst [vmem:[%s379 + $0x18c] sm:$0xf] %v482
                  %v484 = vld [vmem:[%s378 + $0x25c] sm:$0xf]
                  %485 = vst [vmem:[%s379 + $0x190] sm:$0xf] %v484
                  %v486 = vld [vmem:[%s378 + $0x260] sm:$0xf]
                  %487 = vst [vmem:[%s379 + $0x194] sm:$0xf] %v486
                  %v488 = vld [vmem:[%s378 + $0x264] sm:$0xf]
                  %489 = vst [vmem:[%s379 + $0x198] sm:$0xf] %v488
                  %v490 = vld [vmem:[%s378 + $0x268] sm:$0xf]
                  %491 = vst [vmem:[%s379 + $0x19c] sm:$0xf] %v490
                  %v492 = vld [vmem:[%s378 + $0x26c] sm:$0xf]
                  %493 = vst [vmem:[%s379 + $0x1a0] sm:$0xf] %v492
                  %v494 = vld [vmem:[%s378 + $0x270] sm:$0xf]
                  %495 = vst [vmem:[%s379 + $0x1a4] sm:$0xf] %v494
                  %v496 = vld [vmem:[%s378 + $0x274] sm:$0xf]
                  %497 = vst [vmem:[%s379 + $0x1a8] sm:$0xf] %v496
                  %v498 = vld [vmem:[%s378 + $0x278] sm:$0xf]
                  %499 = vst [vmem:[%s379 + $0x1ac] sm:$0xf] %v498
                  %v500 = vld [vmem:[%s378 + $0x27c] sm:$0xf]
                  %501 = vst [vmem:[%s379 + $0x1b0] sm:$0xf] %v500
                  %v502 = vld [vmem:[%s378 + $0x280] sm:$0xf]
                  %503 = vst [vmem:[%s379 + $0x1b4] sm:$0xf] %v502
                  %v504 = vld [vmem:[%s378 + $0x284] sm:$0xf]
                  %505 = vst [vmem:[%s379 + $0x1b8] sm:$0xf] %v504
                  %v506 = vld [vmem:[%s378 + $0x288] sm:$0xf]
                  %507 = vst [vmem:[%s379 + $0x1bc] sm:$0xf] %v506
                  %s508 = sadd.s32 1, %s377
                  %p509 = scmp.ge.s32.totalorder %s508, %s370
                  %s510 = scalar_select %p509, 0, %s508
                  %s511 = smul.u32 %s510, 64
                  %s512 = smul.u32 %s510, 64
                  %s513 = scalar_lea.vmem %s142, %s511
                  %s514 = scalar_lea.vmem %s134, %s512 [#allocation2]
                $region77: #{cnn_forward.4} parent=57 // loop_footer
                  %s374 = sadd.s32 %s372, 1
                $region78: #{cnn_forward.4} parent=57 // loop_footer_branch
                  %371 = sbr.rel target = $region74
                $region79: #{cnn_forward.4} parent=57 // loop_exit
                  _
                %s515 = sshrl.u32 %s138, 4
                %s516 = sand.u32 %s138, 15
                %s517 = smul.u32 %s515, 16
                %s518 = smul.u32 4, %s517
                %s519 = scalar_lea.vmem %s142, %s518
                %s520 = smul.u32 4, %s517
                %s521 = scalar_lea.vmem %s134, %s520 [#allocation2]
                // While loop
                $region80: #{cnn_forward.4} parent=57 // loop_pre_header
                  _
                $region81: #{cnn_forward.4} parent=57 // loop_header
                  %s523 = sphi 0, %s525
                  %p524 = scmp.ge.s32.totalorder %s523, %s516
                  %s528 = sphi 0, %s541
                  %s529 = sphi %s519, %s544
                  %s530 = sphi %s521, %s545
                $region82: #{cnn_forward.4} parent=57 // loop_header_branch
                  %527 = sbr.rel (%p524) target = $region86
                $region83: #{cnn_forward.4} parent=57 // loop_body
                  %v531 = vld [vmem:[%s529] sm:$0xf]
                  %532 = vst [vmem:[%s530] sm:$0xf] %v531
                  %v533 = vld [vmem:[%s529 + $0xc4] sm:$0xf]
                  %534 = vst [vmem:[%s530 + $0x80] sm:$0xf] %v533
                  %v535 = vld [vmem:[%s529 + $0x188] sm:$0xf]
                  %536 = vst [vmem:[%s530 + $0x100] sm:$0xf] %v535
                  %v537 = vld [vmem:[%s529 + $0x24c] sm:$0xf]
                  %538 = vst [vmem:[%s530 + $0x180] sm:$0xf] %v537
                  %s539 = sadd.s32 1, %s528
                  %p540 = scmp.ge.s32.totalorder %s539, %s516
                  %s541 = scalar_select %p540, 0, %s539
                  %s542 = smul.u32 %s541, 4
                  %s543 = smul.u32 %s541, 4
                  %s544 = scalar_lea.vmem %s519, %s542
                  %s545 = scalar_lea.vmem %s521, %s543 [#allocation2]
                $region84: #{cnn_forward.4} parent=57 // loop_footer
                  %s525 = sadd.s32 %s523, 1
                $region85: #{cnn_forward.4} parent=57 // loop_footer_branch
                  %522 = sbr.rel target = $region81
                $region86: #{cnn_forward.4} parent=57 // loop_exit
                  _
              $region58: #{cnn_forward.4} parent=35 // pred_fallthru
                _
            $region36: #{cnn_forward.4} parent=31 // pred_fallthru
              _
            // Predicated region
            $region37: #{cnn_forward.4} parent=31 // pred_check
              _
            $region38: #{cnn_forward.4} parent=31 // pred_check_branch
              %149 = sbr.rel (0) target = $region40
            $region39: #{cnn_forward.4} parent=31 // pred_region
              %s151 = sshrl.u32 %s138, 4
              // While loop
              $region41: #{cnn_forward.4} parent=39 // loop_pre_header
                _
              $region42: #{cnn_forward.4} parent=39 // loop_header
                %s153 = sphi 0, %s155
                %p154 = scmp.ge.s32.totalorder %s153, %s151
                %s158 = sphi 0, %s291
                %s159 = sphi %s142, %s294
                %s160 = sphi %s134, %s295
              $region43: #{cnn_forward.4} parent=39 // loop_header_branch
                %157 = sbr.rel (%p154) target = $region47
              $region44: #{cnn_forward.4} parent=39 // loop_body
                %v161 = vld [vmem:[%s159] sm:$0xf]
                %162 = vst [vmem:[%s160] sm:$0xf] %v161
                %v163 = vld [vmem:[%s159 + $0x4] sm:$0xf]
                %164 = vst [vmem:[%s160 + $0x4] sm:$0xf] %v163
                %v165 = vld [vmem:[%s159 + $0x8] sm:$0xf]
                %166 = vst [vmem:[%s160 + $0x8] sm:$0xf] %v165
                %v167 = vld [vmem:[%s159 + $0xc] sm:$0xf]
                %168 = vst [vmem:[%s160 + $0xc] sm:$0xf] %v167
                %v169 = vld [vmem:[%s159 + $0x10] sm:$0xf]
                %170 = vst [vmem:[%s160 + $0x10] sm:$0xf] %v169
                %v171 = vld [vmem:[%s159 + $0x14] sm:$0xf]
                %172 = vst [vmem:[%s160 + $0x14] sm:$0xf] %v171
                %v173 = vld [vmem:[%s159 + $0x18] sm:$0xf]
                %174 = vst [vmem:[%s160 + $0x18] sm:$0xf] %v173
                %v175 = vld [vmem:[%s159 + $0x1c] sm:$0xf]
                %176 = vst [vmem:[%s160 + $0x1c] sm:$0xf] %v175
                %v177 = vld [vmem:[%s159 + $0x20] sm:$0xf]
                %178 = vst [vmem:[%s160 + $0x20] sm:$0xf] %v177
                %v179 = vld [vmem:[%s159 + $0x24] sm:$0xf]
                %180 = vst [vmem:[%s160 + $0x24] sm:$0xf] %v179
                %v181 = vld [vmem:[%s159 + $0x28] sm:$0xf]
                %182 = vst [vmem:[%s160 + $0x28] sm:$0xf] %v181
                %v183 = vld [vmem:[%s159 + $0x2c] sm:$0xf]
                %184 = vst [vmem:[%s160 + $0x2c] sm:$0xf] %v183
                %v185 = vld [vmem:[%s159 + $0x30] sm:$0xf]
                %186 = vst [vmem:[%s160 + $0x30] sm:$0xf] %v185
                %v187 = vld [vmem:[%s159 + $0x34] sm:$0xf]
                %188 = vst [vmem:[%s160 + $0x34] sm:$0xf] %v187
                %v189 = vld [vmem:[%s159 + $0x38] sm:$0xf]
                %190 = vst [vmem:[%s160 + $0x38] sm:$0xf] %v189
                %v191 = vld [vmem:[%s159 + $0x3c] sm:$0xf]
                %192 = vst [vmem:[%s160 + $0x3c] sm:$0xf] %v191
                %v193 = vld [vmem:[%s159 + $0xc4] sm:$0xf]
                %194 = vst [vmem:[%s160 + $0x80] sm:$0xf] %v193
                %v195 = vld [vmem:[%s159 + $0xc8] sm:$0xf]
                %196 = vst [vmem:[%s160 + $0x84] sm:$0xf] %v195
                %v197 = vld [vmem:[%s159 + $0xcc] sm:$0xf]
                %198 = vst [vmem:[%s160 + $0x88] sm:$0xf] %v197
                %v199 = vld [vmem:[%s159 + $0xd0] sm:$0xf]
                %200 = vst [vmem:[%s160 + $0x8c] sm:$0xf] %v199
                %v201 = vld [vmem:[%s159 + $0xd4] sm:$0xf]
                %202 = vst [vmem:[%s160 + $0x90] sm:$0xf] %v201
                %v203 = vld [vmem:[%s159 + $0xd8] sm:$0xf]
                %204 = vst [vmem:[%s160 + $0x94] sm:$0xf] %v203
                %v205 = vld [vmem:[%s159 + $0xdc] sm:$0xf]
                %206 = vst [vmem:[%s160 + $0x98] sm:$0xf] %v205
                %v207 = vld [vmem:[%s159 + $0xe0] sm:$0xf]
                %208 = vst [vmem:[%s160 + $0x9c] sm:$0xf] %v207
                %v209 = vld [vmem:[%s159 + $0xe4] sm:$0xf]
                %210 = vst [vmem:[%s160 + $0xa0] sm:$0xf] %v209
                %v211 = vld [vmem:[%s159 + $0xe8] sm:$0xf]
                %212 = vst [vmem:[%s160 + $0xa4] sm:$0xf] %v211
                %v213 = vld [vmem:[%s159 + $0xec] sm:$0xf]
                %214 = vst [vmem:[%s160 + $0xa8] sm:$0xf] %v213
                %v215 = vld [vmem:[%s159 + $0xf0] sm:$0xf]
                %216 = vst [vmem:[%s160 + $0xac] sm:$0xf] %v215
                %v217 = vld [vmem:[%s159 + $0xf4] sm:$0xf]
                %218 = vst [vmem:[%s160 + $0xb0] sm:$0xf] %v217
                %v219 = vld [vmem:[%s159 + $0xf8] sm:$0xf]
                %220 = vst [vmem:[%s160 + $0xb4] sm:$0xf] %v219
                %v221 = vld [vmem:[%s159 + $0xfc] sm:$0xf]
                %222 = vst [vmem:[%s160 + $0xb8] sm:$0xf] %v221
                %v223 = vld [vmem:[%s159 + $0x100] sm:$0xf]
                %224 = vst [vmem:[%s160 + $0xbc] sm:$0xf] %v223
                %v225 = vld [vmem:[%s159 + $0x188] sm:$0xf]
                %226 = vst [vmem:[%s160 + $0x100] sm:$0xf] %v225
                %v227 = vld [vmem:[%s159 + $0x18c] sm:$0xf]
                %228 = vst [vmem:[%s160 + $0x104] sm:$0xf] %v227
                %v229 = vld [vmem:[%s159 + $0x190] sm:$0xf]
                %230 = vst [vmem:[%s160 + $0x108] sm:$0xf] %v229
                %v231 = vld [vmem:[%s159 + $0x194] sm:$0xf]
                %232 = vst [vmem:[%s160 + $0x10c] sm:$0xf] %v231
                %v233 = vld [vmem:[%s159 + $0x198] sm:$0xf]
                %234 = vst [vmem:[%s160 + $0x110] sm:$0xf] %v233
                %v235 = vld [vmem:[%s159 + $0x19c] sm:$0xf]
                %236 = vst [vmem:[%s160 + $0x114] sm:$0xf] %v235
                %v237 = vld [vmem:[%s159 + $0x1a0] sm:$0xf]
                %238 = vst [vmem:[%s160 + $0x118] sm:$0xf] %v237
                %v239 = vld [vmem:[%s159 + $0x1a4] sm:$0xf]
                %240 = vst [vmem:[%s160 + $0x11c] sm:$0xf] %v239
                %v241 = vld [vmem:[%s159 + $0x1a8] sm:$0xf]
                %242 = vst [vmem:[%s160 + $0x120] sm:$0xf] %v241
                %v243 = vld [vmem:[%s159 + $0x1ac] sm:$0xf]
                %244 = vst [vmem:[%s160 + $0x124] sm:$0xf] %v243
                %v245 = vld [vmem:[%s159 + $0x1b0] sm:$0xf]
                %246 = vst [vmem:[%s160 + $0x128] sm:$0xf] %v245
                %v247 = vld [vmem:[%s159 + $0x1b4] sm:$0xf]
                %248 = vst [vmem:[%s160 + $0x12c] sm:$0xf] %v247
                %v249 = vld [vmem:[%s159 + $0x1b8] sm:$0xf]
                %250 = vst [vmem:[%s160 + $0x130] sm:$0xf] %v249
                %v251 = vld [vmem:[%s159 + $0x1bc] sm:$0xf]
                %252 = vst [vmem:[%s160 + $0x134] sm:$0xf] %v251
                %v253 = vld [vmem:[%s159 + $0x1c0] sm:$0xf]
                %254 = vst [vmem:[%s160 + $0x138] sm:$0xf] %v253
                %v255 = vld [vmem:[%s159 + $0x1c4] sm:$0xf]
                %256 = vst [vmem:[%s160 + $0x13c] sm:$0xf] %v255
                %v257 = vld [vmem:[%s159 + $0x24c] sm:$0xf]
                %258 = vst [vmem:[%s160 + $0x180] sm:$0xf] %v257
                %v259 = vld [vmem:[%s159 + $0x250] sm:$0xf]
                %260 = vst [vmem:[%s160 + $0x184] sm:$0xf] %v259
                %v261 = vld [vmem:[%s159 + $0x254] sm:$0xf]
                %262 = vst [vmem:[%s160 + $0x188] sm:$0xf] %v261
                %v263 = vld [vmem:[%s159 + $0x258] sm:$0xf]
                %264 = vst [vmem:[%s160 + $0x18c] sm:$0xf] %v263
                %v265 = vld [vmem:[%s159 + $0x25c] sm:$0xf]
                %266 = vst [vmem:[%s160 + $0x190] sm:$0xf] %v265
                %v267 = vld [vmem:[%s159 + $0x260] sm:$0xf]
                %268 = vst [vmem:[%s160 + $0x194] sm:$0xf] %v267
                %v269 = vld [vmem:[%s159 + $0x264] sm:$0xf]
                %270 = vst [vmem:[%s160 + $0x198] sm:$0xf] %v269
                %v271 = vld [vmem:[%s159 + $0x268] sm:$0xf]
                %272 = vst [vmem:[%s160 + $0x19c] sm:$0xf] %v271
                %v273 = vld [vmem:[%s159 + $0x26c] sm:$0xf]
                %274 = vst [vmem:[%s160 + $0x1a0] sm:$0xf] %v273
                %v275 = vld [vmem:[%s159 + $0x270] sm:$0xf]
                %276 = vst [vmem:[%s160 + $0x1a4] sm:$0xf] %v275
                %v277 = vld [vmem:[%s159 + $0x274] sm:$0xf]
                %278 = vst [vmem:[%s160 + $0x1a8] sm:$0xf] %v277
                %v279 = vld [vmem:[%s159 + $0x278] sm:$0xf]
                %280 = vst [vmem:[%s160 + $0x1ac] sm:$0xf] %v279
                %v281 = vld [vmem:[%s159 + $0x27c] sm:$0xf]
                %282 = vst [vmem:[%s160 + $0x1b0] sm:$0xf] %v281
                %v283 = vld [vmem:[%s159 + $0x280] sm:$0xf]
                %284 = vst [vmem:[%s160 + $0x1b4] sm:$0xf] %v283
                %v285 = vld [vmem:[%s159 + $0x284] sm:$0xf]
                %286 = vst [vmem:[%s160 + $0x1b8] sm:$0xf] %v285
                %v287 = vld [vmem:[%s159 + $0x288] sm:$0xf]
                %288 = vst [vmem:[%s160 + $0x1bc] sm:$0xf] %v287
                %s289 = sadd.s32 1, %s158
                %p290 = scmp.ge.s32.totalorder %s289, %s151
                %s291 = scalar_select %p290, 0, %s289
                %s292 = smul.u32 %s291, 64
                %s293 = smul.u32 %s291, 64
                %s294 = scalar_lea.vmem %s142, %s292
                %s295 = scalar_lea.vmem %s134, %s293 [#allocation2]
              $region45: #{cnn_forward.4} parent=39 // loop_footer
                %s155 = sadd.s32 %s153, 1
              $region46: #{cnn_forward.4} parent=39 // loop_footer_branch
                %152 = sbr.rel target = $region42
              $region47: #{cnn_forward.4} parent=39 // loop_exit
                _
              %s296 = sshrl.u32 %s138, 4
              %s297 = sand.u32 %s138, 15
              %s298 = smul.u32 %s296, 16
              %s299 = smul.u32 4, %s298
              %s300 = scalar_lea.vmem %s142, %s299
              %s301 = smul.u32 4, %s298
              %s302 = scalar_lea.vmem %s134, %s301 [#allocation2]
              // While loop
              $region48: #{cnn_forward.4} parent=39 // loop_pre_header
                _
              $region49: #{cnn_forward.4} parent=39 // loop_header
                %s304 = sphi 0, %s306
                %p305 = scmp.ge.s32.totalorder %s304, %s297
                %s309 = sphi 0, %s322
                %s310 = sphi %s300, %s325
                %s311 = sphi %s302, %s326
              $region50: #{cnn_forward.4} parent=39 // loop_header_branch
                %308 = sbr.rel (%p305) target = $region54
              $region51: #{cnn_forward.4} parent=39 // loop_body
                %v312 = vld [vmem:[%s310] sm:$0xf]
                %313 = vst [vmem:[%s311] sm:$0xf] %v312
                %v314 = vld [vmem:[%s310 + $0xc4] sm:$0xf]
                %315 = vst [vmem:[%s311 + $0x80] sm:$0xf] %v314
                %v316 = vld [vmem:[%s310 + $0x188] sm:$0xf]
                %317 = vst [vmem:[%s311 + $0x100] sm:$0xf] %v316
                %v318 = vld [vmem:[%s310 + $0x24c] sm:$0xf]
                %319 = vst [vmem:[%s311 + $0x180] sm:$0xf] %v318
                %s320 = sadd.s32 1, %s309
                %p321 = scmp.ge.s32.totalorder %s320, %s297
                %s322 = scalar_select %p321, 0, %s320
                %s323 = smul.u32 %s322, 4
                %s324 = smul.u32 %s322, 4
                %s325 = scalar_lea.vmem %s300, %s323
                %s326 = scalar_lea.vmem %s302, %s324 [#allocation2]
              $region52: #{cnn_forward.4} parent=39 // loop_footer
                %s306 = sadd.s32 %s304, 1
              $region53: #{cnn_forward.4} parent=39 // loop_footer_branch
                %303 = sbr.rel target = $region49
              $region54: #{cnn_forward.4} parent=39 // loop_exit
                _
            $region40: #{cnn_forward.4} parent=31 // pred_fallthru
              _
          $region32: #{cnn_forward.4} parent=27 // pred_fallthru
            _
          %546 = vnop
        $region28: #{cnn_forward.4} parent=23 // pred_fallthru
          _
      $region24: #{cnn_forward.4} parent=5 // pred_fallthru
        _
      %p547 = scmp.le.s32.totalorder 1, %s9
      %p548 = scmp.lt.s32.totalorder %s9, 3
      %p549 = pnand %p547, %p548
      %p550 = pneg %p549
      // Predicated region
      $region87: #{cnn_forward.4} parent=5 // pred_check
        _
      $region88: #{cnn_forward.4} parent=5 // pred_check_branch
        %552 = sbr.rel (%p549) target = $region90
      $region89: #{cnn_forward.4} parent=5 // pred_region
        %s553 = ssub.s32 %s9, 1
        %s554 = sand.u32 %s22, 1
        %s555 = sand.u32 %s22, 1
        %s556 = smul.addr %s555, 512
        %s557 = scalar_lea.vmem [#allocation2], %s556
        // Predicated region
        $region91: #{cnn_forward.4} parent=89 // pred_check
          %p558 = pneg %p35
        $region92: #{cnn_forward.4} parent=89 // pred_check_branch
          %560 = sbr.rel (%p558) target = $region94
        $region93: #{cnn_forward.4} parent=89 // pred_region
          _
        $region94: #{cnn_forward.4} parent=89 // pred_fallthru
          _
        %s561 = sand.u32 %s22, 1
        %s562 = sand.u32 %s22, 1
        %s563 = smul.addr %s562, 512
        %s564 = scalar_lea.vmem [#allocation2], %s563
        %p565 = pneg %p35
        %p566 = pneg %p32
        %p567 = pneg %p56
        %p568 = pneg %p53
        %p569 = pneg %p77
        %p570 = pneg %p74
        %p571 = pneg %p103
        %p572 = pneg %p100
        %s573 = sand.u32 %s90, 1
        %s574 = sand.u32 %s90, 1
        %s575 = smul.addr %s574, 128
        %s576 = scalar_lea.vmem [#allocation3], %s575
        %s577 = smul.u32 32, %s14
        %s578 = ssub.s32 49, %s577
        %p579 = scmp.lt.s32.totalorder %s578, 32
        %s580 = scalar_select %p579, %s578, 32
        %s581 = smul.u32 256, %s580
        %s582 = smul.u32 32, %s14
        %s583 = ssub.s32 49, %s582
        %p584 = scmp.lt.s32.totalorder %s583, 32
        %s585 = scalar_select %p584, %s583, 32
        %s586 = smul.u32 64, %s585
        %v588 = vld [vmem:[%s1] sm:$0xf]
        %v589 = vld [vmem:[%s1 + $0x4] sm:$0x1]
        %v590 = vld [vmem:[%s2] sm:$0x1]
        %v591 = vld [vmem:[%s557] sm:$0xf]
        %v592 = vld [vmem:[%s557 + $0x4] sm:$0xf]
        %v593 = vld [vmem:[%s557 + $0x8] sm:$0xf]
        %v594 = vld [vmem:[%s557 + $0xc] sm:$0xf]
        %v595 = vld [vmem:[%s557 + $0x10] sm:$0xf]
        %v596 = vld [vmem:[%s557 + $0x14] sm:$0xf]
        %v597 = vld [vmem:[%s557 + $0x18] sm:$0xf]
        %v598 = vld [vmem:[%s557 + $0x1c] sm:$0xf]
        %v599 = vld [vmem:[%s557 + $0x20] sm:$0xf]
        %v600 = vld [vmem:[%s557 + $0x24] sm:$0xf]
        %v601 = vld [vmem:[%s557 + $0x28] sm:$0xf]
        %v602 = vld [vmem:[%s557 + $0x2c] sm:$0xf]
        %v603 = vld [vmem:[%s557 + $0x30] sm:$0xf]
        %v604 = vld [vmem:[%s557 + $0x34] sm:$0xf]
        %v605 = vld [vmem:[%s557 + $0x38] sm:$0xf]
        %v606 = vld [vmem:[%s557 + $0x3c] sm:$0xf]
        %v607 = vld [vmem:[%s557 + $0x40] sm:$0xf]
        %v608 = vld [vmem:[%s557 + $0x44] sm:$0xf]
        %v609 = vld [vmem:[%s557 + $0x48] sm:$0xf]
        %v610 = vld [vmem:[%s557 + $0x4c] sm:$0xf]
        %v611 = vld [vmem:[%s557 + $0x50] sm:$0xf]
        %v612 = vld [vmem:[%s557 + $0x54] sm:$0xf]
        %v613 = vld [vmem:[%s557 + $0x58] sm:$0xf]
        %v614 = vld [vmem:[%s557 + $0x5c] sm:$0xf]
        %v615 = vld [vmem:[%s557 + $0x60] sm:$0xf]
        %v616 = vld [vmem:[%s557 + $0x64] sm:$0xf]
        %v617 = vld [vmem:[%s557 + $0x68] sm:$0xf]
        %v618 = vld [vmem:[%s557 + $0x6c] sm:$0xf]
        %v619 = vld [vmem:[%s557 + $0x70] sm:$0xf]
        %v620 = vld [vmem:[%s557 + $0x74] sm:$0xf]
        %v621 = vld [vmem:[%s557 + $0x78] sm:$0xf]
        %v622 = vld [vmem:[%s557 + $0x7c] sm:$0xf]
        %v624 = vlaneseq
        %v625 = vshrl.u32 %v624, 7
        %v626 = vsub.s32 0, %v625
        %v627 = vrot.slane %v590, %v626
        %v661 = vunpack.c.l.b16 %v591
        %v662 = vunpack.c.l.b16 %v592
        %v663 = vunpack.c.l.b16 %v593
        %v664 = vunpack.c.l.b16 %v594
        %v665 = vunpack.c.l.b16 %v595
        %v666 = vunpack.c.l.b16 %v596
        %v667 = vunpack.c.l.b16 %v597
        %v668 = vunpack.c.l.b16 %v598
        %v669 = vunpack.c.l.b16 %v599
        %v670 = vunpack.c.l.b16 %v600
        %v671 = vunpack.c.l.b16 %v601
        %v672 = vunpack.c.l.b16 %v602
        %v673 = vunpack.c.l.b16 %v603
        %v674 = vunpack.c.l.b16 %v604
        %v675 = vunpack.c.l.b16 %v605
        %v676 = vunpack.c.l.b16 %v606
        %v677 = vunpack.c.l.b16 %v607
        %v678 = vunpack.c.l.b16 %v608
        %v679 = vunpack.c.l.b16 %v609
        %v680 = vunpack.c.l.b16 %v610
        %v681 = vunpack.c.l.b16 %v611
        %v682 = vunpack.c.l.b16 %v612
        %v683 = vunpack.c.l.b16 %v613
        %v684 = vunpack.c.l.b16 %v614
        %v685 = vunpack.c.l.b16 %v615
        %v686 = vunpack.c.l.b16 %v616
        %v687 = vunpack.c.l.b16 %v617
        %v688 = vunpack.c.l.b16 %v618
        %v689 = vunpack.c.l.b16 %v619
        %v690 = vunpack.c.l.b16 %v620
        %v691 = vunpack.c.l.b16 %v621
        %v692 = vunpack.c.l.b16 %v622
        %v693 = vpack.c.b16 %v662, %v661
        %v694 = vpack.c.b16 %v664, %v663
        %v695 = vpack.c.b16 %v666, %v665
        %v696 = vpack.c.b16 %v668, %v667
        %v697 = vpack.c.b16 %v670, %v669
        %v698 = vpack.c.b16 %v672, %v671
        %v699 = vpack.c.b16 %v674, %v673
        %v700 = vpack.c.b16 %v676, %v675
        %v701 = vpack.c.b16 %v678, %v677
        %v702 = vpack.c.b16 %v680, %v679
        %v703 = vpack.c.b16 %v682, %v681
        %v704 = vpack.c.b16 %v684, %v683
        %v705 = vpack.c.b16 %v686, %v685
        %v706 = vpack.c.b16 %v688, %v687
        %v707 = vpack.c.b16 %v690, %v689
        %v708 = vpack.c.b16 %v692, %v691
        %v711 = vunpack.c.l.b16 %v588
        %v712 = vunpack.c.l.b16 %v589
        %v713 = vpack.c.b16 %v712, %v711
        %vm714 = vcmask 72704
        %v716 = vsel %vm714, %v693, 0
        %v719 = vsel %vm714, %v694, 0
        %v722 = vsel %vm714, %v695, 0
        %v725 = vsel %vm714, %v696, 0
        %v728 = vsel %vm714, %v697, 0
        %v731 = vsel %vm714, %v698, 0
        %v734 = vsel %vm714, %v699, 0
        %v737 = vsel %vm714, %v700, 0
        %v740 = vsel %vm714, %v701, 0
        %v743 = vsel %vm714, %v702, 0
        %v746 = vsel %vm714, %v703, 0
        %v749 = vsel %vm714, %v704, 0
        %v752 = vsel %vm714, %v705, 0
        %v755 = vsel %vm714, %v706, 0
        %v758 = vsel %vm714, %v707, 0
        %v761 = vsel %vm714, %v708, 0
        %vm763 = vcmask 1043456
        %vm764 = vcmask 1044480
        %v765 = vsel %vm763, 4294967295, 65535
        %v766 = vsel %vm764, %v765, 0
        %v768 = vand.u32 %v713, %v766
        %770 = vmatprep.subr.bf16.mxu0 0
        %771 = vmatpush1.bf16.msra.mxu0 %v768
        %772 = vmatprep.subr.bf16.mxu0 0
        %773 = vmatpush1.bf16.msra.mxu0 0
        %774 = vmatprep.subr.bf16.mxu0 0
        %775 = vmatpush1.bf16.msra.mxu0 0
        %776 = vmatprep.subr.bf16.mxu0 0
        %777 = vmatpush1.bf16.msra.mxu0 0
        %778 = vmatprep.subr.bf16.mxu0 0
        %779 = vmatpush1.bf16.msra.mxu0 0
        %780 = vmatprep.subr.bf16.mxu0 0
        %781 = vmatpush1.bf16.msra.mxu0 0
        %782 = vmatprep.subr.bf16.mxu0 0
        %783 = vmatpush1.bf16.msra.mxu0 0
        %784 = vmatprep.subr.bf16.mxu0 0
        %785 = vmatpush1.bf16.msra.mxu0 0
        %786 = vmatprep.subr.bf16.mxu0 0
        %787 = vmatpush1.bf16.msra.mxu0 0
        %788 = vmatprep.subr.bf16.mxu0 0
        %789 = vmatpush1.bf16.msra.mxu0 0
        %790 = vmatprep.subr.bf16.mxu0 0
        %791 = vmatpush1.bf16.msra.mxu0 0
        %792 = vmatprep.subr.bf16.mxu0 0
        %793 = vmatpush1.bf16.msra.mxu0 0
        %794 = vmatprep.subr.bf16.mxu0 0
        %795 = vmatpush1.bf16.msra.mxu0 0
        %796 = vmatprep.subr.bf16.mxu0 0
        %797 = vmatpush1.bf16.msra.mxu0 0
        %798 = vmatprep.subr.bf16.mxu0 0
        %799 = vmatpush1.bf16.msra.mxu0 0
        %800 = vmatprep.subr.bf16.mxu0 0
        %801 = vmatpush1.bf16.msra.mxu0 0
        %802 = vmatprep.mubr.bf16.mxu0 0
        %803 = vmatmul.mubr.bf16.gmra.mrb[0].mxu0 %v716
        %v804 = vpop.f32.mrb[0].mxu0
        %v805 = vadd.f32 %v627, %v804
        %v806 = vpop.f32.mrb[0].mxu0
        %v807 = vpop.f32.mrb[0].mxu0
        %v808 = vadd.f32 %v627, %v807
        %v809 = vpop.f32.mrb[0].mxu0
        %810 = vmatprep.mubr.bf16.mxu0 0
        %811 = vmatmul.mubr.bf16.gmra.mrb[0].mxu0 %v719
        %v812 = vpop.f32.mrb[0].mxu0
        %v813 = vadd.f32 %v627, %v812
        %v814 = vpop.f32.mrb[0].mxu0
        %v815 = vpop.f32.mrb[0].mxu0
        %v816 = vadd.f32 %v627, %v815
        %v817 = vpop.f32.mrb[0].mxu0
        %818 = vmatprep.mubr.bf16.mxu0 0
        %819 = vmatmul.mubr.bf16.gmra.mrb[0].mxu0 %v722
        %v820 = vpop.f32.mrb[0].mxu0
        %v821 = vadd.f32 %v627, %v820
        %v822 = vpop.f32.mrb[0].mxu0
        %v823 = vpop.f32.mrb[0].mxu0
        %v824 = vadd.f32 %v627, %v823
        %v825 = vpop.f32.mrb[0].mxu0
        %826 = vmatprep.mubr.bf16.mxu0 0
        %827 = vmatmul.mubr.bf16.gmra.mrb[0].mxu0 %v725
        %v828 = vpop.f32.mrb[0].mxu0
        %v829 = vadd.f32 %v627, %v828
        %v830 = vpop.f32.mrb[0].mxu0
        %v831 = vpop.f32.mrb[0].mxu0
        %v832 = vadd.f32 %v627, %v831
        %v833 = vpop.f32.mrb[0].mxu0
        %834 = vmatprep.mubr.bf16.mxu0 0
        %835 = vmatmul.mubr.bf16.gmra.mrb[0].mxu0 %v728
        %v836 = vpop.f32.mrb[0].mxu0
        %v837 = vadd.f32 %v627, %v836
        %v838 = vpop.f32.mrb[0].mxu0
        %v839 = vpop.f32.mrb[0].mxu0
        %v840 = vadd.f32 %v627, %v839
        %v841 = vpop.f32.mrb[0].mxu0
        %842 = vmatprep.mubr.bf16.mxu0 0
        %843 = vmatmul.mubr.bf16.gmra.mrb[0].mxu0 %v731
        %v844 = vpop.f32.mrb[0].mxu0
        %v845 = vadd.f32 %v627, %v844
        %v846 = vpop.f32.mrb[0].mxu0
        %v847 = vpop.f32.mrb[0].mxu0
        %v848 = vadd.f32 %v627, %v847
        %v849 = vpop.f32.mrb[0].mxu0
        %850 = vmatprep.mubr.bf16.mxu0 0
        %851 = vmatmul.mubr.bf16.gmra.mrb[0].mxu0 %v734
        %v852 = vpop.f32.mrb[0].mxu0
        %v853 = vadd.f32 %v627, %v852
        %v854 = vpop.f32.mrb[0].mxu0
        %v855 = vpop.f32.mrb[0].mxu0
        %v856 = vadd.f32 %v627, %v855
        %v857 = vpop.f32.mrb[0].mxu0
        %858 = vmatprep.mubr.bf16.mxu0 0
        %859 = vmatmul.mubr.bf16.gmra.mrb[0].mxu0 %v737
        %v860 = vpop.f32.mrb[0].mxu0
        %v861 = vadd.f32 %v627, %v860
        %v862 = vpop.f32.mrb[0].mxu0
        %v863 = vpop.f32.mrb[0].mxu0
        %v864 = vadd.f32 %v627, %v863
        %v865 = vpop.f32.mrb[0].mxu0
        %866 = vmatprep.mubr.bf16.mxu0 0
        %867 = vmatmul.mubr.bf16.gmra.mrb[0].mxu0 %v740
        %v868 = vpop.f32.mrb[0].mxu0
        %v869 = vadd.f32 %v627, %v868
        %v870 = vpop.f32.mrb[0].mxu0
        %v871 = vpop.f32.mrb[0].mxu0
        %v872 = vadd.f32 %v627, %v871
        %v873 = vpop.f32.mrb[0].mxu0
        %874 = vmatprep.mubr.bf16.mxu0 0
        %875 = vmatmul.mubr.bf16.gmra.mrb[0].mxu0 %v743
        %v876 = vpop.f32.mrb[0].mxu0
        %v877 = vadd.f32 %v627, %v876
        %v878 = vpop.f32.mrb[0].mxu0
        %v879 = vpop.f32.mrb[0].mxu0
        %v880 = vadd.f32 %v627, %v879
        %v881 = vpop.f32.mrb[0].mxu0
        %882 = vmatprep.mubr.bf16.mxu0 0
        %883 = vmatmul.mubr.bf16.gmra.mrb[0].mxu0 %v746
        %v884 = vpop.f32.mrb[0].mxu0
        %v885 = vadd.f32 %v627, %v884
        %v886 = vpop.f32.mrb[0].mxu0
        %v887 = vpop.f32.mrb[0].mxu0
        %v888 = vadd.f32 %v627, %v887
        %v889 = vpop.f32.mrb[0].mxu0
        %890 = vmatprep.mubr.bf16.mxu0 0
        %891 = vmatmul.mubr.bf16.gmra.mrb[0].mxu0 %v749
        %v892 = vpop.f32.mrb[0].mxu0
        %v893 = vadd.f32 %v627, %v892
        %v894 = vpop.f32.mrb[0].mxu0
        %v895 = vpop.f32.mrb[0].mxu0
        %v896 = vadd.f32 %v627, %v895
        %v897 = vpop.f32.mrb[0].mxu0
        %898 = vmatprep.mubr.bf16.mxu0 0
        %899 = vmatmul.mubr.bf16.gmra.mrb[0].mxu0 %v752
        %v900 = vpop.f32.mrb[0].mxu0
        %v901 = vadd.f32 %v627, %v900
        %v902 = vpop.f32.mrb[0].mxu0
        %v903 = vpop.f32.mrb[0].mxu0
        %v904 = vadd.f32 %v627, %v903
        %v905 = vpop.f32.mrb[0].mxu0
        %906 = vmatprep.mubr.bf16.mxu0 0
        %907 = vmatmul.mubr.bf16.gmra.mrb[0].mxu0 %v755
        %v908 = vpop.f32.mrb[0].mxu0
        %v909 = vadd.f32 %v627, %v908
        %v910 = vpop.f32.mrb[0].mxu0
        %v911 = vpop.f32.mrb[0].mxu0
        %v912 = vadd.f32 %v627, %v911
        %v913 = vpop.f32.mrb[0].mxu0
        %914 = vmatprep.mubr.bf16.mxu0 0
        %915 = vmatmul.mubr.bf16.gmra.mrb[0].mxu0 %v758
        %v916 = vpop.f32.mrb[0].mxu0
        %v917 = vadd.f32 %v627, %v916
        %v918 = vpop.f32.mrb[0].mxu0
        %v919 = vpop.f32.mrb[0].mxu0
        %v920 = vadd.f32 %v627, %v919
        %v921 = vpop.f32.mrb[0].mxu0
        %922 = vmatprep.mubr.bf16.mxu0 0
        %923 = vmatmul.mubr.bf16.gmra.mrb[0].mxu0 %v761
        %v924 = vpop.f32.mrb[0].mxu0
        %v925 = vadd.f32 %v627, %v924
        %v926 = vpop.f32.mrb[0].mxu0
        %v927 = vpop.f32.mrb[0].mxu0
        %v928 = vadd.f32 %v627, %v927
        %v929 = vpop.f32.mrb[0].mxu0
        %930 = vdwg.mxu0
        %v931 = vmax.f32 %v805, 0.0
        %v932 = vmax.f32 %v808, 0.0
        %v933 = vmax.f32 %v813, 0.0
        %v934 = vmax.f32 %v816, 0.0
        %v935 = vmax.f32 %v821, 0.0
        %v936 = vmax.f32 %v824, 0.0
        %v937 = vmax.f32 %v829, 0.0
        %v938 = vmax.f32 %v832, 0.0
        %v939 = vmax.f32 %v837, 0.0
        %v940 = vmax.f32 %v840, 0.0
        %v941 = vmax.f32 %v845, 0.0
        %v942 = vmax.f32 %v848, 0.0
        %v943 = vmax.f32 %v853, 0.0
        %v944 = vmax.f32 %v856, 0.0
        %v945 = vmax.f32 %v861, 0.0
        %v946 = vmax.f32 %v864, 0.0
        %v947 = vmax.f32 %v869, 0.0
        %v948 = vmax.f32 %v872, 0.0
        %v949 = vmax.f32 %v877, 0.0
        %v950 = vmax.f32 %v880, 0.0
        %v951 = vmax.f32 %v885, 0.0
        %v952 = vmax.f32 %v888, 0.0
        %v953 = vmax.f32 %v893, 0.0
        %v954 = vmax.f32 %v896, 0.0
        %v955 = vmax.f32 %v901, 0.0
        %v956 = vmax.f32 %v904, 0.0
        %v957 = vmax.f32 %v909, 0.0
        %v958 = vmax.f32 %v912, 0.0
        %v959 = vmax.f32 %v917, 0.0
        %v960 = vmax.f32 %v920, 0.0
        %v961 = vmax.f32 %v925, 0.0
        %v962 = vmax.f32 %v928, 0.0
        %v963 = vadd.f32 %v931, 0.0
        %v964 = vadd.f32 %v932, 0.0
        %v965 = vadd.f32 %v933, 0.0
        %v966 = vadd.f32 %v934, 0.0
        %v967 = vadd.f32 %v935, 0.0
        %v968 = vadd.f32 %v936, 0.0
        %v969 = vadd.f32 %v937, 0.0
        %v970 = vadd.f32 %v938, 0.0
        %v971 = vadd.f32 %v939, 0.0
        %v972 = vadd.f32 %v940, 0.0
        %v973 = vadd.f32 %v941, 0.0
        %v974 = vadd.f32 %v942, 0.0
        %v975 = vadd.f32 %v943, 0.0
        %v976 = vadd.f32 %v944, 0.0
        %v977 = vadd.f32 %v945, 0.0
        %v978 = vadd.f32 %v946, 0.0
        %v979 = vadd.f32 %v947, 0.0
        %v980 = vadd.f32 %v948, 0.0
        %v981 = vadd.f32 %v949, 0.0
        %v982 = vadd.f32 %v950, 0.0
        %v983 = vadd.f32 %v951, 0.0
        %v984 = vadd.f32 %v952, 0.0
        %v985 = vadd.f32 %v953, 0.0
        %v986 = vadd.f32 %v954, 0.0
        %v987 = vadd.f32 %v955, 0.0
        %v988 = vadd.f32 %v956, 0.0
        %v989 = vadd.f32 %v957, 0.0
        %v990 = vadd.f32 %v958, 0.0
        %v991 = vadd.f32 %v959, 0.0
        %v992 = vadd.f32 %v960, 0.0
        %v993 = vadd.f32 %v961, 0.0
        %v994 = vadd.f32 %v962, 0.0
        %s995 = scalar_lea.vmem %s557, 128 [#allocation2]
        %v996 = vld [vmem:[%s995] sm:$0xf]
        %v997 = vld [vmem:[%s995 + $0x4] sm:$0xf]
        %v998 = vld [vmem:[%s995 + $0x8] sm:$0xf]
        %v999 = vld [vmem:[%s995 + $0xc] sm:$0xf]
        %v1000 = vld [vmem:[%s995 + $0x10] sm:$0xf]
        %v1001 = vld [vmem:[%s995 + $0x14] sm:$0xf]
        %v1002 = vld [vmem:[%s995 + $0x18] sm:$0xf]
        %v1003 = vld [vmem:[%s995 + $0x1c] sm:$0xf]
        %v1004 = vld [vmem:[%s995 + $0x20] sm:$0xf]
        %v1005 = vld [vmem:[%s995 + $0x24] sm:$0xf]
        %v1006 = vld [vmem:[%s995 + $0x28] sm:$0xf]
        %v1007 = vld [vmem:[%s995 + $0x2c] sm:$0xf]
        %v1008 = vld [vmem:[%s995 + $0x30] sm:$0xf]
        %v1009 = vld [vmem:[%s995 + $0x34] sm:$0xf]
        %v1010 = vld [vmem:[%s995 + $0x38] sm:$0xf]
        %v1011 = vld [vmem:[%s995 + $0x3c] sm:$0xf]
        %v1012 = vld [vmem:[%s995 + $0x40] sm:$0xf]
        %v1013 = vld [vmem:[%s995 + $0x44] sm:$0xf]
        %v1014 = vld [vmem:[%s995 + $0x48] sm:$0xf]
        %v1015 = vld [vmem:[%s995 + $0x4c] sm:$0xf]
        %v1016 = vld [vmem:[%s995 + $0x50] sm:$0xf]
        %v1017 = vld [vmem:[%s995 + $0x54] sm:$0xf]
        %v1018 = vld [vmem:[%s995 + $0x58] sm:$0xf]
        %v1019 = vld [vmem:[%s995 + $0x5c] sm:$0xf]
        %v1020 = vld [vmem:[%s995 + $0x60] sm:$0xf]
        %v1021 = vld [vmem:[%s995 + $0x64] sm:$0xf]
        %v1022 = vld [vmem:[%s995 + $0x68] sm:$0xf]
        %v1023 = vld [vmem:[%s995 + $0x6c] sm:$0xf]
        %v1024 = vld [vmem:[%s995 + $0x70] sm:$0xf]
        %v1025 = vld [vmem:[%s995 + $0x74] sm:$0xf]
        %v1026 = vld [vmem:[%s995 + $0x78] sm:$0xf]
        %v1027 = vld [vmem:[%s995 + $0x7c] sm:$0xf]
        %v1060 = vunpack.c.l.b16 %v996
        %v1061 = vunpack.c.l.b16 %v997
        %v1062 = vunpack.c.l.b16 %v998
        %v1063 = vunpack.c.l.b16 %v999
        %v1064 = vunpack.c.l.b16 %v1000
        %v1065 = vunpack.c.l.b16 %v1001
        %v1066 = vunpack.c.l.b16 %v1002
        %v1067 = vunpack.c.l.b16 %v1003
        %v1068 = vunpack.c.l.b16 %v1004
        %v1069 = vunpack.c.l.b16 %v1005
        %v1070 = vunpack.c.l.b16 %v1006
        %v1071 = vunpack.c.l.b16 %v1007
        %v1072 = vunpack.c.l.b16 %v1008
        %v1073 = vunpack.c.l.b16 %v1009
        %v1074 = vunpack.c.l.b16 %v1010
        %v1075 = vunpack.c.l.b16 %v1011
        %v1076 = vunpack.c.l.b16 %v1012
        %v1077 = vunpack.c.l.b16 %v1013
        %v1078 = vunpack.c.l.b16 %v1014
        %v1079 = vunpack.c.l.b16 %v1015
        %v1080 = vunpack.c.l.b16 %v1016
        %v1081 = vunpack.c.l.b16 %v1017
        %v1082 = vunpack.c.l.b16 %v1018
        %v1083 = vunpack.c.l.b16 %v1019
        %v1084 = vunpack.c.l.b16 %v1020
        %v1085 = vunpack.c.l.b16 %v1021
        %v1086 = vunpack.c.l.b16 %v1022
        %v1087 = vunpack.c.l.b16 %v1023
        %v1088 = vunpack.c.l.b16 %v1024
        %v1089 = vunpack.c.l.b16 %v1025
        %v1090 = vunpack.c.l.b16 %v1026
        %v1091 = vunpack.c.l.b16 %v1027
        %v1092 = vpack.c.b16 %v1061, %v1060
        %v1093 = vpack.c.b16 %v1063, %v1062
        %v1094 = vpack.c.b16 %v1065, %v1064
        %v1095 = vpack.c.b16 %v1067, %v1066
        %v1096 = vpack.c.b16 %v1069, %v1068
        %v1097 = vpack.c.b16 %v1071, %v1070
        %v1098 = vpack.c.b16 %v1073, %v1072
        %v1099 = vpack.c.b16 %v1075, %v1074
        %v1100 = vpack.c.b16 %v1077, %v1076
        %v1101 = vpack.c.b16 %v1079, %v1078
        %v1102 = vpack.c.b16 %v1081, %v1080
        %v1103 = vpack.c.b16 %v1083, %v1082
        %v1104 = vpack.c.b16 %v1085, %v1084
        %v1105 = vpack.c.b16 %v1087, %v1086
        %v1106 = vpack.c.b16 %v1089, %v1088
        %v1107 = vpack.c.b16 %v1091, %v1090
        %v1109 = vsel %vm714, %v1092, 0
        %v1112 = vsel %vm714, %v1093, 0
        %v1115 = vsel %vm714, %v1094, 0
        %v1118 = vsel %vm714, %v1095, 0
        %v1121 = vsel %vm714, %v1096, 0
        %v1124 = vsel %vm714, %v1097, 0
        %v1127 = vsel %vm714, %v1098, 0
        %v1130 = vsel %vm714, %v1099, 0
        %v1133 = vsel %vm714, %v1100, 0
        %v1136 = vsel %vm714, %v1101, 0
        %v1139 = vsel %vm714, %v1102, 0
        %v1142 = vsel %vm714, %v1103, 0
        %v1145 = vsel %vm714, %v1104, 0
        %v1148 = vsel %vm714, %v1105, 0
        %v1151 = vsel %vm714, %v1106, 0
        %v1154 = vsel %vm714, %v1107, 0
        %1156 = vmatprep.subr.bf16.mxu0 0
        %1157 = vmatpush1.bf16.msra.mxu0 %v768
        %1158 = vmatprep.subr.bf16.mxu0 0
        %1159 = vmatpush1.bf16.msra.mxu0 0
        %1160 = vmatprep.subr.bf16.mxu0 0
        %1161 = vmatpush1.bf16.msra.mxu0 0
        %1162 = vmatprep.subr.bf16.mxu0 0
        %1163 = vmatpush1.bf16.msra.mxu0 0
        %1164 = vmatprep.subr.bf16.mxu0 0
        %1165 = vmatpush1.bf16.msra.mxu0 0
        %1166 = vmatprep.subr.bf16.mxu0 0
        %1167 = vmatpush1.bf16.msra.mxu0 0
        %1168 = vmatprep.subr.bf16.mxu0 0
        %1169 = vmatpush1.bf16.msra.mxu0 0
        %1170 = vmatprep.subr.bf16.mxu0 0
        %1171 = vmatpush1.bf16.msra.mxu0 0
        %1172 = vmatprep.subr.bf16.mxu0 0
        %1173 = vmatpush1.bf16.msra.mxu0 0
        %1174 = vmatprep.subr.bf16.mxu0 0
        %1175 = vmatpush1.bf16.msra.mxu0 0
        %1176 = vmatprep.subr.bf16.mxu0 0
        %1177 = vmatpush1.bf16.msra.mxu0 0
        %1178 = vmatprep.subr.bf16.mxu0 0
        %1179 = vmatpush1.bf16.msra.mxu0 0
        %1180 = vmatprep.subr.bf16.mxu0 0
        %1181 = vmatpush1.bf16.msra.mxu0 0
        %1182 = vmatprep.subr.bf16.mxu0 0
        %1183 = vmatpush1.bf16.msra.mxu0 0
        %1184 = vmatprep.subr.bf16.mxu0 0
        %1185 = vmatpush1.bf16.msra.mxu0 0
        %1186 = vmatprep.subr.bf16.mxu0 0
        %1187 = vmatpush1.bf16.msra.mxu0 0
        %1188 = vmatprep.mubr.bf16.mxu0 0
        %1189 = vmatmul.mubr.bf16.gmra.mrb[0].mxu0 %v1109
        %v1190 = vpop.f32.mrb[0].mxu0
        %v1191 = vadd.f32 %v627, %v1190
        %v1192 = vpop.f32.mrb[0].mxu0
        %v1193 = vpop.f32.mrb[0].mxu0
        %v1194 = vadd.f32 %v627, %v1193
        %v1195 = vpop.f32.mrb[0].mxu0
        %1196 = vmatprep.mubr.bf16.mxu0 0
        %1197 = vmatmul.mubr.bf16.gmra.mrb[0].mxu0 %v1112
        %v1198 = vpop.f32.mrb[0].mxu0
        %v1199 = vadd.f32 %v627, %v1198
        %v1200 = vpop.f32.mrb[0].mxu0
        %v1201 = vpop.f32.mrb[0].mxu0
        %v1202 = vadd.f32 %v627, %v1201
        %v1203 = vpop.f32.mrb[0].mxu0
        %1204 = vmatprep.mubr.bf16.mxu0 0
        %1205 = vmatmul.mubr.bf16.gmra.mrb[0].mxu0 %v1115
        %v1206 = vpop.f32.mrb[0].mxu0
        %v1207 = vadd.f32 %v627, %v1206
        %v1208 = vpop.f32.mrb[0].mxu0
        %v1209 = vpop.f32.mrb[0].mxu0
        %v1210 = vadd.f32 %v627, %v1209
        %v1211 = vpop.f32.mrb[0].mxu0
        %1212 = vmatprep.mubr.bf16.mxu0 0
        %1213 = vmatmul.mubr.bf16.gmra.mrb[0].mxu0 %v1118
        %v1214 = vpop.f32.mrb[0].mxu0
        %v1215 = vadd.f32 %v627, %v1214
        %v1216 = vpop.f32.mrb[0].mxu0
        %v1217 = vpop.f32.mrb[0].mxu0
        %v1218 = vadd.f32 %v627, %v1217
        %v1219 = vpop.f32.mrb[0].mxu0
        %1220 = vmatprep.mubr.bf16.mxu0 0
        %1221 = vmatmul.mubr.bf16.gmra.mrb[0].mxu0 %v1121
        %v1222 = vpop.f32.mrb[0].mxu0
        %v1223 = vadd.f32 %v627, %v1222
        %v1224 = vpop.f32.mrb[0].mxu0
        %v1225 = vpop.f32.mrb[0].mxu0
        %v1226 = vadd.f32 %v627, %v1225
        %v1227 = vpop.f32.mrb[0].mxu0
        %1228 = vmatprep.mubr.bf16.mxu0 0
        %1229 = vmatmul.mubr.bf16.gmra.mrb[0].mxu0 %v1124
        %v1230 = vpop.f32.mrb[0].mxu0
        %v1231 = vadd.f32 %v627, %v1230
        %v1232 = vpop.f32.mrb[0].mxu0
        %v1233 = vpop.f32.mrb[0].mxu0
        %v1234 = vadd.f32 %v627, %v1233
        %v1235 = vpop.f32.mrb[0].mxu0
        %1236 = vmatprep.mubr.bf16.mxu0 0
        %1237 = vmatmul.mubr.bf16.gmra.mrb[0].mxu0 %v1127
        %v1238 = vpop.f32.mrb[0].mxu0
        %v1239 = vadd.f32 %v627, %v1238
        %v1240 = vpop.f32.mrb[0].mxu0
        %v1241 = vpop.f32.mrb[0].mxu0
        %v1242 = vadd.f32 %v627, %v1241
        %v1243 = vpop.f32.mrb[0].mxu0
        %1244 = vmatprep.mubr.bf16.mxu0 0
        %1245 = vmatmul.mubr.bf16.gmra.mrb[0].mxu0 %v1130
        %v1246 = vpop.f32.mrb[0].mxu0
        %v1247 = vadd.f32 %v627, %v1246
        %v1248 = vpop.f32.mrb[0].mxu0
        %v1249 = vpop.f32.mrb[0].mxu0
        %v1250 = vadd.f32 %v627, %v1249
        %v1251 = vpop.f32.mrb[0].mxu0
        %1252 = vmatprep.mubr.bf16.mxu0 0
        %1253 = vmatmul.mubr.bf16.gmra.mrb[0].mxu0 %v1133
        %v1254 = vpop.f32.mrb[0].mxu0
        %v1255 = vadd.f32 %v627, %v1254
        %v1256 = vpop.f32.mrb[0].mxu0
        %v1257 = vpop.f32.mrb[0].mxu0
        %v1258 = vadd.f32 %v627, %v1257
        %v1259 = vpop.f32.mrb[0].mxu0
        %1260 = vmatprep.mubr.bf16.mxu0 0
        %1261 = vmatmul.mubr.bf16.gmra.mrb[0].mxu0 %v1136
        %v1262 = vpop.f32.mrb[0].mxu0
        %v1263 = vadd.f32 %v627, %v1262
        %v1264 = vpop.f32.mrb[0].mxu0
        %v1265 = vpop.f32.mrb[0].mxu0
        %v1266 = vadd.f32 %v627, %v1265
        %v1267 = vpop.f32.mrb[0].mxu0
        %1268 = vmatprep.mubr.bf16.mxu0 0
        %1269 = vmatmul.mubr.bf16.gmra.mrb[0].mxu0 %v1139
        %v1270 = vpop.f32.mrb[0].mxu0
        %v1271 = vadd.f32 %v627, %v1270
        %v1272 = vpop.f32.mrb[0].mxu0
        %v1273 = vpop.f32.mrb[0].mxu0
        %v1274 = vadd.f32 %v627, %v1273
        %v1275 = vpop.f32.mrb[0].mxu0
        %1276 = vmatprep.mubr.bf16.mxu0 0
        %1277 = vmatmul.mubr.bf16.gmra.mrb[0].mxu0 %v1142
        %v1278 = vpop.f32.mrb[0].mxu0
        %v1279 = vadd.f32 %v627, %v1278
        %v1280 = vpop.f32.mrb[0].mxu0
        %v1281 = vpop.f32.mrb[0].mxu0
        %v1282 = vadd.f32 %v627, %v1281
        %v1283 = vpop.f32.mrb[0].mxu0
        %1284 = vmatprep.mubr.bf16.mxu0 0
        %1285 = vmatmul.mubr.bf16.gmra.mrb[0].mxu0 %v1145
        %v1286 = vpop.f32.mrb[0].mxu0
        %v1287 = vadd.f32 %v627, %v1286
        %v1288 = vpop.f32.mrb[0].mxu0
        %v1289 = vpop.f32.mrb[0].mxu0
        %v1290 = vadd.f32 %v627, %v1289
        %v1291 = vpop.f32.mrb[0].mxu0
        %1292 = vmatprep.mubr.bf16.mxu0 0
        %1293 = vmatmul.mubr.bf16.gmra.mrb[0].mxu0 %v1148
        %v1294 = vpop.f32.mrb[0].mxu0
        %v1295 = vadd.f32 %v627, %v1294
        %v1296 = vpop.f32.mrb[0].mxu0
        %v1297 = vpop.f32.mrb[0].mxu0
        %v1298 = vadd.f32 %v627, %v1297
        %v1299 = vpop.f32.mrb[0].mxu0
        %1300 = vmatprep.mubr.bf16.mxu0 0
        %1301 = vmatmul.mubr.bf16.gmra.mrb[0].mxu0 %v1151
        %v1302 = vpop.f32.mrb[0].mxu0
        %v1303 = vadd.f32 %v627, %v1302
        %v1304 = vpop.f32.mrb[0].mxu0
        %v1305 = vpop.f32.mrb[0].mxu0
        %v1306 = vadd.f32 %v627, %v1305
        %v1307 = vpop.f32.mrb[0].mxu0
        %1308 = vmatprep.mubr.bf16.mxu0 0
        %1309 = vmatmul.mubr.bf16.gmra.mrb[0].mxu0 %v1154
        %v1310 = vpop.f32.mrb[0].mxu0
        %v1311 = vadd.f32 %v627, %v1310
        %v1312 = vpop.f32.mrb[0].mxu0
        %v1313 = vpop.f32.mrb[0].mxu0
        %v1314 = vadd.f32 %v627, %v1313
        %v1315 = vpop.f32.mrb[0].mxu0
        %1316 = vdwg.mxu0
        %v1317 = vmax.f32 %v1191, 0.0
        %v1318 = vmax.f32 %v1194, 0.0
        %v1319 = vmax.f32 %v1199, 0.0
        %v1320 = vmax.f32 %v1202, 0.0
        %v1321 = vmax.f32 %v1207, 0.0
        %v1322 = vmax.f32 %v1210, 0.0
        %v1323 = vmax.f32 %v1215, 0.0
        %v1324 = vmax.f32 %v1218, 0.0
        %v1325 = vmax.f32 %v1223, 0.0
        %v1326 = vmax.f32 %v1226, 0.0
        %v1327 = vmax.f32 %v1231, 0.0
        %v1328 = vmax.f32 %v1234, 0.0
        %v1329 = vmax.f32 %v1239, 0.0
        %v1330 = vmax.f32 %v1242, 0.0
        %v1331 = vmax.f32 %v1247, 0.0
        %v1332 = vmax.f32 %v1250, 0.0
        %v1333 = vmax.f32 %v1255, 0.0
        %v1334 = vmax.f32 %v1258, 0.0
        %v1335 = vmax.f32 %v1263, 0.0
        %v1336 = vmax.f32 %v1266, 0.0
        %v1337 = vmax.f32 %v1271, 0.0
        %v1338 = vmax.f32 %v1274, 0.0
        %v1339 = vmax.f32 %v1279, 0.0
        %v1340 = vmax.f32 %v1282, 0.0
        %v1341 = vmax.f32 %v1287, 0.0
        %v1342 = vmax.f32 %v1290, 0.0
        %v1343 = vmax.f32 %v1295, 0.0
        %v1344 = vmax.f32 %v1298, 0.0
        %v1345 = vmax.f32 %v1303, 0.0
        %v1346 = vmax.f32 %v1306, 0.0
        %v1347 = vmax.f32 %v1311, 0.0
        %v1348 = vmax.f32 %v1314, 0.0
        %v1349 = vadd.f32 %v963, %v1317
        %v1350 = vadd.f32 %v964, %v1318
        %v1351 = vadd.f32 %v965, %v1319
        %v1352 = vadd.f32 %v966, %v1320
        %v1353 = vadd.f32 %v967, %v1321
        %v1354 = vadd.f32 %v968, %v1322
        %v1355 = vadd.f32 %v969, %v1323
        %v1356 = vadd.f32 %v970, %v1324
        %v1357 = vadd.f32 %v971, %v1325
        %v1358 = vadd.f32 %v972, %v1326
        %v1359 = vadd.f32 %v973, %v1327
        %v1360 = vadd.f32 %v974, %v1328
        %v1361 = vadd.f32 %v975, %v1329
        %v1362 = vadd.f32 %v976, %v1330
        %v1363 = vadd.f32 %v977, %v1331
        %v1364 = vadd.f32 %v978, %v1332
        %v1365 = vadd.f32 %v979, %v1333
        %v1366 = vadd.f32 %v980, %v1334
        %v1367 = vadd.f32 %v981, %v1335
        %v1368 = vadd.f32 %v982, %v1336
        %v1369 = vadd.f32 %v983, %v1337
        %v1370 = vadd.f32 %v984, %v1338
        %v1371 = vadd.f32 %v985, %v1339
        %v1372 = vadd.f32 %v986, %v1340
        %v1373 = vadd.f32 %v987, %v1341
        %v1374 = vadd.f32 %v988, %v1342
        %v1375 = vadd.f32 %v989, %v1343
        %v1376 = vadd.f32 %v990, %v1344
        %v1377 = vadd.f32 %v991, %v1345
        %v1378 = vadd.f32 %v992, %v1346
        %v1379 = vadd.f32 %v993, %v1347
        %v1380 = vadd.f32 %v994, %v1348
        %s1381 = scalar_lea.vmem %s557, 256 [#allocation2]
        %v1382 = vld [vmem:[%s1381] sm:$0xf]
        %v1383 = vld [vmem:[%s1381 + $0x4] sm:$0xf]
        %v1384 = vld [vmem:[%s1381 + $0x8] sm:$0xf]
        %v1385 = vld [vmem:[%s1381 + $0xc] sm:$0xf]
        %v1386 = vld [vmem:[%s1381 + $0x10] sm:$0xf]
        %v1387 = vld [vmem:[%s1381 + $0x14] sm:$0xf]
        %v1388 = vld [vmem:[%s1381 + $0x18] sm:$0xf]
        %v1389 = vld [vmem:[%s1381 + $0x1c] sm:$0xf]
        %v1390 = vld [vmem:[%s1381 + $0x20] sm:$0xf]
        %v1391 = vld [vmem:[%s1381 + $0x24] sm:$0xf]
        %v1392 = vld [vmem:[%s1381 + $0x28] sm:$0xf]
        %v1393 = vld [vmem:[%s1381 + $0x2c] sm:$0xf]
        %v1394 = vld [vmem:[%s1381 + $0x30] sm:$0xf]
        %v1395 = vld [vmem:[%s1381 + $0x34] sm:$0xf]
        %v1396 = vld [vmem:[%s1381 + $0x38] sm:$0xf]
        %v1397 = vld [vmem:[%s1381 + $0x3c] sm:$0xf]
        %v1398 = vld [vmem:[%s1381 + $0x40] sm:$0xf]
        %v1399 = vld [vmem:[%s1381 + $0x44] sm:$0xf]
        %v1400 = vld [vmem:[%s1381 + $0x48] sm:$0xf]
        %v1401 = vld [vmem:[%s1381 + $0x4c] sm:$0xf]
        %v1402 = vld [vmem:[%s1381 + $0x50] sm:$0xf]
        %v1403 = vld [vmem:[%s1381 + $0x54] sm:$0xf]
        %v1404 = vld [vmem:[%s1381 + $0x58] sm:$0xf]
        %v1405 = vld [vmem:[%s1381 + $0x5c] sm:$0xf]
        %v1406 = vld [vmem:[%s1381 + $0x60] sm:$0xf]
        %v1407 = vld [vmem:[%s1381 + $0x64] sm:$0xf]
        %v1408 = vld [vmem:[%s1381 + $0x68] sm:$0xf]
        %v1409 = vld [vmem:[%s1381 + $0x6c] sm:$0xf]
        %v1410 = vld [vmem:[%s1381 + $0x70] sm:$0xf]
        %v1411 = vld [vmem:[%s1381 + $0x74] sm:$0xf]
        %v1412 = vld [vmem:[%s1381 + $0x78] sm:$0xf]
        %v1413 = vld [vmem:[%s1381 + $0x7c] sm:$0xf]
        %v1446 = vunpack.c.l.b16 %v1382
        %v1447 = vunpack.c.l.b16 %v1383
        %v1448 = vunpack.c.l.b16 %v1384
        %v1449 = vunpack.c.l.b16 %v1385
        %v1450 = vunpack.c.l.b16 %v1386
        %v1451 = vunpack.c.l.b16 %v1387
        %v1452 = vunpack.c.l.b16 %v1388
        %v1453 = vunpack.c.l.b16 %v1389
        %v1454 = vunpack.c.l.b16 %v1390
        %v1455 = vunpack.c.l.b16 %v1391
        %v1456 = vunpack.c.l.b16 %v1392
        %v1457 = vunpack.c.l.b16 %v1393
        %v1458 = vunpack.c.l.b16 %v1394
        %v1459 = vunpack.c.l.b16 %v1395
        %v1460 = vunpack.c.l.b16 %v1396
        %v1461 = vunpack.c.l.b16 %v1397
        %v1462 = vunpack.c.l.b16 %v1398
        %v1463 = vunpack.c.l.b16 %v1399
        %v1464 = vunpack.c.l.b16 %v1400
        %v1465 = vunpack.c.l.b16 %v1401
        %v1466 = vunpack.c.l.b16 %v1402
        %v1467 = vunpack.c.l.b16 %v1403
        %v1468 = vunpack.c.l.b16 %v1404
        %v1469 = vunpack.c.l.b16 %v1405
        %v1470 = vunpack.c.l.b16 %v1406
        %v1471 = vunpack.c.l.b16 %v1407
        %v1472 = vunpack.c.l.b16 %v1408
        %v1473 = vunpack.c.l.b16 %v1409
        %v1474 = vunpack.c.l.b16 %v1410
        %v1475 = vunpack.c.l.b16 %v1411
        %v1476 = vunpack.c.l.b16 %v1412
        %v1477 = vunpack.c.l.b16 %v1413
        %v1478 = vpack.c.b16 %v1447, %v1446
        %v1479 = vpack.c.b16 %v1449, %v1448
        %v1480 = vpack.c.b16 %v1451, %v1450
        %v1481 = vpack.c.b16 %v1453, %v1452
        %v1482 = vpack.c.b16 %v1455, %v1454
        %v1483 = vpack.c.b16 %v1457, %v1456
        %v1484 = vpack.c.b16 %v1459, %v1458
        %v1485 = vpack.c.b16 %v1461, %v1460
        %v1486 = vpack.c.b16 %v1463, %v1462
        %v1487 = vpack.c.b16 %v1465, %v1464
        %v1488 = vpack.c.b16 %v1467, %v1466
        %v1489 = vpack.c.b16 %v1469, %v1468
        %v1490 = vpack.c.b16 %v1471, %v1470
        %v1491 = vpack.c.b16 %v1473, %v1472
        %v1492 = vpack.c.b16 %v1475, %v1474
        %v1493 = vpack.c.b16 %v1477, %v1476
        %v1495 = vsel %vm714, %v1478, 0
        %v1498 = vsel %vm714, %v1479, 0
        %v1501 = vsel %vm714, %v1480, 0
        %v1504 = vsel %vm714, %v1481, 0
        %v1507 = vsel %vm714, %v1482, 0
        %v1510 = vsel %vm714, %v1483, 0
        %v1513 = vsel %vm714, %v1484, 0
        %v1516 = vsel %vm714, %v1485, 0
        %v1519 = vsel %vm714, %v1486, 0
        %v1522 = vsel %vm714, %v1487, 0
        %v1525 = vsel %vm714, %v1488, 0
        %v1528 = vsel %vm714, %v1489, 0
        %v1531 = vsel %vm714, %v1490, 0
        %v1534 = vsel %vm714, %v1491, 0
        %v1537 = vsel %vm714, %v1492, 0
        %v1540 = vsel %vm714, %v1493, 0
        %1542 = vmatprep.subr.bf16.mxu0 0
        %1543 = vmatpush1.bf16.msra.mxu0 %v768
        %1544 = vmatprep.subr.bf16.mxu0 0
        %1545 = vmatpush1.bf16.msra.mxu0 0
        %1546 = vmatprep.subr.bf16.mxu0 0
        %1547 = vmatpush1.bf16.msra.mxu0 0
        %1548 = vmatprep.subr.bf16.mxu0 0
        %1549 = vmatpush1.bf16.msra.mxu0 0
        %1550 = vmatprep.subr.bf16.mxu0 0
        %1551 = vmatpush1.bf16.msra.mxu0 0
        %1552 = vmatprep.subr.bf16.mxu0 0
        %1553 = vmatpush1.bf16.msra.mxu0 0
        %1554 = vmatprep.subr.bf16.mxu0 0
        %1555 = vmatpush1.bf16.msra.mxu0 0
        %1556 = vmatprep.subr.bf16.mxu0 0
        %1557 = vmatpush1.bf16.msra.mxu0 0
        %1558 = vmatprep.subr.bf16.mxu0 0
        %1559 = vmatpush1.bf16.msra.mxu0 0
        %1560 = vmatprep.subr.bf16.mxu0 0
        %1561 = vmatpush1.bf16.msra.mxu0 0
        %1562 = vmatprep.subr.bf16.mxu0 0
        %1563 = vmatpush1.bf16.msra.mxu0 0
        %1564 = vmatprep.subr.bf16.mxu0 0
        %1565 = vmatpush1.bf16.msra.mxu0 0
        %1566 = vmatprep.subr.bf16.mxu0 0
        %1567 = vmatpush1.bf16.msra.mxu0 0
        %1568 = vmatprep.subr.bf16.mxu0 0
        %1569 = vmatpush1.bf16.msra.mxu0 0
        %1570 = vmatprep.subr.bf16.mxu0 0
        %1571 = vmatpush1.bf16.msra.mxu0 0
        %1572 = vmatprep.subr.bf16.mxu0 0
        %1573 = vmatpush1.bf16.msra.mxu0 0
        %1574 = vmatprep.mubr.bf16.mxu0 0
        %1575 = vmatmul.mubr.bf16.gmra.mrb[0].mxu0 %v1495
        %v1576 = vpop.f32.mrb[0].mxu0
        %v1577 = vadd.f32 %v627, %v1576
        %v1578 = vpop.f32.mrb[0].mxu0
        %v1579 = vpop.f32.mrb[0].mxu0
        %v1580 = vadd.f32 %v627, %v1579
        %v1581 = vpop.f32.mrb[0].mxu0
        %1582 = vmatprep.mubr.bf16.mxu0 0
        %1583 = vmatmul.mubr.bf16.gmra.mrb[0].mxu0 %v1498
        %v1584 = vpop.f32.mrb[0].mxu0
        %v1585 = vadd.f32 %v627, %v1584
        %v1586 = vpop.f32.mrb[0].mxu0
        %v1587 = vpop.f32.mrb[0].mxu0
        %v1588 = vadd.f32 %v627, %v1587
        %v1589 = vpop.f32.mrb[0].mxu0
        %1590 = vmatprep.mubr.bf16.mxu0 0
        %1591 = vmatmul.mubr.bf16.gmra.mrb[0].mxu0 %v1501
        %v1592 = vpop.f32.mrb[0].mxu0
        %v1593 = vadd.f32 %v627, %v1592
        %v1594 = vpop.f32.mrb[0].mxu0
        %v1595 = vpop.f32.mrb[0].mxu0
        %v1596 = vadd.f32 %v627, %v1595
        %v1597 = vpop.f32.mrb[0].mxu0
        %1598 = vmatprep.mubr.bf16.mxu0 0
        %1599 = vmatmul.mubr.bf16.gmra.mrb[0].mxu0 %v1504
        %v1600 = vpop.f32.mrb[0].mxu0
        %v1601 = vadd.f32 %v627, %v1600
        %v1602 = vpop.f32.mrb[0].mxu0
        %v1603 = vpop.f32.mrb[0].mxu0
        %v1604 = vadd.f32 %v627, %v1603
        %v1605 = vpop.f32.mrb[0].mxu0
        %1606 = vmatprep.mubr.bf16.mxu0 0
        %1607 = vmatmul.mubr.bf16.gmra.mrb[0].mxu0 %v1507
        %v1608 = vpop.f32.mrb[0].mxu0
        %v1609 = vadd.f32 %v627, %v1608
        %v1610 = vpop.f32.mrb[0].mxu0
        %v1611 = vpop.f32.mrb[0].mxu0
        %v1612 = vadd.f32 %v627, %v1611
        %v1613 = vpop.f32.mrb[0].mxu0
        %1614 = vmatprep.mubr.bf16.mxu0 0
        %1615 = vmatmul.mubr.bf16.gmra.mrb[0].mxu0 %v1510
        %v1616 = vpop.f32.mrb[0].mxu0
        %v1617 = vadd.f32 %v627, %v1616
        %v1618 = vpop.f32.mrb[0].mxu0
        %v1619 = vpop.f32.mrb[0].mxu0
        %v1620 = vadd.f32 %v627, %v1619
        %v1621 = vpop.f32.mrb[0].mxu0
        %1622 = vmatprep.mubr.bf16.mxu0 0
        %1623 = vmatmul.mubr.bf16.gmra.mrb[0].mxu0 %v1513
        %v1624 = vpop.f32.mrb[0].mxu0
        %v1625 = vadd.f32 %v627, %v1624
        %v1626 = vpop.f32.mrb[0].mxu0
        %v1627 = vpop.f32.mrb[0].mxu0
        %v1628 = vadd.f32 %v627, %v1627
        %v1629 = vpop.f32.mrb[0].mxu0
        %1630 = vmatprep.mubr.bf16.mxu0 0
        %1631 = vmatmul.mubr.bf16.gmra.mrb[0].mxu0 %v1516
        %v1632 = vpop.f32.mrb[0].mxu0
        %v1633 = vadd.f32 %v627, %v1632
        %v1634 = vpop.f32.mrb[0].mxu0
        %v1635 = vpop.f32.mrb[0].mxu0
        %v1636 = vadd.f32 %v627, %v1635
        %v1637 = vpop.f32.mrb[0].mxu0
        %1638 = vmatprep.mubr.bf16.mxu0 0
        %1639 = vmatmul.mubr.bf16.gmra.mrb[0].mxu0 %v1519
        %v1640 = vpop.f32.mrb[0].mxu0
        %v1641 = vadd.f32 %v627, %v1640
        %v1642 = vpop.f32.mrb[0].mxu0
        %v1643 = vpop.f32.mrb[0].mxu0
        %v1644 = vadd.f32 %v627, %v1643
        %v1645 = vpop.f32.mrb[0].mxu0
        %1646 = vmatprep.mubr.bf16.mxu0 0
        %1647 = vmatmul.mubr.bf16.gmra.mrb[0].mxu0 %v1522
        %v1648 = vpop.f32.mrb[0].mxu0
        %v1649 = vadd.f32 %v627, %v1648
        %v1650 = vpop.f32.mrb[0].mxu0
        %v1651 = vpop.f32.mrb[0].mxu0
        %v1652 = vadd.f32 %v627, %v1651
        %v1653 = vpop.f32.mrb[0].mxu0
        %1654 = vmatprep.mubr.bf16.mxu0 0
        %1655 = vmatmul.mubr.bf16.gmra.mrb[0].mxu0 %v1525
        %v1656 = vpop.f32.mrb[0].mxu0
        %v1657 = vadd.f32 %v627, %v1656
        %v1658 = vpop.f32.mrb[0].mxu0
        %v1659 = vpop.f32.mrb[0].mxu0
        %v1660 = vadd.f32 %v627, %v1659
        %v1661 = vpop.f32.mrb[0].mxu0
        %1662 = vmatprep.mubr.bf16.mxu0 0
        %1663 = vmatmul.mubr.bf16.gmra.mrb[0].mxu0 %v1528
        %v1664 = vpop.f32.mrb[0].mxu0
        %v1665 = vadd.f32 %v627, %v1664
        %v1666 = vpop.f32.mrb[0].mxu0
        %v1667 = vpop.f32.mrb[0].mxu0
        %v1668 = vadd.f32 %v627, %v1667
        %v1669 = vpop.f32.mrb[0].mxu0
        %1670 = vmatprep.mubr.bf16.mxu0 0
        %1671 = vmatmul.mubr.bf16.gmra.mrb[0].mxu0 %v1531
        %v1672 = vpop.f32.mrb[0].mxu0
        %v1673 = vadd.f32 %v627, %v1672
        %v1674 = vpop.f32.mrb[0].mxu0
        %v1675 = vpop.f32.mrb[0].mxu0
        %v1676 = vadd.f32 %v627, %v1675
        %v1677 = vpop.f32.mrb[0].mxu0
        %1678 = vmatprep.mubr.bf16.mxu0 0
        %1679 = vmatmul.mubr.bf16.gmra.mrb[0].mxu0 %v1534
        %v1680 = vpop.f32.mrb[0].mxu0
        %v1681 = vadd.f32 %v627, %v1680
        %v1682 = vpop.f32.mrb[0].mxu0
        %v1683 = vpop.f32.mrb[0].mxu0
        %v1684 = vadd.f32 %v627, %v1683
        %v1685 = vpop.f32.mrb[0].mxu0
        %1686 = vmatprep.mubr.bf16.mxu0 0
        %1687 = vmatmul.mubr.bf16.gmra.mrb[0].mxu0 %v1537
        %v1688 = vpop.f32.mrb[0].mxu0
        %v1689 = vadd.f32 %v627, %v1688
        %v1690 = vpop.f32.mrb[0].mxu0
        %v1691 = vpop.f32.mrb[0].mxu0
        %v1692 = vadd.f32 %v627, %v1691
        %v1693 = vpop.f32.mrb[0].mxu0
        %1694 = vmatprep.mubr.bf16.mxu0 0
        %1695 = vmatmul.mubr.bf16.gmra.mrb[0].mxu0 %v1540
        %v1696 = vpop.f32.mrb[0].mxu0
        %v1697 = vadd.f32 %v627, %v1696
        %v1698 = vpop.f32.mrb[0].mxu0
        %v1699 = vpop.f32.mrb[0].mxu0
        %v1700 = vadd.f32 %v627, %v1699
        %v1701 = vpop.f32.mrb[0].mxu0
        %1702 = vdwg.mxu0
        %v1703 = vmax.f32 %v1577, 0.0
        %v1704 = vmax.f32 %v1580, 0.0
        %v1705 = vmax.f32 %v1585, 0.0
        %v1706 = vmax.f32 %v1588, 0.0
        %v1707 = vmax.f32 %v1593, 0.0
        %v1708 = vmax.f32 %v1596, 0.0
        %v1709 = vmax.f32 %v1601, 0.0
        %v1710 = vmax.f32 %v1604, 0.0
        %v1711 = vmax.f32 %v1609, 0.0
        %v1712 = vmax.f32 %v1612, 0.0
        %v1713 = vmax.f32 %v1617, 0.0
        %v1714 = vmax.f32 %v1620, 0.0
        %v1715 = vmax.f32 %v1625, 0.0
        %v1716 = vmax.f32 %v1628, 0.0
        %v1717 = vmax.f32 %v1633, 0.0
        %v1718 = vmax.f32 %v1636, 0.0
        %v1719 = vmax.f32 %v1641, 0.0
        %v1720 = vmax.f32 %v1644, 0.0
        %v1721 = vmax.f32 %v1649, 0.0
        %v1722 = vmax.f32 %v1652, 0.0
        %v1723 = vmax.f32 %v1657, 0.0
        %v1724 = vmax.f32 %v1660, 0.0
        %v1725 = vmax.f32 %v1665, 0.0
        %v1726 = vmax.f32 %v1668, 0.0
        %v1727 = vmax.f32 %v1673, 0.0
        %v1728 = vmax.f32 %v1676, 0.0
        %v1729 = vmax.f32 %v1681, 0.0
        %v1730 = vmax.f32 %v1684, 0.0
        %v1731 = vmax.f32 %v1689, 0.0
        %v1732 = vmax.f32 %v1692, 0.0
        %v1733 = vmax.f32 %v1697, 0.0
        %v1734 = vmax.f32 %v1700, 0.0
        %v1735 = vadd.f32 %v1349, %v1703
        %v1736 = vadd.f32 %v1350, %v1704
        %v1737 = vadd.f32 %v1351, %v1705
        %v1738 = vadd.f32 %v1352, %v1706
        %v1739 = vadd.f32 %v1353, %v1707
        %v1740 = vadd.f32 %v1354, %v1708
        %v1741 = vadd.f32 %v1355, %v1709
        %v1742 = vadd.f32 %v1356, %v1710
        %v1743 = vadd.f32 %v1357, %v1711
        %v1744 = vadd.f32 %v1358, %v1712
        %v1745 = vadd.f32 %v1359, %v1713
        %v1746 = vadd.f32 %v1360, %v1714
        %v1747 = vadd.f32 %v1361, %v1715
        %v1748 = vadd.f32 %v1362, %v1716
        %v1749 = vadd.f32 %v1363, %v1717
        %v1750 = vadd.f32 %v1364, %v1718
        %v1751 = vadd.f32 %v1365, %v1719
        %v1752 = vadd.f32 %v1366, %v1720
        %v1753 = vadd.f32 %v1367, %v1721
        %v1754 = vadd.f32 %v1368, %v1722
        %v1755 = vadd.f32 %v1369, %v1723
        %v1756 = vadd.f32 %v1370, %v1724
        %v1757 = vadd.f32 %v1371, %v1725
        %v1758 = vadd.f32 %v1372, %v1726
        %v1759 = vadd.f32 %v1373, %v1727
        %v1760 = vadd.f32 %v1374, %v1728
        %v1761 = vadd.f32 %v1375, %v1729
        %v1762 = vadd.f32 %v1376, %v1730
        %v1763 = vadd.f32 %v1377, %v1731
        %v1764 = vadd.f32 %v1378, %v1732
        %v1765 = vadd.f32 %v1379, %v1733
        %v1766 = vadd.f32 %v1380, %v1734
        %s1767 = scalar_lea.vmem %s557, 384 [#allocation2]
        %v1768 = vld [vmem:[%s1767] sm:$0xf]
        %v1769 = vld [vmem:[%s1767 + $0x4] sm:$0xf]
        %v1770 = vld [vmem:[%s1767 + $0x8] sm:$0xf]
        %v1771 = vld [vmem:[%s1767 + $0xc] sm:$0xf]
        %v1772 = vld [vmem:[%s1767 + $0x10] sm:$0xf]
        %v1773 = vld [vmem:[%s1767 + $0x14] sm:$0xf]
        %v1774 = vld [vmem:[%s1767 + $0x18] sm:$0xf]
        %v1775 = vld [vmem:[%s1767 + $0x1c] sm:$0xf]
        %v1776 = vld [vmem:[%s1767 + $0x20] sm:$0xf]
        %v1777 = vld [vmem:[%s1767 + $0x24] sm:$0xf]
        %v1778 = vld [vmem:[%s1767 + $0x28] sm:$0xf]
        %v1779 = vld [vmem:[%s1767 + $0x2c] sm:$0xf]
        %v1780 = vld [vmem:[%s1767 + $0x30] sm:$0xf]
        %v1781 = vld [vmem:[%s1767 + $0x34] sm:$0xf]
        %v1782 = vld [vmem:[%s1767 + $0x38] sm:$0xf]
        %v1783 = vld [vmem:[%s1767 + $0x3c] sm:$0xf]
        %v1784 = vld [vmem:[%s1767 + $0x40] sm:$0xf]
        %v1785 = vld [vmem:[%s1767 + $0x44] sm:$0xf]
        %v1786 = vld [vmem:[%s1767 + $0x48] sm:$0xf]
        %v1787 = vld [vmem:[%s1767 + $0x4c] sm:$0xf]
        %v1788 = vld [vmem:[%s1767 + $0x50] sm:$0xf]
        %v1789 = vld [vmem:[%s1767 + $0x54] sm:$0xf]
        %v1790 = vld [vmem:[%s1767 + $0x58] sm:$0xf]
        %v1791 = vld [vmem:[%s1767 + $0x5c] sm:$0xf]
        %v1792 = vld [vmem:[%s1767 + $0x60] sm:$0xf]
        %v1793 = vld [vmem:[%s1767 + $0x64] sm:$0xf]
        %v1794 = vld [vmem:[%s1767 + $0x68] sm:$0xf]
        %v1795 = vld [vmem:[%s1767 + $0x6c] sm:$0xf]
        %v1796 = vld [vmem:[%s1767 + $0x70] sm:$0xf]
        %v1797 = vld [vmem:[%s1767 + $0x74] sm:$0xf]
        %v1798 = vld [vmem:[%s1767 + $0x78] sm:$0xf]
        %v1799 = vld [vmem:[%s1767 + $0x7c] sm:$0xf]
        %v1832 = vunpack.c.l.b16 %v1768
        %v1833 = vunpack.c.l.b16 %v1769
        %v1834 = vunpack.c.l.b16 %v1770
        %v1835 = vunpack.c.l.b16 %v1771
        %v1836 = vunpack.c.l.b16 %v1772
        %v1837 = vunpack.c.l.b16 %v1773
        %v1838 = vunpack.c.l.b16 %v1774
        %v1839 = vunpack.c.l.b16 %v1775
        %v1840 = vunpack.c.l.b16 %v1776
        %v1841 = vunpack.c.l.b16 %v1777
        %v1842 = vunpack.c.l.b16 %v1778
        %v1843 = vunpack.c.l.b16 %v1779
        %v1844 = vunpack.c.l.b16 %v1780
        %v1845 = vunpack.c.l.b16 %v1781
        %v1846 = vunpack.c.l.b16 %v1782
        %v1847 = vunpack.c.l.b16 %v1783
        %v1848 = vunpack.c.l.b16 %v1784
        %v1849 = vunpack.c.l.b16 %v1785
        %v1850 = vunpack.c.l.b16 %v1786
        %v1851 = vunpack.c.l.b16 %v1787
        %v1852 = vunpack.c.l.b16 %v1788
        %v1853 = vunpack.c.l.b16 %v1789
        %v1854 = vunpack.c.l.b16 %v1790
        %v1855 = vunpack.c.l.b16 %v1791
        %v1856 = vunpack.c.l.b16 %v1792
        %v1857 = vunpack.c.l.b16 %v1793
        %v1858 = vunpack.c.l.b16 %v1794
        %v1859 = vunpack.c.l.b16 %v1795
        %v1860 = vunpack.c.l.b16 %v1796
        %v1861 = vunpack.c.l.b16 %v1797
        %v1862 = vunpack.c.l.b16 %v1798
        %v1863 = vunpack.c.l.b16 %v1799
        %v1864 = vpack.c.b16 %v1833, %v1832
        %v1865 = vpack.c.b16 %v1835, %v1834
        %v1866 = vpack.c.b16 %v1837, %v1836
        %v1867 = vpack.c.b16 %v1839, %v1838
        %v1868 = vpack.c.b16 %v1841, %v1840
        %v1869 = vpack.c.b16 %v1843, %v1842
        %v1870 = vpack.c.b16 %v1845, %v1844
        %v1871 = vpack.c.b16 %v1847, %v1846
        %v1872 = vpack.c.b16 %v1849, %v1848
        %v1873 = vpack.c.b16 %v1851, %v1850
        %v1874 = vpack.c.b16 %v1853, %v1852
        %v1875 = vpack.c.b16 %v1855, %v1854
        %v1876 = vpack.c.b16 %v1857, %v1856
        %v1877 = vpack.c.b16 %v1859, %v1858
        %v1878 = vpack.c.b16 %v1861, %v1860
        %v1879 = vpack.c.b16 %v1863, %v1862
        %v1881 = vsel %vm714, %v1864, 0
        %v1884 = vsel %vm714, %v1865, 0
        %v1887 = vsel %vm714, %v1866, 0
        %v1890 = vsel %vm714, %v1867, 0
        %v1893 = vsel %vm714, %v1868, 0
        %v1896 = vsel %vm714, %v1869, 0
        %v1899 = vsel %vm714, %v1870, 0
        %v1902 = vsel %vm714, %v1871, 0
        %v1905 = vsel %vm714, %v1872, 0
        %v1908 = vsel %vm714, %v1873, 0
        %v1911 = vsel %vm714, %v1874, 0
        %v1914 = vsel %vm714, %v1875, 0
        %v1917 = vsel %vm714, %v1876, 0
        %v1920 = vsel %vm714, %v1877, 0
        %v1923 = vsel %vm714, %v1878, 0
        %v1926 = vsel %vm714, %v1879, 0
        %1928 = vmatprep.subr.bf16.mxu0 0
        %1929 = vmatpush1.bf16.msra.mxu0 %v768
        %1930 = vmatprep.subr.bf16.mxu0 0
        %1931 = vmatpush1.bf16.msra.mxu0 0
        %1932 = vmatprep.subr.bf16.mxu0 0
        %1933 = vmatpush1.bf16.msra.mxu0 0
        %1934 = vmatprep.subr.bf16.mxu0 0
        %1935 = vmatpush1.bf16.msra.mxu0 0
        %1936 = vmatprep.subr.bf16.mxu0 0
        %1937 = vmatpush1.bf16.msra.mxu0 0
        %1938 = vmatprep.subr.bf16.mxu0 0
        %1939 = vmatpush1.bf16.msra.mxu0 0
        %1940 = vmatprep.subr.bf16.mxu0 0
        %1941 = vmatpush1.bf16.msra.mxu0 0
        %1942 = vmatprep.subr.bf16.mxu0 0
        %1943 = vmatpush1.bf16.msra.mxu0 0
        %1944 = vmatprep.subr.bf16.mxu0 0
        %1945 = vmatpush1.bf16.msra.mxu0 0
        %1946 = vmatprep.subr.bf16.mxu0 0
        %1947 = vmatpush1.bf16.msra.mxu0 0
        %1948 = vmatprep.subr.bf16.mxu0 0
        %1949 = vmatpush1.bf16.msra.mxu0 0
        %1950 = vmatprep.subr.bf16.mxu0 0
        %1951 = vmatpush1.bf16.msra.mxu0 0
        %1952 = vmatprep.subr.bf16.mxu0 0
        %1953 = vmatpush1.bf16.msra.mxu0 0
        %1954 = vmatprep.subr.bf16.mxu0 0
        %1955 = vmatpush1.bf16.msra.mxu0 0
        %1956 = vmatprep.subr.bf16.mxu0 0
        %1957 = vmatpush1.bf16.msra.mxu0 0
        %1958 = vmatprep.subr.bf16.mxu0 0
        %1959 = vmatpush1.bf16.msra.mxu0 0
        %1960 = vmatprep.mubr.bf16.mxu0 0
        %1961 = vmatmul.mubr.bf16.gmra.mrb[0].mxu0 %v1881
        %v1962 = vpop.f32.mrb[0].mxu0
        %v1963 = vadd.f32 %v627, %v1962
        %v1964 = vpop.f32.mrb[0].mxu0
        %v1965 = vpop.f32.mrb[0].mxu0
        %v1966 = vadd.f32 %v627, %v1965
        %v1967 = vpop.f32.mrb[0].mxu0
        %1968 = vmatprep.mubr.bf16.mxu0 0
        %1969 = vmatmul.mubr.bf16.gmra.mrb[0].mxu0 %v1884
        %v1970 = vpop.f32.mrb[0].mxu0
        %v1971 = vadd.f32 %v627, %v1970
        %v1972 = vpop.f32.mrb[0].mxu0
        %v1973 = vpop.f32.mrb[0].mxu0
        %v1974 = vadd.f32 %v627, %v1973
        %v1975 = vpop.f32.mrb[0].mxu0
        %1976 = vmatprep.mubr.bf16.mxu0 0
        %1977 = vmatmul.mubr.bf16.gmra.mrb[0].mxu0 %v1887
        %v1978 = vpop.f32.mrb[0].mxu0
        %v1979 = vadd.f32 %v627, %v1978
        %v1980 = vpop.f32.mrb[0].mxu0
        %v1981 = vpop.f32.mrb[0].mxu0
        %v1982 = vadd.f32 %v627, %v1981
        %v1983 = vpop.f32.mrb[0].mxu0
        %1984 = vmatprep.mubr.bf16.mxu0 0
        %1985 = vmatmul.mubr.bf16.gmra.mrb[0].mxu0 %v1890
        %v1986 = vpop.f32.mrb[0].mxu0
        %v1987 = vadd.f32 %v627, %v1986
        %v1988 = vpop.f32.mrb[0].mxu0
        %v1989 = vpop.f32.mrb[0].mxu0
        %v1990 = vadd.f32 %v627, %v1989
        %v1991 = vpop.f32.mrb[0].mxu0
        %1992 = vmatprep.mubr.bf16.mxu0 0
        %1993 = vmatmul.mubr.bf16.gmra.mrb[0].mxu0 %v1893
        %v1994 = vpop.f32.mrb[0].mxu0
        %v1995 = vadd.f32 %v627, %v1994
        %v1996 = vpop.f32.mrb[0].mxu0
        %v1997 = vpop.f32.mrb[0].mxu0
        %v1998 = vadd.f32 %v627, %v1997
        %v1999 = vpop.f32.mrb[0].mxu0
        %2000 = vmatprep.mubr.bf16.mxu0 0
        %2001 = vmatmul.mubr.bf16.gmra.mrb[0].mxu0 %v1896
        %v2002 = vpop.f32.mrb[0].mxu0
        %v2003 = vadd.f32 %v627, %v2002
        %v2004 = vpop.f32.mrb[0].mxu0
        %v2005 = vpop.f32.mrb[0].mxu0
        %v2006 = vadd.f32 %v627, %v2005
        %v2007 = vpop.f32.mrb[0].mxu0
        %2008 = vmatprep.mubr.bf16.mxu0 0
        %2009 = vmatmul.mubr.bf16.gmra.mrb[0].mxu0 %v1899
        %v2010 = vpop.f32.mrb[0].mxu0
        %v2011 = vadd.f32 %v627, %v2010
        %v2012 = vpop.f32.mrb[0].mxu0
        %v2013 = vpop.f32.mrb[0].mxu0
        %v2014 = vadd.f32 %v627, %v2013
        %v2015 = vpop.f32.mrb[0].mxu0
        %2016 = vmatprep.mubr.bf16.mxu0 0
        %2017 = vmatmul.mubr.bf16.gmra.mrb[0].mxu0 %v1902
        %v2018 = vpop.f32.mrb[0].mxu0
        %v2019 = vadd.f32 %v627, %v2018
        %v2020 = vpop.f32.mrb[0].mxu0
        %v2021 = vpop.f32.mrb[0].mxu0
        %v2022 = vadd.f32 %v627, %v2021
        %v2023 = vpop.f32.mrb[0].mxu0
        %2024 = vmatprep.mubr.bf16.mxu0 0
        %2025 = vmatmul.mubr.bf16.gmra.mrb[0].mxu0 %v1905
        %v2026 = vpop.f32.mrb[0].mxu0
        %v2027 = vadd.f32 %v627, %v2026
        %v2028 = vpop.f32.mrb[0].mxu0
        %v2029 = vpop.f32.mrb[0].mxu0
        %v2030 = vadd.f32 %v627, %v2029
        %v2031 = vpop.f32.mrb[0].mxu0
        %2032 = vmatprep.mubr.bf16.mxu0 0
        %2033 = vmatmul.mubr.bf16.gmra.mrb[0].mxu0 %v1908
        %v2034 = vpop.f32.mrb[0].mxu0
        %v2035 = vadd.f32 %v627, %v2034
        %v2036 = vpop.f32.mrb[0].mxu0
        %v2037 = vpop.f32.mrb[0].mxu0
        %v2038 = vadd.f32 %v627, %v2037
        %v2039 = vpop.f32.mrb[0].mxu0
        %2040 = vmatprep.mubr.bf16.mxu0 0
        %2041 = vmatmul.mubr.bf16.gmra.mrb[0].mxu0 %v1911
        %v2042 = vpop.f32.mrb[0].mxu0
        %v2043 = vadd.f32 %v627, %v2042
        %v2044 = vpop.f32.mrb[0].mxu0
        %v2045 = vpop.f32.mrb[0].mxu0
        %v2046 = vadd.f32 %v627, %v2045
        %v2047 = vpop.f32.mrb[0].mxu0
        %2048 = vmatprep.mubr.bf16.mxu0 0
        %2049 = vmatmul.mubr.bf16.gmra.mrb[0].mxu0 %v1914
        %v2050 = vpop.f32.mrb[0].mxu0
        %v2051 = vadd.f32 %v627, %v2050
        %v2052 = vpop.f32.mrb[0].mxu0
        %v2053 = vpop.f32.mrb[0].mxu0
        %v2054 = vadd.f32 %v627, %v2053
        %v2055 = vpop.f32.mrb[0].mxu0
        %2056 = vmatprep.mubr.bf16.mxu0 0
        %2057 = vmatmul.mubr.bf16.gmra.mrb[0].mxu0 %v1917
        %v2058 = vpop.f32.mrb[0].mxu0
        %v2059 = vadd.f32 %v627, %v2058
        %v2060 = vpop.f32.mrb[0].mxu0
        %v2061 = vpop.f32.mrb[0].mxu0
        %v2062 = vadd.f32 %v627, %v2061
        %v2063 = vpop.f32.mrb[0].mxu0
        %2064 = vmatprep.mubr.bf16.mxu0 0
        %2065 = vmatmul.mubr.bf16.gmra.mrb[0].mxu0 %v1920
        %v2066 = vpop.f32.mrb[0].mxu0
        %v2067 = vadd.f32 %v627, %v2066
        %v2068 = vpop.f32.mrb[0].mxu0
        %v2069 = vpop.f32.mrb[0].mxu0
        %v2070 = vadd.f32 %v627, %v2069
        %v2071 = vpop.f32.mrb[0].mxu0
        %2072 = vmatprep.mubr.bf16.mxu0 0
        %2073 = vmatmul.mubr.bf16.gmra.mrb[0].mxu0 %v1923
        %v2074 = vpop.f32.mrb[0].mxu0
        %v2075 = vadd.f32 %v627, %v2074
        %v2076 = vpop.f32.mrb[0].mxu0
        %v2077 = vpop.f32.mrb[0].mxu0
        %v2078 = vadd.f32 %v627, %v2077
        %v2079 = vpop.f32.mrb[0].mxu0
        %2080 = vmatprep.mubr.bf16.mxu0 0
        %2081 = vmatmul.mubr.bf16.gmra.mrb[0].mxu0 %v1926
        %v2082 = vpop.f32.mrb[0].mxu0
        %v2083 = vadd.f32 %v627, %v2082
        %v2084 = vpop.f32.mrb[0].mxu0
        %v2085 = vpop.f32.mrb[0].mxu0
        %v2086 = vadd.f32 %v627, %v2085
        %v2087 = vpop.f32.mrb[0].mxu0
        %2088 = vdwg.mxu0
        %v2089 = vmax.f32 %v1963, 0.0
        %v2090 = vmax.f32 %v1966, 0.0
        %v2091 = vmax.f32 %v1971, 0.0
        %v2092 = vmax.f32 %v1974, 0.0
        %v2093 = vmax.f32 %v1979, 0.0
        %v2094 = vmax.f32 %v1982, 0.0
        %v2095 = vmax.f32 %v1987, 0.0
        %v2096 = vmax.f32 %v1990, 0.0
        %v2097 = vmax.f32 %v1995, 0.0
        %v2098 = vmax.f32 %v1998, 0.0
        %v2099 = vmax.f32 %v2003, 0.0
        %v2100 = vmax.f32 %v2006, 0.0
        %v2101 = vmax.f32 %v2011, 0.0
        %v2102 = vmax.f32 %v2014, 0.0
        %v2103 = vmax.f32 %v2019, 0.0
        %v2104 = vmax.f32 %v2022, 0.0
        %v2105 = vmax.f32 %v2027, 0.0
        %v2106 = vmax.f32 %v2030, 0.0
        %v2107 = vmax.f32 %v2035, 0.0
        %v2108 = vmax.f32 %v2038, 0.0
        %v2109 = vmax.f32 %v2043, 0.0
        %v2110 = vmax.f32 %v2046, 0.0
        %v2111 = vmax.f32 %v2051, 0.0
        %v2112 = vmax.f32 %v2054, 0.0
        %v2113 = vmax.f32 %v2059, 0.0
        %v2114 = vmax.f32 %v2062, 0.0
        %v2115 = vmax.f32 %v2067, 0.0
        %v2116 = vmax.f32 %v2070, 0.0
        %v2117 = vmax.f32 %v2075, 0.0
        %v2118 = vmax.f32 %v2078, 0.0
        %v2119 = vmax.f32 %v2083, 0.0
        %v2120 = vmax.f32 %v2086, 0.0
        %v2121 = vadd.f32 %v1735, %v2089
        %v2122 = vadd.f32 %v1736, %v2090
        %v2123 = vadd.f32 %v1737, %v2091
        %v2124 = vadd.f32 %v1738, %v2092
        %v2125 = vadd.f32 %v1739, %v2093
        %v2126 = vadd.f32 %v1740, %v2094
        %v2127 = vadd.f32 %v1741, %v2095
        %v2128 = vadd.f32 %v1742, %v2096
        %v2129 = vadd.f32 %v1743, %v2097
        %v2130 = vadd.f32 %v1744, %v2098
        %v2131 = vadd.f32 %v1745, %v2099
        %v2132 = vadd.f32 %v1746, %v2100
        %v2133 = vadd.f32 %v1747, %v2101
        %v2134 = vadd.f32 %v1748, %v2102
        %v2135 = vadd.f32 %v1749, %v2103
        %v2136 = vadd.f32 %v1750, %v2104
        %v2137 = vadd.f32 %v1751, %v2105
        %v2138 = vadd.f32 %v1752, %v2106
        %v2139 = vadd.f32 %v1753, %v2107
        %v2140 = vadd.f32 %v1754, %v2108
        %v2141 = vadd.f32 %v1755, %v2109
        %v2142 = vadd.f32 %v1756, %v2110
        %v2143 = vadd.f32 %v1757, %v2111
        %v2144 = vadd.f32 %v1758, %v2112
        %v2145 = vadd.f32 %v1759, %v2113
        %v2146 = vadd.f32 %v1760, %v2114
        %v2147 = vadd.f32 %v1761, %v2115
        %v2148 = vadd.f32 %v1762, %v2116
        %v2149 = vadd.f32 %v1763, %v2117
        %v2150 = vadd.f32 %v1764, %v2118
        %v2151 = vadd.f32 %v1765, %v2119
        %v2152 = vadd.f32 %v1766, %v2120
        %v2153 = vmul.f32 %v2121, 0.25
        %v2154 = vmul.f32 %v2122, 0.25
        %v2155 = vmul.f32 %v2123, 0.25
        %v2156 = vmul.f32 %v2124, 0.25
        %v2157 = vmul.f32 %v2125, 0.25
        %v2158 = vmul.f32 %v2126, 0.25
        %v2159 = vmul.f32 %v2127, 0.25
        %v2160 = vmul.f32 %v2128, 0.25
        %v2161 = vmul.f32 %v2129, 0.25
        %v2162 = vmul.f32 %v2130, 0.25
        %v2163 = vmul.f32 %v2131, 0.25
        %v2164 = vmul.f32 %v2132, 0.25
        %v2165 = vmul.f32 %v2133, 0.25
        %v2166 = vmul.f32 %v2134, 0.25
        %v2167 = vmul.f32 %v2135, 0.25
        %v2168 = vmul.f32 %v2136, 0.25
        %v2169 = vmul.f32 %v2137, 0.25
        %v2170 = vmul.f32 %v2138, 0.25
        %v2171 = vmul.f32 %v2139, 0.25
        %v2172 = vmul.f32 %v2140, 0.25
        %v2173 = vmul.f32 %v2141, 0.25
        %v2174 = vmul.f32 %v2142, 0.25
        %v2175 = vmul.f32 %v2143, 0.25
        %v2176 = vmul.f32 %v2144, 0.25
        %v2177 = vmul.f32 %v2145, 0.25
        %v2178 = vmul.f32 %v2146, 0.25
        %v2179 = vmul.f32 %v2147, 0.25
        %v2180 = vmul.f32 %v2148, 0.25
        %v2181 = vmul.f32 %v2149, 0.25
        %v2182 = vmul.f32 %v2150, 0.25
        %v2183 = vmul.f32 %v2151, 0.25
        %v2184 = vmul.f32 %v2152, 0.25
        %v2185 = vpack.c.bf16 %v2154, %v2153
        %v2186 = vpack.c.bf16 %v2156, %v2155
        %v2187 = vpack.c.bf16 %v2158, %v2157
        %v2188 = vpack.c.bf16 %v2160, %v2159
        %v2189 = vpack.c.bf16 %v2162, %v2161
        %v2190 = vpack.c.bf16 %v2164, %v2163
        %v2191 = vpack.c.bf16 %v2166, %v2165
        %v2192 = vpack.c.bf16 %v2168, %v2167
        %v2193 = vpack.c.bf16 %v2170, %v2169
        %v2194 = vpack.c.bf16 %v2172, %v2171
        %v2195 = vpack.c.bf16 %v2174, %v2173
        %v2196 = vpack.c.bf16 %v2176, %v2175
        %v2197 = vpack.c.bf16 %v2178, %v2177
        %v2198 = vpack.c.bf16 %v2180, %v2179
        %v2199 = vpack.c.bf16 %v2182, %v2181
        %v2200 = vpack.c.bf16 %v2184, %v2183
        %v2217 = vunpack.c.l.b16 %v2185
        %v2218 = vunpack.c.h.b16 %v2185
        %v2219 = vunpack.c.l.b16 %v2186
        %v2220 = vunpack.c.h.b16 %v2186
        %v2221 = vunpack.c.l.b16 %v2187
        %v2222 = vunpack.c.h.b16 %v2187
        %v2223 = vunpack.c.l.b16 %v2188
        %v2224 = vunpack.c.h.b16 %v2188
        %v2225 = vunpack.c.l.b16 %v2189
        %v2226 = vunpack.c.h.b16 %v2189
        %v2227 = vunpack.c.l.b16 %v2190
        %v2228 = vunpack.c.h.b16 %v2190
        %v2229 = vunpack.c.l.b16 %v2191
        %v2230 = vunpack.c.h.b16 %v2191
        %v2231 = vunpack.c.l.b16 %v2192
        %v2232 = vunpack.c.h.b16 %v2192
        %v2233 = vunpack.c.l.b16 %v2193
        %v2234 = vunpack.c.h.b16 %v2193
        %v2235 = vunpack.c.l.b16 %v2194
        %v2236 = vunpack.c.h.b16 %v2194
        %v2237 = vunpack.c.l.b16 %v2195
        %v2238 = vunpack.c.h.b16 %v2195
        %v2239 = vunpack.c.l.b16 %v2196
        %v2240 = vunpack.c.h.b16 %v2196
        %v2241 = vunpack.c.l.b16 %v2197
        %v2242 = vunpack.c.h.b16 %v2197
        %v2243 = vunpack.c.l.b16 %v2198
        %v2244 = vunpack.c.h.b16 %v2198
        %v2245 = vunpack.c.l.b16 %v2199
        %v2246 = vunpack.c.h.b16 %v2199
        %v2247 = vunpack.c.l.b16 %v2200
        %v2248 = vunpack.c.h.b16 %v2200
        %v2249 = vpack.c.b16 %v2217, %v2217
        %v2250 = vpack.c.b16 %v2218, %v2218
        %v2251 = vpack.c.b16 %v2219, %v2219
        %v2252 = vpack.c.b16 %v2220, %v2220
        %v2253 = vpack.c.b16 %v2221, %v2221
        %v2254 = vpack.c.b16 %v2222, %v2222
        %v2255 = vpack.c.b16 %v2223, %v2223
        %v2256 = vpack.c.b16 %v2224, %v2224
        %v2257 = vpack.c.b16 %v2225, %v2225
        %v2258 = vpack.c.b16 %v2226, %v2226
        %v2259 = vpack.c.b16 %v2227, %v2227
        %v2260 = vpack.c.b16 %v2228, %v2228
        %v2261 = vpack.c.b16 %v2229, %v2229
        %v2262 = vpack.c.b16 %v2230, %v2230
        %v2263 = vpack.c.b16 %v2231, %v2231
        %v2264 = vpack.c.b16 %v2232, %v2232
        %v2265 = vpack.c.b16 %v2233, %v2233
        %v2266 = vpack.c.b16 %v2234, %v2234
        %v2267 = vpack.c.b16 %v2235, %v2235
        %v2268 = vpack.c.b16 %v2236, %v2236
        %v2269 = vpack.c.b16 %v2237, %v2237
        %v2270 = vpack.c.b16 %v2238, %v2238
        %v2271 = vpack.c.b16 %v2239, %v2239
        %v2272 = vpack.c.b16 %v2240, %v2240
        %v2273 = vpack.c.b16 %v2241, %v2241
        %v2274 = vpack.c.b16 %v2242, %v2242
        %v2275 = vpack.c.b16 %v2243, %v2243
        %v2276 = vpack.c.b16 %v2244, %v2244
        %v2277 = vpack.c.b16 %v2245, %v2245
        %v2278 = vpack.c.b16 %v2246, %v2246
        %v2279 = vpack.c.b16 %v2247, %v2247
        %v2280 = vpack.c.b16 %v2248, %v2248
        %vm2313 = vcmask 125952
        %2314 = vst.msk [vmem:[%s576] sm:$0xf] %vm2313, %v2249
        %2315 = vst.msk [vmem:[%s576 + $0x4] sm:$0xf] %vm2313, %v2250
        %2316 = vst.msk [vmem:[%s576 + $0x8] sm:$0xf] %vm2313, %v2251
        %2317 = vst.msk [vmem:[%s576 + $0xc] sm:$0xf] %vm2313, %v2252
        %2318 = vst.msk [vmem:[%s576 + $0x10] sm:$0xf] %vm2313, %v2253
        %2319 = vst.msk [vmem:[%s576 + $0x14] sm:$0xf] %vm2313, %v2254
        %2320 = vst.msk [vmem:[%s576 + $0x18] sm:$0xf] %vm2313, %v2255
        %2321 = vst.msk [vmem:[%s576 + $0x1c] sm:$0xf] %vm2313, %v2256
        %2322 = vst.msk [vmem:[%s576 + $0x20] sm:$0xf] %vm2313, %v2257
        %2323 = vst.msk [vmem:[%s576 + $0x24] sm:$0xf] %vm2313, %v2258
        %2324 = vst.msk [vmem:[%s576 + $0x28] sm:$0xf] %vm2313, %v2259
        %2325 = vst.msk [vmem:[%s576 + $0x2c] sm:$0xf] %vm2313, %v2260
        %2326 = vst.msk [vmem:[%s576 + $0x30] sm:$0xf] %vm2313, %v2261
        %2327 = vst.msk [vmem:[%s576 + $0x34] sm:$0xf] %vm2313, %v2262
        %2328 = vst.msk [vmem:[%s576 + $0x38] sm:$0xf] %vm2313, %v2263
        %2329 = vst.msk [vmem:[%s576 + $0x3c] sm:$0xf] %vm2313, %v2264
        %2330 = vst.msk [vmem:[%s576 + $0x40] sm:$0xf] %vm2313, %v2265
        %2331 = vst.msk [vmem:[%s576 + $0x44] sm:$0xf] %vm2313, %v2266
        %2332 = vst.msk [vmem:[%s576 + $0x48] sm:$0xf] %vm2313, %v2267
        %2333 = vst.msk [vmem:[%s576 + $0x4c] sm:$0xf] %vm2313, %v2268
        %2334 = vst.msk [vmem:[%s576 + $0x50] sm:$0xf] %vm2313, %v2269
        %2335 = vst.msk [vmem:[%s576 + $0x54] sm:$0xf] %vm2313, %v2270
        %2336 = vst.msk [vmem:[%s576 + $0x58] sm:$0xf] %vm2313, %v2271
        %2337 = vst.msk [vmem:[%s576 + $0x5c] sm:$0xf] %vm2313, %v2272
        %2338 = vst.msk [vmem:[%s576 + $0x60] sm:$0xf] %vm2313, %v2273
        %2339 = vst.msk [vmem:[%s576 + $0x64] sm:$0xf] %vm2313, %v2274
        %2340 = vst.msk [vmem:[%s576 + $0x68] sm:$0xf] %vm2313, %v2275
        %2341 = vst.msk [vmem:[%s576 + $0x6c] sm:$0xf] %vm2313, %v2276
        %2342 = vst.msk [vmem:[%s576 + $0x70] sm:$0xf] %vm2313, %v2277
        %2343 = vst.msk [vmem:[%s576 + $0x74] sm:$0xf] %vm2313, %v2278
        %2344 = vst.msk [vmem:[%s576 + $0x78] sm:$0xf] %vm2313, %v2279
        %2345 = vst.msk [vmem:[%s576 + $0x7c] sm:$0xf] %vm2313, %v2280
        %s2346 = sand.u32 %s90, 1
        %s2347 = sand.u32 %s90, 1
        %s2348 = smul.addr %s2347, 128
        %s2349 = scalar_lea.vmem [#allocation3], %s2348
        // Predicated region
        $region95: #{cnn_forward.4} parent=89 // pred_check
          %p2350 = pneg %p100
        $region96: #{cnn_forward.4} parent=89 // pred_check_branch
          %2352 = sbr.rel (%p2350) target = $region98
        $region97: #{cnn_forward.4} parent=89 // pred_region
          %s2353 = smul.u32 32, %s14
          %s2354 = ssub.s32 49, %s2353
          %p2355 = scmp.lt.s32.totalorder %s2354, 32
          %s2356 = scalar_select %p2355, %s2354, 32
          %s2357 = smul.u32 64, %s2356
          %p2358 = scmp.ne.s32.totalorder 0, %s2357
          %s2359 = smul.addr %s2353, 4
          %s2360 = scalar_lea.vmem %s3, %s2359
          // Predicated region
          $region99: #{cnn_forward.4} parent=97 // pred_check
            %p2361 = pneg %p2358
          $region100: #{cnn_forward.4} parent=97 // pred_check_branch
            %2363 = sbr.rel (%p2361) target = $region102
          $region101: #{cnn_forward.4} parent=97 // pred_region
            // Predicated region
            $region103: #{cnn_forward.4} parent=101 // pred_check
              _
            $region104: #{cnn_forward.4} parent=101 // pred_check_branch
              %2365 = sbr.rel target = $region106
            $region105: #{cnn_forward.4} parent=101 // pred_region
              // Predicated region
              $region125: #{cnn_forward.4} parent=105 // pred_check
                _
              $region126: #{cnn_forward.4} parent=105 // pred_check_branch
                %2476 = sbr.rel (0) target = $region128
              $region127: #{cnn_forward.4} parent=105 // pred_region
                %s2478 = sshrl.u32 %s2356, 5
                // While loop
                $region129: #{cnn_forward.4} parent=127 // loop_pre_header
                  _
                $region130: #{cnn_forward.4} parent=127 // loop_header
                  %s2480 = sphi 0, %s2482
                  %p2481 = scmp.ge.s32.totalorder %s2480, %s2478
                  %s2485 = sphi 0, %s2554
                  %s2486 = sphi %s2349, %s2557
                  %s2487 = sphi %s2360, %s2558
                $region131: #{cnn_forward.4} parent=127 // loop_header_branch
                  %2484 = sbr.rel (%p2481) target = $region135
                $region132: #{cnn_forward.4} parent=127 // loop_body
                  %v2488 = vld [vmem:[%s2486] sm:$0xf]
                  %2489 = vst [vmem:[%s2487] sm:$0xf] %v2488
                  %v2490 = vld [vmem:[%s2486 + $0x4] sm:$0xf]
                  %2491 = vst [vmem:[%s2487 + $0x4] sm:$0xf] %v2490
                  %v2492 = vld [vmem:[%s2486 + $0x8] sm:$0xf]
                  %2493 = vst [vmem:[%s2487 + $0x8] sm:$0xf] %v2492
                  %v2494 = vld [vmem:[%s2486 + $0xc] sm:$0xf]
                  %2495 = vst [vmem:[%s2487 + $0xc] sm:$0xf] %v2494
                  %v2496 = vld [vmem:[%s2486 + $0x10] sm:$0xf]
                  %2497 = vst [vmem:[%s2487 + $0x10] sm:$0xf] %v2496
                  %v2498 = vld [vmem:[%s2486 + $0x14] sm:$0xf]
                  %2499 = vst [vmem:[%s2487 + $0x14] sm:$0xf] %v2498
                  %v2500 = vld [vmem:[%s2486 + $0x18] sm:$0xf]
                  %2501 = vst [vmem:[%s2487 + $0x18] sm:$0xf] %v2500
                  %v2502 = vld [vmem:[%s2486 + $0x1c] sm:$0xf]
                  %2503 = vst [vmem:[%s2487 + $0x1c] sm:$0xf] %v2502
                  %v2504 = vld [vmem:[%s2486 + $0x20] sm:$0xf]
                  %2505 = vst [vmem:[%s2487 + $0x20] sm:$0xf] %v2504
                  %v2506 = vld [vmem:[%s2486 + $0x24] sm:$0xf]
                  %2507 = vst [vmem:[%s2487 + $0x24] sm:$0xf] %v2506
                  %v2508 = vld [vmem:[%s2486 + $0x28] sm:$0xf]
                  %2509 = vst [vmem:[%s2487 + $0x28] sm:$0xf] %v2508
                  %v2510 = vld [vmem:[%s2486 + $0x2c] sm:$0xf]
                  %2511 = vst [vmem:[%s2487 + $0x2c] sm:$0xf] %v2510
                  %v2512 = vld [vmem:[%s2486 + $0x30] sm:$0xf]
                  %2513 = vst [vmem:[%s2487 + $0x30] sm:$0xf] %v2512
                  %v2514 = vld [vmem:[%s2486 + $0x34] sm:$0xf]
                  %2515 = vst [vmem:[%s2487 + $0x34] sm:$0xf] %v2514
                  %v2516 = vld [vmem:[%s2486 + $0x38] sm:$0xf]
                  %2517 = vst [vmem:[%s2487 + $0x38] sm:$0xf] %v2516
                  %v2518 = vld [vmem:[%s2486 + $0x3c] sm:$0xf]
                  %2519 = vst [vmem:[%s2487 + $0x3c] sm:$0xf] %v2518
                  %v2520 = vld [vmem:[%s2486 + $0x40] sm:$0xf]
                  %2521 = vst [vmem:[%s2487 + $0x40] sm:$0xf] %v2520
                  %v2522 = vld [vmem:[%s2486 + $0x44] sm:$0xf]
                  %2523 = vst [vmem:[%s2487 + $0x44] sm:$0xf] %v2522
                  %v2524 = vld [vmem:[%s2486 + $0x48] sm:$0xf]
                  %2525 = vst [vmem:[%s2487 + $0x48] sm:$0xf] %v2524
                  %v2526 = vld [vmem:[%s2486 + $0x4c] sm:$0xf]
                  %2527 = vst [vmem:[%s2487 + $0x4c] sm:$0xf] %v2526
                  %v2528 = vld [vmem:[%s2486 + $0x50] sm:$0xf]
                  %2529 = vst [vmem:[%s2487 + $0x50] sm:$0xf] %v2528
                  %v2530 = vld [vmem:[%s2486 + $0x54] sm:$0xf]
                  %2531 = vst [vmem:[%s2487 + $0x54] sm:$0xf] %v2530
                  %v2532 = vld [vmem:[%s2486 + $0x58] sm:$0xf]
                  %2533 = vst [vmem:[%s2487 + $0x58] sm:$0xf] %v2532
                  %v2534 = vld [vmem:[%s2486 + $0x5c] sm:$0xf]
                  %2535 = vst [vmem:[%s2487 + $0x5c] sm:$0xf] %v2534
                  %v2536 = vld [vmem:[%s2486 + $0x60] sm:$0xf]
                  %2537 = vst [vmem:[%s2487 + $0x60] sm:$0xf] %v2536
                  %v2538 = vld [vmem:[%s2486 + $0x64] sm:$0xf]
                  %2539 = vst [vmem:[%s2487 + $0x64] sm:$0xf] %v2538
                  %v2540 = vld [vmem:[%s2486 + $0x68] sm:$0xf]
                  %2541 = vst [vmem:[%s2487 + $0x68] sm:$0xf] %v2540
                  %v2542 = vld [vmem:[%s2486 + $0x6c] sm:$0xf]
                  %2543 = vst [vmem:[%s2487 + $0x6c] sm:$0xf] %v2542
                  %v2544 = vld [vmem:[%s2486 + $0x70] sm:$0xf]
                  %2545 = vst [vmem:[%s2487 + $0x70] sm:$0xf] %v2544
                  %v2546 = vld [vmem:[%s2486 + $0x74] sm:$0xf]
                  %2547 = vst [vmem:[%s2487 + $0x74] sm:$0xf] %v2546
                  %v2548 = vld [vmem:[%s2486 + $0x78] sm:$0xf]
                  %2549 = vst [vmem:[%s2487 + $0x78] sm:$0xf] %v2548
                  %v2550 = vld [vmem:[%s2486 + $0x7c] sm:$0xf]
                  %2551 = vst [vmem:[%s2487 + $0x7c] sm:$0xf] %v2550
                  %s2552 = sadd.s32 1, %s2485
                  %p2553 = scmp.ge.s32.totalorder %s2552, %s2478
                  %s2554 = scalar_select %p2553, 0, %s2552
                  %s2555 = smul.u32 %s2554, 128
                  %s2556 = smul.u32 %s2554, 128
                  %s2557 = scalar_lea.vmem %s2349, %s2555 [#allocation3]
                  %s2558 = scalar_lea.vmem %s2360, %s2556
                $region133: #{cnn_forward.4} parent=127 // loop_footer
                  %s2482 = sadd.s32 %s2480, 1
                $region134: #{cnn_forward.4} parent=127 // loop_footer_branch
                  %2479 = sbr.rel target = $region130
                $region135: #{cnn_forward.4} parent=127 // loop_exit
                  _
                %s2559 = sshrl.u32 %s2356, 5
                %s2560 = sand.u32 %s2356, 31
                %s2561 = smul.u32 %s2559, 32
                %s2562 = smul.u32 4, %s2561
                %s2563 = scalar_lea.vmem %s2349, %s2562 [#allocation3]
                %s2564 = smul.u32 4, %s2561
                %s2565 = scalar_lea.vmem %s2360, %s2564
                // While loop
                $region136: #{cnn_forward.4} parent=127 // loop_pre_header
                  _
                $region137: #{cnn_forward.4} parent=127 // loop_header
                  %s2567 = sphi 0, %s2569
                  %p2568 = scmp.ge.s32.totalorder %s2567, %s2560
                  %s2572 = sphi 0, %s2579
                  %s2573 = sphi %s2563, %s2582
                  %s2574 = sphi %s2565, %s2583
                $region138: #{cnn_forward.4} parent=127 // loop_header_branch
                  %2571 = sbr.rel (%p2568) target = $region142
                $region139: #{cnn_forward.4} parent=127 // loop_body
                  %v2575 = vld [vmem:[%s2573] sm:$0xf]
                  %2576 = vst [vmem:[%s2574] sm:$0xf] %v2575
                  %s2577 = sadd.s32 1, %s2572
                  %p2578 = scmp.ge.s32.totalorder %s2577, %s2560
                  %s2579 = scalar_select %p2578, 0, %s2577
                  %s2580 = smul.u32 %s2579, 4
                  %s2581 = smul.u32 %s2579, 4
                  %s2582 = scalar_lea.vmem %s2563, %s2580 [#allocation3]
                  %s2583 = scalar_lea.vmem %s2565, %s2581
                $region140: #{cnn_forward.4} parent=127 // loop_footer
                  %s2569 = sadd.s32 %s2567, 1
                $region141: #{cnn_forward.4} parent=127 // loop_footer_branch
                  %2566 = sbr.rel target = $region137
                $region142: #{cnn_forward.4} parent=127 // loop_exit
                  _
              $region128: #{cnn_forward.4} parent=105 // pred_fallthru
                _
            $region106: #{cnn_forward.4} parent=101 // pred_fallthru
              _
            // Predicated region
            $region107: #{cnn_forward.4} parent=101 // pred_check
              _
            $region108: #{cnn_forward.4} parent=101 // pred_check_branch
              %2367 = sbr.rel (0) target = $region110
            $region109: #{cnn_forward.4} parent=101 // pred_region
              %s2369 = sshrl.u32 %s2356, 5
              // While loop
              $region111: #{cnn_forward.4} parent=109 // loop_pre_header
                _
              $region112: #{cnn_forward.4} parent=109 // loop_header
                %s2371 = sphi 0, %s2373
                %p2372 = scmp.ge.s32.totalorder %s2371, %s2369
                %s2376 = sphi 0, %s2445
                %s2377 = sphi %s2349, %s2448
                %s2378 = sphi %s2360, %s2449
              $region113: #{cnn_forward.4} parent=109 // loop_header_branch
                %2375 = sbr.rel (%p2372) target = $region117
              $region114: #{cnn_forward.4} parent=109 // loop_body
                %v2379 = vld [vmem:[%s2377] sm:$0xf]
                %2380 = vst [vmem:[%s2378] sm:$0xf] %v2379
                %v2381 = vld [vmem:[%s2377 + $0x4] sm:$0xf]
                %2382 = vst [vmem:[%s2378 + $0x4] sm:$0xf] %v2381
                %v2383 = vld [vmem:[%s2377 + $0x8] sm:$0xf]
                %2384 = vst [vmem:[%s2378 + $0x8] sm:$0xf] %v2383
                %v2385 = vld [vmem:[%s2377 + $0xc] sm:$0xf]
                %2386 = vst [vmem:[%s2378 + $0xc] sm:$0xf] %v2385
                %v2387 = vld [vmem:[%s2377 + $0x10] sm:$0xf]
                %2388 = vst [vmem:[%s2378 + $0x10] sm:$0xf] %v2387
                %v2389 = vld [vmem:[%s2377 + $0x14] sm:$0xf]
                %2390 = vst [vmem:[%s2378 + $0x14] sm:$0xf] %v2389
                %v2391 = vld [vmem:[%s2377 + $0x18] sm:$0xf]
                %2392 = vst [vmem:[%s2378 + $0x18] sm:$0xf] %v2391
                %v2393 = vld [vmem:[%s2377 + $0x1c] sm:$0xf]
                %2394 = vst [vmem:[%s2378 + $0x1c] sm:$0xf] %v2393
                %v2395 = vld [vmem:[%s2377 + $0x20] sm:$0xf]
                %2396 = vst [vmem:[%s2378 + $0x20] sm:$0xf] %v2395
                %v2397 = vld [vmem:[%s2377 + $0x24] sm:$0xf]
                %2398 = vst [vmem:[%s2378 + $0x24] sm:$0xf] %v2397
                %v2399 = vld [vmem:[%s2377 + $0x28] sm:$0xf]
                %2400 = vst [vmem:[%s2378 + $0x28] sm:$0xf] %v2399
                %v2401 = vld [vmem:[%s2377 + $0x2c] sm:$0xf]
                %2402 = vst [vmem:[%s2378 + $0x2c] sm:$0xf] %v2401
                %v2403 = vld [vmem:[%s2377 + $0x30] sm:$0xf]
                %2404 = vst [vmem:[%s2378 + $0x30] sm:$0xf] %v2403
                %v2405 = vld [vmem:[%s2377 + $0x34] sm:$0xf]
                %2406 = vst [vmem:[%s2378 + $0x34] sm:$0xf] %v2405
                %v2407 = vld [vmem:[%s2377 + $0x38] sm:$0xf]
                %2408 = vst [vmem:[%s2378 + $0x38] sm:$0xf] %v2407
                %v2409 = vld [vmem:[%s2377 + $0x3c] sm:$0xf]
                %2410 = vst [vmem:[%s2378 + $0x3c] sm:$0xf] %v2409
                %v2411 = vld [vmem:[%s2377 + $0x40] sm:$0xf]
                %2412 = vst [vmem:[%s2378 + $0x40] sm:$0xf] %v2411
                %v2413 = vld [vmem:[%s2377 + $0x44] sm:$0xf]
                %2414 = vst [vmem:[%s2378 + $0x44] sm:$0xf] %v2413
                %v2415 = vld [vmem:[%s2377 + $0x48] sm:$0xf]
                %2416 = vst [vmem:[%s2378 + $0x48] sm:$0xf] %v2415
                %v2417 = vld [vmem:[%s2377 + $0x4c] sm:$0xf]
                %2418 = vst [vmem:[%s2378 + $0x4c] sm:$0xf] %v2417
                %v2419 = vld [vmem:[%s2377 + $0x50] sm:$0xf]
                %2420 = vst [vmem:[%s2378 + $0x50] sm:$0xf] %v2419
                %v2421 = vld [vmem:[%s2377 + $0x54] sm:$0xf]
                %2422 = vst [vmem:[%s2378 + $0x54] sm:$0xf] %v2421
                %v2423 = vld [vmem:[%s2377 + $0x58] sm:$0xf]
                %2424 = vst [vmem:[%s2378 + $0x58] sm:$0xf] %v2423
                %v2425 = vld [vmem:[%s2377 + $0x5c] sm:$0xf]
                %2426 = vst [vmem:[%s2378 + $0x5c] sm:$0xf] %v2425
                %v2427 = vld [vmem:[%s2377 + $0x60] sm:$0xf]
                %2428 = vst [vmem:[%s2378 + $0x60] sm:$0xf] %v2427
                %v2429 = vld [vmem:[%s2377 + $0x64] sm:$0xf]
                %2430 = vst [vmem:[%s2378 + $0x64] sm:$0xf] %v2429
                %v2431 = vld [vmem:[%s2377 + $0x68] sm:$0xf]
                %2432 = vst [vmem:[%s2378 + $0x68] sm:$0xf] %v2431
                %v2433 = vld [vmem:[%s2377 + $0x6c] sm:$0xf]
                %2434 = vst [vmem:[%s2378 + $0x6c] sm:$0xf] %v2433
                %v2435 = vld [vmem:[%s2377 + $0x70] sm:$0xf]
                %2436 = vst [vmem:[%s2378 + $0x70] sm:$0xf] %v2435
                %v2437 = vld [vmem:[%s2377 + $0x74] sm:$0xf]
                %2438 = vst [vmem:[%s2378 + $0x74] sm:$0xf] %v2437
                %v2439 = vld [vmem:[%s2377 + $0x78] sm:$0xf]
                %2440 = vst [vmem:[%s2378 + $0x78] sm:$0xf] %v2439
                %v2441 = vld [vmem:[%s2377 + $0x7c] sm:$0xf]
                %2442 = vst [vmem:[%s2378 + $0x7c] sm:$0xf] %v2441
                %s2443 = sadd.s32 1, %s2376
                %p2444 = scmp.ge.s32.totalorder %s2443, %s2369
                %s2445 = scalar_select %p2444, 0, %s2443
                %s2446 = smul.u32 %s2445, 128
                %s2447 = smul.u32 %s2445, 128
                %s2448 = scalar_lea.vmem %s2349, %s2446 [#allocation3]
                %s2449 = scalar_lea.vmem %s2360, %s2447
              $region115: #{cnn_forward.4} parent=109 // loop_footer
                %s2373 = sadd.s32 %s2371, 1
              $region116: #{cnn_forward.4} parent=109 // loop_footer_branch
                %2370 = sbr.rel target = $region112
              $region117: #{cnn_forward.4} parent=109 // loop_exit
                _
              %s2450 = sshrl.u32 %s2356, 5
              %s2451 = sand.u32 %s2356, 31
              %s2452 = smul.u32 %s2450, 32
              %s2453 = smul.u32 4, %s2452
              %s2454 = scalar_lea.vmem %s2349, %s2453 [#allocation3]
              %s2455 = smul.u32 4, %s2452
              %s2456 = scalar_lea.vmem %s2360, %s2455
              // While loop
              $region118: #{cnn_forward.4} parent=109 // loop_pre_header
                _
              $region119: #{cnn_forward.4} parent=109 // loop_header
                %s2458 = sphi 0, %s2460
                %p2459 = scmp.ge.s32.totalorder %s2458, %s2451
                %s2463 = sphi 0, %s2470
                %s2464 = sphi %s2454, %s2473
                %s2465 = sphi %s2456, %s2474
              $region120: #{cnn_forward.4} parent=109 // loop_header_branch
                %2462 = sbr.rel (%p2459) target = $region124
              $region121: #{cnn_forward.4} parent=109 // loop_body
                %v2466 = vld [vmem:[%s2464] sm:$0xf]
                %2467 = vst [vmem:[%s2465] sm:$0xf] %v2466
                %s2468 = sadd.s32 1, %s2463
                %p2469 = scmp.ge.s32.totalorder %s2468, %s2451
                %s2470 = scalar_select %p2469, 0, %s2468
                %s2471 = smul.u32 %s2470, 4
                %s2472 = smul.u32 %s2470, 4
                %s2473 = scalar_lea.vmem %s2454, %s2471 [#allocation3]
                %s2474 = scalar_lea.vmem %s2456, %s2472
              $region122: #{cnn_forward.4} parent=109 // loop_footer
                %s2460 = sadd.s32 %s2458, 1
              $region123: #{cnn_forward.4} parent=109 // loop_footer_branch
                %2457 = sbr.rel target = $region119
              $region124: #{cnn_forward.4} parent=109 // loop_exit
                _
            $region110: #{cnn_forward.4} parent=101 // pred_fallthru
              _
          $region102: #{cnn_forward.4} parent=97 // pred_fallthru
            _
          %2584 = vnop
        $region98: #{cnn_forward.4} parent=89 // pred_fallthru
          _
      $region90: #{cnn_forward.4} parent=5 // pred_fallthru
        _
      %p2585 = scmp.le.s32.totalorder 2, %s9
      // Predicated region
      $region143: #{cnn_forward.4} parent=5 // pred_check
        %p2586 = pneg %p2585
      $region144: #{cnn_forward.4} parent=5 // pred_check_branch
        %2588 = sbr.rel (%p2586) target = $region146
      $region145: #{cnn_forward.4} parent=5 // pred_region
        %s2589 = ssub.s32 %s9, 2
        // Predicated region
        $region147: #{cnn_forward.4} parent=145 // pred_check
          %p2590 = pneg %p106
        $region148: #{cnn_forward.4} parent=145 // pred_check_branch
          %2592 = sbr.rel (%p2590) target = $region150
        $region149: #{cnn_forward.4} parent=145 // pred_region
          %s2593 = sand.u32 %s91, 1
          %s2594 = sand.u32 %s91, 1
          %s2595 = smul.addr %s2594, 128
          %s2596 = scalar_lea.vmem [#allocation3], %s2595
        $region150: #{cnn_forward.4} parent=145 // pred_fallthru
          _
      $region146: #{cnn_forward.4} parent=5 // pred_fallthru
        _
    $region6: #{cnn_forward.4} parent=1 // loop_footer
      %s13 = sadd.s32 1, %s9
    $region7: #{cnn_forward.4} parent=1 // loop_footer_branch
      %8 = sbr.rel target = $region3
    $region8: #{cnn_forward.4} parent=1 // loop_exit
      _

// kernel: cnn_forward.5
$region0: #{cnn_forward.5}
  #allocation0 [shape = 'u32[]', space=smem, size = 0x4, offset = 0x4, fixed_abs, tag = 'smem constant byte address 0x4 - core index']
  #allocation1 [shape = 'u32[144,128]{1,0:T(1,128)}', space=vmem, size = 0x12000, scoped, tag = 'internal scratch']
  %s0 = inlined_call_operand.vmem [shape: bf16[4,98,144], index: 0, kind: input, shape index: {}]
  %s1 = inlined_call_operand.vmem [shape: bf16[144,32], index: 1, kind: input, shape index: {}]
  %s2 = inlined_call_operand.vmem [shape: f32[1,32], index: 2, kind: input, shape index: {}]
  %s3 = inlined_call_operand.vmem [shape: bf16[98,32], index: 3, kind: output, shape index: {}]
  %s4 = sld [smem:[#allocation0]]
  $region22: #{cnn_forward.5} parent=0
    _
  %s6 = ssub.s32 1, %s4
  %s7 = scalar_select 0, %s6, %s4
  // Predicated region
  $region2: #{cnn_forward.5} parent=0 // pred_check
    _
  $region3: #{cnn_forward.5} parent=0 // pred_check_branch
    %9 = sbr.rel (0) target = $region5
  $region4: #{cnn_forward.5} parent=0 // pred_region
    _
  $region5: #{cnn_forward.5} parent=0 // pred_fallthru
    _
  // Predicated region
  $region6: #{cnn_forward.5} parent=0 // pred_check
    _
  $region7: #{cnn_forward.5} parent=0 // pred_check_branch
    %11 = sbr.rel (0) target = $region9
  $region8: #{cnn_forward.5} parent=0 // pred_region
    _
  $region9: #{cnn_forward.5} parent=0 // pred_fallthru
    _
  // Predicated region
  $region10: #{cnn_forward.5} parent=0 // pred_check
    _
  $region11: #{cnn_forward.5} parent=0 // pred_check_branch
    %13 = sbr.rel (0) target = $region13
  $region12: #{cnn_forward.5} parent=0 // pred_region
    _
  $region13: #{cnn_forward.5} parent=0 // pred_fallthru
    _
  %v15 = vld [vmem:[%s1] sm:$0xf]
  %v16 = vld [vmem:[%s1 + $0x4] sm:$0xf]
  %v17 = vld [vmem:[%s1 + $0x8] sm:$0xf]
  %v18 = vld [vmem:[%s1 + $0xc] sm:$0xf]
  %v19 = vld [vmem:[%s1 + $0x10] sm:$0xf]
  %v20 = vld [vmem:[%s1 + $0x14] sm:$0xf]
  %v21 = vld [vmem:[%s1 + $0x18] sm:$0xf]
  %v22 = vld [vmem:[%s1 + $0x1c] sm:$0xf]
  %v23 = vld [vmem:[%s1 + $0x20] sm:$0xf]
  %v24 = vld [vmem:[%s1 + $0x24] sm:$0xf]
  %v25 = vld [vmem:[%s1 + $0x28] sm:$0xf]
  %v26 = vld [vmem:[%s1 + $0x2c] sm:$0xf]
  %v27 = vld [vmem:[%s1 + $0x30] sm:$0xf]
  %v28 = vld [vmem:[%s1 + $0x34] sm:$0xf]
  %v29 = vld [vmem:[%s1 + $0x38] sm:$0xf]
  %v30 = vld [vmem:[%s1 + $0x3c] sm:$0xf]
  %v31 = vld [vmem:[%s1 + $0x40] sm:$0xf]
  %v32 = vld [vmem:[%s1 + $0x44] sm:$0xf]
  %v33 = vld [vmem:[%s2] sm:$0x1]
  %v34 = vld [vmem:[%s0] sm:$0xff]
  %v35 = vld [vmem:[%s0 + $0x8] sm:$0xff]
  %v36 = vld [vmem:[%s0 + $0x10] sm:$0xff]
  %v37 = vld [vmem:[%s0 + $0x18] sm:$0xff]
  %v38 = vld [vmem:[%s0 + $0x20] sm:$0xff]
  %v39 = vld [vmem:[%s0 + $0x28] sm:$0xff]
  %v40 = vld [vmem:[%s0 + $0x30] sm:$0xff]
  %v41 = vld [vmem:[%s0 + $0x38] sm:$0xff]
  %v42 = vld [vmem:[%s0 + $0x40] sm:$0xff]
  %v43 = vld [vmem:[%s0 + $0x48] sm:$0xff]
  %v44 = vld [vmem:[%s0 + $0x50] sm:$0xff]
  %v45 = vld [vmem:[%s0 + $0x58] sm:$0xff]
  %v46 = vld [vmem:[%s0 + $0x60] sm:$0x11]
  %v48 = vlaneseq
  %v49 = vshrl.u32 %v48, 7
  %v50 = vsub.s32 0, %v49
  %v51 = vrot.slane %v33, %v50
  %v66 = vunpack.c.l.b16 %v34
  %v67 = vunpack.c.h.b16 %v34
  %v68 = vunpack.c.l.b16 %v35
  %v69 = vunpack.c.h.b16 %v35
  %v70 = vunpack.c.l.b16 %v36
  %v71 = vunpack.c.h.b16 %v36
  %v72 = vunpack.c.l.b16 %v37
  %v73 = vunpack.c.h.b16 %v37
  %v74 = vunpack.c.l.b16 %v38
  %v75 = vunpack.c.h.b16 %v38
  %v76 = vunpack.c.l.b16 %v39
  %v77 = vunpack.c.h.b16 %v39
  %v78 = vunpack.c.l.b16 %v40
  %v79 = vunpack.c.h.b16 %v40
  %v80 = vunpack.c.l.b16 %v41
  %v81 = vunpack.c.h.b16 %v41
  %v82 = vunpack.c.l.b16 %v42
  %v83 = vunpack.c.h.b16 %v42
  %v84 = vunpack.c.l.b16 %v43
  %v85 = vunpack.c.h.b16 %v43
  %v86 = vunpack.c.l.b16 %v44
  %v87 = vunpack.c.h.b16 %v44
  %v88 = vunpack.c.l.b16 %v45
  %v89 = vunpack.c.h.b16 %v45
  %v90 = vunpack.c.l.b16 %v46
  %v91 = vunpack.c.h.b16 %v46
  %v92 = vpack.c.b16 %v68, %v66
  %v93 = vpack.c.b16 %v69, %v67
  %v94 = vpack.c.b16 %v72, %v70
  %v95 = vpack.c.b16 %v73, %v71
  %v96 = vpack.c.b16 %v76, %v74
  %v97 = vpack.c.b16 %v77, %v75
  %v98 = vpack.c.b16 %v80, %v78
  %v99 = vpack.c.b16 %v81, %v79
  %v100 = vpack.c.b16 %v84, %v82
  %v101 = vpack.c.b16 %v85, %v83
  %v102 = vpack.c.b16 %v88, %v86
  %v103 = vpack.c.b16 %v89, %v87
  %v104 = vpack.c.b16 %v90, %v90
  %v105 = vpack.c.b16 %v91, %v91
  %v131 = vunpack.c.l.b16 %v15
  %v132 = vunpack.c.l.b16 %v16
  %v133 = vunpack.c.l.b16 %v17
  %v134 = vunpack.c.l.b16 %v18
  %v135 = vunpack.c.l.b16 %v19
  %v136 = vunpack.c.l.b16 %v20
  %v137 = vunpack.c.l.b16 %v21
  %v138 = vunpack.c.l.b16 %v22
  %v139 = vunpack.c.l.b16 %v23
  %v140 = vunpack.c.l.b16 %v24
  %v141 = vunpack.c.l.b16 %v25
  %v142 = vunpack.c.l.b16 %v26
  %v143 = vunpack.c.l.b16 %v27
  %v144 = vunpack.c.l.b16 %v28
  %v145 = vunpack.c.l.b16 %v29
  %v146 = vunpack.c.l.b16 %v30
  %v147 = vunpack.c.l.b16 %v31
  %v148 = vunpack.c.l.b16 %v32
  %v149 = vpack.c.b16 %v132, %v131
  %v150 = vpack.c.b16 %v134, %v133
  %v151 = vpack.c.b16 %v136, %v135
  %v152 = vpack.c.b16 %v138, %v137
  %v153 = vpack.c.b16 %v140, %v139
  %v154 = vpack.c.b16 %v142, %v141
  %v155 = vpack.c.b16 %v144, %v143
  %v156 = vpack.c.b16 %v146, %v145
  %v157 = vpack.c.b16 %v148, %v147
  %vm167 = vcmask 130048
  %v169 = vsel %vm167, %v93, 0
  %v172 = vsel %vm167, %v95, 0
  %v175 = vsel %vm167, %v97, 0
  %v178 = vsel %vm167, %v99, 0
  %v181 = vsel %vm167, %v101, 0
  %v184 = vsel %vm167, %v103, 0
  %v187 = vsel %vm167, %v105, 0
  %189 = vmatprep.subr.bf16.mxu0 0
  %190 = vmatpush1.bf16.msra.mxu0 %v149
  %191 = vmatprep.subr.bf16.mxu0 0
  %192 = vmatpush1.bf16.msra.mxu0 %v150
  %193 = vmatprep.subr.bf16.mxu0 0
  %194 = vmatpush1.bf16.msra.mxu0 %v151
  %195 = vmatprep.subr.bf16.mxu0 0
  %196 = vmatpush1.bf16.msra.mxu0 %v152
  %197 = vmatprep.subr.bf16.mxu0 0
  %198 = vmatpush1.bf16.msra.mxu0 %v153
  %199 = vmatprep.subr.bf16.mxu0 0
  %200 = vmatpush1.bf16.msra.mxu0 %v154
  %201 = vmatprep.subr.bf16.mxu0 0
  %202 = vmatpush1.bf16.msra.mxu0 %v155
  %203 = vmatprep.subr.bf16.mxu0 0
  %204 = vmatpush1.bf16.msra.mxu0 %v156
  %205 = vmatprep.subr.bf16.mxu0 0
  %206 = vmatpush1.bf16.msra.mxu0 %v157
  %207 = vmatprep.subr.bf16.mxu0 0
  %208 = vmatpush1.bf16.msra.mxu0 0
  %209 = vmatprep.subr.bf16.mxu0 0
  %210 = vmatpush1.bf16.msra.mxu0 0
  %211 = vmatprep.subr.bf16.mxu0 0
  %212 = vmatpush1.bf16.msra.mxu0 0
  %213 = vmatprep.subr.bf16.mxu0 0
  %214 = vmatpush1.bf16.msra.mxu0 0
  %215 = vmatprep.subr.bf16.mxu0 0
  %216 = vmatpush1.bf16.msra.mxu0 0
  %217 = vmatprep.subr.bf16.mxu0 0
  %218 = vmatpush1.bf16.msra.mxu0 0
  %219 = vmatprep.subr.bf16.mxu0 0
  %220 = vmatpush1.bf16.msra.mxu0 0
  %221 = vmatprep.mubr.bf16.mxu0 %v169
  %222 = vmatmul.mubr.bf16.gmra.mrb[0].mxu0 %v92
  %v223 = vpop.f32.mrb[0].mxu0
  %v224 = vadd.f32 %v51, %v223
  %v225 = vpop.f32.mrb[0].mxu0
  %v226 = vpop.f32.mrb[0].mxu0
  %v227 = vadd.f32 %v51, %v226
  %v228 = vpop.f32.mrb[0].mxu0
  %229 = vmatprep.mubr.bf16.mxu0 %v172
  %230 = vmatmul.mubr.bf16.gmra.mrb[0].mxu0 %v94
  %v231 = vpop.f32.mrb[0].mxu0
  %v232 = vadd.f32 %v51, %v231
  %v233 = vpop.f32.mrb[0].mxu0
  %v234 = vpop.f32.mrb[0].mxu0
  %v235 = vadd.f32 %v51, %v234
  %v236 = vpop.f32.mrb[0].mxu0
  %237 = vmatprep.mubr.bf16.mxu0 %v175
  %238 = vmatmul.mubr.bf16.gmra.mrb[0].mxu0 %v96
  %v239 = vpop.f32.mrb[0].mxu0
  %v240 = vadd.f32 %v51, %v239
  %v241 = vpop.f32.mrb[0].mxu0
  %v242 = vpop.f32.mrb[0].mxu0
  %v243 = vadd.f32 %v51, %v242
  %v244 = vpop.f32.mrb[0].mxu0
  %245 = vmatprep.mubr.bf16.mxu0 %v178
  %246 = vmatmul.mubr.bf16.gmra.mrb[0].mxu0 %v98
  %v247 = vpop.f32.mrb[0].mxu0
  %v248 = vadd.f32 %v51, %v247
  %v249 = vpop.f32.mrb[0].mxu0
  %v250 = vpop.f32.mrb[0].mxu0
  %v251 = vadd.f32 %v51, %v250
  %v252 = vpop.f32.mrb[0].mxu0
  %253 = vmatprep.mubr.bf16.mxu0 %v181
  %254 = vmatmul.mubr.bf16.gmra.mrb[0].mxu0 %v100
  %v255 = vpop.f32.mrb[0].mxu0
  %v256 = vadd.f32 %v51, %v255
  %v257 = vpop.f32.mrb[0].mxu0
  %v258 = vpop.f32.mrb[0].mxu0
  %v259 = vadd.f32 %v51, %v258
  %v260 = vpop.f32.mrb[0].mxu0
  %261 = vmatprep.mubr.bf16.mxu0 %v184
  %262 = vmatmul.mubr.bf16.gmra.mrb[0].mxu0 %v102
  %v263 = vpop.f32.mrb[0].mxu0
  %v264 = vadd.f32 %v51, %v263
  %v265 = vpop.f32.mrb[0].mxu0
  %v266 = vpop.f32.mrb[0].mxu0
  %v267 = vadd.f32 %v51, %v266
  %v268 = vpop.f32.mrb[0].mxu0
  %269 = vmatprep.mubr.bf16.mxu0 %v187
  %270 = vmatmul.mubr.bf16.gmra.mrb[0].mxu0 %v104
  %v271 = vpop.f32.mrb[0].mxu0
  %v272 = vadd.f32 %v51, %v271
  %v273 = vpop.f32.mrb[0].mxu0
  %v274 = vpop.f32.mrb[0].mxu0
  %v275 = vpop.f32.mrb[0].mxu0
  %276 = vdwg.mxu0
  %v277 = vmax.f32 %v224, 0.0
  %v278 = vmax.f32 %v227, 0.0
  %v279 = vmax.f32 %v232, 0.0
  %v280 = vmax.f32 %v235, 0.0
  %v281 = vmax.f32 %v240, 0.0
  %v282 = vmax.f32 %v243, 0.0
  %v283 = vmax.f32 %v248, 0.0
  %v284 = vmax.f32 %v251, 0.0
  %v285 = vmax.f32 %v256, 0.0
  %v286 = vmax.f32 %v259, 0.0
  %v287 = vmax.f32 %v264, 0.0
  %v288 = vmax.f32 %v267, 0.0
  %v289 = vmax.f32 %v272, 0.0
  %v290 = vadd.f32 %v277, 0.0
  %v291 = vadd.f32 %v278, 0.0
  %v292 = vadd.f32 %v279, 0.0
  %v293 = vadd.f32 %v280, 0.0
  %v294 = vadd.f32 %v281, 0.0
  %v295 = vadd.f32 %v282, 0.0
  %v296 = vadd.f32 %v283, 0.0
  %v297 = vadd.f32 %v284, 0.0
  %v298 = vadd.f32 %v285, 0.0
  %v299 = vadd.f32 %v286, 0.0
  %v300 = vadd.f32 %v287, 0.0
  %v301 = vadd.f32 %v288, 0.0
  %v302 = vadd.f32 %v289, 0.0
  %s303 = scalar_lea.vmem %s0, 104
  %v304 = vld [vmem:[%s303] sm:$0xff]
  %v305 = vld [vmem:[%s303 + $0x8] sm:$0xff]
  %v306 = vld [vmem:[%s303 + $0x10] sm:$0xff]
  %v307 = vld [vmem:[%s303 + $0x18] sm:$0xff]
  %v308 = vld [vmem:[%s303 + $0x20] sm:$0xff]
  %v309 = vld [vmem:[%s303 + $0x28] sm:$0xff]
  %v310 = vld [vmem:[%s303 + $0x30] sm:$0xff]
  %v311 = vld [vmem:[%s303 + $0x38] sm:$0xff]
  %v312 = vld [vmem:[%s303 + $0x40] sm:$0xff]
  %v313 = vld [vmem:[%s303 + $0x48] sm:$0xff]
  %v314 = vld [vmem:[%s303 + $0x50] sm:$0xff]
  %v315 = vld [vmem:[%s303 + $0x58] sm:$0xff]
  %v316 = vld [vmem:[%s303 + $0x60] sm:$0x11]
  %v330 = vunpack.c.l.b16 %v304
  %v331 = vunpack.c.h.b16 %v304
  %v332 = vunpack.c.l.b16 %v305
  %v333 = vunpack.c.h.b16 %v305
  %v334 = vunpack.c.l.b16 %v306
  %v335 = vunpack.c.h.b16 %v306
  %v336 = vunpack.c.l.b16 %v307
  %v337 = vunpack.c.h.b16 %v307
  %v338 = vunpack.c.l.b16 %v308
  %v339 = vunpack.c.h.b16 %v308
  %v340 = vunpack.c.l.b16 %v309
  %v341 = vunpack.c.h.b16 %v309
  %v342 = vunpack.c.l.b16 %v310
  %v343 = vunpack.c.h.b16 %v310
  %v344 = vunpack.c.l.b16 %v311
  %v345 = vunpack.c.h.b16 %v311
  %v346 = vunpack.c.l.b16 %v312
  %v347 = vunpack.c.h.b16 %v312
  %v348 = vunpack.c.l.b16 %v313
  %v349 = vunpack.c.h.b16 %v313
  %v350 = vunpack.c.l.b16 %v314
  %v351 = vunpack.c.h.b16 %v314
  %v352 = vunpack.c.l.b16 %v315
  %v353 = vunpack.c.h.b16 %v315
  %v354 = vunpack.c.l.b16 %v316
  %v355 = vunpack.c.h.b16 %v316
  %v356 = vpack.c.b16 %v332, %v330
  %v357 = vpack.c.b16 %v333, %v331
  %v358 = vpack.c.b16 %v336, %v334
  %v359 = vpack.c.b16 %v337, %v335
  %v360 = vpack.c.b16 %v340, %v338
  %v361 = vpack.c.b16 %v341, %v339
  %v362 = vpack.c.b16 %v344, %v342
  %v363 = vpack.c.b16 %v345, %v343
  %v364 = vpack.c.b16 %v348, %v346
  %v365 = vpack.c.b16 %v349, %v347
  %v366 = vpack.c.b16 %v352, %v350
  %v367 = vpack.c.b16 %v353, %v351
  %v368 = vpack.c.b16 %v354, %v354
  %v369 = vpack.c.b16 %v355, %v355
  %v378 = vsel %vm167, %v357, 0
  %v381 = vsel %vm167, %v359, 0
  %v384 = vsel %vm167, %v361, 0
  %v387 = vsel %vm167, %v363, 0
  %v390 = vsel %vm167, %v365, 0
  %v393 = vsel %vm167, %v367, 0
  %v396 = vsel %vm167, %v369, 0
  %398 = vmatprep.subr.bf16.mxu0 0
  %399 = vmatpush1.bf16.msra.mxu0 %v149
  %400 = vmatprep.subr.bf16.mxu0 0
  %401 = vmatpush1.bf16.msra.mxu0 %v150
  %402 = vmatprep.subr.bf16.mxu0 0
  %403 = vmatpush1.bf16.msra.mxu0 %v151
  %404 = vmatprep.subr.bf16.mxu0 0
  %405 = vmatpush1.bf16.msra.mxu0 %v152
  %406 = vmatprep.subr.bf16.mxu0 0
  %407 = vmatpush1.bf16.msra.mxu0 %v153
  %408 = vmatprep.subr.bf16.mxu0 0
  %409 = vmatpush1.bf16.msra.mxu0 %v154
  %410 = vmatprep.subr.bf16.mxu0 0
  %411 = vmatpush1.bf16.msra.mxu0 %v155
  %412 = vmatprep.subr.bf16.mxu0 0
  %413 = vmatpush1.bf16.msra.mxu0 %v156
  %414 = vmatprep.subr.bf16.mxu0 0
  %415 = vmatpush1.bf16.msra.mxu0 %v157
  %416 = vmatprep.subr.bf16.mxu0 0
  %417 = vmatpush1.bf16.msra.mxu0 0
  %418 = vmatprep.subr.bf16.mxu0 0
  %419 = vmatpush1.bf16.msra.mxu0 0
  %420 = vmatprep.subr.bf16.mxu0 0
  %421 = vmatpush1.bf16.msra.mxu0 0
  %422 = vmatprep.subr.bf16.mxu0 0
  %423 = vmatpush1.bf16.msra.mxu0 0
  %424 = vmatprep.subr.bf16.mxu0 0
  %425 = vmatpush1.bf16.msra.mxu0 0
  %426 = vmatprep.subr.bf16.mxu0 0
  %427 = vmatpush1.bf16.msra.mxu0 0
  %428 = vmatprep.subr.bf16.mxu0 0
  %429 = vmatpush1.bf16.msra.mxu0 0
  %430 = vmatprep.mubr.bf16.mxu0 %v378
  %431 = vmatmul.mubr.bf16.gmra.mrb[0].mxu0 %v356
  %v432 = vpop.f32.mrb[0].mxu0
  %v433 = vadd.f32 %v51, %v432
  %v434 = vpop.f32.mrb[0].mxu0
  %v435 = vpop.f32.mrb[0].mxu0
  %v436 = vadd.f32 %v51, %v435
  %v437 = vpop.f32.mrb[0].mxu0
  %438 = vmatprep.mubr.bf16.mxu0 %v381
  %439 = vmatmul.mubr.bf16.gmra.mrb[0].mxu0 %v358
  %v440 = vpop.f32.mrb[0].mxu0
  %v441 = vadd.f32 %v51, %v440
  %v442 = vpop.f32.mrb[0].mxu0
  %v443 = vpop.f32.mrb[0].mxu0
  %v444 = vadd.f32 %v51, %v443
  %v445 = vpop.f32.mrb[0].mxu0
  %446 = vmatprep.mubr.bf16.mxu0 %v384
  %447 = vmatmul.mubr.bf16.gmra.mrb[0].mxu0 %v360
  %v448 = vpop.f32.mrb[0].mxu0
  %v449 = vadd.f32 %v51, %v448
  %v450 = vpop.f32.mrb[0].mxu0
  %v451 = vpop.f32.mrb[0].mxu0
  %v452 = vadd.f32 %v51, %v451
  %v453 = vpop.f32.mrb[0].mxu0
  %454 = vmatprep.mubr.bf16.mxu0 %v387
  %455 = vmatmul.mubr.bf16.gmra.mrb[0].mxu0 %v362
  %v456 = vpop.f32.mrb[0].mxu0
  %v457 = vadd.f32 %v51, %v456
  %v458 = vpop.f32.mrb[0].mxu0
  %v459 = vpop.f32.mrb[0].mxu0
  %v460 = vadd.f32 %v51, %v459
  %v461 = vpop.f32.mrb[0].mxu0
  %462 = vmatprep.mubr.bf16.mxu0 %v390
  %463 = vmatmul.mubr.bf16.gmra.mrb[0].mxu0 %v364
  %v464 = vpop.f32.mrb[0].mxu0
  %v465 = vadd.f32 %v51, %v464
  %v466 = vpop.f32.mrb[0].mxu0
  %v467 = vpop.f32.mrb[0].mxu0
  %v468 = vadd.f32 %v51, %v467
  %v469 = vpop.f32.mrb[0].mxu0
  %470 = vmatprep.mubr.bf16.mxu0 %v393
  %471 = vmatmul.mubr.bf16.gmra.mrb[0].mxu0 %v366
  %v472 = vpop.f32.mrb[0].mxu0
  %v473 = vadd.f32 %v51, %v472
  %v474 = vpop.f32.mrb[0].mxu0
  %v475 = vpop.f32.mrb[0].mxu0
  %v476 = vadd.f32 %v51, %v475
  %v477 = vpop.f32.mrb[0].mxu0
  %478 = vmatprep.mubr.bf16.mxu0 %v396
  %479 = vmatmul.mubr.bf16.gmra.mrb[0].mxu0 %v368
  %v480 = vpop.f32.mrb[0].mxu0
  %v481 = vadd.f32 %v51, %v480
  %v482 = vpop.f32.mrb[0].mxu0
  %v483 = vpop.f32.mrb[0].mxu0
  %v484 = vpop.f32.mrb[0].mxu0
  %485 = vdwg.mxu0
  %v486 = vmax.f32 %v433, 0.0
  %v487 = vmax.f32 %v436, 0.0
  %v488 = vmax.f32 %v441, 0.0
  %v489 = vmax.f32 %v444, 0.0
  %v490 = vmax.f32 %v449, 0.0
  %v491 = vmax.f32 %v452, 0.0
  %v492 = vmax.f32 %v457, 0.0
  %v493 = vmax.f32 %v460, 0.0
  %v494 = vmax.f32 %v465, 0.0
  %v495 = vmax.f32 %v468, 0.0
  %v496 = vmax.f32 %v473, 0.0
  %v497 = vmax.f32 %v476, 0.0
  %v498 = vmax.f32 %v481, 0.0
  %v499 = vadd.f32 %v290, %v486
  %v500 = vadd.f32 %v291, %v487
  %v501 = vadd.f32 %v292, %v488
  %v502 = vadd.f32 %v293, %v489
  %v503 = vadd.f32 %v294, %v490
  %v504 = vadd.f32 %v295, %v491
  %v505 = vadd.f32 %v296, %v492
  %v506 = vadd.f32 %v297, %v493
  %v507 = vadd.f32 %v298, %v494
  %v508 = vadd.f32 %v299, %v495
  %v509 = vadd.f32 %v300, %v496
  %v510 = vadd.f32 %v301, %v497
  %v511 = vadd.f32 %v302, %v498
  %s512 = scalar_lea.vmem %s0, 208
  %v513 = vld [vmem:[%s512] sm:$0xff]
  %v514 = vld [vmem:[%s512 + $0x8] sm:$0xff]
  %v515 = vld [vmem:[%s512 + $0x10] sm:$0xff]
  %v516 = vld [vmem:[%s512 + $0x18] sm:$0xff]
  %v517 = vld [vmem:[%s512 + $0x20] sm:$0xff]
  %v518 = vld [vmem:[%s512 + $0x28] sm:$0xff]
  %v519 = vld [vmem:[%s512 + $0x30] sm:$0xff]
  %v520 = vld [vmem:[%s512 + $0x38] sm:$0xff]
  %v521 = vld [vmem:[%s512 + $0x40] sm:$0xff]
  %v522 = vld [vmem:[%s512 + $0x48] sm:$0xff]
  %v523 = vld [vmem:[%s512 + $0x50] sm:$0xff]
  %v524 = vld [vmem:[%s512 + $0x58] sm:$0xff]
  %v525 = vld [vmem:[%s512 + $0x60] sm:$0x11]
  %v539 = vunpack.c.l.b16 %v513
  %v540 = vunpack.c.h.b16 %v513
  %v541 = vunpack.c.l.b16 %v514
  %v542 = vunpack.c.h.b16 %v514
  %v543 = vunpack.c.l.b16 %v515
  %v544 = vunpack.c.h.b16 %v515
  %v545 = vunpack.c.l.b16 %v516
  %v546 = vunpack.c.h.b16 %v516
  %v547 = vunpack.c.l.b16 %v517
  %v548 = vunpack.c.h.b16 %v517
  %v549 = vunpack.c.l.b16 %v518
  %v550 = vunpack.c.h.b16 %v518
  %v551 = vunpack.c.l.b16 %v519
  %v552 = vunpack.c.h.b16 %v519
  %v553 = vunpack.c.l.b16 %v520
  %v554 = vunpack.c.h.b16 %v520
  %v555 = vunpack.c.l.b16 %v521
  %v556 = vunpack.c.h.b16 %v521
  %v557 = vunpack.c.l.b16 %v522
  %v558 = vunpack.c.h.b16 %v522
  %v559 = vunpack.c.l.b16 %v523
  %v560 = vunpack.c.h.b16 %v523
  %v561 = vunpack.c.l.b16 %v524
  %v562 = vunpack.c.h.b16 %v524
  %v563 = vunpack.c.l.b16 %v525
  %v564 = vunpack.c.h.b16 %v525
  %v565 = vpack.c.b16 %v541, %v539
  %v566 = vpack.c.b16 %v542, %v540
  %v567 = vpack.c.b16 %v545, %v543
  %v568 = vpack.c.b16 %v546, %v544
  %v569 = vpack.c.b16 %v549, %v547
  %v570 = vpack.c.b16 %v550, %v548
  %v571 = vpack.c.b16 %v553, %v551
  %v572 = vpack.c.b16 %v554, %v552
  %v573 = vpack.c.b16 %v557, %v555
  %v574 = vpack.c.b16 %v558, %v556
  %v575 = vpack.c.b16 %v561, %v559
  %v576 = vpack.c.b16 %v562, %v560
  %v577 = vpack.c.b16 %v563, %v563
  %v578 = vpack.c.b16 %v564, %v564
  %v587 = vsel %vm167, %v566, 0
  %v590 = vsel %vm167, %v568, 0
  %v593 = vsel %vm167, %v570, 0
  %v596 = vsel %vm167, %v572, 0
  %v599 = vsel %vm167, %v574, 0
  %v602 = vsel %vm167, %v576, 0
  %v605 = vsel %vm167, %v578, 0
  %607 = vmatprep.subr.bf16.mxu0 0
  %608 = vmatpush1.bf16.msra.mxu0 %v149
  %609 = vmatprep.subr.bf16.mxu0 0
  %610 = vmatpush1.bf16.msra.mxu0 %v150
  %611 = vmatprep.subr.bf16.mxu0 0
  %612 = vmatpush1.bf16.msra.mxu0 %v151
  %613 = vmatprep.subr.bf16.mxu0 0
  %614 = vmatpush1.bf16.msra.mxu0 %v152
  %615 = vmatprep.subr.bf16.mxu0 0
  %616 = vmatpush1.bf16.msra.mxu0 %v153
  %617 = vmatprep.subr.bf16.mxu0 0
  %618 = vmatpush1.bf16.msra.mxu0 %v154
  %619 = vmatprep.subr.bf16.mxu0 0
  %620 = vmatpush1.bf16.msra.mxu0 %v155
  %621 = vmatprep.subr.bf16.mxu0 0
  %622 = vmatpush1.bf16.msra.mxu0 %v156
  %623 = vmatprep.subr.bf16.mxu0 0
  %624 = vmatpush1.bf16.msra.mxu0 %v157
  %625 = vmatprep.subr.bf16.mxu0 0
  %626 = vmatpush1.bf16.msra.mxu0 0
  %627 = vmatprep.subr.bf16.mxu0 0
  %628 = vmatpush1.bf16.msra.mxu0 0
  %629 = vmatprep.subr.bf16.mxu0 0
  %630 = vmatpush1.bf16.msra.mxu0 0
  %631 = vmatprep.subr.bf16.mxu0 0
  %632 = vmatpush1.bf16.msra.mxu0 0
  %633 = vmatprep.subr.bf16.mxu0 0
  %634 = vmatpush1.bf16.msra.mxu0 0
  %635 = vmatprep.subr.bf16.mxu0 0
  %636 = vmatpush1.bf16.msra.mxu0 0
  %637 = vmatprep.subr.bf16.mxu0 0
  %638 = vmatpush1.bf16.msra.mxu0 0
  %639 = vmatprep.mubr.bf16.mxu0 %v587
  %640 = vmatmul.mubr.bf16.gmra.mrb[0].mxu0 %v565
  %v641 = vpop.f32.mrb[0].mxu0
  %v642 = vadd.f32 %v51, %v641
  %v643 = vpop.f32.mrb[0].mxu0
  %v644 = vpop.f32.mrb[0].mxu0
  %v645 = vadd.f32 %v51, %v644
  %v646 = vpop.f32.mrb[0].mxu0
  %647 = vmatprep.mubr.bf16.mxu0 %v590
  %648 = vmatmul.mubr.bf16.gmra.mrb[0].mxu0 %v567
  %v649 = vpop.f32.mrb[0].mxu0
  %v650 = vadd.f32 %v51, %v649
  %v651 = vpop.f32.mrb[0].mxu0
  %v652 = vpop.f32.mrb[0].mxu0
  %v653 = vadd.f32 %v51, %v652
  %v654 = vpop.f32.mrb[0].mxu0
  %655 = vmatprep.mubr.bf16.mxu0 %v593
  %656 = vmatmul.mubr.bf16.gmra.mrb[0].mxu0 %v569
  %v657 = vpop.f32.mrb[0].mxu0
  %v658 = vadd.f32 %v51, %v657
  %v659 = vpop.f32.mrb[0].mxu0
  %v660 = vpop.f32.mrb[0].mxu0
  %v661 = vadd.f32 %v51, %v660
  %v662 = vpop.f32.mrb[0].mxu0
  %663 = vmatprep.mubr.bf16.mxu0 %v596
  %664 = vmatmul.mubr.bf16.gmra.mrb[0].mxu0 %v571
  %v665 = vpop.f32.mrb[0].mxu0
  %v666 = vadd.f32 %v51, %v665
  %v667 = vpop.f32.mrb[0].mxu0
  %v668 = vpop.f32.mrb[0].mxu0
  %v669 = vadd.f32 %v51, %v668
  %v670 = vpop.f32.mrb[0].mxu0
  %671 = vmatprep.mubr.bf16.mxu0 %v599
  %672 = vmatmul.mubr.bf16.gmra.mrb[0].mxu0 %v573
  %v673 = vpop.f32.mrb[0].mxu0
  %v674 = vadd.f32 %v51, %v673
  %v675 = vpop.f32.mrb[0].mxu0
  %v676 = vpop.f32.mrb[0].mxu0
  %v677 = vadd.f32 %v51, %v676
  %v678 = vpop.f32.mrb[0].mxu0
  %679 = vmatprep.mubr.bf16.mxu0 %v602
  %680 = vmatmul.mubr.bf16.gmra.mrb[0].mxu0 %v575
  %v681 = vpop.f32.mrb[0].mxu0
  %v682 = vadd.f32 %v51, %v681
  %v683 = vpop.f32.mrb[0].mxu0
  %v684 = vpop.f32.mrb[0].mxu0
  %v685 = vadd.f32 %v51, %v684
  %v686 = vpop.f32.mrb[0].mxu0
  %687 = vmatprep.mubr.bf16.mxu0 %v605
  %688 = vmatmul.mubr.bf16.gmra.mrb[0].mxu0 %v577
  %v689 = vpop.f32.mrb[0].mxu0
  %v690 = vadd.f32 %v51, %v689
  %v691 = vpop.f32.mrb[0].mxu0
  %v692 = vpop.f32.mrb[0].mxu0
  %v693 = vpop.f32.mrb[0].mxu0
  %694 = vdwg.mxu0
  %v695 = vmax.f32 %v642, 0.0
  %v696 = vmax.f32 %v645, 0.0
  %v697 = vmax.f32 %v650, 0.0
  %v698 = vmax.f32 %v653, 0.0
  %v699 = vmax.f32 %v658, 0.0
  %v700 = vmax.f32 %v661, 0.0
  %v701 = vmax.f32 %v666, 0.0
  %v702 = vmax.f32 %v669, 0.0
  %v703 = vmax.f32 %v674, 0.0
  %v704 = vmax.f32 %v677, 0.0
  %v705 = vmax.f32 %v682, 0.0
  %v706 = vmax.f32 %v685, 0.0
  %v707 = vmax.f32 %v690, 0.0
  %v708 = vadd.f32 %v499, %v695
  %v709 = vadd.f32 %v500, %v696
  %v710 = vadd.f32 %v501, %v697
  %v711 = vadd.f32 %v502, %v698
  %v712 = vadd.f32 %v503, %v699
  %v713 = vadd.f32 %v504, %v700
  %v714 = vadd.f32 %v505, %v701
  %v715 = vadd.f32 %v506, %v702
  %v716 = vadd.f32 %v507, %v703
  %v717 = vadd.f32 %v508, %v704
  %v718 = vadd.f32 %v509, %v705
  %v719 = vadd.f32 %v510, %v706
  %v720 = vadd.f32 %v511, %v707
  %s721 = scalar_lea.vmem %s0, 312
  %v722 = vld [vmem:[%s721] sm:$0xff]
  %v723 = vld [vmem:[%s721 + $0x8] sm:$0xff]
  %v724 = vld [vmem:[%s721 + $0x10] sm:$0xff]
  %v725 = vld [vmem:[%s721 + $0x18] sm:$0xff]
  %v726 = vld [vmem:[%s721 + $0x20] sm:$0xff]
  %v727 = vld [vmem:[%s721 + $0x28] sm:$0xff]
  %v728 = vld [vmem:[%s721 + $0x30] sm:$0xff]
  %v729 = vld [vmem:[%s721 + $0x38] sm:$0xff]
  %v730 = vld [vmem:[%s721 + $0x40] sm:$0xff]
  %v731 = vld [vmem:[%s721 + $0x48] sm:$0xff]
  %v732 = vld [vmem:[%s721 + $0x50] sm:$0xff]
  %v733 = vld [vmem:[%s721 + $0x58] sm:$0xff]
  %v734 = vld [vmem:[%s721 + $0x60] sm:$0x11]
  %v748 = vunpack.c.l.b16 %v722
  %v749 = vunpack.c.h.b16 %v722
  %v750 = vunpack.c.l.b16 %v723
  %v751 = vunpack.c.h.b16 %v723
  %v752 = vunpack.c.l.b16 %v724
  %v753 = vunpack.c.h.b16 %v724
  %v754 = vunpack.c.l.b16 %v725
  %v755 = vunpack.c.h.b16 %v725
  %v756 = vunpack.c.l.b16 %v726
  %v757 = vunpack.c.h.b16 %v726
  %v758 = vunpack.c.l.b16 %v727
  %v759 = vunpack.c.h.b16 %v727
  %v760 = vunpack.c.l.b16 %v728
  %v761 = vunpack.c.h.b16 %v728
  %v762 = vunpack.c.l.b16 %v729
  %v763 = vunpack.c.h.b16 %v729
  %v764 = vunpack.c.l.b16 %v730
  %v765 = vunpack.c.h.b16 %v730
  %v766 = vunpack.c.l.b16 %v731
  %v767 = vunpack.c.h.b16 %v731
  %v768 = vunpack.c.l.b16 %v732
  %v769 = vunpack.c.h.b16 %v732
  %v770 = vunpack.c.l.b16 %v733
  %v771 = vunpack.c.h.b16 %v733
  %v772 = vunpack.c.l.b16 %v734
  %v773 = vunpack.c.h.b16 %v734
  %v774 = vpack.c.b16 %v750, %v748
  %v775 = vpack.c.b16 %v751, %v749
  %v776 = vpack.c.b16 %v754, %v752
  %v777 = vpack.c.b16 %v755, %v753
  %v778 = vpack.c.b16 %v758, %v756
  %v779 = vpack.c.b16 %v759, %v757
  %v780 = vpack.c.b16 %v762, %v760
  %v781 = vpack.c.b16 %v763, %v761
  %v782 = vpack.c.b16 %v766, %v764
  %v783 = vpack.c.b16 %v767, %v765
  %v784 = vpack.c.b16 %v770, %v768
  %v785 = vpack.c.b16 %v771, %v769
  %v786 = vpack.c.b16 %v772, %v772
  %v787 = vpack.c.b16 %v773, %v773
  %v796 = vsel %vm167, %v775, 0
  %v799 = vsel %vm167, %v777, 0
  %v802 = vsel %vm167, %v779, 0
  %v805 = vsel %vm167, %v781, 0
  %v808 = vsel %vm167, %v783, 0
  %v811 = vsel %vm167, %v785, 0
  %v814 = vsel %vm167, %v787, 0
  %816 = vmatprep.subr.bf16.mxu0 0
  %817 = vmatpush1.bf16.msra.mxu0 %v149
  %818 = vmatprep.subr.bf16.mxu0 0
  %819 = vmatpush1.bf16.msra.mxu0 %v150
  %820 = vmatprep.subr.bf16.mxu0 0
  %821 = vmatpush1.bf16.msra.mxu0 %v151
  %822 = vmatprep.subr.bf16.mxu0 0
  %823 = vmatpush1.bf16.msra.mxu0 %v152
  %824 = vmatprep.subr.bf16.mxu0 0
  %825 = vmatpush1.bf16.msra.mxu0 %v153
  %826 = vmatprep.subr.bf16.mxu0 0
  %827 = vmatpush1.bf16.msra.mxu0 %v154
  %828 = vmatprep.subr.bf16.mxu0 0
  %829 = vmatpush1.bf16.msra.mxu0 %v155
  %830 = vmatprep.subr.bf16.mxu0 0
  %831 = vmatpush1.bf16.msra.mxu0 %v156
  %832 = vmatprep.subr.bf16.mxu0 0
  %833 = vmatpush1.bf16.msra.mxu0 %v157
  %834 = vmatprep.subr.bf16.mxu0 0
  %835 = vmatpush1.bf16.msra.mxu0 0
  %836 = vmatprep.subr.bf16.mxu0 0
  %837 = vmatpush1.bf16.msra.mxu0 0
  %838 = vmatprep.subr.bf16.mxu0 0
  %839 = vmatpush1.bf16.msra.mxu0 0
  %840 = vmatprep.subr.bf16.mxu0 0
  %841 = vmatpush1.bf16.msra.mxu0 0
  %842 = vmatprep.subr.bf16.mxu0 0
  %843 = vmatpush1.bf16.msra.mxu0 0
  %844 = vmatprep.subr.bf16.mxu0 0
  %845 = vmatpush1.bf16.msra.mxu0 0
  %846 = vmatprep.subr.bf16.mxu0 0
  %847 = vmatpush1.bf16.msra.mxu0 0
  %848 = vmatprep.mubr.bf16.mxu0 %v796
  %849 = vmatmul.mubr.bf16.gmra.mrb[0].mxu0 %v774
  %v850 = vpop.f32.mrb[0].mxu0
  %v851 = vadd.f32 %v51, %v850
  %v852 = vpop.f32.mrb[0].mxu0
  %v853 = vpop.f32.mrb[0].mxu0
  %v854 = vadd.f32 %v51, %v853
  %v855 = vpop.f32.mrb[0].mxu0
  %856 = vmatprep.mubr.bf16.mxu0 %v799
  %857 = vmatmul.mubr.bf16.gmra.mrb[0].mxu0 %v776
  %v858 = vpop.f32.mrb[0].mxu0
  %v859 = vadd.f32 %v51, %v858
  %v860 = vpop.f32.mrb[0].mxu0
  %v861 = vpop.f32.mrb[0].mxu0
  %v862 = vadd.f32 %v51, %v861
  %v863 = vpop.f32.mrb[0].mxu0
  %864 = vmatprep.mubr.bf16.mxu0 %v802
  %865 = vmatmul.mubr.bf16.gmra.mrb[0].mxu0 %v778
  %v866 = vpop.f32.mrb[0].mxu0
  %v867 = vadd.f32 %v51, %v866
  %v868 = vpop.f32.mrb[0].mxu0
  %v869 = vpop.f32.mrb[0].mxu0
  %v870 = vadd.f32 %v51, %v869
  %v871 = vpop.f32.mrb[0].mxu0
  %872 = vmatprep.mubr.bf16.mxu0 %v805
  %873 = vmatmul.mubr.bf16.gmra.mrb[0].mxu0 %v780
  %v874 = vpop.f32.mrb[0].mxu0
  %v875 = vadd.f32 %v51, %v874
  %v876 = vpop.f32.mrb[0].mxu0
  %v877 = vpop.f32.mrb[0].mxu0
  %v878 = vadd.f32 %v51, %v877
  %v879 = vpop.f32.mrb[0].mxu0
  %880 = vmatprep.mubr.bf16.mxu0 %v808
  %881 = vmatmul.mubr.bf16.gmra.mrb[0].mxu0 %v782
  %v882 = vpop.f32.mrb[0].mxu0
  %v883 = vadd.f32 %v51, %v882
  %v884 = vpop.f32.mrb[0].mxu0
  %v885 = vpop.f32.mrb[0].mxu0
  %v886 = vadd.f32 %v51, %v885
  %v887 = vpop.f32.mrb[0].mxu0
  %888 = vmatprep.mubr.bf16.mxu0 %v811
  %889 = vmatmul.mubr.bf16.gmra.mrb[0].mxu0 %v784
  %v890 = vpop.f32.mrb[0].mxu0
  %v891 = vadd.f32 %v51, %v890
  %v892 = vpop.f32.mrb[0].mxu0
  %v893 = vpop.f32.mrb[0].mxu0
  %v894 = vadd.f32 %v51, %v893
  %v895 = vpop.f32.mrb[0].mxu0
  %896 = vmatprep.mubr.bf16.mxu0 %v814
  %897 = vmatmul.mubr.bf16.gmra.mrb[0].mxu0 %v786
  %v898 = vpop.f32.mrb[0].mxu0
  %v899 = vadd.f32 %v51, %v898
  %v900 = vpop.f32.mrb[0].mxu0
  %v901 = vpop.f32.mrb[0].mxu0
  %v902 = vpop.f32.mrb[0].mxu0
  %903 = vdwg.mxu0
  %v904 = vmax.f32 %v851, 0.0
  %v905 = vmax.f32 %v854, 0.0
  %v906 = vmax.f32 %v859, 0.0
  %v907 = vmax.f32 %v862, 0.0
  %v908 = vmax.f32 %v867, 0.0
  %v909 = vmax.f32 %v870, 0.0
  %v910 = vmax.f32 %v875, 0.0
  %v911 = vmax.f32 %v878, 0.0
  %v912 = vmax.f32 %v883, 0.0
  %v913 = vmax.f32 %v886, 0.0
  %v914 = vmax.f32 %v891, 0.0
  %v915 = vmax.f32 %v894, 0.0
  %v916 = vmax.f32 %v899, 0.0
  %v917 = vadd.f32 %v708, %v904
  %v918 = vadd.f32 %v709, %v905
  %v919 = vadd.f32 %v710, %v906
  %v920 = vadd.f32 %v711, %v907
  %v921 = vadd.f32 %v712, %v908
  %v922 = vadd.f32 %v713, %v909
  %v923 = vadd.f32 %v714, %v910
  %v924 = vadd.f32 %v715, %v911
  %v925 = vadd.f32 %v716, %v912
  %v926 = vadd.f32 %v717, %v913
  %v927 = vadd.f32 %v718, %v914
  %v928 = vadd.f32 %v719, %v915
  %v929 = vadd.f32 %v720, %v916
  %v930 = vmul.f32 %v917, 0.25
  %v931 = vmul.f32 %v918, 0.25
  %v932 = vmul.f32 %v919, 0.25
  %v933 = vmul.f32 %v920, 0.25
  %v934 = vmul.f32 %v921, 0.25
  %v935 = vmul.f32 %v922, 0.25
  %v936 = vmul.f32 %v923, 0.25
  %v937 = vmul.f32 %v924, 0.25
  %v938 = vmul.f32 %v925, 0.25
  %v939 = vmul.f32 %v926, 0.25
  %v940 = vmul.f32 %v927, 0.25
  %v941 = vmul.f32 %v928, 0.25
  %v942 = vmul.f32 %v929, 0.25
  %v943 = vpack.c.bf16 %v931, %v930
  %v944 = vpack.c.bf16 %v933, %v932
  %v945 = vpack.c.bf16 %v935, %v934
  %v946 = vpack.c.bf16 %v937, %v936
  %v947 = vpack.c.bf16 %v939, %v938
  %v948 = vpack.c.bf16 %v941, %v940
  %v949 = vpack.c.bf16 %v942, %v942
  %v957 = vunpack.c.l.b16 %v943
  %v958 = vunpack.c.h.b16 %v943
  %v959 = vunpack.c.l.b16 %v944
  %v960 = vunpack.c.h.b16 %v944
  %v961 = vunpack.c.l.b16 %v945
  %v962 = vunpack.c.h.b16 %v945
  %v963 = vunpack.c.l.b16 %v946
  %v964 = vunpack.c.h.b16 %v946
  %v965 = vunpack.c.l.b16 %v947
  %v966 = vunpack.c.h.b16 %v947
  %v967 = vunpack.c.l.b16 %v948
  %v968 = vunpack.c.h.b16 %v948
  %v969 = vunpack.c.l.b16 %v949
  %v970 = vpack.c.b16 %v957, %v957
  %v971 = vpack.c.b16 %v958, %v958
  %v972 = vpack.c.b16 %v959, %v959
  %v973 = vpack.c.b16 %v960, %v960
  %v974 = vpack.c.b16 %v961, %v961
  %v975 = vpack.c.b16 %v962, %v962
  %v976 = vpack.c.b16 %v963, %v963
  %v977 = vpack.c.b16 %v964, %v964
  %v978 = vpack.c.b16 %v965, %v965
  %v979 = vpack.c.b16 %v966, %v966
  %v980 = vpack.c.b16 %v967, %v967
  %v981 = vpack.c.b16 %v968, %v968
  %v982 = vpack.c.b16 %v969, %v969
  %vm996 = vcmask 257024
  %997 = vst.msk [vmem:[%s3] sm:$0xf] %vm996, %v970
  %998 = vst.msk [vmem:[%s3 + $0x4] sm:$0xf] %vm996, %v971
  %999 = vst.msk [vmem:[%s3 + $0x8] sm:$0xf] %vm996, %v972
  %1000 = vst.msk [vmem:[%s3 + $0xc] sm:$0xf] %vm996, %v973
  %1001 = vst.msk [vmem:[%s3 + $0x10] sm:$0xf] %vm996, %v974
  %1002 = vst.msk [vmem:[%s3 + $0x14] sm:$0xf] %vm996, %v975
  %1003 = vst.msk [vmem:[%s3 + $0x18] sm:$0xf] %vm996, %v976
  %1004 = vst.msk [vmem:[%s3 + $0x1c] sm:$0xf] %vm996, %v977
  %1005 = vst.msk [vmem:[%s3 + $0x20] sm:$0xf] %vm996, %v978
  %1006 = vst.msk [vmem:[%s3 + $0x24] sm:$0xf] %vm996, %v979
  %1007 = vst.msk [vmem:[%s3 + $0x28] sm:$0xf] %vm996, %v980
  %1008 = vst.msk [vmem:[%s3 + $0x2c] sm:$0xf] %vm996, %v981
  %vm1009 = vcmask 253952
  %1010 = vst.msk [vmem:[%s3 + $0x30] sm:$0x1] %vm1009, %v982
  // Predicated region
  $region14: #{cnn_forward.5} parent=0 // pred_check
    _
  $region15: #{cnn_forward.5} parent=0 // pred_check_branch
    %1012 = sbr.rel (0) target = $region17
  $region16: #{cnn_forward.5} parent=0 // pred_region
    _
  $region17: #{cnn_forward.5} parent=0 // pred_fallthru
    _
  // Predicated region
  $region18: #{cnn_forward.5} parent=0 // pred_check
    _
  $region19: #{cnn_forward.5} parent=0 // pred_check_branch
    %1014 = sbr.rel (0) target = $region21
  $region20: #{cnn_forward.5} parent=0 // pred_region
    _
  $region21: #{cnn_forward.5} parent=0 // pred_fallthru
    _

// kernel: cnn_forward.6
$region0: #{cnn_forward.6}
  #allocation0 [shape = 'u32[]', space=smem, size = 0x4, offset = 0x4, fixed_abs, tag = 'smem constant byte address 0x4 - core index']
  #allocation1 [shape = 'u32[144,128]{1,0:T(1,128)}', space=vmem, size = 0x12000, scoped, tag = 'internal scratch']
  %s0 = inlined_call_operand.vmem [shape: bf16[128,128], index: 0, kind: input, shape index: {}]
  %s1 = inlined_call_operand.vmem [shape: bf16[128,64], index: 1, kind: input, shape index: {}]
  %s2 = inlined_call_operand.vmem [shape: f32[1,64], index: 2, kind: input, shape index: {}]
  %s3 = inlined_call_operand.vmem [shape: bf16[128,64], index: 3, kind: output, shape index: {}]
  %s4 = sld [smem:[#allocation0]]
  $region22: #{cnn_forward.6} parent=0
    _
  %s6 = ssub.s32 1, %s4
  %s7 = scalar_select 0, %s6, %s4
  // Predicated region
  $region2: #{cnn_forward.6} parent=0 // pred_check
    _
  $region3: #{cnn_forward.6} parent=0 // pred_check_branch
    %9 = sbr.rel (0) target = $region5
  $region4: #{cnn_forward.6} parent=0 // pred_region
    _
  $region5: #{cnn_forward.6} parent=0 // pred_fallthru
    _
  // Predicated region
  $region6: #{cnn_forward.6} parent=0 // pred_check
    _
  $region7: #{cnn_forward.6} parent=0 // pred_check_branch
    %11 = sbr.rel (0) target = $region9
  $region8: #{cnn_forward.6} parent=0 // pred_region
    _
  $region9: #{cnn_forward.6} parent=0 // pred_fallthru
    _
  // Predicated region
  $region10: #{cnn_forward.6} parent=0 // pred_check
    _
  $region11: #{cnn_forward.6} parent=0 // pred_check_branch
    %13 = sbr.rel (0) target = $region13
  $region12: #{cnn_forward.6} parent=0 // pred_region
    _
  $region13: #{cnn_forward.6} parent=0 // pred_fallthru
    _
  %v15 = vld [vmem:[%s0] sm:$0xf]
  %v16 = vld [vmem:[%s0 + $0x4] sm:$0xf]
  %v17 = vld [vmem:[%s0 + $0x8] sm:$0xf]
  %v18 = vld [vmem:[%s0 + $0xc] sm:$0xf]
  %v19 = vld [vmem:[%s0 + $0x10] sm:$0xf]
  %v20 = vld [vmem:[%s0 + $0x14] sm:$0xf]
  %v21 = vld [vmem:[%s0 + $0x18] sm:$0xf]
  %v22 = vld [vmem:[%s0 + $0x1c] sm:$0xf]
  %v23 = vld [vmem:[%s0 + $0x20] sm:$0xf]
  %v24 = vld [vmem:[%s0 + $0x24] sm:$0xf]
  %v25 = vld [vmem:[%s0 + $0x28] sm:$0xf]
  %v26 = vld [vmem:[%s0 + $0x2c] sm:$0xf]
  %v27 = vld [vmem:[%s0 + $0x30] sm:$0xf]
  %v28 = vld [vmem:[%s0 + $0x34] sm:$0xf]
  %v29 = vld [vmem:[%s0 + $0x38] sm:$0xf]
  %v30 = vld [vmem:[%s0 + $0x3c] sm:$0xf]
  %v31 = vld [vmem:[%s1] sm:$0xf]
  %v32 = vld [vmem:[%s1 + $0x4] sm:$0xf]
  %v33 = vld [vmem:[%s1 + $0x8] sm:$0xf]
  %v34 = vld [vmem:[%s1 + $0xc] sm:$0xf]
  %v35 = vld [vmem:[%s1 + $0x10] sm:$0xf]
  %v36 = vld [vmem:[%s1 + $0x14] sm:$0xf]
  %v37 = vld [vmem:[%s1 + $0x18] sm:$0xf]
  %v38 = vld [vmem:[%s1 + $0x1c] sm:$0xf]
  %v39 = vld [vmem:[%s1 + $0x20] sm:$0xf]
  %v40 = vld [vmem:[%s1 + $0x24] sm:$0xf]
  %v41 = vld [vmem:[%s1 + $0x28] sm:$0xf]
  %v42 = vld [vmem:[%s1 + $0x2c] sm:$0xf]
  %v43 = vld [vmem:[%s1 + $0x30] sm:$0xf]
  %v44 = vld [vmem:[%s1 + $0x34] sm:$0xf]
  %v45 = vld [vmem:[%s1 + $0x38] sm:$0xf]
  %v46 = vld [vmem:[%s1 + $0x3c] sm:$0xf]
  %v47 = vld [vmem:[%s2] sm:$0x1]
  %v49 = vlaneseq
  %v50 = vshrl.u32 %v49, 7
  %v51 = vsub.s32 0, %v50
  %v52 = vrot.slane %v47, %v51
  %v70 = vunpack.c.l.b16 %v15
  %v71 = vunpack.c.l.b16 %v16
  %v72 = vunpack.c.l.b16 %v17
  %v73 = vunpack.c.l.b16 %v18
  %v74 = vunpack.c.l.b16 %v19
  %v75 = vunpack.c.l.b16 %v20
  %v76 = vunpack.c.l.b16 %v21
  %v77 = vunpack.c.l.b16 %v22
  %v78 = vunpack.c.l.b16 %v23
  %v79 = vunpack.c.l.b16 %v24
  %v80 = vunpack.c.l.b16 %v25
  %v81 = vunpack.c.l.b16 %v26
  %v82 = vunpack.c.l.b16 %v27
  %v83 = vunpack.c.l.b16 %v28
  %v84 = vunpack.c.l.b16 %v29
  %v85 = vunpack.c.l.b16 %v30
  %v86 = vpack.c.b16 %v71, %v70
  %v87 = vpack.c.b16 %v73, %v72
  %v88 = vpack.c.b16 %v75, %v74
  %v89 = vpack.c.b16 %v77, %v76
  %v90 = vpack.c.b16 %v79, %v78
  %v91 = vpack.c.b16 %v81, %v80
  %v92 = vpack.c.b16 %v83, %v82
  %v93 = vpack.c.b16 %v85, %v84
  %v118 = vunpack.c.l.b16 %v31
  %v119 = vunpack.c.l.b16 %v32
  %v120 = vunpack.c.l.b16 %v33
  %v121 = vunpack.c.l.b16 %v34
  %v122 = vunpack.c.l.b16 %v35
  %v123 = vunpack.c.l.b16 %v36
  %v124 = vunpack.c.l.b16 %v37
  %v125 = vunpack.c.l.b16 %v38
  %v126 = vunpack.c.l.b16 %v39
  %v127 = vunpack.c.l.b16 %v40
  %v128 = vunpack.c.l.b16 %v41
  %v129 = vunpack.c.l.b16 %v42
  %v130 = vunpack.c.l.b16 %v43
  %v131 = vunpack.c.l.b16 %v44
  %v132 = vunpack.c.l.b16 %v45
  %v133 = vunpack.c.l.b16 %v46
  %v134 = vpack.c.b16 %v119, %v118
  %v135 = vpack.c.b16 %v121, %v120
  %v136 = vpack.c.b16 %v123, %v122
  %v137 = vpack.c.b16 %v125, %v124
  %v138 = vpack.c.b16 %v127, %v126
  %v139 = vpack.c.b16 %v129, %v128
  %v140 = vpack.c.b16 %v131, %v130
  %v141 = vpack.c.b16 %v133, %v132
  %150 = vmatprep.subr.bf16.mxu0 0
  %151 = vmatpush1.bf16.msra.mxu0 %v134
  %152 = vmatprep.subr.bf16.mxu0 0
  %153 = vmatpush1.bf16.msra.mxu0 %v135
  %154 = vmatprep.subr.bf16.mxu0 0
  %155 = vmatpush1.bf16.msra.mxu0 %v136
  %156 = vmatprep.subr.bf16.mxu0 0
  %157 = vmatpush1.bf16.msra.mxu0 %v137
  %158 = vmatprep.subr.bf16.mxu0 0
  %159 = vmatpush1.bf16.msra.mxu0 %v138
  %160 = vmatprep.subr.bf16.mxu0 0
  %161 = vmatpush1.bf16.msra.mxu0 %v139
  %162 = vmatprep.subr.bf16.mxu0 0
  %163 = vmatpush1.bf16.msra.mxu0 %v140
  %164 = vmatprep.subr.bf16.mxu0 0
  %165 = vmatpush1.bf16.msra.mxu0 %v141
  %166 = vmatprep.subr.bf16.mxu0 0
  %167 = vmatpush1.bf16.msra.mxu0 0
  %168 = vmatprep.subr.bf16.mxu0 0
  %169 = vmatpush1.bf16.msra.mxu0 0
  %170 = vmatprep.subr.bf16.mxu0 0
  %171 = vmatpush1.bf16.msra.mxu0 0
  %172 = vmatprep.subr.bf16.mxu0 0
  %173 = vmatpush1.bf16.msra.mxu0 0
  %174 = vmatprep.subr.bf16.mxu0 0
  %175 = vmatpush1.bf16.msra.mxu0 0
  %176 = vmatprep.subr.bf16.mxu0 0
  %177 = vmatpush1.bf16.msra.mxu0 0
  %178 = vmatprep.subr.bf16.mxu0 0
  %179 = vmatpush1.bf16.msra.mxu0 0
  %180 = vmatprep.subr.bf16.mxu0 0
  %181 = vmatpush1.bf16.msra.mxu0 0
  %182 = vmatprep.mubr.bf16.mxu0 0
  %183 = vmatmul.mubr.bf16.gmra.mrb[0].mxu0 %v86
  %v184 = vpop.f32.mrb[0].mxu0
  %v185 = vadd.f32 %v52, %v184
  %v186 = vpop.f32.mrb[0].mxu0
  %v187 = vpop.f32.mrb[0].mxu0
  %v188 = vadd.f32 %v52, %v187
  %v189 = vpop.f32.mrb[0].mxu0
  %190 = vmatprep.mubr.bf16.mxu0 0
  %191 = vmatmul.mubr.bf16.gmra.mrb[0].mxu0 %v87
  %v192 = vpop.f32.mrb[0].mxu0
  %v193 = vadd.f32 %v52, %v192
  %v194 = vpop.f32.mrb[0].mxu0
  %v195 = vpop.f32.mrb[0].mxu0
  %v196 = vadd.f32 %v52, %v195
  %v197 = vpop.f32.mrb[0].mxu0
  %198 = vmatprep.mubr.bf16.mxu0 0
  %199 = vmatmul.mubr.bf16.gmra.mrb[0].mxu0 %v88
  %v200 = vpop.f32.mrb[0].mxu0
  %v201 = vadd.f32 %v52, %v200
  %v202 = vpop.f32.mrb[0].mxu0
  %v203 = vpop.f32.mrb[0].mxu0
  %v204 = vadd.f32 %v52, %v203
  %v205 = vpop.f32.mrb[0].mxu0
  %206 = vmatprep.mubr.bf16.mxu0 0
  %207 = vmatmul.mubr.bf16.gmra.mrb[0].mxu0 %v89
  %v208 = vpop.f32.mrb[0].mxu0
  %v209 = vadd.f32 %v52, %v208
  %v210 = vpop.f32.mrb[0].mxu0
  %v211 = vpop.f32.mrb[0].mxu0
  %v212 = vadd.f32 %v52, %v211
  %v213 = vpop.f32.mrb[0].mxu0
  %214 = vmatprep.mubr.bf16.mxu0 0
  %215 = vmatmul.mubr.bf16.gmra.mrb[0].mxu0 %v90
  %v216 = vpop.f32.mrb[0].mxu0
  %v217 = vadd.f32 %v52, %v216
  %v218 = vpop.f32.mrb[0].mxu0
  %v219 = vpop.f32.mrb[0].mxu0
  %v220 = vadd.f32 %v52, %v219
  %v221 = vpop.f32.mrb[0].mxu0
  %222 = vmatprep.mubr.bf16.mxu0 0
  %223 = vmatmul.mubr.bf16.gmra.mrb[0].mxu0 %v91
  %v224 = vpop.f32.mrb[0].mxu0
  %v225 = vadd.f32 %v52, %v224
  %v226 = vpop.f32.mrb[0].mxu0
  %v227 = vpop.f32.mrb[0].mxu0
  %v228 = vadd.f32 %v52, %v227
  %v229 = vpop.f32.mrb[0].mxu0
  %230 = vmatprep.mubr.bf16.mxu0 0
  %231 = vmatmul.mubr.bf16.gmra.mrb[0].mxu0 %v92
  %v232 = vpop.f32.mrb[0].mxu0
  %v233 = vadd.f32 %v52, %v232
  %v234 = vpop.f32.mrb[0].mxu0
  %v235 = vpop.f32.mrb[0].mxu0
  %v236 = vadd.f32 %v52, %v235
  %v237 = vpop.f32.mrb[0].mxu0
  %238 = vmatprep.mubr.bf16.mxu0 0
  %239 = vmatmul.mubr.bf16.gmra.mrb[0].mxu0 %v93
  %v240 = vpop.f32.mrb[0].mxu0
  %v241 = vadd.f32 %v52, %v240
  %v242 = vpop.f32.mrb[0].mxu0
  %v243 = vpop.f32.mrb[0].mxu0
  %v244 = vadd.f32 %v52, %v243
  %v245 = vpop.f32.mrb[0].mxu0
  %246 = vdwg.mxu0
  %v247 = vmax.f32 %v185, 0.0
  %v248 = vmax.f32 %v188, 0.0
  %v249 = vmax.f32 %v193, 0.0
  %v250 = vmax.f32 %v196, 0.0
  %v251 = vmax.f32 %v201, 0.0
  %v252 = vmax.f32 %v204, 0.0
  %v253 = vmax.f32 %v209, 0.0
  %v254 = vmax.f32 %v212, 0.0
  %v255 = vmax.f32 %v217, 0.0
  %v256 = vmax.f32 %v220, 0.0
  %v257 = vmax.f32 %v225, 0.0
  %v258 = vmax.f32 %v228, 0.0
  %v259 = vmax.f32 %v233, 0.0
  %v260 = vmax.f32 %v236, 0.0
  %v261 = vmax.f32 %v241, 0.0
  %v262 = vmax.f32 %v244, 0.0
  %v263 = vpack.c.bf16 %v248, %v247
  %v264 = vpack.c.bf16 %v250, %v249
  %v265 = vpack.c.bf16 %v252, %v251
  %v266 = vpack.c.bf16 %v254, %v253
  %v267 = vpack.c.bf16 %v256, %v255
  %v268 = vpack.c.bf16 %v258, %v257
  %v269 = vpack.c.bf16 %v260, %v259
  %v270 = vpack.c.bf16 %v262, %v261
  %v279 = vunpack.c.l.b16 %v263
  %v280 = vunpack.c.h.b16 %v263
  %v281 = vunpack.c.l.b16 %v264
  %v282 = vunpack.c.h.b16 %v264
  %v283 = vunpack.c.l.b16 %v265
  %v284 = vunpack.c.h.b16 %v265
  %v285 = vunpack.c.l.b16 %v266
  %v286 = vunpack.c.h.b16 %v266
  %v287 = vunpack.c.l.b16 %v267
  %v288 = vunpack.c.h.b16 %v267
  %v289 = vunpack.c.l.b16 %v268
  %v290 = vunpack.c.h.b16 %v268
  %v291 = vunpack.c.l.b16 %v269
  %v292 = vunpack.c.h.b16 %v269
  %v293 = vunpack.c.l.b16 %v270
  %v294 = vunpack.c.h.b16 %v270
  %v295 = vpack.c.b16 %v279, %v279
  %v296 = vpack.c.b16 %v280, %v280
  %v297 = vpack.c.b16 %v281, %v281
  %v298 = vpack.c.b16 %v282, %v282
  %v299 = vpack.c.b16 %v283, %v283
  %v300 = vpack.c.b16 %v284, %v284
  %v301 = vpack.c.b16 %v285, %v285
  %v302 = vpack.c.b16 %v286, %v286
  %v303 = vpack.c.b16 %v287, %v287
  %v304 = vpack.c.b16 %v288, %v288
  %v305 = vpack.c.b16 %v289, %v289
  %v306 = vpack.c.b16 %v290, %v290
  %v307 = vpack.c.b16 %v291, %v291
  %v308 = vpack.c.b16 %v292, %v292
  %v309 = vpack.c.b16 %v293, %v293
  %v310 = vpack.c.b16 %v294, %v294
  %vm327 = vcmask 519168
  %328 = vst.msk [vmem:[%s3] sm:$0xf] %vm327, %v295
  %329 = vst.msk [vmem:[%s3 + $0x4] sm:$0xf] %vm327, %v296
  %330 = vst.msk [vmem:[%s3 + $0x8] sm:$0xf] %vm327, %v297
  %331 = vst.msk [vmem:[%s3 + $0xc] sm:$0xf] %vm327, %v298
  %332 = vst.msk [vmem:[%s3 + $0x10] sm:$0xf] %vm327, %v299
  %333 = vst.msk [vmem:[%s3 + $0x14] sm:$0xf] %vm327, %v300
  %334 = vst.msk [vmem:[%s3 + $0x18] sm:$0xf] %vm327, %v301
  %335 = vst.msk [vmem:[%s3 + $0x1c] sm:$0xf] %vm327, %v302
  %336 = vst.msk [vmem:[%s3 + $0x20] sm:$0xf] %vm327, %v303
  %337 = vst.msk [vmem:[%s3 + $0x24] sm:$0xf] %vm327, %v304
  %338 = vst.msk [vmem:[%s3 + $0x28] sm:$0xf] %vm327, %v305
  %339 = vst.msk [vmem:[%s3 + $0x2c] sm:$0xf] %vm327, %v306
  %340 = vst.msk [vmem:[%s3 + $0x30] sm:$0xf] %vm327, %v307
  %341 = vst.msk [vmem:[%s3 + $0x34] sm:$0xf] %vm327, %v308
  %342 = vst.msk [vmem:[%s3 + $0x38] sm:$0xf] %vm327, %v309
  %343 = vst.msk [vmem:[%s3 + $0x3c] sm:$0xf] %vm327, %v310
  // Predicated region
  $region14: #{cnn_forward.6} parent=0 // pred_check
    _
  $region15: #{cnn_forward.6} parent=0 // pred_check_branch
    %345 = sbr.rel (0) target = $region17
  $region16: #{cnn_forward.6} parent=0 // pred_region
    _
  $region17: #{cnn_forward.6} parent=0 // pred_fallthru
    _
  // Predicated region
  $region18: #{cnn_forward.6} parent=0 // pred_check
    _
  $region19: #{cnn_forward.6} parent=0 // pred_check_branch
    %347 = sbr.rel (0) target = $region21
  $region20: #{cnn_forward.6} parent=0 // pred_region
    _
  $region21: #{cnn_forward.6} parent=0 // pred_fallthru
    _

// kernel: cnn_forward.7
$region0: #{cnn_forward.7}
  #allocation0 [shape = 'u32[]', space=smem, size = 0x4, offset = 0x4, fixed_abs, tag = 'smem constant byte address 0x4 - core index']
  #allocation1 [shape = 'u32[144,128]{1,0:T(1,128)}', space=vmem, size = 0x12000, scoped, tag = 'internal scratch']
  %s0 = inlined_call_operand.vmem [shape: bf16[2,4096], index: 0, kind: input, shape index: {}]
  %s1 = inlined_call_operand.vmem [shape: bf16[4096,128], index: 1, kind: input, shape index: {}]
  %s2 = inlined_call_operand.vmem [shape: f32[1,128], index: 2, kind: input, shape index: {}]
  %s3 = inlined_call_operand.vmem [shape: bf16[128,10], index: 3, kind: input, shape index: {}]
  %s4 = inlined_call_operand.vmem [shape: f32[1,10], index: 4, kind: input, shape index: {}]
  %s5 = inlined_call_operand.hbm [shape: f32[2,10], index: 5, kind: output, shape index: {}]
  %s6 = sld [smem:[#allocation0]]
  $region30: #{cnn_forward.7} parent=0
    _
  %s8 = ssub.s32 1, %s6
  %s9 = scalar_select 0, %s8, %s6
  $region1: #{cnn_forward.7} parent=0
    #allocation2 [shape = 'u8[1024]{0}', space=vmem, size = 0x400, scoped, tag = 'output window, operand 0, single buffered']
    #allocation3 [shape = 's32[1]{0}', space=sflag, size = 0x4, scoped, tag = 'scoped memory for cnn_forward.7']
    %10 = vsyncpa [#allocation3], 0
    // Predicated region
    $region2: #{cnn_forward.7} parent=1 // pred_check
      _
    $region3: #{cnn_forward.7} parent=1 // pred_check_branch
      %12 = sbr.rel (0) target = $region5
    $region4: #{cnn_forward.7} parent=1 // pred_region
      _
    $region5: #{cnn_forward.7} parent=1 // pred_fallthru
      _
    // Predicated region
    $region6: #{cnn_forward.7} parent=1 // pred_check
      _
    $region7: #{cnn_forward.7} parent=1 // pred_check_branch
      %14 = sbr.rel (0) target = $region9
    $region8: #{cnn_forward.7} parent=1 // pred_region
      _
    $region9: #{cnn_forward.7} parent=1 // pred_fallthru
      _
    // Predicated region
    $region10: #{cnn_forward.7} parent=1 // pred_check
      _
    $region11: #{cnn_forward.7} parent=1 // pred_check_branch
      %16 = sbr.rel (0) target = $region13
    $region12: #{cnn_forward.7} parent=1 // pred_region
      _
    $region13: #{cnn_forward.7} parent=1 // pred_fallthru
      _
    // Predicated region
    $region14: #{cnn_forward.7} parent=1 // pred_check
      _
    $region15: #{cnn_forward.7} parent=1 // pred_check_branch
      %18 = sbr.rel (0) target = $region17
    $region16: #{cnn_forward.7} parent=1 // pred_region
      _
    $region17: #{cnn_forward.7} parent=1 // pred_fallthru
      _
    // Predicated region
    $region18: #{cnn_forward.7} parent=1 // pred_check
      _
    $region19: #{cnn_forward.7} parent=1 // pred_check_branch
      %20 = sbr.rel (0) target = $region21
    $region20: #{cnn_forward.7} parent=1 // pred_region
      _
    $region21: #{cnn_forward.7} parent=1 // pred_fallthru
      _
    %v22 = vld [vmem:[%s0] sm:$0xff]
    %v23 = vld [vmem:[%s0 + $0x8] sm:$0xff]
    %v24 = vld [vmem:[%s0 + $0x10] sm:$0xff]
    %v25 = vld [vmem:[%s0 + $0x18] sm:$0xff]
    %v26 = vld [vmem:[%s1] sm:$0xf]
    %v27 = vld [vmem:[%s1 + $0x4] sm:$0xf]
    %v28 = vld [vmem:[%s1 + $0x8] sm:$0xf]
    %v29 = vld [vmem:[%s1 + $0xc] sm:$0xf]
    %v30 = vld [vmem:[%s1 + $0x10] sm:$0xf]
    %v31 = vld [vmem:[%s1 + $0x14] sm:$0xf]
    %v32 = vld [vmem:[%s1 + $0x18] sm:$0xf]
    %v33 = vld [vmem:[%s1 + $0x1c] sm:$0xf]
    %v34 = vld [vmem:[%s1 + $0x20] sm:$0xf]
    %v35 = vld [vmem:[%s1 + $0x24] sm:$0xf]
    %v36 = vld [vmem:[%s1 + $0x28] sm:$0xf]
    %v37 = vld [vmem:[%s1 + $0x2c] sm:$0xf]
    %v38 = vld [vmem:[%s1 + $0x30] sm:$0xf]
    %v39 = vld [vmem:[%s1 + $0x34] sm:$0xf]
    %v40 = vld [vmem:[%s1 + $0x38] sm:$0xf]
    %v41 = vld [vmem:[%s1 + $0x3c] sm:$0xf]
    %v42 = vld [vmem:[%s1 + $0x40] sm:$0xf]
    %v43 = vld [vmem:[%s1 + $0x44] sm:$0xf]
    %v44 = vld [vmem:[%s1 + $0x48] sm:$0xf]
    %v45 = vld [vmem:[%s1 + $0x4c] sm:$0xf]
    %v46 = vld [vmem:[%s1 + $0x50] sm:$0xf]
    %v47 = vld [vmem:[%s1 + $0x54] sm:$0xf]
    %v48 = vld [vmem:[%s1 + $0x58] sm:$0xf]
    %v49 = vld [vmem:[%s1 + $0x5c] sm:$0xf]
    %v50 = vld [vmem:[%s1 + $0x60] sm:$0xf]
    %v51 = vld [vmem:[%s1 + $0x64] sm:$0xf]
    %v52 = vld [vmem:[%s1 + $0x68] sm:$0xf]
    %v53 = vld [vmem:[%s1 + $0x6c] sm:$0xf]
    %v54 = vld [vmem:[%s1 + $0x70] sm:$0xf]
    %v55 = vld [vmem:[%s1 + $0x74] sm:$0xf]
    %v56 = vld [vmem:[%s1 + $0x78] sm:$0xf]
    %v57 = vld [vmem:[%s1 + $0x7c] sm:$0xf]
    %v58 = vld [vmem:[%s1 + $0x80] sm:$0xf]
    %v59 = vld [vmem:[%s1 + $0x84] sm:$0xf]
    %v60 = vld [vmem:[%s1 + $0x88] sm:$0xf]
    %v61 = vld [vmem:[%s1 + $0x8c] sm:$0xf]
    %v62 = vld [vmem:[%s1 + $0x90] sm:$0xf]
    %v63 = vld [vmem:[%s1 + $0x94] sm:$0xf]
    %v64 = vld [vmem:[%s1 + $0x98] sm:$0xf]
    %v65 = vld [vmem:[%s1 + $0x9c] sm:$0xf]
    %v66 = vld [vmem:[%s1 + $0xa0] sm:$0xf]
    %v67 = vld [vmem:[%s1 + $0xa4] sm:$0xf]
    %v68 = vld [vmem:[%s1 + $0xa8] sm:$0xf]
    %v69 = vld [vmem:[%s1 + $0xac] sm:$0xf]
    %v70 = vld [vmem:[%s1 + $0xb0] sm:$0xf]
    %v71 = vld [vmem:[%s1 + $0xb4] sm:$0xf]
    %v72 = vld [vmem:[%s1 + $0xb8] sm:$0xf]
    %v73 = vld [vmem:[%s1 + $0xbc] sm:$0xf]
    %v74 = vld [vmem:[%s1 + $0xc0] sm:$0xf]
    %v75 = vld [vmem:[%s1 + $0xc4] sm:$0xf]
    %v76 = vld [vmem:[%s1 + $0xc8] sm:$0xf]
    %v77 = vld [vmem:[%s1 + $0xcc] sm:$0xf]
    %v78 = vld [vmem:[%s1 + $0xd0] sm:$0xf]
    %v79 = vld [vmem:[%s1 + $0xd4] sm:$0xf]
    %v80 = vld [vmem:[%s1 + $0xd8] sm:$0xf]
    %v81 = vld [vmem:[%s1 + $0xdc] sm:$0xf]
    %v82 = vld [vmem:[%s1 + $0xe0] sm:$0xf]
    %v83 = vld [vmem:[%s1 + $0xe4] sm:$0xf]
    %v84 = vld [vmem:[%s1 + $0xe8] sm:$0xf]
    %v85 = vld [vmem:[%s1 + $0xec] sm:$0xf]
    %v86 = vld [vmem:[%s1 + $0xf0] sm:$0xf]
    %v87 = vld [vmem:[%s1 + $0xf4] sm:$0xf]
    %v88 = vld [vmem:[%s1 + $0xf8] sm:$0xf]
    %v89 = vld [vmem:[%s1 + $0xfc] sm:$0xf]
    %v90 = vld [vmem:[%s1 + $0x100] sm:$0xf]
    %v91 = vld [vmem:[%s1 + $0x104] sm:$0xf]
    %v92 = vld [vmem:[%s1 + $0x108] sm:$0xf]
    %v93 = vld [vmem:[%s1 + $0x10c] sm:$0xf]
    %v94 = vld [vmem:[%s1 + $0x110] sm:$0xf]
    %v95 = vld [vmem:[%s1 + $0x114] sm:$0xf]
    %v96 = vld [vmem:[%s1 + $0x118] sm:$0xf]
    %v97 = vld [vmem:[%s1 + $0x11c] sm:$0xf]
    %v98 = vld [vmem:[%s1 + $0x120] sm:$0xf]
    %v99 = vld [vmem:[%s1 + $0x124] sm:$0xf]
    %v100 = vld [vmem:[%s1 + $0x128] sm:$0xf]
    %v101 = vld [vmem:[%s1 + $0x12c] sm:$0xf]
    %v102 = vld [vmem:[%s1 + $0x130] sm:$0xf]
    %v103 = vld [vmem:[%s1 + $0x134] sm:$0xf]
    %v104 = vld [vmem:[%s1 + $0x138] sm:$0xf]
    %v105 = vld [vmem:[%s1 + $0x13c] sm:$0xf]
    %v106 = vld [vmem:[%s1 + $0x140] sm:$0xf]
    %v107 = vld [vmem:[%s1 + $0x144] sm:$0xf]
    %v108 = vld [vmem:[%s1 + $0x148] sm:$0xf]
    %v109 = vld [vmem:[%s1 + $0x14c] sm:$0xf]
    %v110 = vld [vmem:[%s1 + $0x150] sm:$0xf]
    %v111 = vld [vmem:[%s1 + $0x154] sm:$0xf]
    %v112 = vld [vmem:[%s1 + $0x158] sm:$0xf]
    %v113 = vld [vmem:[%s1 + $0x15c] sm:$0xf]
    %v114 = vld [vmem:[%s1 + $0x160] sm:$0xf]
    %v115 = vld [vmem:[%s1 + $0x164] sm:$0xf]
    %v116 = vld [vmem:[%s1 + $0x168] sm:$0xf]
    %v117 = vld [vmem:[%s1 + $0x16c] sm:$0xf]
    %v118 = vld [vmem:[%s1 + $0x170] sm:$0xf]
    %v119 = vld [vmem:[%s1 + $0x174] sm:$0xf]
    %v120 = vld [vmem:[%s1 + $0x178] sm:$0xf]
    %v121 = vld [vmem:[%s1 + $0x17c] sm:$0xf]
    %v122 = vld [vmem:[%s1 + $0x180] sm:$0xf]
    %v123 = vld [vmem:[%s1 + $0x184] sm:$0xf]
    %v124 = vld [vmem:[%s1 + $0x188] sm:$0xf]
    %v125 = vld [vmem:[%s1 + $0x18c] sm:$0xf]
    %v126 = vld [vmem:[%s1 + $0x190] sm:$0xf]
    %v127 = vld [vmem:[%s1 + $0x194] sm:$0xf]
    %v128 = vld [vmem:[%s1 + $0x198] sm:$0xf]
    %v129 = vld [vmem:[%s1 + $0x19c] sm:$0xf]
    %v130 = vld [vmem:[%s1 + $0x1a0] sm:$0xf]
    %v131 = vld [vmem:[%s1 + $0x1a4] sm:$0xf]
    %v132 = vld [vmem:[%s1 + $0x1a8] sm:$0xf]
    %v133 = vld [vmem:[%s1 + $0x1ac] sm:$0xf]
    %v134 = vld [vmem:[%s1 + $0x1b0] sm:$0xf]
    %v135 = vld [vmem:[%s1 + $0x1b4] sm:$0xf]
    %v136 = vld [vmem:[%s1 + $0x1b8] sm:$0xf]
    %v137 = vld [vmem:[%s1 + $0x1bc] sm:$0xf]
    %v138 = vld [vmem:[%s1 + $0x1c0] sm:$0xf]
    %v139 = vld [vmem:[%s1 + $0x1c4] sm:$0xf]
    %v140 = vld [vmem:[%s1 + $0x1c8] sm:$0xf]
    %v141 = vld [vmem:[%s1 + $0x1cc] sm:$0xf]
    %v142 = vld [vmem:[%s1 + $0x1d0] sm:$0xf]
    %v143 = vld [vmem:[%s1 + $0x1d4] sm:$0xf]
    %v144 = vld [vmem:[%s1 + $0x1d8] sm:$0xf]
    %v145 = vld [vmem:[%s1 + $0x1dc] sm:$0xf]
    %v146 = vld [vmem:[%s1 + $0x1e0] sm:$0xf]
    %v147 = vld [vmem:[%s1 + $0x1e4] sm:$0xf]
    %v148 = vld [vmem:[%s1 + $0x1e8] sm:$0xf]
    %v149 = vld [vmem:[%s1 + $0x1ec] sm:$0xf]
    %v150 = vld [vmem:[%s1 + $0x1f0] sm:$0xf]
    %v151 = vld [vmem:[%s1 + $0x1f4] sm:$0xf]
    %v152 = vld [vmem:[%s1 + $0x1f8] sm:$0xf]
    %v153 = vld [vmem:[%s1 + $0x1fc] sm:$0xf]
    %v154 = vld [vmem:[%s1 + $0x200] sm:$0xf]
    %v155 = vld [vmem:[%s1 + $0x204] sm:$0xf]
    %v156 = vld [vmem:[%s1 + $0x208] sm:$0xf]
    %v157 = vld [vmem:[%s1 + $0x20c] sm:$0xf]
    %v158 = vld [vmem:[%s1 + $0x210] sm:$0xf]
    %v159 = vld [vmem:[%s1 + $0x214] sm:$0xf]
    %v160 = vld [vmem:[%s1 + $0x218] sm:$0xf]
    %v161 = vld [vmem:[%s1 + $0x21c] sm:$0xf]
    %v162 = vld [vmem:[%s1 + $0x220] sm:$0xf]
    %v163 = vld [vmem:[%s1 + $0x224] sm:$0xf]
    %v164 = vld [vmem:[%s1 + $0x228] sm:$0xf]
    %v165 = vld [vmem:[%s1 + $0x22c] sm:$0xf]
    %v166 = vld [vmem:[%s1 + $0x230] sm:$0xf]
    %v167 = vld [vmem:[%s1 + $0x234] sm:$0xf]
    %v168 = vld [vmem:[%s1 + $0x238] sm:$0xf]
    %v169 = vld [vmem:[%s1 + $0x23c] sm:$0xf]
    %v170 = vld [vmem:[%s1 + $0x240] sm:$0xf]
    %v171 = vld [vmem:[%s1 + $0x244] sm:$0xf]
    %v172 = vld [vmem:[%s1 + $0x248] sm:$0xf]
    %v173 = vld [vmem:[%s1 + $0x24c] sm:$0xf]
    %v174 = vld [vmem:[%s1 + $0x250] sm:$0xf]
    %v175 = vld [vmem:[%s1 + $0x254] sm:$0xf]
    %v176 = vld [vmem:[%s1 + $0x258] sm:$0xf]
    %v177 = vld [vmem:[%s1 + $0x25c] sm:$0xf]
    %v178 = vld [vmem:[%s1 + $0x260] sm:$0xf]
    %v179 = vld [vmem:[%s1 + $0x264] sm:$0xf]
    %v180 = vld [vmem:[%s1 + $0x268] sm:$0xf]
    %v181 = vld [vmem:[%s1 + $0x26c] sm:$0xf]
    %v182 = vld [vmem:[%s1 + $0x270] sm:$0xf]
    %v183 = vld [vmem:[%s1 + $0x274] sm:$0xf]
    %v184 = vld [vmem:[%s1 + $0x278] sm:$0xf]
    %v185 = vld [vmem:[%s1 + $0x27c] sm:$0xf]
    %v186 = vld [vmem:[%s1 + $0x280] sm:$0xf]
    %v187 = vld [vmem:[%s1 + $0x284] sm:$0xf]
    %v188 = vld [vmem:[%s1 + $0x288] sm:$0xf]
    %v189 = vld [vmem:[%s1 + $0x28c] sm:$0xf]
    %v190 = vld [vmem:[%s1 + $0x290] sm:$0xf]
    %v191 = vld [vmem:[%s1 + $0x294] sm:$0xf]
    %v192 = vld [vmem:[%s1 + $0x298] sm:$0xf]
    %v193 = vld [vmem:[%s1 + $0x29c] sm:$0xf]
    %v194 = vld [vmem:[%s1 + $0x2a0] sm:$0xf]
    %v195 = vld [vmem:[%s1 + $0x2a4] sm:$0xf]
    %v196 = vld [vmem:[%s1 + $0x2a8] sm:$0xf]
    %v197 = vld [vmem:[%s1 + $0x2ac] sm:$0xf]
    %v198 = vld [vmem:[%s1 + $0x2b0] sm:$0xf]
    %v199 = vld [vmem:[%s1 + $0x2b4] sm:$0xf]
    %v200 = vld [vmem:[%s1 + $0x2b8] sm:$0xf]
    %v201 = vld [vmem:[%s1 + $0x2bc] sm:$0xf]
    %v202 = vld [vmem:[%s1 + $0x2c0] sm:$0xf]
    %v203 = vld [vmem:[%s1 + $0x2c4] sm:$0xf]
    %v204 = vld [vmem:[%s1 + $0x2c8] sm:$0xf]
    %v205 = vld [vmem:[%s1 + $0x2cc] sm:$0xf]
    %v206 = vld [vmem:[%s1 + $0x2d0] sm:$0xf]
    %v207 = vld [vmem:[%s1 + $0x2d4] sm:$0xf]
    %v208 = vld [vmem:[%s1 + $0x2d8] sm:$0xf]
    %v209 = vld [vmem:[%s1 + $0x2dc] sm:$0xf]
    %v210 = vld [vmem:[%s1 + $0x2e0] sm:$0xf]
    %v211 = vld [vmem:[%s1 + $0x2e4] sm:$0xf]
    %v212 = vld [vmem:[%s1 + $0x2e8] sm:$0xf]
    %v213 = vld [vmem:[%s1 + $0x2ec] sm:$0xf]
    %v214 = vld [vmem:[%s1 + $0x2f0] sm:$0xf]
    %v215 = vld [vmem:[%s1 + $0x2f4] sm:$0xf]
    %v216 = vld [vmem:[%s1 + $0x2f8] sm:$0xf]
    %v217 = vld [vmem:[%s1 + $0x2fc] sm:$0xf]
    %v218 = vld [vmem:[%s1 + $0x300] sm:$0xf]
    %v219 = vld [vmem:[%s1 + $0x304] sm:$0xf]
    %v220 = vld [vmem:[%s1 + $0x308] sm:$0xf]
    %v221 = vld [vmem:[%s1 + $0x30c] sm:$0xf]
    %v222 = vld [vmem:[%s1 + $0x310] sm:$0xf]
    %v223 = vld [vmem:[%s1 + $0x314] sm:$0xf]
    %v224 = vld [vmem:[%s1 + $0x318] sm:$0xf]
    %v225 = vld [vmem:[%s1 + $0x31c] sm:$0xf]
    %v226 = vld [vmem:[%s1 + $0x320] sm:$0xf]
    %v227 = vld [vmem:[%s1 + $0x324] sm:$0xf]
    %v228 = vld [vmem:[%s1 + $0x328] sm:$0xf]
    %v229 = vld [vmem:[%s1 + $0x32c] sm:$0xf]
    %v230 = vld [vmem:[%s1 + $0x330] sm:$0xf]
    %v231 = vld [vmem:[%s1 + $0x334] sm:$0xf]
    %v232 = vld [vmem:[%s1 + $0x338] sm:$0xf]
    %v233 = vld [vmem:[%s1 + $0x33c] sm:$0xf]
    %v234 = vld [vmem:[%s1 + $0x340] sm:$0xf]
    %v235 = vld [vmem:[%s1 + $0x344] sm:$0xf]
    %v236 = vld [vmem:[%s1 + $0x348] sm:$0xf]
    %v237 = vld [vmem:[%s1 + $0x34c] sm:$0xf]
    %v238 = vld [vmem:[%s1 + $0x350] sm:$0xf]
    %v239 = vld [vmem:[%s1 + $0x354] sm:$0xf]
    %v240 = vld [vmem:[%s1 + $0x358] sm:$0xf]
    %v241 = vld [vmem:[%s1 + $0x35c] sm:$0xf]
    %v242 = vld [vmem:[%s1 + $0x360] sm:$0xf]
    %v243 = vld [vmem:[%s1 + $0x364] sm:$0xf]
    %v244 = vld [vmem:[%s1 + $0x368] sm:$0xf]
    %v245 = vld [vmem:[%s1 + $0x36c] sm:$0xf]
    %v246 = vld [vmem:[%s1 + $0x370] sm:$0xf]
    %v247 = vld [vmem:[%s1 + $0x374] sm:$0xf]
    %v248 = vld [vmem:[%s1 + $0x378] sm:$0xf]
    %v249 = vld [vmem:[%s1 + $0x37c] sm:$0xf]
    %v250 = vld [vmem:[%s1 + $0x380] sm:$0xf]
    %v251 = vld [vmem:[%s1 + $0x384] sm:$0xf]
    %v252 = vld [vmem:[%s1 + $0x388] sm:$0xf]
    %v253 = vld [vmem:[%s1 + $0x38c] sm:$0xf]
    %v254 = vld [vmem:[%s1 + $0x390] sm:$0xf]
    %v255 = vld [vmem:[%s1 + $0x394] sm:$0xf]
    %v256 = vld [vmem:[%s1 + $0x398] sm:$0xf]
    %v257 = vld [vmem:[%s1 + $0x39c] sm:$0xf]
    %v258 = vld [vmem:[%s1 + $0x3a0] sm:$0xf]
    %v259 = vld [vmem:[%s1 + $0x3a4] sm:$0xf]
    %v260 = vld [vmem:[%s1 + $0x3a8] sm:$0xf]
    %v261 = vld [vmem:[%s1 + $0x3ac] sm:$0xf]
    %v262 = vld [vmem:[%s1 + $0x3b0] sm:$0xf]
    %v263 = vld [vmem:[%s1 + $0x3b4] sm:$0xf]
    %v264 = vld [vmem:[%s1 + $0x3b8] sm:$0xf]
    %v265 = vld [vmem:[%s1 + $0x3bc] sm:$0xf]
    %v266 = vld [vmem:[%s1 + $0x3c0] sm:$0xf]
    %v267 = vld [vmem:[%s1 + $0x3c4] sm:$0xf]
    %v268 = vld [vmem:[%s1 + $0x3c8] sm:$0xf]
    %v269 = vld [vmem:[%s1 + $0x3cc] sm:$0xf]
    %v270 = vld [vmem:[%s1 + $0x3d0] sm:$0xf]
    %v271 = vld [vmem:[%s1 + $0x3d4] sm:$0xf]
    %v272 = vld [vmem:[%s1 + $0x3d8] sm:$0xf]
    %v273 = vld [vmem:[%s1 + $0x3dc] sm:$0xf]
    %v274 = vld [vmem:[%s1 + $0x3e0] sm:$0xf]
    %v275 = vld [vmem:[%s1 + $0x3e4] sm:$0xf]
    %v276 = vld [vmem:[%s1 + $0x3e8] sm:$0xf]
    %v277 = vld [vmem:[%s1 + $0x3ec] sm:$0xf]
    %v278 = vld [vmem:[%s1 + $0x3f0] sm:$0xf]
    %v279 = vld [vmem:[%s1 + $0x3f4] sm:$0xf]
    %v280 = vld [vmem:[%s1 + $0x3f8] sm:$0xf]
    %v281 = vld [vmem:[%s1 + $0x3fc] sm:$0xf]
    %v282 = vld [vmem:[%s1 + $0x400] sm:$0xf]
    %v283 = vld [vmem:[%s1 + $0x404] sm:$0xf]
    %v284 = vld [vmem:[%s1 + $0x408] sm:$0xf]
    %v285 = vld [vmem:[%s1 + $0x40c] sm:$0xf]
    %v286 = vld [vmem:[%s1 + $0x410] sm:$0xf]
    %v287 = vld [vmem:[%s1 + $0x414] sm:$0xf]
    %v288 = vld [vmem:[%s1 + $0x418] sm:$0xf]
    %v289 = vld [vmem:[%s1 + $0x41c] sm:$0xf]
    %v290 = vld [vmem:[%s1 + $0x420] sm:$0xf]
    %v291 = vld [vmem:[%s1 + $0x424] sm:$0xf]
    %v292 = vld [vmem:[%s1 + $0x428] sm:$0xf]
    %v293 = vld [vmem:[%s1 + $0x42c] sm:$0xf]
    %v294 = vld [vmem:[%s1 + $0x430] sm:$0xf]
    %v295 = vld [vmem:[%s1 + $0x434] sm:$0xf]
    %v296 = vld [vmem:[%s1 + $0x438] sm:$0xf]
    %v297 = vld [vmem:[%s1 + $0x43c] sm:$0xf]
    %v298 = vld [vmem:[%s1 + $0x440] sm:$0xf]
    %v299 = vld [vmem:[%s1 + $0x444] sm:$0xf]
    %v300 = vld [vmem:[%s1 + $0x448] sm:$0xf]
    %v301 = vld [vmem:[%s1 + $0x44c] sm:$0xf]
    %v302 = vld [vmem:[%s1 + $0x450] sm:$0xf]
    %v303 = vld [vmem:[%s1 + $0x454] sm:$0xf]
    %v304 = vld [vmem:[%s1 + $0x458] sm:$0xf]
    %v305 = vld [vmem:[%s1 + $0x45c] sm:$0xf]
    %v306 = vld [vmem:[%s1 + $0x460] sm:$0xf]
    %v307 = vld [vmem:[%s1 + $0x464] sm:$0xf]
    %v308 = vld [vmem:[%s1 + $0x468] sm:$0xf]
    %v309 = vld [vmem:[%s1 + $0x46c] sm:$0xf]
    %v310 = vld [vmem:[%s1 + $0x470] sm:$0xf]
    %v311 = vld [vmem:[%s1 + $0x474] sm:$0xf]
    %v312 = vld [vmem:[%s1 + $0x478] sm:$0xf]
    %v313 = vld [vmem:[%s1 + $0x47c] sm:$0xf]
    %v314 = vld [vmem:[%s1 + $0x480] sm:$0xf]
    %v315 = vld [vmem:[%s1 + $0x484] sm:$0xf]
    %v316 = vld [vmem:[%s1 + $0x488] sm:$0xf]
    %v317 = vld [vmem:[%s1 + $0x48c] sm:$0xf]
    %v318 = vld [vmem:[%s1 + $0x490] sm:$0xf]
    %v319 = vld [vmem:[%s1 + $0x494] sm:$0xf]
    %v320 = vld [vmem:[%s1 + $0x498] sm:$0xf]
    %v321 = vld [vmem:[%s1 + $0x49c] sm:$0xf]
    %v322 = vld [vmem:[%s1 + $0x4a0] sm:$0xf]
    %v323 = vld [vmem:[%s1 + $0x4a4] sm:$0xf]
    %v324 = vld [vmem:[%s1 + $0x4a8] sm:$0xf]
    %v325 = vld [vmem:[%s1 + $0x4ac] sm:$0xf]
    %v326 = vld [vmem:[%s1 + $0x4b0] sm:$0xf]
    %v327 = vld [vmem:[%s1 + $0x4b4] sm:$0xf]
    %v328 = vld [vmem:[%s1 + $0x4b8] sm:$0xf]
    %v329 = vld [vmem:[%s1 + $0x4bc] sm:$0xf]
    %v330 = vld [vmem:[%s1 + $0x4c0] sm:$0xf]
    %v331 = vld [vmem:[%s1 + $0x4c4] sm:$0xf]
    %v332 = vld [vmem:[%s1 + $0x4c8] sm:$0xf]
    %v333 = vld [vmem:[%s1 + $0x4cc] sm:$0xf]
    %v334 = vld [vmem:[%s1 + $0x4d0] sm:$0xf]
    %v335 = vld [vmem:[%s1 + $0x4d4] sm:$0xf]
    %v336 = vld [vmem:[%s1 + $0x4d8] sm:$0xf]
    %v337 = vld [vmem:[%s1 + $0x4dc] sm:$0xf]
    %v338 = vld [vmem:[%s1 + $0x4e0] sm:$0xf]
    %v339 = vld [vmem:[%s1 + $0x4e4] sm:$0xf]
    %v340 = vld [vmem:[%s1 + $0x4e8] sm:$0xf]
    %v341 = vld [vmem:[%s1 + $0x4ec] sm:$0xf]
    %v342 = vld [vmem:[%s1 + $0x4f0] sm:$0xf]
    %v343 = vld [vmem:[%s1 + $0x4f4] sm:$0xf]
    %v344 = vld [vmem:[%s1 + $0x4f8] sm:$0xf]
    %v345 = vld [vmem:[%s1 + $0x4fc] sm:$0xf]
    %v346 = vld [vmem:[%s1 + $0x500] sm:$0xf]
    %v347 = vld [vmem:[%s1 + $0x504] sm:$0xf]
    %v348 = vld [vmem:[%s1 + $0x508] sm:$0xf]
    %v349 = vld [vmem:[%s1 + $0x50c] sm:$0xf]
    %v350 = vld [vmem:[%s1 + $0x510] sm:$0xf]
    %v351 = vld [vmem:[%s1 + $0x514] sm:$0xf]
    %v352 = vld [vmem:[%s1 + $0x518] sm:$0xf]
    %v353 = vld [vmem:[%s1 + $0x51c] sm:$0xf]
    %v354 = vld [vmem:[%s1 + $0x520] sm:$0xf]
    %v355 = vld [vmem:[%s1 + $0x524] sm:$0xf]
    %v356 = vld [vmem:[%s1 + $0x528] sm:$0xf]
    %v357 = vld [vmem:[%s1 + $0x52c] sm:$0xf]
    %v358 = vld [vmem:[%s1 + $0x530] sm:$0xf]
    %v359 = vld [vmem:[%s1 + $0x534] sm:$0xf]
    %v360 = vld [vmem:[%s1 + $0x538] sm:$0xf]
    %v361 = vld [vmem:[%s1 + $0x53c] sm:$0xf]
    %v362 = vld [vmem:[%s1 + $0x540] sm:$0xf]
    %v363 = vld [vmem:[%s1 + $0x544] sm:$0xf]
    %v364 = vld [vmem:[%s1 + $0x548] sm:$0xf]
    %v365 = vld [vmem:[%s1 + $0x54c] sm:$0xf]
    %v366 = vld [vmem:[%s1 + $0x550] sm:$0xf]
    %v367 = vld [vmem:[%s1 + $0x554] sm:$0xf]
    %v368 = vld [vmem:[%s1 + $0x558] sm:$0xf]
    %v369 = vld [vmem:[%s1 + $0x55c] sm:$0xf]
    %v370 = vld [vmem:[%s1 + $0x560] sm:$0xf]
    %v371 = vld [vmem:[%s1 + $0x564] sm:$0xf]
    %v372 = vld [vmem:[%s1 + $0x568] sm:$0xf]
    %v373 = vld [vmem:[%s1 + $0x56c] sm:$0xf]
    %v374 = vld [vmem:[%s1 + $0x570] sm:$0xf]
    %v375 = vld [vmem:[%s1 + $0x574] sm:$0xf]
    %v376 = vld [vmem:[%s1 + $0x578] sm:$0xf]
    %v377 = vld [vmem:[%s1 + $0x57c] sm:$0xf]
    %v378 = vld [vmem:[%s1 + $0x580] sm:$0xf]
    %v379 = vld [vmem:[%s1 + $0x584] sm:$0xf]
    %v380 = vld [vmem:[%s1 + $0x588] sm:$0xf]
    %v381 = vld [vmem:[%s1 + $0x58c] sm:$0xf]
    %v382 = vld [vmem:[%s1 + $0x590] sm:$0xf]
    %v383 = vld [vmem:[%s1 + $0x594] sm:$0xf]
    %v384 = vld [vmem:[%s1 + $0x598] sm:$0xf]
    %v385 = vld [vmem:[%s1 + $0x59c] sm:$0xf]
    %v386 = vld [vmem:[%s1 + $0x5a0] sm:$0xf]
    %v387 = vld [vmem:[%s1 + $0x5a4] sm:$0xf]
    %v388 = vld [vmem:[%s1 + $0x5a8] sm:$0xf]
    %v389 = vld [vmem:[%s1 + $0x5ac] sm:$0xf]
    %v390 = vld [vmem:[%s1 + $0x5b0] sm:$0xf]
    %v391 = vld [vmem:[%s1 + $0x5b4] sm:$0xf]
    %v392 = vld [vmem:[%s1 + $0x5b8] sm:$0xf]
    %v393 = vld [vmem:[%s1 + $0x5bc] sm:$0xf]
    %v394 = vld [vmem:[%s1 + $0x5c0] sm:$0xf]
    %v395 = vld [vmem:[%s1 + $0x5c4] sm:$0xf]
    %v396 = vld [vmem:[%s1 + $0x5c8] sm:$0xf]
    %v397 = vld [vmem:[%s1 + $0x5cc] sm:$0xf]
    %v398 = vld [vmem:[%s1 + $0x5d0] sm:$0xf]
    %v399 = vld [vmem:[%s1 + $0x5d4] sm:$0xf]
    %v400 = vld [vmem:[%s1 + $0x5d8] sm:$0xf]
    %v401 = vld [vmem:[%s1 + $0x5dc] sm:$0xf]
    %v402 = vld [vmem:[%s1 + $0x5e0] sm:$0xf]
    %v403 = vld [vmem:[%s1 + $0x5e4] sm:$0xf]
    %v404 = vld [vmem:[%s1 + $0x5e8] sm:$0xf]
    %v405 = vld [vmem:[%s1 + $0x5ec] sm:$0xf]
    %v406 = vld [vmem:[%s1 + $0x5f0] sm:$0xf]
    %v407 = vld [vmem:[%s1 + $0x5f4] sm:$0xf]
    %v408 = vld [vmem:[%s1 + $0x5f8] sm:$0xf]
    %v409 = vld [vmem:[%s1 + $0x5fc] sm:$0xf]
    %v410 = vld [vmem:[%s1 + $0x600] sm:$0xf]
    %v411 = vld [vmem:[%s1 + $0x604] sm:$0xf]
    %v412 = vld [vmem:[%s1 + $0x608] sm:$0xf]
    %v413 = vld [vmem:[%s1 + $0x60c] sm:$0xf]
    %v414 = vld [vmem:[%s1 + $0x610] sm:$0xf]
    %v415 = vld [vmem:[%s1 + $0x614] sm:$0xf]
    %v416 = vld [vmem:[%s1 + $0x618] sm:$0xf]
    %v417 = vld [vmem:[%s1 + $0x61c] sm:$0xf]
    %v418 = vld [vmem:[%s1 + $0x620] sm:$0xf]
    %v419 = vld [vmem:[%s1 + $0x624] sm:$0xf]
    %v420 = vld [vmem:[%s1 + $0x628] sm:$0xf]
    %v421 = vld [vmem:[%s1 + $0x62c] sm:$0xf]
    %v422 = vld [vmem:[%s1 + $0x630] sm:$0xf]
    %v423 = vld [vmem:[%s1 + $0x634] sm:$0xf]
    %v424 = vld [vmem:[%s1 + $0x638] sm:$0xf]
    %v425 = vld [vmem:[%s1 + $0x63c] sm:$0xf]
    %v426 = vld [vmem:[%s1 + $0x640] sm:$0xf]
    %v427 = vld [vmem:[%s1 + $0x644] sm:$0xf]
    %v428 = vld [vmem:[%s1 + $0x648] sm:$0xf]
    %v429 = vld [vmem:[%s1 + $0x64c] sm:$0xf]
    %v430 = vld [vmem:[%s1 + $0x650] sm:$0xf]
    %v431 = vld [vmem:[%s1 + $0x654] sm:$0xf]
    %v432 = vld [vmem:[%s1 + $0x658] sm:$0xf]
    %v433 = vld [vmem:[%s1 + $0x65c] sm:$0xf]
    %v434 = vld [vmem:[%s1 + $0x660] sm:$0xf]
    %v435 = vld [vmem:[%s1 + $0x664] sm:$0xf]
    %v436 = vld [vmem:[%s1 + $0x668] sm:$0xf]
    %v437 = vld [vmem:[%s1 + $0x66c] sm:$0xf]
    %v438 = vld [vmem:[%s1 + $0x670] sm:$0xf]
    %v439 = vld [vmem:[%s1 + $0x674] sm:$0xf]
    %v440 = vld [vmem:[%s1 + $0x678] sm:$0xf]
    %v441 = vld [vmem:[%s1 + $0x67c] sm:$0xf]
    %v442 = vld [vmem:[%s1 + $0x680] sm:$0xf]
    %v443 = vld [vmem:[%s1 + $0x684] sm:$0xf]
    %v444 = vld [vmem:[%s1 + $0x688] sm:$0xf]
    %v445 = vld [vmem:[%s1 + $0x68c] sm:$0xf]
    %v446 = vld [vmem:[%s1 + $0x690] sm:$0xf]
    %v447 = vld [vmem:[%s1 + $0x694] sm:$0xf]
    %v448 = vld [vmem:[%s1 + $0x698] sm:$0xf]
    %v449 = vld [vmem:[%s1 + $0x69c] sm:$0xf]
    %v450 = vld [vmem:[%s1 + $0x6a0] sm:$0xf]
    %v451 = vld [vmem:[%s1 + $0x6a4] sm:$0xf]
    %v452 = vld [vmem:[%s1 + $0x6a8] sm:$0xf]
    %v453 = vld [vmem:[%s1 + $0x6ac] sm:$0xf]
    %v454 = vld [vmem:[%s1 + $0x6b0] sm:$0xf]
    %v455 = vld [vmem:[%s1 + $0x6b4] sm:$0xf]
    %v456 = vld [vmem:[%s1 + $0x6b8] sm:$0xf]
    %v457 = vld [vmem:[%s1 + $0x6bc] sm:$0xf]
    %v458 = vld [vmem:[%s1 + $0x6c0] sm:$0xf]
    %v459 = vld [vmem:[%s1 + $0x6c4] sm:$0xf]
    %v460 = vld [vmem:[%s1 + $0x6c8] sm:$0xf]
    %v461 = vld [vmem:[%s1 + $0x6cc] sm:$0xf]
    %v462 = vld [vmem:[%s1 + $0x6d0] sm:$0xf]
    %v463 = vld [vmem:[%s1 + $0x6d4] sm:$0xf]
    %v464 = vld [vmem:[%s1 + $0x6d8] sm:$0xf]
    %v465 = vld [vmem:[%s1 + $0x6dc] sm:$0xf]
    %v466 = vld [vmem:[%s1 + $0x6e0] sm:$0xf]
    %v467 = vld [vmem:[%s1 + $0x6e4] sm:$0xf]
    %v468 = vld [vmem:[%s1 + $0x6e8] sm:$0xf]
    %v469 = vld [vmem:[%s1 + $0x6ec] sm:$0xf]
    %v470 = vld [vmem:[%s1 + $0x6f0] sm:$0xf]
    %v471 = vld [vmem:[%s1 + $0x6f4] sm:$0xf]
    %v472 = vld [vmem:[%s1 + $0x6f8] sm:$0xf]
    %v473 = vld [vmem:[%s1 + $0x6fc] sm:$0xf]
    %v474 = vld [vmem:[%s1 + $0x700] sm:$0xf]
    %v475 = vld [vmem:[%s1 + $0x704] sm:$0xf]
    %v476 = vld [vmem:[%s1 + $0x708] sm:$0xf]
    %v477 = vld [vmem:[%s1 + $0x70c] sm:$0xf]
    %v478 = vld [vmem:[%s1 + $0x710] sm:$0xf]
    %v479 = vld [vmem:[%s1 + $0x714] sm:$0xf]
    %v480 = vld [vmem:[%s1 + $0x718] sm:$0xf]
    %v481 = vld [vmem:[%s1 + $0x71c] sm:$0xf]
    %v482 = vld [vmem:[%s1 + $0x720] sm:$0xf]
    %v483 = vld [vmem:[%s1 + $0x724] sm:$0xf]
    %v484 = vld [vmem:[%s1 + $0x728] sm:$0xf]
    %v485 = vld [vmem:[%s1 + $0x72c] sm:$0xf]
    %v486 = vld [vmem:[%s1 + $0x730] sm:$0xf]
    %v487 = vld [vmem:[%s1 + $0x734] sm:$0xf]
    %v488 = vld [vmem:[%s1 + $0x738] sm:$0xf]
    %v489 = vld [vmem:[%s1 + $0x73c] sm:$0xf]
    %v490 = vld [vmem:[%s1 + $0x740] sm:$0xf]
    %v491 = vld [vmem:[%s1 + $0x744] sm:$0xf]
    %v492 = vld [vmem:[%s1 + $0x748] sm:$0xf]
    %v493 = vld [vmem:[%s1 + $0x74c] sm:$0xf]
    %v494 = vld [vmem:[%s1 + $0x750] sm:$0xf]
    %v495 = vld [vmem:[%s1 + $0x754] sm:$0xf]
    %v496 = vld [vmem:[%s1 + $0x758] sm:$0xf]
    %v497 = vld [vmem:[%s1 + $0x75c] sm:$0xf]
    %v498 = vld [vmem:[%s1 + $0x760] sm:$0xf]
    %v499 = vld [vmem:[%s1 + $0x764] sm:$0xf]
    %v500 = vld [vmem:[%s1 + $0x768] sm:$0xf]
    %v501 = vld [vmem:[%s1 + $0x76c] sm:$0xf]
    %v502 = vld [vmem:[%s1 + $0x770] sm:$0xf]
    %v503 = vld [vmem:[%s1 + $0x774] sm:$0xf]
    %v504 = vld [vmem:[%s1 + $0x778] sm:$0xf]
    %v505 = vld [vmem:[%s1 + $0x77c] sm:$0xf]
    %v506 = vld [vmem:[%s1 + $0x780] sm:$0xf]
    %v507 = vld [vmem:[%s1 + $0x784] sm:$0xf]
    %v508 = vld [vmem:[%s1 + $0x788] sm:$0xf]
    %v509 = vld [vmem:[%s1 + $0x78c] sm:$0xf]
    %v510 = vld [vmem:[%s1 + $0x790] sm:$0xf]
    %v511 = vld [vmem:[%s1 + $0x794] sm:$0xf]
    %v512 = vld [vmem:[%s1 + $0x798] sm:$0xf]
    %v513 = vld [vmem:[%s1 + $0x79c] sm:$0xf]
    %v514 = vld [vmem:[%s1 + $0x7a0] sm:$0xf]
    %v515 = vld [vmem:[%s1 + $0x7a4] sm:$0xf]
    %v516 = vld [vmem:[%s1 + $0x7a8] sm:$0xf]
    %v517 = vld [vmem:[%s1 + $0x7ac] sm:$0xf]
    %v518 = vld [vmem:[%s1 + $0x7b0] sm:$0xf]
    %v519 = vld [vmem:[%s1 + $0x7b4] sm:$0xf]
    %v520 = vld [vmem:[%s1 + $0x7b8] sm:$0xf]
    %v521 = vld [vmem:[%s1 + $0x7bc] sm:$0xf]
    %v522 = vld [vmem:[%s1 + $0x7c0] sm:$0xf]
    %v523 = vld [vmem:[%s1 + $0x7c4] sm:$0xf]
    %v524 = vld [vmem:[%s1 + $0x7c8] sm:$0xf]
    %v525 = vld [vmem:[%s1 + $0x7cc] sm:$0xf]
    %v526 = vld [vmem:[%s1 + $0x7d0] sm:$0xf]
    %v527 = vld [vmem:[%s1 + $0x7d4] sm:$0xf]
    %v528 = vld [vmem:[%s1 + $0x7d8] sm:$0xf]
    %v529 = vld [vmem:[%s1 + $0x7dc] sm:$0xf]
    %v530 = vld [vmem:[%s1 + $0x7e0] sm:$0xf]
    %v531 = vld [vmem:[%s1 + $0x7e4] sm:$0xf]
    %v532 = vld [vmem:[%s1 + $0x7e8] sm:$0xf]
    %v533 = vld [vmem:[%s1 + $0x7ec] sm:$0xf]
    %v534 = vld [vmem:[%s1 + $0x7f0] sm:$0xf]
    %v535 = vld [vmem:[%s1 + $0x7f4] sm:$0xf]
    %v536 = vld [vmem:[%s1 + $0x7f8] sm:$0xf]
    %v537 = vld [vmem:[%s1 + $0x7fc] sm:$0xf]
    %v538 = vld [vmem:[%s2] sm:$0x1]
    %v540 = vlaneseq
    %v541 = vshrl.u32 %v540, 7
    %v542 = vsub.s32 0, %v541
    %v543 = vrot.slane %v538, %v542
    %v549 = vcombine.high %v22, %v22
    %v551 = vunpack.c.l.s4 1966171168
    %v552 = vunpack.c.0.s8 %v551
    %v553 = vlaneseq
    %v554 = vshrl.u32 %v553, 7
    %v555 = vsub.s32 %v552, %v554
    %v556 = vrot.slane %v22, %v555
    %v558 = vunpack.c.l.s4 1966171168
    %v559 = vunpack.c.0.s8 %v558
    %v560 = vlaneseq
    %v561 = vshrl.u32 %v560, 7
    %v562 = vsub.s32 %v559, %v561
    %v563 = vrot.slane %v549, %v562
    %v564 = vcombine.high %v556, %v556
    %v565 = vcombine.high %v563, %v563
    %v567 = vunpack.c.l.s4 1966171168
    %v568 = vunpack.c.0.s8 %v567
    %v569 = vlaneseq
    %v570 = vshrl.u32 %v569, 7
    %v571 = vsub.s32 %v568, %v570
    %v572 = vrot.slane %v556, %v571
    %v574 = vunpack.c.l.s4 1966171168
    %v575 = vunpack.c.0.s8 %v574
    %v576 = vlaneseq
    %v577 = vshrl.u32 %v576, 7
    %v578 = vsub.s32 %v575, %v577
    %v579 = vrot.slane %v563, %v578
    %v581 = vunpack.c.l.s4 1966171168
    %v582 = vunpack.c.0.s8 %v581
    %v583 = vlaneseq
    %v584 = vshrl.u32 %v583, 7
    %v585 = vsub.s32 %v582, %v584
    %v586 = vrot.slane %v564, %v585
    %v588 = vunpack.c.l.s4 1966171168
    %v589 = vunpack.c.0.s8 %v588
    %v590 = vlaneseq
    %v591 = vshrl.u32 %v590, 7
    %v592 = vsub.s32 %v589, %v591
    %v593 = vrot.slane %v565, %v592
    %v594 = vcombine.high %v572, %v572
    %v595 = vcombine.high %v579, %v579
    %v596 = vcombine.high %v586, %v586
    %v597 = vcombine.high %v593, %v593
    %v598 = vcombine.high %v23, %v23
    %v600 = vunpack.c.l.s4 1966171168
    %v601 = vunpack.c.0.s8 %v600
    %v602 = vlaneseq
    %v603 = vshrl.u32 %v602, 7
    %v604 = vsub.s32 %v601, %v603
    %v605 = vrot.slane %v23, %v604
    %v607 = vunpack.c.l.s4 1966171168
    %v608 = vunpack.c.0.s8 %v607
    %v609 = vlaneseq
    %v610 = vshrl.u32 %v609, 7
    %v611 = vsub.s32 %v608, %v610
    %v612 = vrot.slane %v598, %v611
    %v613 = vcombine.high %v605, %v605
    %v614 = vcombine.high %v612, %v612
    %v616 = vunpack.c.l.s4 1966171168
    %v617 = vunpack.c.0.s8 %v616
    %v618 = vlaneseq
    %v619 = vshrl.u32 %v618, 7
    %v620 = vsub.s32 %v617, %v619
    %v621 = vrot.slane %v605, %v620
    %v623 = vunpack.c.l.s4 1966171168
    %v624 = vunpack.c.0.s8 %v623
    %v625 = vlaneseq
    %v626 = vshrl.u32 %v625, 7
    %v627 = vsub.s32 %v624, %v626
    %v628 = vrot.slane %v612, %v627
    %v630 = vunpack.c.l.s4 1966171168
    %v631 = vunpack.c.0.s8 %v630
    %v632 = vlaneseq
    %v633 = vshrl.u32 %v632, 7
    %v634 = vsub.s32 %v631, %v633
    %v635 = vrot.slane %v613, %v634
    %v637 = vunpack.c.l.s4 1966171168
    %v638 = vunpack.c.0.s8 %v637
    %v639 = vlaneseq
    %v640 = vshrl.u32 %v639, 7
    %v641 = vsub.s32 %v638, %v640
    %v642 = vrot.slane %v614, %v641
    %v643 = vcombine.high %v621, %v621
    %v644 = vcombine.high %v628, %v628
    %v645 = vcombine.high %v635, %v635
    %v646 = vcombine.high %v642, %v642
    %v647 = vcombine.high %v24, %v24
    %v649 = vunpack.c.l.s4 1966171168
    %v650 = vunpack.c.0.s8 %v649
    %v651 = vlaneseq
    %v652 = vshrl.u32 %v651, 7
    %v653 = vsub.s32 %v650, %v652
    %v654 = vrot.slane %v24, %v653
    %v656 = vunpack.c.l.s4 1966171168
    %v657 = vunpack.c.0.s8 %v656
    %v658 = vlaneseq
    %v659 = vshrl.u32 %v658, 7
    %v660 = vsub.s32 %v657, %v659
    %v661 = vrot.slane %v647, %v660
    %v662 = vcombine.high %v654, %v654
    %v663 = vcombine.high %v661, %v661
    %v665 = vunpack.c.l.s4 1966171168
    %v666 = vunpack.c.0.s8 %v665
    %v667 = vlaneseq
    %v668 = vshrl.u32 %v667, 7
    %v669 = vsub.s32 %v666, %v668
    %v670 = vrot.slane %v654, %v669
    %v672 = vunpack.c.l.s4 1966171168
    %v673 = vunpack.c.0.s8 %v672
    %v674 = vlaneseq
    %v675 = vshrl.u32 %v674, 7
    %v676 = vsub.s32 %v673, %v675
    %v677 = vrot.slane %v661, %v676
    %v679 = vunpack.c.l.s4 1966171168
    %v680 = vunpack.c.0.s8 %v679
    %v681 = vlaneseq
    %v682 = vshrl.u32 %v681, 7
    %v683 = vsub.s32 %v680, %v682
    %v684 = vrot.slane %v662, %v683
    %v686 = vunpack.c.l.s4 1966171168
    %v687 = vunpack.c.0.s8 %v686
    %v688 = vlaneseq
    %v689 = vshrl.u32 %v688, 7
    %v690 = vsub.s32 %v687, %v689
    %v691 = vrot.slane %v663, %v690
    %v692 = vcombine.high %v670, %v670
    %v693 = vcombine.high %v677, %v677
    %v694 = vcombine.high %v684, %v684
    %v695 = vcombine.high %v691, %v691
    %v696 = vcombine.high %v25, %v25
    %v698 = vunpack.c.l.s4 1966171168
    %v699 = vunpack.c.0.s8 %v698
    %v700 = vlaneseq
    %v701 = vshrl.u32 %v700, 7
    %v702 = vsub.s32 %v699, %v701
    %v703 = vrot.slane %v25, %v702
    %v705 = vunpack.c.l.s4 1966171168
    %v706 = vunpack.c.0.s8 %v705
    %v707 = vlaneseq
    %v708 = vshrl.u32 %v707, 7
    %v709 = vsub.s32 %v706, %v708
    %v710 = vrot.slane %v696, %v709
    %v711 = vcombine.high %v703, %v703
    %v712 = vcombine.high %v710, %v710
    %v714 = vunpack.c.l.s4 1966171168
    %v715 = vunpack.c.0.s8 %v714
    %v716 = vlaneseq
    %v717 = vshrl.u32 %v716, 7
    %v718 = vsub.s32 %v715, %v717
    %v719 = vrot.slane %v703, %v718
    %v721 = vunpack.c.l.s4 1966171168
    %v722 = vunpack.c.0.s8 %v721
    %v723 = vlaneseq
    %v724 = vshrl.u32 %v723, 7
    %v725 = vsub.s32 %v722, %v724
    %v726 = vrot.slane %v710, %v725
    %v728 = vunpack.c.l.s4 1966171168
    %v729 = vunpack.c.0.s8 %v728
    %v730 = vlaneseq
    %v731 = vshrl.u32 %v730, 7
    %v732 = vsub.s32 %v729, %v731
    %v733 = vrot.slane %v711, %v732
    %v735 = vunpack.c.l.s4 1966171168
    %v736 = vunpack.c.0.s8 %v735
    %v737 = vlaneseq
    %v738 = vshrl.u32 %v737, 7
    %v739 = vsub.s32 %v736, %v738
    %v740 = vrot.slane %v712, %v739
    %v741 = vcombine.high %v719, %v719
    %v742 = vcombine.high %v726, %v726
    %v743 = vcombine.high %v733, %v733
    %v744 = vcombine.high %v740, %v740
    %v1289 = vunpack.c.l.b16 %v26
    %v1290 = vunpack.c.l.b16 %v27
    %v1291 = vunpack.c.l.b16 %v28
    %v1292 = vunpack.c.l.b16 %v29
    %v1293 = vunpack.c.l.b16 %v30
    %v1294 = vunpack.c.l.b16 %v31
    %v1295 = vunpack.c.l.b16 %v32
    %v1296 = vunpack.c.l.b16 %v33
    %v1297 = vunpack.c.l.b16 %v34
    %v1298 = vunpack.c.l.b16 %v35
    %v1299 = vunpack.c.l.b16 %v36
    %v1300 = vunpack.c.l.b16 %v37
    %v1301 = vunpack.c.l.b16 %v38
    %v1302 = vunpack.c.l.b16 %v39
    %v1303 = vunpack.c.l.b16 %v40
    %v1304 = vunpack.c.l.b16 %v41
    %v1305 = vunpack.c.l.b16 %v42
    %v1306 = vunpack.c.l.b16 %v43
    %v1307 = vunpack.c.l.b16 %v44
    %v1308 = vunpack.c.l.b16 %v45
    %v1309 = vunpack.c.l.b16 %v46
    %v1310 = vunpack.c.l.b16 %v47
    %v1311 = vunpack.c.l.b16 %v48
    %v1312 = vunpack.c.l.b16 %v49
    %v1313 = vunpack.c.l.b16 %v50
    %v1314 = vunpack.c.l.b16 %v51
    %v1315 = vunpack.c.l.b16 %v52
    %v1316 = vunpack.c.l.b16 %v53
    %v1317 = vunpack.c.l.b16 %v54
    %v1318 = vunpack.c.l.b16 %v55
    %v1319 = vunpack.c.l.b16 %v56
    %v1320 = vunpack.c.l.b16 %v57
    %v1321 = vunpack.c.l.b16 %v58
    %v1322 = vunpack.c.l.b16 %v59
    %v1323 = vunpack.c.l.b16 %v60
    %v1324 = vunpack.c.l.b16 %v61
    %v1325 = vunpack.c.l.b16 %v62
    %v1326 = vunpack.c.l.b16 %v63
    %v1327 = vunpack.c.l.b16 %v64
    %v1328 = vunpack.c.l.b16 %v65
    %v1329 = vunpack.c.l.b16 %v66
    %v1330 = vunpack.c.l.b16 %v67
    %v1331 = vunpack.c.l.b16 %v68
    %v1332 = vunpack.c.l.b16 %v69
    %v1333 = vunpack.c.l.b16 %v70
    %v1334 = vunpack.c.l.b16 %v71
    %v1335 = vunpack.c.l.b16 %v72
    %v1336 = vunpack.c.l.b16 %v73
    %v1337 = vunpack.c.l.b16 %v74
    %v1338 = vunpack.c.l.b16 %v75
    %v1339 = vunpack.c.l.b16 %v76
    %v1340 = vunpack.c.l.b16 %v77
    %v1341 = vunpack.c.l.b16 %v78
    %v1342 = vunpack.c.l.b16 %v79
    %v1343 = vunpack.c.l.b16 %v80
    %v1344 = vunpack.c.l.b16 %v81
    %v1345 = vunpack.c.l.b16 %v82
    %v1346 = vunpack.c.l.b16 %v83
    %v1347 = vunpack.c.l.b16 %v84
    %v1348 = vunpack.c.l.b16 %v85
    %v1349 = vunpack.c.l.b16 %v86
    %v1350 = vunpack.c.l.b16 %v87
    %v1351 = vunpack.c.l.b16 %v88
    %v1352 = vunpack.c.l.b16 %v89
    %v1353 = vunpack.c.l.b16 %v90
    %v1354 = vunpack.c.l.b16 %v91
    %v1355 = vunpack.c.l.b16 %v92
    %v1356 = vunpack.c.l.b16 %v93
    %v1357 = vunpack.c.l.b16 %v94
    %v1358 = vunpack.c.l.b16 %v95
    %v1359 = vunpack.c.l.b16 %v96
    %v1360 = vunpack.c.l.b16 %v97
    %v1361 = vunpack.c.l.b16 %v98
    %v1362 = vunpack.c.l.b16 %v99
    %v1363 = vunpack.c.l.b16 %v100
    %v1364 = vunpack.c.l.b16 %v101
    %v1365 = vunpack.c.l.b16 %v102
    %v1366 = vunpack.c.l.b16 %v103
    %v1367 = vunpack.c.l.b16 %v104
    %v1368 = vunpack.c.l.b16 %v105
    %v1369 = vunpack.c.l.b16 %v106
    %v1370 = vunpack.c.l.b16 %v107
    %v1371 = vunpack.c.l.b16 %v108
    %v1372 = vunpack.c.l.b16 %v109
    %v1373 = vunpack.c.l.b16 %v110
    %v1374 = vunpack.c.l.b16 %v111
    %v1375 = vunpack.c.l.b16 %v112
    %v1376 = vunpack.c.l.b16 %v113
    %v1377 = vunpack.c.l.b16 %v114
    %v1378 = vunpack.c.l.b16 %v115
    %v1379 = vunpack.c.l.b16 %v116
    %v1380 = vunpack.c.l.b16 %v117
    %v1381 = vunpack.c.l.b16 %v118
    %v1382 = vunpack.c.l.b16 %v119
    %v1383 = vunpack.c.l.b16 %v120
    %v1384 = vunpack.c.l.b16 %v121
    %v1385 = vunpack.c.l.b16 %v122
    %v1386 = vunpack.c.l.b16 %v123
    %v1387 = vunpack.c.l.b16 %v124
    %v1388 = vunpack.c.l.b16 %v125
    %v1389 = vunpack.c.l.b16 %v126
    %v1390 = vunpack.c.l.b16 %v127
    %v1391 = vunpack.c.l.b16 %v128
    %v1392 = vunpack.c.l.b16 %v129
    %v1393 = vunpack.c.l.b16 %v130
    %v1394 = vunpack.c.l.b16 %v131
    %v1395 = vunpack.c.l.b16 %v132
    %v1396 = vunpack.c.l.b16 %v133
    %v1397 = vunpack.c.l.b16 %v134
    %v1398 = vunpack.c.l.b16 %v135
    %v1399 = vunpack.c.l.b16 %v136
    %v1400 = vunpack.c.l.b16 %v137
    %v1401 = vunpack.c.l.b16 %v138
    %v1402 = vunpack.c.l.b16 %v139
    %v1403 = vunpack.c.l.b16 %v140
    %v1404 = vunpack.c.l.b16 %v141
    %v1405 = vunpack.c.l.b16 %v142
    %v1406 = vunpack.c.l.b16 %v143
    %v1407 = vunpack.c.l.b16 %v144
    %v1408 = vunpack.c.l.b16 %v145
    %v1409 = vunpack.c.l.b16 %v146
    %v1410 = vunpack.c.l.b16 %v147
    %v1411 = vunpack.c.l.b16 %v148
    %v1412 = vunpack.c.l.b16 %v149
    %v1413 = vunpack.c.l.b16 %v150
    %v1414 = vunpack.c.l.b16 %v151
    %v1415 = vunpack.c.l.b16 %v152
    %v1416 = vunpack.c.l.b16 %v153
    %v1417 = vunpack.c.l.b16 %v154
    %v1418 = vunpack.c.l.b16 %v155
    %v1419 = vunpack.c.l.b16 %v156
    %v1420 = vunpack.c.l.b16 %v157
    %v1421 = vunpack.c.l.b16 %v158
    %v1422 = vunpack.c.l.b16 %v159
    %v1423 = vunpack.c.l.b16 %v160
    %v1424 = vunpack.c.l.b16 %v161
    %v1425 = vunpack.c.l.b16 %v162
    %v1426 = vunpack.c.l.b16 %v163
    %v1427 = vunpack.c.l.b16 %v164
    %v1428 = vunpack.c.l.b16 %v165
    %v1429 = vunpack.c.l.b16 %v166
    %v1430 = vunpack.c.l.b16 %v167
    %v1431 = vunpack.c.l.b16 %v168
    %v1432 = vunpack.c.l.b16 %v169
    %v1433 = vunpack.c.l.b16 %v170
    %v1434 = vunpack.c.l.b16 %v171
    %v1435 = vunpack.c.l.b16 %v172
    %v1436 = vunpack.c.l.b16 %v173
    %v1437 = vunpack.c.l.b16 %v174
    %v1438 = vunpack.c.l.b16 %v175
    %v1439 = vunpack.c.l.b16 %v176
    %v1440 = vunpack.c.l.b16 %v177
    %v1441 = vunpack.c.l.b16 %v178
    %v1442 = vunpack.c.l.b16 %v179
    %v1443 = vunpack.c.l.b16 %v180
    %v1444 = vunpack.c.l.b16 %v181
    %v1445 = vunpack.c.l.b16 %v182
    %v1446 = vunpack.c.l.b16 %v183
    %v1447 = vunpack.c.l.b16 %v184
    %v1448 = vunpack.c.l.b16 %v185
    %v1449 = vunpack.c.l.b16 %v186
    %v1450 = vunpack.c.l.b16 %v187
    %v1451 = vunpack.c.l.b16 %v188
    %v1452 = vunpack.c.l.b16 %v189
    %v1453 = vunpack.c.l.b16 %v190
    %v1454 = vunpack.c.l.b16 %v191
    %v1455 = vunpack.c.l.b16 %v192
    %v1456 = vunpack.c.l.b16 %v193
    %v1457 = vunpack.c.l.b16 %v194
    %v1458 = vunpack.c.l.b16 %v195
    %v1459 = vunpack.c.l.b16 %v196
    %v1460 = vunpack.c.l.b16 %v197
    %v1461 = vunpack.c.l.b16 %v198
    %v1462 = vunpack.c.l.b16 %v199
    %v1463 = vunpack.c.l.b16 %v200
    %v1464 = vunpack.c.l.b16 %v201
    %v1465 = vunpack.c.l.b16 %v202
    %v1466 = vunpack.c.l.b16 %v203
    %v1467 = vunpack.c.l.b16 %v204
    %v1468 = vunpack.c.l.b16 %v205
    %v1469 = vunpack.c.l.b16 %v206
    %v1470 = vunpack.c.l.b16 %v207
    %v1471 = vunpack.c.l.b16 %v208
    %v1472 = vunpack.c.l.b16 %v209
    %v1473 = vunpack.c.l.b16 %v210
    %v1474 = vunpack.c.l.b16 %v211
    %v1475 = vunpack.c.l.b16 %v212
    %v1476 = vunpack.c.l.b16 %v213
    %v1477 = vunpack.c.l.b16 %v214
    %v1478 = vunpack.c.l.b16 %v215
    %v1479 = vunpack.c.l.b16 %v216
    %v1480 = vunpack.c.l.b16 %v217
    %v1481 = vunpack.c.l.b16 %v218
    %v1482 = vunpack.c.l.b16 %v219
    %v1483 = vunpack.c.l.b16 %v220
    %v1484 = vunpack.c.l.b16 %v221
    %v1485 = vunpack.c.l.b16 %v222
    %v1486 = vunpack.c.l.b16 %v223
    %v1487 = vunpack.c.l.b16 %v224
    %v1488 = vunpack.c.l.b16 %v225
    %v1489 = vunpack.c.l.b16 %v226
    %v1490 = vunpack.c.l.b16 %v227
    %v1491 = vunpack.c.l.b16 %v228
    %v1492 = vunpack.c.l.b16 %v229
    %v1493 = vunpack.c.l.b16 %v230
    %v1494 = vunpack.c.l.b16 %v231
    %v1495 = vunpack.c.l.b16 %v232
    %v1496 = vunpack.c.l.b16 %v233
    %v1497 = vunpack.c.l.b16 %v234
    %v1498 = vunpack.c.l.b16 %v235
    %v1499 = vunpack.c.l.b16 %v236
    %v1500 = vunpack.c.l.b16 %v237
    %v1501 = vunpack.c.l.b16 %v238
    %v1502 = vunpack.c.l.b16 %v239
    %v1503 = vunpack.c.l.b16 %v240
    %v1504 = vunpack.c.l.b16 %v241
    %v1505 = vunpack.c.l.b16 %v242
    %v1506 = vunpack.c.l.b16 %v243
    %v1507 = vunpack.c.l.b16 %v244
    %v1508 = vunpack.c.l.b16 %v245
    %v1509 = vunpack.c.l.b16 %v246
    %v1510 = vunpack.c.l.b16 %v247
    %v1511 = vunpack.c.l.b16 %v248
    %v1512 = vunpack.c.l.b16 %v249
    %v1513 = vunpack.c.l.b16 %v250
    %v1514 = vunpack.c.l.b16 %v251
    %v1515 = vunpack.c.l.b16 %v252
    %v1516 = vunpack.c.l.b16 %v253
    %v1517 = vunpack.c.l.b16 %v254
    %v1518 = vunpack.c.l.b16 %v255
    %v1519 = vunpack.c.l.b16 %v256
    %v1520 = vunpack.c.l.b16 %v257
    %v1521 = vunpack.c.l.b16 %v258
    %v1522 = vunpack.c.l.b16 %v259
    %v1523 = vunpack.c.l.b16 %v260
    %v1524 = vunpack.c.l.b16 %v261
    %v1525 = vunpack.c.l.b16 %v262
    %v1526 = vunpack.c.l.b16 %v263
    %v1527 = vunpack.c.l.b16 %v264
    %v1528 = vunpack.c.l.b16 %v265
    %v1529 = vunpack.c.l.b16 %v266
    %v1530 = vunpack.c.l.b16 %v267
    %v1531 = vunpack.c.l.b16 %v268
    %v1532 = vunpack.c.l.b16 %v269
    %v1533 = vunpack.c.l.b16 %v270
    %v1534 = vunpack.c.l.b16 %v271
    %v1535 = vunpack.c.l.b16 %v272
    %v1536 = vunpack.c.l.b16 %v273
    %v1537 = vunpack.c.l.b16 %v274
    %v1538 = vunpack.c.l.b16 %v275
    %v1539 = vunpack.c.l.b16 %v276
    %v1540 = vunpack.c.l.b16 %v277
    %v1541 = vunpack.c.l.b16 %v278
    %v1542 = vunpack.c.l.b16 %v279
    %v1543 = vunpack.c.l.b16 %v280
    %v1544 = vunpack.c.l.b16 %v281
    %v1545 = vunpack.c.l.b16 %v282
    %v1546 = vunpack.c.l.b16 %v283
    %v1547 = vunpack.c.l.b16 %v284
    %v1548 = vunpack.c.l.b16 %v285
    %v1549 = vunpack.c.l.b16 %v286
    %v1550 = vunpack.c.l.b16 %v287
    %v1551 = vunpack.c.l.b16 %v288
    %v1552 = vunpack.c.l.b16 %v289
    %v1553 = vunpack.c.l.b16 %v290
    %v1554 = vunpack.c.l.b16 %v291
    %v1555 = vunpack.c.l.b16 %v292
    %v1556 = vunpack.c.l.b16 %v293
    %v1557 = vunpack.c.l.b16 %v294
    %v1558 = vunpack.c.l.b16 %v295
    %v1559 = vunpack.c.l.b16 %v296
    %v1560 = vunpack.c.l.b16 %v297
    %v1561 = vunpack.c.l.b16 %v298
    %v1562 = vunpack.c.l.b16 %v299
    %v1563 = vunpack.c.l.b16 %v300
    %v1564 = vunpack.c.l.b16 %v301
    %v1565 = vunpack.c.l.b16 %v302
    %v1566 = vunpack.c.l.b16 %v303
    %v1567 = vunpack.c.l.b16 %v304
    %v1568 = vunpack.c.l.b16 %v305
    %v1569 = vunpack.c.l.b16 %v306
    %v1570 = vunpack.c.l.b16 %v307
    %v1571 = vunpack.c.l.b16 %v308
    %v1572 = vunpack.c.l.b16 %v309
    %v1573 = vunpack.c.l.b16 %v310
    %v1574 = vunpack.c.l.b16 %v311
    %v1575 = vunpack.c.l.b16 %v312
    %v1576 = vunpack.c.l.b16 %v313
    %v1577 = vunpack.c.l.b16 %v314
    %v1578 = vunpack.c.l.b16 %v315
    %v1579 = vunpack.c.l.b16 %v316
    %v1580 = vunpack.c.l.b16 %v317
    %v1581 = vunpack.c.l.b16 %v318
    %v1582 = vunpack.c.l.b16 %v319
    %v1583 = vunpack.c.l.b16 %v320
    %v1584 = vunpack.c.l.b16 %v321
    %v1585 = vunpack.c.l.b16 %v322
    %v1586 = vunpack.c.l.b16 %v323
    %v1587 = vunpack.c.l.b16 %v324
    %v1588 = vunpack.c.l.b16 %v325
    %v1589 = vunpack.c.l.b16 %v326
    %v1590 = vunpack.c.l.b16 %v327
    %v1591 = vunpack.c.l.b16 %v328
    %v1592 = vunpack.c.l.b16 %v329
    %v1593 = vunpack.c.l.b16 %v330
    %v1594 = vunpack.c.l.b16 %v331
    %v1595 = vunpack.c.l.b16 %v332
    %v1596 = vunpack.c.l.b16 %v333
    %v1597 = vunpack.c.l.b16 %v334
    %v1598 = vunpack.c.l.b16 %v335
    %v1599 = vunpack.c.l.b16 %v336
    %v1600 = vunpack.c.l.b16 %v337
    %v1601 = vunpack.c.l.b16 %v338
    %v1602 = vunpack.c.l.b16 %v339
    %v1603 = vunpack.c.l.b16 %v340
    %v1604 = vunpack.c.l.b16 %v341
    %v1605 = vunpack.c.l.b16 %v342
    %v1606 = vunpack.c.l.b16 %v343
    %v1607 = vunpack.c.l.b16 %v344
    %v1608 = vunpack.c.l.b16 %v345
    %v1609 = vunpack.c.l.b16 %v346
    %v1610 = vunpack.c.l.b16 %v347
    %v1611 = vunpack.c.l.b16 %v348
    %v1612 = vunpack.c.l.b16 %v349
    %v1613 = vunpack.c.l.b16 %v350
    %v1614 = vunpack.c.l.b16 %v351
    %v1615 = vunpack.c.l.b16 %v352
    %v1616 = vunpack.c.l.b16 %v353
    %v1617 = vunpack.c.l.b16 %v354
    %v1618 = vunpack.c.l.b16 %v355
    %v1619 = vunpack.c.l.b16 %v356
    %v1620 = vunpack.c.l.b16 %v357
    %v1621 = vunpack.c.l.b16 %v358
    %v1622 = vunpack.c.l.b16 %v359
    %v1623 = vunpack.c.l.b16 %v360
    %v1624 = vunpack.c.l.b16 %v361
    %v1625 = vunpack.c.l.b16 %v362
    %v1626 = vunpack.c.l.b16 %v363
    %v1627 = vunpack.c.l.b16 %v364
    %v1628 = vunpack.c.l.b16 %v365
    %v1629 = vunpack.c.l.b16 %v366
    %v1630 = vunpack.c.l.b16 %v367
    %v1631 = vunpack.c.l.b16 %v368
    %v1632 = vunpack.c.l.b16 %v369
    %v1633 = vunpack.c.l.b16 %v370
    %v1634 = vunpack.c.l.b16 %v371
    %v1635 = vunpack.c.l.b16 %v372
    %v1636 = vunpack.c.l.b16 %v373
    %v1637 = vunpack.c.l.b16 %v374
    %v1638 = vunpack.c.l.b16 %v375
    %v1639 = vunpack.c.l.b16 %v376
    %v1640 = vunpack.c.l.b16 %v377
    %v1641 = vunpack.c.l.b16 %v378
    %v1642 = vunpack.c.l.b16 %v379
    %v1643 = vunpack.c.l.b16 %v380
    %v1644 = vunpack.c.l.b16 %v381
    %v1645 = vunpack.c.l.b16 %v382
    %v1646 = vunpack.c.l.b16 %v383
    %v1647 = vunpack.c.l.b16 %v384
    %v1648 = vunpack.c.l.b16 %v385
    %v1649 = vunpack.c.l.b16 %v386
    %v1650 = vunpack.c.l.b16 %v387
    %v1651 = vunpack.c.l.b16 %v388
    %v1652 = vunpack.c.l.b16 %v389
    %v1653 = vunpack.c.l.b16 %v390
    %v1654 = vunpack.c.l.b16 %v391
    %v1655 = vunpack.c.l.b16 %v392
    %v1656 = vunpack.c.l.b16 %v393
    %v1657 = vunpack.c.l.b16 %v394
    %v1658 = vunpack.c.l.b16 %v395
    %v1659 = vunpack.c.l.b16 %v396
    %v1660 = vunpack.c.l.b16 %v397
    %v1661 = vunpack.c.l.b16 %v398
    %v1662 = vunpack.c.l.b16 %v399
    %v1663 = vunpack.c.l.b16 %v400
    %v1664 = vunpack.c.l.b16 %v401
    %v1665 = vunpack.c.l.b16 %v402
    %v1666 = vunpack.c.l.b16 %v403
    %v1667 = vunpack.c.l.b16 %v404
    %v1668 = vunpack.c.l.b16 %v405
    %v1669 = vunpack.c.l.b16 %v406
    %v1670 = vunpack.c.l.b16 %v407
    %v1671 = vunpack.c.l.b16 %v408
    %v1672 = vunpack.c.l.b16 %v409
    %v1673 = vunpack.c.l.b16 %v410
    %v1674 = vunpack.c.l.b16 %v411
    %v1675 = vunpack.c.l.b16 %v412
    %v1676 = vunpack.c.l.b16 %v413
    %v1677 = vunpack.c.l.b16 %v414
    %v1678 = vunpack.c.l.b16 %v415
    %v1679 = vunpack.c.l.b16 %v416
    %v1680 = vunpack.c.l.b16 %v417
    %v1681 = vunpack.c.l.b16 %v418
    %v1682 = vunpack.c.l.b16 %v419
    %v1683 = vunpack.c.l.b16 %v420
    %v1684 = vunpack.c.l.b16 %v421
    %v1685 = vunpack.c.l.b16 %v422
    %v1686 = vunpack.c.l.b16 %v423
    %v1687 = vunpack.c.l.b16 %v424
    %v1688 = vunpack.c.l.b16 %v425
    %v1689 = vunpack.c.l.b16 %v426
    %v1690 = vunpack.c.l.b16 %v427
    %v1691 = vunpack.c.l.b16 %v428
    %v1692 = vunpack.c.l.b16 %v429
    %v1693 = vunpack.c.l.b16 %v430
    %v1694 = vunpack.c.l.b16 %v431
    %v1695 = vunpack.c.l.b16 %v432
    %v1696 = vunpack.c.l.b16 %v433
    %v1697 = vunpack.c.l.b16 %v434
    %v1698 = vunpack.c.l.b16 %v435
    %v1699 = vunpack.c.l.b16 %v436
    %v1700 = vunpack.c.l.b16 %v437
    %v1701 = vunpack.c.l.b16 %v438
    %v1702 = vunpack.c.l.b16 %v439
    %v1703 = vunpack.c.l.b16 %v440
    %v1704 = vunpack.c.l.b16 %v441
    %v1705 = vunpack.c.l.b16 %v442
    %v1706 = vunpack.c.l.b16 %v443
    %v1707 = vunpack.c.l.b16 %v444
    %v1708 = vunpack.c.l.b16 %v445
    %v1709 = vunpack.c.l.b16 %v446
    %v1710 = vunpack.c.l.b16 %v447
    %v1711 = vunpack.c.l.b16 %v448
    %v1712 = vunpack.c.l.b16 %v449
    %v1713 = vunpack.c.l.b16 %v450
    %v1714 = vunpack.c.l.b16 %v451
    %v1715 = vunpack.c.l.b16 %v452
    %v1716 = vunpack.c.l.b16 %v453
    %v1717 = vunpack.c.l.b16 %v454
    %v1718 = vunpack.c.l.b16 %v455
    %v1719 = vunpack.c.l.b16 %v456
    %v1720 = vunpack.c.l.b16 %v457
    %v1721 = vunpack.c.l.b16 %v458
    %v1722 = vunpack.c.l.b16 %v459
    %v1723 = vunpack.c.l.b16 %v460
    %v1724 = vunpack.c.l.b16 %v461
    %v1725 = vunpack.c.l.b16 %v462
    %v1726 = vunpack.c.l.b16 %v463
    %v1727 = vunpack.c.l.b16 %v464
    %v1728 = vunpack.c.l.b16 %v465
    %v1729 = vunpack.c.l.b16 %v466
    %v1730 = vunpack.c.l.b16 %v467
    %v1731 = vunpack.c.l.b16 %v468
    %v1732 = vunpack.c.l.b16 %v469
    %v1733 = vunpack.c.l.b16 %v470
    %v1734 = vunpack.c.l.b16 %v471
    %v1735 = vunpack.c.l.b16 %v472
    %v1736 = vunpack.c.l.b16 %v473
    %v1737 = vunpack.c.l.b16 %v474
    %v1738 = vunpack.c.l.b16 %v475
    %v1739 = vunpack.c.l.b16 %v476
    %v1740 = vunpack.c.l.b16 %v477
    %v1741 = vunpack.c.l.b16 %v478
    %v1742 = vunpack.c.l.b16 %v479
    %v1743 = vunpack.c.l.b16 %v480
    %v1744 = vunpack.c.l.b16 %v481
    %v1745 = vunpack.c.l.b16 %v482
    %v1746 = vunpack.c.l.b16 %v483
    %v1747 = vunpack.c.l.b16 %v484
    %v1748 = vunpack.c.l.b16 %v485
    %v1749 = vunpack.c.l.b16 %v486
    %v1750 = vunpack.c.l.b16 %v487
    %v1751 = vunpack.c.l.b16 %v488
    %v1752 = vunpack.c.l.b16 %v489
    %v1753 = vunpack.c.l.b16 %v490
    %v1754 = vunpack.c.l.b16 %v491
    %v1755 = vunpack.c.l.b16 %v492
    %v1756 = vunpack.c.l.b16 %v493
    %v1757 = vunpack.c.l.b16 %v494
    %v1758 = vunpack.c.l.b16 %v495
    %v1759 = vunpack.c.l.b16 %v496
    %v1760 = vunpack.c.l.b16 %v497
    %v1761 = vunpack.c.l.b16 %v498
    %v1762 = vunpack.c.l.b16 %v499
    %v1763 = vunpack.c.l.b16 %v500
    %v1764 = vunpack.c.l.b16 %v501
    %v1765 = vunpack.c.l.b16 %v502
    %v1766 = vunpack.c.l.b16 %v503
    %v1767 = vunpack.c.l.b16 %v504
    %v1768 = vunpack.c.l.b16 %v505
    %v1769 = vunpack.c.l.b16 %v506
    %v1770 = vunpack.c.l.b16 %v507
    %v1771 = vunpack.c.l.b16 %v508
    %v1772 = vunpack.c.l.b16 %v509
    %v1773 = vunpack.c.l.b16 %v510
    %v1774 = vunpack.c.l.b16 %v511
    %v1775 = vunpack.c.l.b16 %v512
    %v1776 = vunpack.c.l.b16 %v513
    %v1777 = vunpack.c.l.b16 %v514
    %v1778 = vunpack.c.l.b16 %v515
    %v1779 = vunpack.c.l.b16 %v516
    %v1780 = vunpack.c.l.b16 %v517
    %v1781 = vunpack.c.l.b16 %v518
    %v1782 = vunpack.c.l.b16 %v519
    %v1783 = vunpack.c.l.b16 %v520
    %v1784 = vunpack.c.l.b16 %v521
    %v1785 = vunpack.c.l.b16 %v522
    %v1786 = vunpack.c.l.b16 %v523
    %v1787 = vunpack.c.l.b16 %v524
    %v1788 = vunpack.c.l.b16 %v525
    %v1789 = vunpack.c.l.b16 %v526
    %v1790 = vunpack.c.l.b16 %v527
    %v1791 = vunpack.c.l.b16 %v528
    %v1792 = vunpack.c.l.b16 %v529
    %v1793 = vunpack.c.l.b16 %v530
    %v1794 = vunpack.c.l.b16 %v531
    %v1795 = vunpack.c.l.b16 %v532
    %v1796 = vunpack.c.l.b16 %v533
    %v1797 = vunpack.c.l.b16 %v534
    %v1798 = vunpack.c.l.b16 %v535
    %v1799 = vunpack.c.l.b16 %v536
    %v1800 = vunpack.c.l.b16 %v537
    %v1801 = vpack.c.b16 %v1290, %v1289
    %v1802 = vpack.c.b16 %v1292, %v1291
    %v1803 = vpack.c.b16 %v1294, %v1293
    %v1804 = vpack.c.b16 %v1296, %v1295
    %v1805 = vpack.c.b16 %v1298, %v1297
    %v1806 = vpack.c.b16 %v1300, %v1299
    %v1807 = vpack.c.b16 %v1302, %v1301
    %v1808 = vpack.c.b16 %v1304, %v1303
    %v1809 = vpack.c.b16 %v1306, %v1305
    %v1810 = vpack.c.b16 %v1308, %v1307
    %v1811 = vpack.c.b16 %v1310, %v1309
    %v1812 = vpack.c.b16 %v1312, %v1311
    %v1813 = vpack.c.b16 %v1314, %v1313
    %v1814 = vpack.c.b16 %v1316, %v1315
    %v1815 = vpack.c.b16 %v1318, %v1317
    %v1816 = vpack.c.b16 %v1320, %v1319
    %v1817 = vpack.c.b16 %v1322, %v1321
    %v1818 = vpack.c.b16 %v1324, %v1323
    %v1819 = vpack.c.b16 %v1326, %v1325
    %v1820 = vpack.c.b16 %v1328, %v1327
    %v1821 = vpack.c.b16 %v1330, %v1329
    %v1822 = vpack.c.b16 %v1332, %v1331
    %v1823 = vpack.c.b16 %v1334, %v1333
    %v1824 = vpack.c.b16 %v1336, %v1335
    %v1825 = vpack.c.b16 %v1338, %v1337
    %v1826 = vpack.c.b16 %v1340, %v1339
    %v1827 = vpack.c.b16 %v1342, %v1341
    %v1828 = vpack.c.b16 %v1344, %v1343
    %v1829 = vpack.c.b16 %v1346, %v1345
    %v1830 = vpack.c.b16 %v1348, %v1347
    %v1831 = vpack.c.b16 %v1350, %v1349
    %v1832 = vpack.c.b16 %v1352, %v1351
    %v1833 = vpack.c.b16 %v1354, %v1353
    %v1834 = vpack.c.b16 %v1356, %v1355
    %v1835 = vpack.c.b16 %v1358, %v1357
    %v1836 = vpack.c.b16 %v1360, %v1359
    %v1837 = vpack.c.b16 %v1362, %v1361
    %v1838 = vpack.c.b16 %v1364, %v1363
    %v1839 = vpack.c.b16 %v1366, %v1365
    %v1840 = vpack.c.b16 %v1368, %v1367
    %v1841 = vpack.c.b16 %v1370, %v1369
    %v1842 = vpack.c.b16 %v1372, %v1371
    %v1843 = vpack.c.b16 %v1374, %v1373
    %v1844 = vpack.c.b16 %v1376, %v1375
    %v1845 = vpack.c.b16 %v1378, %v1377
    %v1846 = vpack.c.b16 %v1380, %v1379
    %v1847 = vpack.c.b16 %v1382, %v1381
    %v1848 = vpack.c.b16 %v1384, %v1383
    %v1849 = vpack.c.b16 %v1386, %v1385
    %v1850 = vpack.c.b16 %v1388, %v1387
    %v1851 = vpack.c.b16 %v1390, %v1389
    %v1852 = vpack.c.b16 %v1392, %v1391
    %v1853 = vpack.c.b16 %v1394, %v1393
    %v1854 = vpack.c.b16 %v1396, %v1395
    %v1855 = vpack.c.b16 %v1398, %v1397
    %v1856 = vpack.c.b16 %v1400, %v1399
    %v1857 = vpack.c.b16 %v1402, %v1401
    %v1858 = vpack.c.b16 %v1404, %v1403
    %v1859 = vpack.c.b16 %v1406, %v1405
    %v1860 = vpack.c.b16 %v1408, %v1407
    %v1861 = vpack.c.b16 %v1410, %v1409
    %v1862 = vpack.c.b16 %v1412, %v1411
    %v1863 = vpack.c.b16 %v1414, %v1413
    %v1864 = vpack.c.b16 %v1416, %v1415
    %v1865 = vpack.c.b16 %v1418, %v1417
    %v1866 = vpack.c.b16 %v1420, %v1419
    %v1867 = vpack.c.b16 %v1422, %v1421
    %v1868 = vpack.c.b16 %v1424, %v1423
    %v1869 = vpack.c.b16 %v1426, %v1425
    %v1870 = vpack.c.b16 %v1428, %v1427
    %v1871 = vpack.c.b16 %v1430, %v1429
    %v1872 = vpack.c.b16 %v1432, %v1431
    %v1873 = vpack.c.b16 %v1434, %v1433
    %v1874 = vpack.c.b16 %v1436, %v1435
    %v1875 = vpack.c.b16 %v1438, %v1437
    %v1876 = vpack.c.b16 %v1440, %v1439
    %v1877 = vpack.c.b16 %v1442, %v1441
    %v1878 = vpack.c.b16 %v1444, %v1443
    %v1879 = vpack.c.b16 %v1446, %v1445
    %v1880 = vpack.c.b16 %v1448, %v1447
    %v1881 = vpack.c.b16 %v1450, %v1449
    %v1882 = vpack.c.b16 %v1452, %v1451
    %v1883 = vpack.c.b16 %v1454, %v1453
    %v1884 = vpack.c.b16 %v1456, %v1455
    %v1885 = vpack.c.b16 %v1458, %v1457
    %v1886 = vpack.c.b16 %v1460, %v1459
    %v1887 = vpack.c.b16 %v1462, %v1461
    %v1888 = vpack.c.b16 %v1464, %v1463
    %v1889 = vpack.c.b16 %v1466, %v1465
    %v1890 = vpack.c.b16 %v1468, %v1467
    %v1891 = vpack.c.b16 %v1470, %v1469
    %v1892 = vpack.c.b16 %v1472, %v1471
    %v1893 = vpack.c.b16 %v1474, %v1473
    %v1894 = vpack.c.b16 %v1476, %v1475
    %v1895 = vpack.c.b16 %v1478, %v1477
    %v1896 = vpack.c.b16 %v1480, %v1479
    %v1897 = vpack.c.b16 %v1482, %v1481
    %v1898 = vpack.c.b16 %v1484, %v1483
    %v1899 = vpack.c.b16 %v1486, %v1485
    %v1900 = vpack.c.b16 %v1488, %v1487
    %v1901 = vpack.c.b16 %v1490, %v1489
    %v1902 = vpack.c.b16 %v1492, %v1491
    %v1903 = vpack.c.b16 %v1494, %v1493
    %v1904 = vpack.c.b16 %v1496, %v1495
    %v1905 = vpack.c.b16 %v1498, %v1497
    %v1906 = vpack.c.b16 %v1500, %v1499
    %v1907 = vpack.c.b16 %v1502, %v1501
    %v1908 = vpack.c.b16 %v1504, %v1503
    %v1909 = vpack.c.b16 %v1506, %v1505
    %v1910 = vpack.c.b16 %v1508, %v1507
    %v1911 = vpack.c.b16 %v1510, %v1509
    %v1912 = vpack.c.b16 %v1512, %v1511
    %v1913 = vpack.c.b16 %v1514, %v1513
    %v1914 = vpack.c.b16 %v1516, %v1515
    %v1915 = vpack.c.b16 %v1518, %v1517
    %v1916 = vpack.c.b16 %v1520, %v1519
    %v1917 = vpack.c.b16 %v1522, %v1521
    %v1918 = vpack.c.b16 %v1524, %v1523
    %v1919 = vpack.c.b16 %v1526, %v1525
    %v1920 = vpack.c.b16 %v1528, %v1527
    %v1921 = vpack.c.b16 %v1530, %v1529
    %v1922 = vpack.c.b16 %v1532, %v1531
    %v1923 = vpack.c.b16 %v1534, %v1533
    %v1924 = vpack.c.b16 %v1536, %v1535
    %v1925 = vpack.c.b16 %v1538, %v1537
    %v1926 = vpack.c.b16 %v1540, %v1539
    %v1927 = vpack.c.b16 %v1542, %v1541
    %v1928 = vpack.c.b16 %v1544, %v1543
    %v1929 = vpack.c.b16 %v1546, %v1545
    %v1930 = vpack.c.b16 %v1548, %v1547
    %v1931 = vpack.c.b16 %v1550, %v1549
    %v1932 = vpack.c.b16 %v1552, %v1551
    %v1933 = vpack.c.b16 %v1554, %v1553
    %v1934 = vpack.c.b16 %v1556, %v1555
    %v1935 = vpack.c.b16 %v1558, %v1557
    %v1936 = vpack.c.b16 %v1560, %v1559
    %v1937 = vpack.c.b16 %v1562, %v1561
    %v1938 = vpack.c.b16 %v1564, %v1563
    %v1939 = vpack.c.b16 %v1566, %v1565
    %v1940 = vpack.c.b16 %v1568, %v1567
    %v1941 = vpack.c.b16 %v1570, %v1569
    %v1942 = vpack.c.b16 %v1572, %v1571
    %v1943 = vpack.c.b16 %v1574, %v1573
    %v1944 = vpack.c.b16 %v1576, %v1575
    %v1945 = vpack.c.b16 %v1578, %v1577
    %v1946 = vpack.c.b16 %v1580, %v1579
    %v1947 = vpack.c.b16 %v1582, %v1581
    %v1948 = vpack.c.b16 %v1584, %v1583
    %v1949 = vpack.c.b16 %v1586, %v1585
    %v1950 = vpack.c.b16 %v1588, %v1587
    %v1951 = vpack.c.b16 %v1590, %v1589
    %v1952 = vpack.c.b16 %v1592, %v1591
    %v1953 = vpack.c.b16 %v1594, %v1593
    %v1954 = vpack.c.b16 %v1596, %v1595
    %v1955 = vpack.c.b16 %v1598, %v1597
    %v1956 = vpack.c.b16 %v1600, %v1599
    %v1957 = vpack.c.b16 %v1602, %v1601
    %v1958 = vpack.c.b16 %v1604, %v1603
    %v1959 = vpack.c.b16 %v1606, %v1605
    %v1960 = vpack.c.b16 %v1608, %v1607
    %v1961 = vpack.c.b16 %v1610, %v1609
    %v1962 = vpack.c.b16 %v1612, %v1611
    %v1963 = vpack.c.b16 %v1614, %v1613
    %v1964 = vpack.c.b16 %v1616, %v1615
    %v1965 = vpack.c.b16 %v1618, %v1617
    %v1966 = vpack.c.b16 %v1620, %v1619
    %v1967 = vpack.c.b16 %v1622, %v1621
    %v1968 = vpack.c.b16 %v1624, %v1623
    %v1969 = vpack.c.b16 %v1626, %v1625
    %v1970 = vpack.c.b16 %v1628, %v1627
    %v1971 = vpack.c.b16 %v1630, %v1629
    %v1972 = vpack.c.b16 %v1632, %v1631
    %v1973 = vpack.c.b16 %v1634, %v1633
    %v1974 = vpack.c.b16 %v1636, %v1635
    %v1975 = vpack.c.b16 %v1638, %v1637
    %v1976 = vpack.c.b16 %v1640, %v1639
    %v1977 = vpack.c.b16 %v1642, %v1641
    %v1978 = vpack.c.b16 %v1644, %v1643
    %v1979 = vpack.c.b16 %v1646, %v1645
    %v1980 = vpack.c.b16 %v1648, %v1647
    %v1981 = vpack.c.b16 %v1650, %v1649
    %v1982 = vpack.c.b16 %v1652, %v1651
    %v1983 = vpack.c.b16 %v1654, %v1653
    %v1984 = vpack.c.b16 %v1656, %v1655
    %v1985 = vpack.c.b16 %v1658, %v1657
    %v1986 = vpack.c.b16 %v1660, %v1659
    %v1987 = vpack.c.b16 %v1662, %v1661
    %v1988 = vpack.c.b16 %v1664, %v1663
    %v1989 = vpack.c.b16 %v1666, %v1665
    %v1990 = vpack.c.b16 %v1668, %v1667
    %v1991 = vpack.c.b16 %v1670, %v1669
    %v1992 = vpack.c.b16 %v1672, %v1671
    %v1993 = vpack.c.b16 %v1674, %v1673
    %v1994 = vpack.c.b16 %v1676, %v1675
    %v1995 = vpack.c.b16 %v1678, %v1677
    %v1996 = vpack.c.b16 %v1680, %v1679
    %v1997 = vpack.c.b16 %v1682, %v1681
    %v1998 = vpack.c.b16 %v1684, %v1683
    %v1999 = vpack.c.b16 %v1686, %v1685
    %v2000 = vpack.c.b16 %v1688, %v1687
    %v2001 = vpack.c.b16 %v1690, %v1689
    %v2002 = vpack.c.b16 %v1692, %v1691
    %v2003 = vpack.c.b16 %v1694, %v1693
    %v2004 = vpack.c.b16 %v1696, %v1695
    %v2005 = vpack.c.b16 %v1698, %v1697
    %v2006 = vpack.c.b16 %v1700, %v1699
    %v2007 = vpack.c.b16 %v1702, %v1701
    %v2008 = vpack.c.b16 %v1704, %v1703
    %v2009 = vpack.c.b16 %v1706, %v1705
    %v2010 = vpack.c.b16 %v1708, %v1707
    %v2011 = vpack.c.b16 %v1710, %v1709
    %v2012 = vpack.c.b16 %v1712, %v1711
    %v2013 = vpack.c.b16 %v1714, %v1713
    %v2014 = vpack.c.b16 %v1716, %v1715
    %v2015 = vpack.c.b16 %v1718, %v1717
    %v2016 = vpack.c.b16 %v1720, %v1719
    %v2017 = vpack.c.b16 %v1722, %v1721
    %v2018 = vpack.c.b16 %v1724, %v1723
    %v2019 = vpack.c.b16 %v1726, %v1725
    %v2020 = vpack.c.b16 %v1728, %v1727
    %v2021 = vpack.c.b16 %v1730, %v1729
    %v2022 = vpack.c.b16 %v1732, %v1731
    %v2023 = vpack.c.b16 %v1734, %v1733
    %v2024 = vpack.c.b16 %v1736, %v1735
    %v2025 = vpack.c.b16 %v1738, %v1737
    %v2026 = vpack.c.b16 %v1740, %v1739
    %v2027 = vpack.c.b16 %v1742, %v1741
    %v2028 = vpack.c.b16 %v1744, %v1743
    %v2029 = vpack.c.b16 %v1746, %v1745
    %v2030 = vpack.c.b16 %v1748, %v1747
    %v2031 = vpack.c.b16 %v1750, %v1749
    %v2032 = vpack.c.b16 %v1752, %v1751
    %v2033 = vpack.c.b16 %v1754, %v1753
    %v2034 = vpack.c.b16 %v1756, %v1755
    %v2035 = vpack.c.b16 %v1758, %v1757
    %v2036 = vpack.c.b16 %v1760, %v1759
    %v2037 = vpack.c.b16 %v1762, %v1761
    %v2038 = vpack.c.b16 %v1764, %v1763
    %v2039 = vpack.c.b16 %v1766, %v1765
    %v2040 = vpack.c.b16 %v1768, %v1767
    %v2041 = vpack.c.b16 %v1770, %v1769
    %v2042 = vpack.c.b16 %v1772, %v1771
    %v2043 = vpack.c.b16 %v1774, %v1773
    %v2044 = vpack.c.b16 %v1776, %v1775
    %v2045 = vpack.c.b16 %v1778, %v1777
    %v2046 = vpack.c.b16 %v1780, %v1779
    %v2047 = vpack.c.b16 %v1782, %v1781
    %v2048 = vpack.c.b16 %v1784, %v1783
    %v2049 = vpack.c.b16 %v1786, %v1785
    %v2050 = vpack.c.b16 %v1788, %v1787
    %v2051 = vpack.c.b16 %v1790, %v1789
    %v2052 = vpack.c.b16 %v1792, %v1791
    %v2053 = vpack.c.b16 %v1794, %v1793
    %v2054 = vpack.c.b16 %v1796, %v1795
    %v2055 = vpack.c.b16 %v1798, %v1797
    %v2056 = vpack.c.b16 %v1800, %v1799
    %2313 = vmatprep.subr.bf16.mxu0 0
    %2314 = vmatpush1.bf16.msra.mxu0 %v1801
    %2315 = vmatprep.subr.bf16.mxu0 0
    %2316 = vmatpush1.bf16.msra.mxu0 %v1802
    %2317 = vmatprep.subr.bf16.mxu0 0
    %2318 = vmatpush1.bf16.msra.mxu0 %v1803
    %2319 = vmatprep.subr.bf16.mxu0 0
    %2320 = vmatpush1.bf16.msra.mxu0 %v1804
    %2321 = vmatprep.subr.bf16.mxu0 0
    %2322 = vmatpush1.bf16.msra.mxu0 %v1805
    %2323 = vmatprep.subr.bf16.mxu0 0
    %2324 = vmatpush1.bf16.msra.mxu0 %v1806
    %2325 = vmatprep.subr.bf16.mxu0 0
    %2326 = vmatpush1.bf16.msra.mxu0 %v1807
    %2327 = vmatprep.subr.bf16.mxu0 0
    %2328 = vmatpush1.bf16.msra.mxu0 %v1808
    %2329 = vmatprep.subr.bf16.mxu0 0
    %2330 = vmatpush1.bf16.msra.mxu0 %v1809
    %2331 = vmatprep.subr.bf16.mxu0 0
    %2332 = vmatpush1.bf16.msra.mxu0 %v1810
    %2333 = vmatprep.subr.bf16.mxu0 0
    %2334 = vmatpush1.bf16.msra.mxu0 %v1811
    %2335 = vmatprep.subr.bf16.mxu0 0
    %2336 = vmatpush1.bf16.msra.mxu0 %v1812
    %2337 = vmatprep.subr.bf16.mxu0 0
    %2338 = vmatpush1.bf16.msra.mxu0 %v1813
    %2339 = vmatprep.subr.bf16.mxu0 0
    %2340 = vmatpush1.bf16.msra.mxu0 %v1814
    %2341 = vmatprep.subr.bf16.mxu0 0
    %2342 = vmatpush1.bf16.msra.mxu0 %v1815
    %2343 = vmatprep.subr.bf16.mxu0 0
    %2344 = vmatpush1.bf16.msra.mxu0 %v1816
    %2345 = vmatprep.mubr.bf16.mxu0 %v586
    %2346 = vmatmul.mubr.bf16.gmra.mrb[0].mxu0 %v572
    %v2347 = vpop.f32.mrb[0].mxu0
    %v2348 = vadd.f32 %v543, %v2347
    %v2349 = vpop.f32.mrb[0].mxu0
    %v2350 = vpop.f32.mrb[0].mxu0
    %v2351 = vpop.f32.mrb[0].mxu0
    %2352 = vdwg.mxu0
    %2353 = vmatprep.subr.bf16.mxu0 0
    %2354 = vmatpush1.bf16.msra.mxu0 %v1817
    %2355 = vmatprep.subr.bf16.mxu0 0
    %2356 = vmatpush1.bf16.msra.mxu0 %v1818
    %2357 = vmatprep.subr.bf16.mxu0 0
    %2358 = vmatpush1.bf16.msra.mxu0 %v1819
    %2359 = vmatprep.subr.bf16.mxu0 0
    %2360 = vmatpush1.bf16.msra.mxu0 %v1820
    %2361 = vmatprep.subr.bf16.mxu0 0
    %2362 = vmatpush1.bf16.msra.mxu0 %v1821
    %2363 = vmatprep.subr.bf16.mxu0 0
    %2364 = vmatpush1.bf16.msra.mxu0 %v1822
    %2365 = vmatprep.subr.bf16.mxu0 0
    %2366 = vmatpush1.bf16.msra.mxu0 %v1823
    %2367 = vmatprep.subr.bf16.mxu0 0
    %2368 = vmatpush1.bf16.msra.mxu0 %v1824
    %2369 = vmatprep.subr.bf16.mxu0 0
    %2370 = vmatpush1.bf16.msra.mxu0 %v1825
    %2371 = vmatprep.subr.bf16.mxu0 0
    %2372 = vmatpush1.bf16.msra.mxu0 %v1826
    %2373 = vmatprep.subr.bf16.mxu0 0
    %2374 = vmatpush1.bf16.msra.mxu0 %v1827
    %2375 = vmatprep.subr.bf16.mxu0 0
    %2376 = vmatpush1.bf16.msra.mxu0 %v1828
    %2377 = vmatprep.subr.bf16.mxu0 0
    %2378 = vmatpush1.bf16.msra.mxu0 %v1829
    %2379 = vmatprep.subr.bf16.mxu0 0
    %2380 = vmatpush1.bf16.msra.mxu0 %v1830
    %2381 = vmatprep.subr.bf16.mxu0 0
    %2382 = vmatpush1.bf16.msra.mxu0 %v1831
    %2383 = vmatprep.subr.bf16.mxu0 0
    %2384 = vmatpush1.bf16.msra.mxu0 %v1832
    %2385 = vmatprep.mubr.bf16.mxu0 %v596
    %2386 = vmatmul.mubr.bf16.gmra.mrb[0].mxu0 %v594
    %v2387 = vpop.f32.mrb[0].mxu0
    %v2388 = vadd.f32 %v2348, %v2387
    %v2389 = vpop.f32.mrb[0].mxu0
    %v2390 = vpop.f32.mrb[0].mxu0
    %v2391 = vpop.f32.mrb[0].mxu0
    %2392 = vdwg.mxu0
    %2393 = vmatprep.subr.bf16.mxu0 0
    %2394 = vmatpush1.bf16.msra.mxu0 %v1833
    %2395 = vmatprep.subr.bf16.mxu0 0
    %2396 = vmatpush1.bf16.msra.mxu0 %v1834
    %2397 = vmatprep.subr.bf16.mxu0 0
    %2398 = vmatpush1.bf16.msra.mxu0 %v1835
    %2399 = vmatprep.subr.bf16.mxu0 0
    %2400 = vmatpush1.bf16.msra.mxu0 %v1836
    %2401 = vmatprep.subr.bf16.mxu0 0
    %2402 = vmatpush1.bf16.msra.mxu0 %v1837
    %2403 = vmatprep.subr.bf16.mxu0 0
    %2404 = vmatpush1.bf16.msra.mxu0 %v1838
    %2405 = vmatprep.subr.bf16.mxu0 0
    %2406 = vmatpush1.bf16.msra.mxu0 %v1839
    %2407 = vmatprep.subr.bf16.mxu0 0
    %2408 = vmatpush1.bf16.msra.mxu0 %v1840
    %2409 = vmatprep.subr.bf16.mxu0 0
    %2410 = vmatpush1.bf16.msra.mxu0 %v1841
    %2411 = vmatprep.subr.bf16.mxu0 0
    %2412 = vmatpush1.bf16.msra.mxu0 %v1842
    %2413 = vmatprep.subr.bf16.mxu0 0
    %2414 = vmatpush1.bf16.msra.mxu0 %v1843
    %2415 = vmatprep.subr.bf16.mxu0 0
    %2416 = vmatpush1.bf16.msra.mxu0 %v1844
    %2417 = vmatprep.subr.bf16.mxu0 0
    %2418 = vmatpush1.bf16.msra.mxu0 %v1845
    %2419 = vmatprep.subr.bf16.mxu0 0
    %2420 = vmatpush1.bf16.msra.mxu0 %v1846
    %2421 = vmatprep.subr.bf16.mxu0 0
    %2422 = vmatpush1.bf16.msra.mxu0 %v1847
    %2423 = vmatprep.subr.bf16.mxu0 0
    %2424 = vmatpush1.bf16.msra.mxu0 %v1848
    %2425 = vmatprep.mubr.bf16.mxu0 %v593
    %2426 = vmatmul.mubr.bf16.gmra.mrb[0].mxu0 %v579
    %v2427 = vpop.f32.mrb[0].mxu0
    %v2428 = vadd.f32 %v2388, %v2427
    %v2429 = vpop.f32.mrb[0].mxu0
    %v2430 = vpop.f32.mrb[0].mxu0
    %v2431 = vpop.f32.mrb[0].mxu0
    %2432 = vdwg.mxu0
    %2433 = vmatprep.subr.bf16.mxu0 0
    %2434 = vmatpush1.bf16.msra.mxu0 %v1849
    %2435 = vmatprep.subr.bf16.mxu0 0
    %2436 = vmatpush1.bf16.msra.mxu0 %v1850
    %2437 = vmatprep.subr.bf16.mxu0 0
    %2438 = vmatpush1.bf16.msra.mxu0 %v1851
    %2439 = vmatprep.subr.bf16.mxu0 0
    %2440 = vmatpush1.bf16.msra.mxu0 %v1852
    %2441 = vmatprep.subr.bf16.mxu0 0
    %2442 = vmatpush1.bf16.msra.mxu0 %v1853
    %2443 = vmatprep.subr.bf16.mxu0 0
    %2444 = vmatpush1.bf16.msra.mxu0 %v1854
    %2445 = vmatprep.subr.bf16.mxu0 0
    %2446 = vmatpush1.bf16.msra.mxu0 %v1855
    %2447 = vmatprep.subr.bf16.mxu0 0
    %2448 = vmatpush1.bf16.msra.mxu0 %v1856
    %2449 = vmatprep.subr.bf16.mxu0 0
    %2450 = vmatpush1.bf16.msra.mxu0 %v1857
    %2451 = vmatprep.subr.bf16.mxu0 0
    %2452 = vmatpush1.bf16.msra.mxu0 %v1858
    %2453 = vmatprep.subr.bf16.mxu0 0
    %2454 = vmatpush1.bf16.msra.mxu0 %v1859
    %2455 = vmatprep.subr.bf16.mxu0 0
    %2456 = vmatpush1.bf16.msra.mxu0 %v1860
    %2457 = vmatprep.subr.bf16.mxu0 0
    %2458 = vmatpush1.bf16.msra.mxu0 %v1861
    %2459 = vmatprep.subr.bf16.mxu0 0
    %2460 = vmatpush1.bf16.msra.mxu0 %v1862
    %2461 = vmatprep.subr.bf16.mxu0 0
    %2462 = vmatpush1.bf16.msra.mxu0 %v1863
    %2463 = vmatprep.subr.bf16.mxu0 0
    %2464 = vmatpush1.bf16.msra.mxu0 %v1864
    %2465 = vmatprep.mubr.bf16.mxu0 %v597
    %2466 = vmatmul.mubr.bf16.gmra.mrb[0].mxu0 %v595
    %v2467 = vpop.f32.mrb[0].mxu0
    %v2468 = vadd.f32 %v2428, %v2467
    %v2469 = vpop.f32.mrb[0].mxu0
    %v2470 = vpop.f32.mrb[0].mxu0
    %v2471 = vpop.f32.mrb[0].mxu0
    %2472 = vdwg.mxu0
    %2473 = vmatprep.subr.bf16.mxu0 0
    %2474 = vmatpush1.bf16.msra.mxu0 %v1865
    %2475 = vmatprep.subr.bf16.mxu0 0
    %2476 = vmatpush1.bf16.msra.mxu0 %v1866
    %2477 = vmatprep.subr.bf16.mxu0 0
    %2478 = vmatpush1.bf16.msra.mxu0 %v1867
    %2479 = vmatprep.subr.bf16.mxu0 0
    %2480 = vmatpush1.bf16.msra.mxu0 %v1868
    %2481 = vmatprep.subr.bf16.mxu0 0
    %2482 = vmatpush1.bf16.msra.mxu0 %v1869
    %2483 = vmatprep.subr.bf16.mxu0 0
    %2484 = vmatpush1.bf16.msra.mxu0 %v1870
    %2485 = vmatprep.subr.bf16.mxu0 0
    %2486 = vmatpush1.bf16.msra.mxu0 %v1871
    %2487 = vmatprep.subr.bf16.mxu0 0
    %2488 = vmatpush1.bf16.msra.mxu0 %v1872
    %2489 = vmatprep.subr.bf16.mxu0 0
    %2490 = vmatpush1.bf16.msra.mxu0 %v1873
    %2491 = vmatprep.subr.bf16.mxu0 0
    %2492 = vmatpush1.bf16.msra.mxu0 %v1874
    %2493 = vmatprep.subr.bf16.mxu0 0
    %2494 = vmatpush1.bf16.msra.mxu0 %v1875
    %2495 = vmatprep.subr.bf16.mxu0 0
    %2496 = vmatpush1.bf16.msra.mxu0 %v1876
    %2497 = vmatprep.subr.bf16.mxu0 0
    %2498 = vmatpush1.bf16.msra.mxu0 %v1877
    %2499 = vmatprep.subr.bf16.mxu0 0
    %2500 = vmatpush1.bf16.msra.mxu0 %v1878
    %2501 = vmatprep.subr.bf16.mxu0 0
    %2502 = vmatpush1.bf16.msra.mxu0 %v1879
    %2503 = vmatprep.subr.bf16.mxu0 0
    %2504 = vmatpush1.bf16.msra.mxu0 %v1880
    %2505 = vmatprep.mubr.bf16.mxu0 %v635
    %2506 = vmatmul.mubr.bf16.gmra.mrb[0].mxu0 %v621
    %v2507 = vpop.f32.mrb[0].mxu0
    %v2508 = vadd.f32 %v2468, %v2507
    %v2509 = vpop.f32.mrb[0].mxu0
    %v2510 = vpop.f32.mrb[0].mxu0
    %v2511 = vpop.f32.mrb[0].mxu0
    %2512 = vdwg.mxu0
    %2513 = vmatprep.subr.bf16.mxu0 0
    %2514 = vmatpush1.bf16.msra.mxu0 %v1881
    %2515 = vmatprep.subr.bf16.mxu0 0
    %2516 = vmatpush1.bf16.msra.mxu0 %v1882
    %2517 = vmatprep.subr.bf16.mxu0 0
    %2518 = vmatpush1.bf16.msra.mxu0 %v1883
    %2519 = vmatprep.subr.bf16.mxu0 0
    %2520 = vmatpush1.bf16.msra.mxu0 %v1884
    %2521 = vmatprep.subr.bf16.mxu0 0
    %2522 = vmatpush1.bf16.msra.mxu0 %v1885
    %2523 = vmatprep.subr.bf16.mxu0 0
    %2524 = vmatpush1.bf16.msra.mxu0 %v1886
    %2525 = vmatprep.subr.bf16.mxu0 0
    %2526 = vmatpush1.bf16.msra.mxu0 %v1887
    %2527 = vmatprep.subr.bf16.mxu0 0
    %2528 = vmatpush1.bf16.msra.mxu0 %v1888
    %2529 = vmatprep.subr.bf16.mxu0 0
    %2530 = vmatpush1.bf16.msra.mxu0 %v1889
    %2531 = vmatprep.subr.bf16.mxu0 0
    %2532 = vmatpush1.bf16.msra.mxu0 %v1890
    %2533 = vmatprep.subr.bf16.mxu0 0
    %2534 = vmatpush1.bf16.msra.mxu0 %v1891
    %2535 = vmatprep.subr.bf16.mxu0 0
    %2536 = vmatpush1.bf16.msra.mxu0 %v1892
    %2537 = vmatprep.subr.bf16.mxu0 0
    %2538 = vmatpush1.bf16.msra.mxu0 %v1893
    %2539 = vmatprep.subr.bf16.mxu0 0
    %2540 = vmatpush1.bf16.msra.mxu0 %v1894
    %2541 = vmatprep.subr.bf16.mxu0 0
    %2542 = vmatpush1.bf16.msra.mxu0 %v1895
    %2543 = vmatprep.subr.bf16.mxu0 0
    %2544 = vmatpush1.bf16.msra.mxu0 %v1896
    %2545 = vmatprep.mubr.bf16.mxu0 %v645
    %2546 = vmatmul.mubr.bf16.gmra.mrb[0].mxu0 %v643
    %v2547 = vpop.f32.mrb[0].mxu0
    %v2548 = vadd.f32 %v2508, %v2547
    %v2549 = vpop.f32.mrb[0].mxu0
    %v2550 = vpop.f32.mrb[0].mxu0
    %v2551 = vpop.f32.mrb[0].mxu0
    %2552 = vdwg.mxu0
    %2553 = vmatprep.subr.bf16.mxu0 0
    %2554 = vmatpush1.bf16.msra.mxu0 %v1897
    %2555 = vmatprep.subr.bf16.mxu0 0
    %2556 = vmatpush1.bf16.msra.mxu0 %v1898
    %2557 = vmatprep.subr.bf16.mxu0 0
    %2558 = vmatpush1.bf16.msra.mxu0 %v1899
    %2559 = vmatprep.subr.bf16.mxu0 0
    %2560 = vmatpush1.bf16.msra.mxu0 %v1900
    %2561 = vmatprep.subr.bf16.mxu0 0
    %2562 = vmatpush1.bf16.msra.mxu0 %v1901
    %2563 = vmatprep.subr.bf16.mxu0 0
    %2564 = vmatpush1.bf16.msra.mxu0 %v1902
    %2565 = vmatprep.subr.bf16.mxu0 0
    %2566 = vmatpush1.bf16.msra.mxu0 %v1903
    %2567 = vmatprep.subr.bf16.mxu0 0
    %2568 = vmatpush1.bf16.msra.mxu0 %v1904
    %2569 = vmatprep.subr.bf16.mxu0 0
    %2570 = vmatpush1.bf16.msra.mxu0 %v1905
    %2571 = vmatprep.subr.bf16.mxu0 0
    %2572 = vmatpush1.bf16.msra.mxu0 %v1906
    %2573 = vmatprep.subr.bf16.mxu0 0
    %2574 = vmatpush1.bf16.msra.mxu0 %v1907
    %2575 = vmatprep.subr.bf16.mxu0 0
    %2576 = vmatpush1.bf16.msra.mxu0 %v1908
    %2577 = vmatprep.subr.bf16.mxu0 0
    %2578 = vmatpush1.bf16.msra.mxu0 %v1909
    %2579 = vmatprep.subr.bf16.mxu0 0
    %2580 = vmatpush1.bf16.msra.mxu0 %v1910
    %2581 = vmatprep.subr.bf16.mxu0 0
    %2582 = vmatpush1.bf16.msra.mxu0 %v1911
    %2583 = vmatprep.subr.bf16.mxu0 0
    %2584 = vmatpush1.bf16.msra.mxu0 %v1912
    %2585 = vmatprep.mubr.bf16.mxu0 %v642
    %2586 = vmatmul.mubr.bf16.gmra.mrb[0].mxu0 %v628
    %v2587 = vpop.f32.mrb[0].mxu0
    %v2588 = vadd.f32 %v2548, %v2587
    %v2589 = vpop.f32.mrb[0].mxu0
    %v2590 = vpop.f32.mrb[0].mxu0
    %v2591 = vpop.f32.mrb[0].mxu0
    %2592 = vdwg.mxu0
    %2593 = vmatprep.subr.bf16.mxu0 0
    %2594 = vmatpush1.bf16.msra.mxu0 %v1913
    %2595 = vmatprep.subr.bf16.mxu0 0
    %2596 = vmatpush1.bf16.msra.mxu0 %v1914
    %2597 = vmatprep.subr.bf16.mxu0 0
    %2598 = vmatpush1.bf16.msra.mxu0 %v1915
    %2599 = vmatprep.subr.bf16.mxu0 0
    %2600 = vmatpush1.bf16.msra.mxu0 %v1916
    %2601 = vmatprep.subr.bf16.mxu0 0
    %2602 = vmatpush1.bf16.msra.mxu0 %v1917
    %2603 = vmatprep.subr.bf16.mxu0 0
    %2604 = vmatpush1.bf16.msra.mxu0 %v1918
    %2605 = vmatprep.subr.bf16.mxu0 0
    %2606 = vmatpush1.bf16.msra.mxu0 %v1919
    %2607 = vmatprep.subr.bf16.mxu0 0
    %2608 = vmatpush1.bf16.msra.mxu0 %v1920
    %2609 = vmatprep.subr.bf16.mxu0 0
    %2610 = vmatpush1.bf16.msra.mxu0 %v1921
    %2611 = vmatprep.subr.bf16.mxu0 0
    %2612 = vmatpush1.bf16.msra.mxu0 %v1922
    %2613 = vmatprep.subr.bf16.mxu0 0
    %2614 = vmatpush1.bf16.msra.mxu0 %v1923
    %2615 = vmatprep.subr.bf16.mxu0 0
    %2616 = vmatpush1.bf16.msra.mxu0 %v1924
    %2617 = vmatprep.subr.bf16.mxu0 0
    %2618 = vmatpush1.bf16.msra.mxu0 %v1925
    %2619 = vmatprep.subr.bf16.mxu0 0
    %2620 = vmatpush1.bf16.msra.mxu0 %v1926
    %2621 = vmatprep.subr.bf16.mxu0 0
    %2622 = vmatpush1.bf16.msra.mxu0 %v1927
    %2623 = vmatprep.subr.bf16.mxu0 0
    %2624 = vmatpush1.bf16.msra.mxu0 %v1928
    %2625 = vmatprep.mubr.bf16.mxu0 %v646
    %2626 = vmatmul.mubr.bf16.gmra.mrb[0].mxu0 %v644
    %v2627 = vpop.f32.mrb[0].mxu0
    %v2628 = vadd.f32 %v2588, %v2627
    %v2629 = vpop.f32.mrb[0].mxu0
    %v2630 = vpop.f32.mrb[0].mxu0
    %v2631 = vpop.f32.mrb[0].mxu0
    %2632 = vdwg.mxu0
    %2633 = vmatprep.subr.bf16.mxu0 0
    %2634 = vmatpush1.bf16.msra.mxu0 %v1929
    %2635 = vmatprep.subr.bf16.mxu0 0
    %2636 = vmatpush1.bf16.msra.mxu0 %v1930
    %2637 = vmatprep.subr.bf16.mxu0 0
    %2638 = vmatpush1.bf16.msra.mxu0 %v1931
    %2639 = vmatprep.subr.bf16.mxu0 0
    %2640 = vmatpush1.bf16.msra.mxu0 %v1932
    %2641 = vmatprep.subr.bf16.mxu0 0
    %2642 = vmatpush1.bf16.msra.mxu0 %v1933
    %2643 = vmatprep.subr.bf16.mxu0 0
    %2644 = vmatpush1.bf16.msra.mxu0 %v1934
    %2645 = vmatprep.subr.bf16.mxu0 0
    %2646 = vmatpush1.bf16.msra.mxu0 %v1935
    %2647 = vmatprep.subr.bf16.mxu0 0
    %2648 = vmatpush1.bf16.msra.mxu0 %v1936
    %2649 = vmatprep.subr.bf16.mxu0 0
    %2650 = vmatpush1.bf16.msra.mxu0 %v1937
    %2651 = vmatprep.subr.bf16.mxu0 0
    %2652 = vmatpush1.bf16.msra.mxu0 %v1938
    %2653 = vmatprep.subr.bf16.mxu0 0
    %2654 = vmatpush1.bf16.msra.mxu0 %v1939
    %2655 = vmatprep.subr.bf16.mxu0 0
    %2656 = vmatpush1.bf16.msra.mxu0 %v1940
    %2657 = vmatprep.subr.bf16.mxu0 0
    %2658 = vmatpush1.bf16.msra.mxu0 %v1941
    %2659 = vmatprep.subr.bf16.mxu0 0
    %2660 = vmatpush1.bf16.msra.mxu0 %v1942
    %2661 = vmatprep.subr.bf16.mxu0 0
    %2662 = vmatpush1.bf16.msra.mxu0 %v1943
    %2663 = vmatprep.subr.bf16.mxu0 0
    %2664 = vmatpush1.bf16.msra.mxu0 %v1944
    %2665 = vmatprep.mubr.bf16.mxu0 %v684
    %2666 = vmatmul.mubr.bf16.gmra.mrb[0].mxu0 %v670
    %v2667 = vpop.f32.mrb[0].mxu0
    %v2668 = vadd.f32 %v2628, %v2667
    %v2669 = vpop.f32.mrb[0].mxu0
    %v2670 = vpop.f32.mrb[0].mxu0
    %v2671 = vpop.f32.mrb[0].mxu0
    %2672 = vdwg.mxu0
    %2673 = vmatprep.subr.bf16.mxu0 0
    %2674 = vmatpush1.bf16.msra.mxu0 %v1945
    %2675 = vmatprep.subr.bf16.mxu0 0
    %2676 = vmatpush1.bf16.msra.mxu0 %v1946
    %2677 = vmatprep.subr.bf16.mxu0 0
    %2678 = vmatpush1.bf16.msra.mxu0 %v1947
    %2679 = vmatprep.subr.bf16.mxu0 0
    %2680 = vmatpush1.bf16.msra.mxu0 %v1948
    %2681 = vmatprep.subr.bf16.mxu0 0
    %2682 = vmatpush1.bf16.msra.mxu0 %v1949
    %2683 = vmatprep.subr.bf16.mxu0 0
    %2684 = vmatpush1.bf16.msra.mxu0 %v1950
    %2685 = vmatprep.subr.bf16.mxu0 0
    %2686 = vmatpush1.bf16.msra.mxu0 %v1951
    %2687 = vmatprep.subr.bf16.mxu0 0
    %2688 = vmatpush1.bf16.msra.mxu0 %v1952
    %2689 = vmatprep.subr.bf16.mxu0 0
    %2690 = vmatpush1.bf16.msra.mxu0 %v1953
    %2691 = vmatprep.subr.bf16.mxu0 0
    %2692 = vmatpush1.bf16.msra.mxu0 %v1954
    %2693 = vmatprep.subr.bf16.mxu0 0
    %2694 = vmatpush1.bf16.msra.mxu0 %v1955
    %2695 = vmatprep.subr.bf16.mxu0 0
    %2696 = vmatpush1.bf16.msra.mxu0 %v1956
    %2697 = vmatprep.subr.bf16.mxu0 0
    %2698 = vmatpush1.bf16.msra.mxu0 %v1957
    %2699 = vmatprep.subr.bf16.mxu0 0
    %2700 = vmatpush1.bf16.msra.mxu0 %v1958
    %2701 = vmatprep.subr.bf16.mxu0 0
    %2702 = vmatpush1.bf16.msra.mxu0 %v1959
    %2703 = vmatprep.subr.bf16.mxu0 0
    %2704 = vmatpush1.bf16.msra.mxu0 %v1960
    %2705 = vmatprep.mubr.bf16.mxu0 %v694
    %2706 = vmatmul.mubr.bf16.gmra.mrb[0].mxu0 %v692
    %v2707 = vpop.f32.mrb[0].mxu0
    %v2708 = vadd.f32 %v2668, %v2707
    %v2709 = vpop.f32.mrb[0].mxu0
    %v2710 = vpop.f32.mrb[0].mxu0
    %v2711 = vpop.f32.mrb[0].mxu0
    %2712 = vdwg.mxu0
    %2713 = vmatprep.subr.bf16.mxu0 0
    %2714 = vmatpush1.bf16.msra.mxu0 %v1961
    %2715 = vmatprep.subr.bf16.mxu0 0
    %2716 = vmatpush1.bf16.msra.mxu0 %v1962
    %2717 = vmatprep.subr.bf16.mxu0 0
    %2718 = vmatpush1.bf16.msra.mxu0 %v1963
    %2719 = vmatprep.subr.bf16.mxu0 0
    %2720 = vmatpush1.bf16.msra.mxu0 %v1964
    %2721 = vmatprep.subr.bf16.mxu0 0
    %2722 = vmatpush1.bf16.msra.mxu0 %v1965
    %2723 = vmatprep.subr.bf16.mxu0 0
    %2724 = vmatpush1.bf16.msra.mxu0 %v1966
    %2725 = vmatprep.subr.bf16.mxu0 0
    %2726 = vmatpush1.bf16.msra.mxu0 %v1967
    %2727 = vmatprep.subr.bf16.mxu0 0
    %2728 = vmatpush1.bf16.msra.mxu0 %v1968
    %2729 = vmatprep.subr.bf16.mxu0 0
    %2730 = vmatpush1.bf16.msra.mxu0 %v1969
    %2731 = vmatprep.subr.bf16.mxu0 0
    %2732 = vmatpush1.bf16.msra.mxu0 %v1970
    %2733 = vmatprep.subr.bf16.mxu0 0
    %2734 = vmatpush1.bf16.msra.mxu0 %v1971
    %2735 = vmatprep.subr.bf16.mxu0 0
    %2736 = vmatpush1.bf16.msra.mxu0 %v1972
    %2737 = vmatprep.subr.bf16.mxu0 0
    %2738 = vmatpush1.bf16.msra.mxu0 %v1973
    %2739 = vmatprep.subr.bf16.mxu0 0
    %2740 = vmatpush1.bf16.msra.mxu0 %v1974
    %2741 = vmatprep.subr.bf16.mxu0 0
    %2742 = vmatpush1.bf16.msra.mxu0 %v1975
    %2743 = vmatprep.subr.bf16.mxu0 0
    %2744 = vmatpush1.bf16.msra.mxu0 %v1976
    %2745 = vmatprep.mubr.bf16.mxu0 %v691
    %2746 = vmatmul.mubr.bf16.gmra.mrb[0].mxu0 %v677
    %v2747 = vpop.f32.mrb[0].mxu0
    %v2748 = vadd.f32 %v2708, %v2747
    %v2749 = vpop.f32.mrb[0].mxu0
    %v2750 = vpop.f32.mrb[0].mxu0
    %v2751 = vpop.f32.mrb[0].mxu0
    %2752 = vdwg.mxu0
    %2753 = vmatprep.subr.bf16.mxu0 0
    %2754 = vmatpush1.bf16.msra.mxu0 %v1977
    %2755 = vmatprep.subr.bf16.mxu0 0
    %2756 = vmatpush1.bf16.msra.mxu0 %v1978
    %2757 = vmatprep.subr.bf16.mxu0 0
    %2758 = vmatpush1.bf16.msra.mxu0 %v1979
    %2759 = vmatprep.subr.bf16.mxu0 0
    %2760 = vmatpush1.bf16.msra.mxu0 %v1980
    %2761 = vmatprep.subr.bf16.mxu0 0
    %2762 = vmatpush1.bf16.msra.mxu0 %v1981
    %2763 = vmatprep.subr.bf16.mxu0 0
    %2764 = vmatpush1.bf16.msra.mxu0 %v1982
    %2765 = vmatprep.subr.bf16.mxu0 0
    %2766 = vmatpush1.bf16.msra.mxu0 %v1983
    %2767 = vmatprep.subr.bf16.mxu0 0
    %2768 = vmatpush1.bf16.msra.mxu0 %v1984
    %2769 = vmatprep.subr.bf16.mxu0 0
    %2770 = vmatpush1.bf16.msra.mxu0 %v1985
    %2771 = vmatprep.subr.bf16.mxu0 0
    %2772 = vmatpush1.bf16.msra.mxu0 %v1986
    %2773 = vmatprep.subr.bf16.mxu0 0
    %2774 = vmatpush1.bf16.msra.mxu0 %v1987
    %2775 = vmatprep.subr.bf16.mxu0 0
    %2776 = vmatpush1.bf16.msra.mxu0 %v1988
    %2777 = vmatprep.subr.bf16.mxu0 0
    %2778 = vmatpush1.bf16.msra.mxu0 %v1989
    %2779 = vmatprep.subr.bf16.mxu0 0
    %2780 = vmatpush1.bf16.msra.mxu0 %v1990
    %2781 = vmatprep.subr.bf16.mxu0 0
    %2782 = vmatpush1.bf16.msra.mxu0 %v1991
    %2783 = vmatprep.subr.bf16.mxu0 0
    %2784 = vmatpush1.bf16.msra.mxu0 %v1992
    %2785 = vmatprep.mubr.bf16.mxu0 %v695
    %2786 = vmatmul.mubr.bf16.gmra.mrb[0].mxu0 %v693
    %v2787 = vpop.f32.mrb[0].mxu0
    %v2788 = vadd.f32 %v2748, %v2787
    %v2789 = vpop.f32.mrb[0].mxu0
    %v2790 = vpop.f32.mrb[0].mxu0
    %v2791 = vpop.f32.mrb[0].mxu0
    %2792 = vdwg.mxu0
    %2793 = vmatprep.subr.bf16.mxu0 0
    %2794 = vmatpush1.bf16.msra.mxu0 %v1993
    %2795 = vmatprep.subr.bf16.mxu0 0
    %2796 = vmatpush1.bf16.msra.mxu0 %v1994
    %2797 = vmatprep.subr.bf16.mxu0 0
    %2798 = vmatpush1.bf16.msra.mxu0 %v1995
    %2799 = vmatprep.subr.bf16.mxu0 0
    %2800 = vmatpush1.bf16.msra.mxu0 %v1996
    %2801 = vmatprep.subr.bf16.mxu0 0
    %2802 = vmatpush1.bf16.msra.mxu0 %v1997
    %2803 = vmatprep.subr.bf16.mxu0 0
    %2804 = vmatpush1.bf16.msra.mxu0 %v1998
    %2805 = vmatprep.subr.bf16.mxu0 0
    %2806 = vmatpush1.bf16.msra.mxu0 %v1999
    %2807 = vmatprep.subr.bf16.mxu0 0
    %2808 = vmatpush1.bf16.msra.mxu0 %v2000
    %2809 = vmatprep.subr.bf16.mxu0 0
    %2810 = vmatpush1.bf16.msra.mxu0 %v2001
    %2811 = vmatprep.subr.bf16.mxu0 0
    %2812 = vmatpush1.bf16.msra.mxu0 %v2002
    %2813 = vmatprep.subr.bf16.mxu0 0
    %2814 = vmatpush1.bf16.msra.mxu0 %v2003
    %2815 = vmatprep.subr.bf16.mxu0 0
    %2816 = vmatpush1.bf16.msra.mxu0 %v2004
    %2817 = vmatprep.subr.bf16.mxu0 0
    %2818 = vmatpush1.bf16.msra.mxu0 %v2005
    %2819 = vmatprep.subr.bf16.mxu0 0
    %2820 = vmatpush1.bf16.msra.mxu0 %v2006
    %2821 = vmatprep.subr.bf16.mxu0 0
    %2822 = vmatpush1.bf16.msra.mxu0 %v2007
    %2823 = vmatprep.subr.bf16.mxu0 0
    %2824 = vmatpush1.bf16.msra.mxu0 %v2008
    %2825 = vmatprep.mubr.bf16.mxu0 %v733
    %2826 = vmatmul.mubr.bf16.gmra.mrb[0].mxu0 %v719
    %v2827 = vpop.f32.mrb[0].mxu0
    %v2828 = vadd.f32 %v2788, %v2827
    %v2829 = vpop.f32.mrb[0].mxu0
    %v2830 = vpop.f32.mrb[0].mxu0
    %v2831 = vpop.f32.mrb[0].mxu0
    %2832 = vdwg.mxu0
    %2833 = vmatprep.subr.bf16.mxu0 0
    %2834 = vmatpush1.bf16.msra.mxu0 %v2009
    %2835 = vmatprep.subr.bf16.mxu0 0
    %2836 = vmatpush1.bf16.msra.mxu0 %v2010
    %2837 = vmatprep.subr.bf16.mxu0 0
    %2838 = vmatpush1.bf16.msra.mxu0 %v2011
    %2839 = vmatprep.subr.bf16.mxu0 0
    %2840 = vmatpush1.bf16.msra.mxu0 %v2012
    %2841 = vmatprep.subr.bf16.mxu0 0
    %2842 = vmatpush1.bf16.msra.mxu0 %v2013
    %2843 = vmatprep.subr.bf16.mxu0 0
    %2844 = vmatpush1.bf16.msra.mxu0 %v2014
    %2845 = vmatprep.subr.bf16.mxu0 0
    %2846 = vmatpush1.bf16.msra.mxu0 %v2015
    %2847 = vmatprep.subr.bf16.mxu0 0
    %2848 = vmatpush1.bf16.msra.mxu0 %v2016
    %2849 = vmatprep.subr.bf16.mxu0 0
    %2850 = vmatpush1.bf16.msra.mxu0 %v2017
    %2851 = vmatprep.subr.bf16.mxu0 0
    %2852 = vmatpush1.bf16.msra.mxu0 %v2018
    %2853 = vmatprep.subr.bf16.mxu0 0
    %2854 = vmatpush1.bf16.msra.mxu0 %v2019
    %2855 = vmatprep.subr.bf16.mxu0 0
    %2856 = vmatpush1.bf16.msra.mxu0 %v2020
    %2857 = vmatprep.subr.bf16.mxu0 0
    %2858 = vmatpush1.bf16.msra.mxu0 %v2021
    %2859 = vmatprep.subr.bf16.mxu0 0
    %2860 = vmatpush1.bf16.msra.mxu0 %v2022
    %2861 = vmatprep.subr.bf16.mxu0 0
    %2862 = vmatpush1.bf16.msra.mxu0 %v2023
    %2863 = vmatprep.subr.bf16.mxu0 0
    %2864 = vmatpush1.bf16.msra.mxu0 %v2024
    %2865 = vmatprep.mubr.bf16.mxu0 %v743
    %2866 = vmatmul.mubr.bf16.gmra.mrb[0].mxu0 %v741
    %v2867 = vpop.f32.mrb[0].mxu0
    %v2868 = vadd.f32 %v2828, %v2867
    %v2869 = vpop.f32.mrb[0].mxu0
    %v2870 = vpop.f32.mrb[0].mxu0
    %v2871 = vpop.f32.mrb[0].mxu0
    %2872 = vdwg.mxu0
    %2873 = vmatprep.subr.bf16.mxu0 0
    %2874 = vmatpush1.bf16.msra.mxu0 %v2025
    %2875 = vmatprep.subr.bf16.mxu0 0
    %2876 = vmatpush1.bf16.msra.mxu0 %v2026
    %2877 = vmatprep.subr.bf16.mxu0 0
    %2878 = vmatpush1.bf16.msra.mxu0 %v2027
    %2879 = vmatprep.subr.bf16.mxu0 0
    %2880 = vmatpush1.bf16.msra.mxu0 %v2028
    %2881 = vmatprep.subr.bf16.mxu0 0
    %2882 = vmatpush1.bf16.msra.mxu0 %v2029
    %2883 = vmatprep.subr.bf16.mxu0 0
    %2884 = vmatpush1.bf16.msra.mxu0 %v2030
    %2885 = vmatprep.subr.bf16.mxu0 0
    %2886 = vmatpush1.bf16.msra.mxu0 %v2031
    %2887 = vmatprep.subr.bf16.mxu0 0
    %2888 = vmatpush1.bf16.msra.mxu0 %v2032
    %2889 = vmatprep.subr.bf16.mxu0 0
    %2890 = vmatpush1.bf16.msra.mxu0 %v2033
    %2891 = vmatprep.subr.bf16.mxu0 0
    %2892 = vmatpush1.bf16.msra.mxu0 %v2034
    %2893 = vmatprep.subr.bf16.mxu0 0
    %2894 = vmatpush1.bf16.msra.mxu0 %v2035
    %2895 = vmatprep.subr.bf16.mxu0 0
    %2896 = vmatpush1.bf16.msra.mxu0 %v2036
    %2897 = vmatprep.subr.bf16.mxu0 0
    %2898 = vmatpush1.bf16.msra.mxu0 %v2037
    %2899 = vmatprep.subr.bf16.mxu0 0
    %2900 = vmatpush1.bf16.msra.mxu0 %v2038
    %2901 = vmatprep.subr.bf16.mxu0 0
    %2902 = vmatpush1.bf16.msra.mxu0 %v2039
    %2903 = vmatprep.subr.bf16.mxu0 0
    %2904 = vmatpush1.bf16.msra.mxu0 %v2040
    %2905 = vmatprep.mubr.bf16.mxu0 %v740
    %2906 = vmatmul.mubr.bf16.gmra.mrb[0].mxu0 %v726
    %v2907 = vpop.f32.mrb[0].mxu0
    %v2908 = vadd.f32 %v2868, %v2907
    %v2909 = vpop.f32.mrb[0].mxu0
    %v2910 = vpop.f32.mrb[0].mxu0
    %v2911 = vpop.f32.mrb[0].mxu0
    %2912 = vdwg.mxu0
    %2913 = vmatprep.subr.bf16.mxu0 0
    %2914 = vmatpush1.bf16.msra.mxu0 %v2041
    %2915 = vmatprep.subr.bf16.mxu0 0
    %2916 = vmatpush1.bf16.msra.mxu0 %v2042
    %2917 = vmatprep.subr.bf16.mxu0 0
    %2918 = vmatpush1.bf16.msra.mxu0 %v2043
    %2919 = vmatprep.subr.bf16.mxu0 0
    %2920 = vmatpush1.bf16.msra.mxu0 %v2044
    %2921 = vmatprep.subr.bf16.mxu0 0
    %2922 = vmatpush1.bf16.msra.mxu0 %v2045
    %2923 = vmatprep.subr.bf16.mxu0 0
    %2924 = vmatpush1.bf16.msra.mxu0 %v2046
    %2925 = vmatprep.subr.bf16.mxu0 0
    %2926 = vmatpush1.bf16.msra.mxu0 %v2047
    %2927 = vmatprep.subr.bf16.mxu0 0
    %2928 = vmatpush1.bf16.msra.mxu0 %v2048
    %2929 = vmatprep.subr.bf16.mxu0 0
    %2930 = vmatpush1.bf16.msra.mxu0 %v2049
    %2931 = vmatprep.subr.bf16.mxu0 0
    %2932 = vmatpush1.bf16.msra.mxu0 %v2050
    %2933 = vmatprep.subr.bf16.mxu0 0
    %2934 = vmatpush1.bf16.msra.mxu0 %v2051
    %2935 = vmatprep.subr.bf16.mxu0 0
    %2936 = vmatpush1.bf16.msra.mxu0 %v2052
    %2937 = vmatprep.subr.bf16.mxu0 0
    %2938 = vmatpush1.bf16.msra.mxu0 %v2053
    %2939 = vmatprep.subr.bf16.mxu0 0
    %2940 = vmatpush1.bf16.msra.mxu0 %v2054
    %2941 = vmatprep.subr.bf16.mxu0 0
    %2942 = vmatpush1.bf16.msra.mxu0 %v2055
    %2943 = vmatprep.subr.bf16.mxu0 0
    %2944 = vmatpush1.bf16.msra.mxu0 %v2056
    %2945 = vmatprep.mubr.bf16.mxu0 %v744
    %2946 = vmatmul.mubr.bf16.gmra.mrb[0].mxu0 %v742
    %v2947 = vpop.f32.mrb[0].mxu0
    %v2948 = vadd.f32 %v2908, %v2947
    %v2949 = vpop.f32.mrb[0].mxu0
    %v2950 = vpop.f32.mrb[0].mxu0
    %v2951 = vpop.f32.mrb[0].mxu0
    %2952 = vdwg.mxu0
    %v2953 = vmax.f32 %v2948, 0.0
    %v2954 = vpack.c.bf16 %v2953, %v2953
    %v2955 = vld [vmem:[%s3] sm:$0xf]
    %v2956 = vld [vmem:[%s3 + $0x4] sm:$0xf]
    %v2957 = vld [vmem:[%s3 + $0x8] sm:$0xf]
    %v2958 = vld [vmem:[%s3 + $0xc] sm:$0xf]
    %v2959 = vld [vmem:[%s3 + $0x10] sm:$0xf]
    %v2960 = vld [vmem:[%s3 + $0x14] sm:$0xf]
    %v2961 = vld [vmem:[%s3 + $0x18] sm:$0xf]
    %v2962 = vld [vmem:[%s3 + $0x1c] sm:$0xf]
    %v2963 = vld [vmem:[%s3 + $0x20] sm:$0xf]
    %v2964 = vld [vmem:[%s3 + $0x24] sm:$0xf]
    %v2965 = vld [vmem:[%s3 + $0x28] sm:$0xf]
    %v2966 = vld [vmem:[%s3 + $0x2c] sm:$0xf]
    %v2967 = vld [vmem:[%s3 + $0x30] sm:$0xf]
    %v2968 = vld [vmem:[%s3 + $0x34] sm:$0xf]
    %v2969 = vld [vmem:[%s3 + $0x38] sm:$0xf]
    %v2970 = vld [vmem:[%s3 + $0x3c] sm:$0xf]
    %v2971 = vld [vmem:[%s4] sm:$0x1]
    %v2973 = vlaneseq
    %v2974 = vshrl.u32 %v2973, 7
    %v2975 = vsub.s32 0, %v2974
    %v2976 = vrot.slane %v2971, %v2975
    %v2994 = vunpack.c.l.b16 %v2955
    %v2995 = vunpack.c.l.b16 %v2956
    %v2996 = vunpack.c.l.b16 %v2957
    %v2997 = vunpack.c.l.b16 %v2958
    %v2998 = vunpack.c.l.b16 %v2959
    %v2999 = vunpack.c.l.b16 %v2960
    %v3000 = vunpack.c.l.b16 %v2961
    %v3001 = vunpack.c.l.b16 %v2962
    %v3002 = vunpack.c.l.b16 %v2963
    %v3003 = vunpack.c.l.b16 %v2964
    %v3004 = vunpack.c.l.b16 %v2965
    %v3005 = vunpack.c.l.b16 %v2966
    %v3006 = vunpack.c.l.b16 %v2967
    %v3007 = vunpack.c.l.b16 %v2968
    %v3008 = vunpack.c.l.b16 %v2969
    %v3009 = vunpack.c.l.b16 %v2970
    %v3010 = vpack.c.b16 %v2995, %v2994
    %v3011 = vpack.c.b16 %v2997, %v2996
    %v3012 = vpack.c.b16 %v2999, %v2998
    %v3013 = vpack.c.b16 %v3001, %v3000
    %v3014 = vpack.c.b16 %v3003, %v3002
    %v3015 = vpack.c.b16 %v3005, %v3004
    %v3016 = vpack.c.b16 %v3007, %v3006
    %v3017 = vpack.c.b16 %v3009, %v3008
    %3026 = vmatprep.subr.bf16.mxu0 0
    %3027 = vmatpush1.bf16.msra.mxu0 %v3010
    %3028 = vmatprep.subr.bf16.mxu0 0
    %3029 = vmatpush1.bf16.msra.mxu0 %v3011
    %3030 = vmatprep.subr.bf16.mxu0 0
    %3031 = vmatpush1.bf16.msra.mxu0 %v3012
    %3032 = vmatprep.subr.bf16.mxu0 0
    %3033 = vmatpush1.bf16.msra.mxu0 %v3013
    %3034 = vmatprep.subr.bf16.mxu0 0
    %3035 = vmatpush1.bf16.msra.mxu0 %v3014
    %3036 = vmatprep.subr.bf16.mxu0 0
    %3037 = vmatpush1.bf16.msra.mxu0 %v3015
    %3038 = vmatprep.subr.bf16.mxu0 0
    %3039 = vmatpush1.bf16.msra.mxu0 %v3016
    %3040 = vmatprep.subr.bf16.mxu0 0
    %3041 = vmatpush1.bf16.msra.mxu0 %v3017
    %3042 = vmatprep.subr.bf16.mxu0 0
    %3043 = vmatpush1.bf16.msra.mxu0 0
    %3044 = vmatprep.subr.bf16.mxu0 0
    %3045 = vmatpush1.bf16.msra.mxu0 0
    %3046 = vmatprep.subr.bf16.mxu0 0
    %3047 = vmatpush1.bf16.msra.mxu0 0
    %3048 = vmatprep.subr.bf16.mxu0 0
    %3049 = vmatpush1.bf16.msra.mxu0 0
    %3050 = vmatprep.subr.bf16.mxu0 0
    %3051 = vmatpush1.bf16.msra.mxu0 0
    %3052 = vmatprep.subr.bf16.mxu0 0
    %3053 = vmatpush1.bf16.msra.mxu0 0
    %3054 = vmatprep.subr.bf16.mxu0 0
    %3055 = vmatpush1.bf16.msra.mxu0 0
    %3056 = vmatprep.subr.bf16.mxu0 0
    %3057 = vmatpush1.bf16.msra.mxu0 0
    %3058 = vmatprep.mubr.bf16.mxu0 0
    %3059 = vmatmul.mubr.bf16.gmra.mrb[0].mxu0 %v2954
    %v3060 = vpop.f32.mrb[0].mxu0
    %v3061 = vadd.f32 %v2976, %v3060
    %v3062 = vpop.f32.mrb[0].mxu0
    %v3063 = vpop.f32.mrb[0].mxu0
    %v3064 = vpop.f32.mrb[0].mxu0
    %3065 = vdwg.mxu0
    %vm3066 = vcmask 74752
    %3067 = vst.msk [vmem:[#allocation2] sm:$0x3] %vm3066, %v3061
    // Predicated region
    $region22: #{cnn_forward.7} parent=1 // pred_check
      _
    $region23: #{cnn_forward.7} parent=1 // pred_check_branch
      %3069 = sbr.rel (0) target = $region25
    $region24: #{cnn_forward.7} parent=1 // pred_region
      %s3071 = ssub.s32 32, 32
      %3072 = vsyncadd [#allocation3], %s3071
      %s3074 = sshll.u32 [#allocation2], 4
      %s3075 = int_to_ptr.vmem [resolvable:$true] %s3074
      %3077 = dma.vmem_to_hbm [thread:$0]  %s3075, 32, %s5, [#allocation3]
    $region25: #{cnn_forward.7} parent=1 // pred_fallthru
      _
    // Predicated region
    $region26: #{cnn_forward.7} parent=1 // pred_check
      _
    $region27: #{cnn_forward.7} parent=1 // pred_check_branch
      %3079 = sbr.rel (0) target = $region29
    $region28: #{cnn_forward.7} parent=1 // pred_region
      %3080 = dma.done [#allocation3], 32
    $region29: #{cnn_forward.7} parent=1 // pred_fallthru
      _
    %3081 = vsyncpa [#allocation3], 1

</llo_original>
